<compile_context>
chip_gen: v7x
topology: tpu7x:2x2x1
jax: 0.10.0
libtpu: 0.0.40
codegen_flags: <defaults>
</compile_context>

<pallas_src>
import functools

import jax
import jax.numpy as jnp
from jax.experimental import pallas as pl
from jax.experimental.pallas import tpu as pltpu

LANE = 128


def _round_up(x, m):
    return (x + m - 1) // m * m


# ----------------------------- Encoder kernel ------------------------------ #
def encoder_kernel(patch_ref, pool_ref, wconv_ref, bconv_ref,
                   wfc_ref, bfc_ref, feat_ref, acc_ref):
    i = pl.program_id(0)

    @pl.when(i == 0)
    def _():
        acc_ref[...] = jnp.zeros_like(acc_ref)

    # conv-as-GEMM for this row tile + ReLU.
    conv = jnp.dot(patch_ref[...], wconv_ref[...],
                   preferred_element_type=jnp.float32)
    conv = jnp.maximum(conv + bconv_ref[...], 0.0)

    # Global average pool expressed as a matmul (MXU, not an XLU reduce);
    # per-image partial sums accumulate across row tiles.
    acc_ref[...] += jnp.dot(pool_ref[...], conv,
                            preferred_element_type=jnp.float32)

    @pl.when(i == pl.num_programs(0) - 1)
    def _():
        feat = jnp.dot(acc_ref[...], wfc_ref[...],
                       preferred_element_type=jnp.float32) + bfc_ref[...]
        # EncoderCNN: relu(fc(...)); dropout is identity in eval mode.
        feat_ref[...] = jnp.maximum(feat, 0.0)


def encoder_forward(pp, images_nchw):
    B, C, H, W = images_nchw.shape
    KH = KW = 3
    K = KH * KW * C
    HW = H * W
    Kp, Fp = pp["wconv"].shape
    Ep = pp["wfc"].shape[1]

    # Glue: NCHW -> NHWC, pad, im2col (the conv GEMM itself runs in the kernel).
    # TODO(synk): at production image sizes replace this wrapper im2col (9x HBM
    # blow-up) with an in-kernel shifted-accumulate conv over NHWC tiles.
    x = jnp.transpose(images_nchw, (0, 2, 3, 1))
    xp = jnp.pad(x, ((0, 0), (1, 1), (1, 1), (0, 0)))
    pats = [xp[:, kh:kh + H, kw:kw + W, :] for kh in range(KH) for kw in range(KW)]
    patches = jnp.concatenate(pats, axis=-1).reshape(B * HW, K)
    patches = jnp.pad(patches, ((0, 0), (0, Kp - K)))        # lane-pad K -> Kp

    # Per-image mean-pool matrix: pooled = pool @ relu(conv).
    pool = jnp.kron(jnp.eye(B, dtype=jnp.float32),
                    jnp.full((1, HW), 1.0 / HW, jnp.float32))  # (B, B*HW)

    rows = B * HW
    tm = 256 if rows % 256 == 0 else rows                    # one big row-tiled GEMM
    grid = (rows // tm,)

    feat = pl.pallas_call(
        encoder_kernel,
        out_shape=jax.ShapeDtypeStruct((B, Ep), jnp.float32),
        grid=grid,
        in_specs=[
            pl.BlockSpec((tm, Kp), lambda i: (i, 0)),
            pl.BlockSpec((B, tm), lambda i: (0, i)),
            pl.BlockSpec((Kp, Fp), lambda i: (0, 0)),
            pl.BlockSpec((1, Fp), lambda i: (0, 0)),
            pl.BlockSpec((Fp, Ep), lambda i: (0, 0)),
            pl.BlockSpec((1, Ep), lambda i: (0, 0)),
        ],
        out_specs=pl.BlockSpec((B, Ep), lambda i: (0, 0)),
        scratch_shapes=[pltpu.VMEM((B, Fp), jnp.float32)],
        compiler_params=pltpu.CompilerParams(dimension_semantics=("arbitrary",)),
    )(patches, pool, pp["wconv"], pp["bconv"], pp["wfc"], pp["bfc"])
    return feat                                               # (B, Ep), pad cols are 0


# --------------------------- Decoder LSTM kernel ---------------------------- #
def make_lstm_kernel(L, T, B, Ep, Hp):
    def kernel(*refs):
        x_ref = refs[0]                        # (T*B, Ep)
        lstm_refs = refs[1:1 + 3 * L]          # per layer: wih, whh, b
        h_out_ref = refs[1 + 3 * L]            # (T*B, Hp)

        # Hoist the layer-0 input projection out of the recurrence:
        # one (T*B, Ep) x (Ep, 4Hp) GEMM instead of T tiny matmuls.
        xg0 = (jnp.dot(x_ref[...], lstm_refs[0][...],
                       preferred_element_type=jnp.float32) + lstm_refs[2][...])

        h = [jnp.zeros((B, Hp), jnp.float32) for _ in range(L)]
        c = [jnp.zeros((B, Hp), jnp.float32) for _ in range(L)]

        def cell(gates, h_prev, c_prev):
            # PyTorch LSTM gate order: input, forget, cell(g), output.
            # Hp is a multiple of 128 so every gate slice is lane-aligned.
            i_g = jax.nn.sigmoid(gates[:, 0 * Hp:1 * Hp])
            f_g = jax.nn.sigmoid(gates[:, 1 * Hp:2 * Hp])
            g_g = jnp.tanh(gates[:, 2 * Hp:3 * Hp])
            o_g = jax.nn.sigmoid(gates[:, 3 * Hp:4 * Hp])
            c_new = f_g * c_prev + i_g * g_g
            h_new = o_g * jnp.tanh(c_new)
            return h_new, c_new

        # T is small and static -> full unroll (scheduler visibility).
        # TODO(synk): for long sequences, block T over a grid axis with (h, c)
        # kept in VMEM scratch, and shard batch over cores on v7x.
        for t in range(T):
            x_in = None
            for l in range(L):
                whh = lstm_refs[3 * l + 1][...]
                if l == 0:
                    gates = xg0[t * B:(t + 1) * B, :] + jnp.dot(
                        h[0], whh, preferred_element_type=jnp.float32)
                else:
                    gates = (jnp.dot(x_in, lstm_refs[3 * l][...],
                                     preferred_element_type=jnp.float32)
                             + jnp.dot(h[l], whh, preferred_element_type=jnp.float32)
                             + lstm_refs[3 * l + 2][...])
                h[l], c[l] = cell(gates, h[l], c[l])
                x_in = h[l]
            h_out_ref[t * B:(t + 1) * B, :] = h[L - 1]
    return kernel


# ----------------------- Vocab projection kernel (V-tiled) ------------------ #
def proj_kernel(h_ref, w_ref, b_ref, o_ref):
    o_ref[...] = (jnp.dot(h_ref[...], w_ref[...],
                          preferred_element_type=jnp.float32) + b_ref[...])


def vocab_projection(h_flat, wout, bout):
    M, Hp = h_flat.shape
    Vp = wout.shape[1]
    tn = 512 if Vp % 512 == 0 else 128
    # TODO(synk): at production sizes also tile M (rows) and Hp (reduction).
    return pl.pallas_call(
        proj_kernel,
        out_shape=jax.ShapeDtypeStruct((M, Vp), jnp.float32),
        grid=(Vp // tn,),
        in_specs=[
            pl.BlockSpec((M, Hp), lambda j: (0, 0)),
            pl.BlockSpec((Hp, tn), lambda j: (0, j)),
            pl.BlockSpec((1, tn), lambda j: (0, j)),
        ],
        out_specs=pl.BlockSpec((M, tn), lambda j: (0, j)),
        compiler_params=pltpu.CompilerParams(dimension_semantics=("parallel",)),
    )(h_flat, wout, bout)


def decoder_forward(pp, features_p, captions, vocab_size):
    # captions: (seq_len, B) int32; features_p: (B, Ep)
    emb = jnp.take(pp["embed"], captions, axis=0)             # (seq_len, B, Ep)
    # dropout on embeddings: eval-mode identity
    x = jnp.concatenate([features_p[None], emb], axis=0)      # (T, B, Ep)
    T, B, Ep = x.shape
    L = len(pp["lstm"])
    Hp = pp["lstm"][0]["whh"].shape[0]
    Vp = pp["wout"].shape[1]

    lstm_args = []
    for lp in pp["lstm"]:
        lstm_args += [lp["wih"], lp["whh"], lp["b"]]

    # Whole recurrence in one kernel call (everything fits VMEM at these sizes).
    h_flat = pl.pallas_call(
        make_lstm_kernel(L, T, B, Ep, Hp),
        out_shape=jax.ShapeDtypeStruct((T * B, Hp), jnp.float32),
    )(x.reshape(T * B, Ep), *lstm_args)

    # Output projection split out of the recurrence: one (T*B, Hp) x (Hp, Vp) GEMM.
    logits_p = vocab_projection(h_flat, pp["wout"], pp["bout"])    # (T*B, Vp)
    return logits_p.reshape(T, B, Vp)[:, :, :vocab_size]


# ------------------------------ Full forward ------------------------------- #
@functools.partial(jax.jit, static_argnums=(3,))
def cnn_to_rnn_forward(padded_params, images, captions, vocab_size):
    features = encoder_forward(padded_params, images)
    return decoder_forward(padded_params, features, captions, vocab_size)


# ------------------------------- Parameters -------------------------------- #
def init_params(key, embed_size, hidden_size, vocab_size, num_layers,
                in_channels=3, conv_channels=16):
    keys = jax.random.split(key, 7 + num_layers)
    s = 0.1
    params = {
        "wconv": s * jax.random.normal(keys[0], (9 * in_channels, conv_channels), jnp.float32),
        "bconv": s * jax.random.normal(keys[1], (1, conv_channels), jnp.float32),
        "wfc":   s * jax.random.normal(keys[2], (conv_channels, embed_size), jnp.float32),
        "bfc":   s * jax.random.normal(keys[3], (1, embed_size), jnp.float32),
        "embed": s * jax.random.normal(keys[4], (vocab_size, embed_size), jnp.float32),
        "wout":  s * jax.random.normal(keys[5], (hidden_size, vocab_size), jnp.float32),
        "bout":  s * jax.random.normal(keys[6], (1, vocab_size), jnp.float32),
    }
    lstm = []
    for l in range(num_layers):
        kin = embed_size if l == 0 else hidden_size
        k1, k2, k3 = jax.random.split(keys[7 + l], 3)
        lstm.append({
            # NOTE: PyTorch nn.LSTM has b_ih + b_hh; sum them into "b" when porting.
            "wih": s * jax.random.normal(k1, (kin, 4 * hidden_size), jnp.float32),
            "whh": s * jax.random.normal(k2, (hidden_size, 4 * hidden_size), jnp.float32),
            "b":   s * jax.random.normal(k3, (1, 4 * hidden_size), jnp.float32),
        })
    params["lstm"] = lstm
    return params


def pad_params(params):
    """Zero-pad every feature dim to a multiple of 128 (lane width).

    Zero padding keeps the forward math exact: padded activations stay zero
    through conv/relu/fc, and padded LSTM gate columns have zero weights+bias so
    the padded hidden/cell entries stay exactly zero at every timestep.
    """
    K, F = params["wconv"].shape
    E = params["wfc"].shape[1]
    H = params["lstm"][0]["whh"].shape[0]
    V = params["wout"].shape[1]
    Kp, Fp, Ep, Hp, Vp = (_round_up(d, LANE) for d in (K, F, E, H, V))

    def pad2(a, r, c):
        return jnp.pad(a, ((0, r - a.shape[0]), (0, c - a.shape[1])))

    def pad_gates(w, rows_p):
        r = w.shape[0]
        w = w.reshape(r, 4, H)                     # gate-major (i, f, g, o)
        w = jnp.pad(w, ((0, rows_p - r), (0, 0), (0, Hp - H)))
        return w.reshape(rows_p, 4 * Hp)

    pp = {
        "wconv": pad2(params["wconv"], Kp, Fp),
        "bconv": pad2(params["bconv"], 1, Fp),
        "wfc":   pad2(params["wfc"], Fp, Ep),
        "bfc":   pad2(params["bfc"], 1, Ep),
        "embed": pad2(params["embed"], V, Ep),     # rows indexed by token id: keep V
        "wout":  pad2(params["wout"], Hp, Vp),
        "bout":  pad2(params["bout"], 1, Vp),
        "lstm":  [],
    }
    for l, lp in enumerate(params["lstm"]):
        rows_p = Ep if l == 0 else Hp
        pp["lstm"].append({
            "wih": pad_gates(lp["wih"], rows_p),
            "whh": pad_gates(lp["whh"], Hp),
            "b":   pad_gates(lp["b"], 1),
        })
    return pp


if __name__ == "__main__":
    B, C, Himg, Wimg = 2, 3, 16, 16
    embed_size, hidden_size, vocab_size, num_layers = 32, 32, 64, 2
    seq_len = 8

    key = jax.random.PRNGKey(0)
    k_img, k_cap, k_par = jax.random.split(key, 3)

    images = jax.random.normal(k_img, (B, C, Himg, Wimg), jnp.float32)    # NCHW like torch
    captions = jax.random.randint(k_cap, (seq_len, B), 0, vocab_size, jnp.int32)
    params = init_params(k_par, embed_size, hidden_size, vocab_size, num_layers,
                         in_channels=C)
    padded = pad_params(params)

    out = cnn_to_rnn_forward(padded, images, captions, vocab_size)
    out = jax.block_until_ready(out)
    assert out.shape == (seq_len + 1, B, vocab_size), out.shape
    assert bool(jnp.all(jnp.isfinite(out)))
    print("KERNEL_OK")
</pallas_src>

<mosaic_0001>
module attributes {stable_mosaic.version = 11 : i64} {
  func.func @encoder_kernel(%arg0: i32, %arg1: memref<256x128xf32, #tpu.memory_space<vmem>>, %arg2: memref<2x256xf32, #tpu.memory_space<vmem>>, %arg3: memref<128x128xf32, #tpu.memory_space<vmem>>, %arg4: memref<1x128xf32, #tpu.memory_space<vmem>>, %arg5: memref<128x128xf32, #tpu.memory_space<vmem>>, %arg6: memref<1x128xf32, #tpu.memory_space<vmem>>, %arg7: memref<2x128xf32, #tpu.memory_space<vmem>>, %arg8: memref<2x128xf32, #tpu.memory_space<vmem>>) attributes {dimension_semantics = [#tpu.dimension_semantics<arbitrary>], iteration_bounds = array<i64: 2>, scalar_prefetch = 0 : i64, scratch_operands = 1 : i64, tpu.core_type = #tpu.core_type<tc>, window_params = [{transform_indices = @transform_0, window_bounds = array<i64: 256, 128>}, {transform_indices = @transform_1, window_bounds = array<i64: 2, 256>}, {pipeline_mode = #tpu.pipeline_mode<synchronous>, transform_indices = @transform_2, window_bounds = array<i64: 128, 128>}, {pipeline_mode = #tpu.pipeline_mode<synchronous>, transform_indices = @transform_3, window_bounds = array<i64: 1, 128>}, {pipeline_mode = #tpu.pipeline_mode<synchronous>, transform_indices = @transform_4, window_bounds = array<i64: 128, 128>}, {pipeline_mode = #tpu.pipeline_mode<synchronous>, transform_indices = @transform_5, window_bounds = array<i64: 1, 128>}, {pipeline_mode = #tpu.pipeline_mode<synchronous>, transform_indices = @transform_6, window_bounds = array<i64: 2, 128>}]} {
    %c0_i32 = arith.constant 0 : i32
    %0 = arith.cmpi eq, %arg0, %c0_i32 : i32
    %1 = arith.extui %0 : i1 to i32
    %c0_i32_0 = arith.constant 0 : i32
    %2 = arith.cmpi ne, %1, %c0_i32_0 : i32
    scf.if %2 {
      %cst_15 = arith.constant 0.000000e+00 : f32
      %19 = vector.broadcast %cst_15 : f32 to vector<2x128xf32>
      %c0_16 = arith.constant 0 : index
      %c0_17 = arith.constant 0 : index
      %20 = vector.load %arg8[%c0_16, %c0_17] : memref<2x128xf32, #tpu.memory_space<vmem>>, vector<2x128xf32>
      tpu.vector_store %arg8[%c0_16, %c0_17], %19 {strides = array<i32>} : memref<2x128xf32, #tpu.memory_space<vmem>>, vector<2x128xf32>,
    } else {
    }
    %c0 = arith.constant 0 : index
    %c0_1 = arith.constant 0 : index
    %3 = vector.load %arg1[%c0, %c0_1] : memref<256x128xf32, #tpu.memory_space<vmem>>, vector<256x128xf32>
    %c0_2 = arith.constant 0 : index
    %c0_3 = arith.constant 0 : index
    %4 = vector.load %arg3[%c0_2, %c0_3] : memref<128x128xf32, #tpu.memory_space<vmem>>, vector<128x128xf32>
    %cst = arith.constant dense<0.000000e+00> : vector<256x128xf32>
    %5 = tpu.matmul %3, %4, %cst {dimension_numbers = #tpu.dot_dimension_numbers<[1], [0], [0], [1], [0, 0, 1, 1], [], []>} : vector<256x128xf32>, vector<128x128xf32>, vector<256x128xf32> -> vector<256x128xf32>
    %c0_4 = arith.constant 0 : index
    %c0_5 = arith.constant 0 : index
    %6 = vector.load %arg4[%c0_4, %c0_5] : memref<1x128xf32, #tpu.memory_space<vmem>>, vector<1x128xf32>
    %7 = vector.broadcast %6 : vector<1x128xf32> to vector<256x128xf32>
    %8 = arith.addf %5, %7 : vector<256x128xf32>
    %cst_6 = arith.constant 0.000000e+00 : f32
    %9 = vector.broadcast %cst_6 : f32 to vector<256x128xf32>
    %10 = arith.maximumf %8, %9 : vector<256x128xf32>
    %c0_7 = arith.constant 0 : index
    %c0_8 = arith.constant 0 : index
    %11 = vector.load %arg8[%c0_7, %c0_8] : memref<2x128xf32, #tpu.memory_space<vmem>>, vector<2x128xf32>
    %c0_9 = arith.constant 0 : index
    %c0_10 = arith.constant 0 : index
    %12 = vector.load %arg2[%c0_9, %c0_10] : memref<2x256xf32, #tpu.memory_space<vmem>>, vector<2x256xf32>
    %cst_11 = arith.constant dense<0.000000e+00> : vector<2x128xf32>
    %13 = tpu.matmul %12, %10, %cst_11 {dimension_numbers = #tpu.dot_dimension_numbers<[1], [0], [0], [1], [0, 0, 1, 1], [], []>} : vector<2x256xf32>, vector<256x128xf32>, vector<2x128xf32> -> vector<2x128xf32>
    %14 = arith.addf %11, %13 : vector<2x128xf32>
    %c0_12 = arith.constant 0 : index
    %c0_13 = arith.constant 0 : index
    %15 = vector.load %arg8[%c0_12, %c0_13] : memref<2x128xf32, #tpu.memory_space<vmem>>, vector<2x128xf32>
    tpu.vector_store %arg8[%c0_12, %c0_13], %14 {strides = array<i32>} : memref<2x128xf32, #tpu.memory_space<vmem>>, vector<2x128xf32>,
    %c1_i32 = arith.constant 1 : i32
    %16 = arith.cmpi eq, %arg0, %c1_i32 : i32
    %17 = arith.extui %16 : i1 to i32
    %c0_i32_14 = arith.constant 0 : i32
    %18 = arith.cmpi ne, %17, %c0_i32_14 : i32
    scf.if %18 {
      %c0_15 = arith.constant 0 : index
      %c0_16 = arith.constant 0 : index
      %19 = vector.load %arg8[%c0_15, %c0_16] : memref<2x128xf32, #tpu.memory_space<vmem>>, vector<2x128xf32>
      %c0_17 = arith.constant 0 : index
      %c0_18 = arith.constant 0 : index
      %20 = vector.load %arg5[%c0_17, %c0_18] : memref<128x128xf32, #tpu.memory_space<vmem>>, vector<128x128xf32>
      %cst_19 = arith.constant dense<0.000000e+00> : vector<2x128xf32>
      %21 = tpu.matmul %19, %20, %cst_19 {dimension_numbers = #tpu.dot_dimension_numbers<[1], [0], [0], [1], [0, 0, 1, 1], [], []>} : vector<2x128xf32>, vector<128x128xf32>, vector<2x128xf32> -> vector<2x128xf32>
      %c0_20 = arith.constant 0 : index
      %c0_21 = arith.constant 0 : index
      %22 = vector.load %arg6[%c0_20, %c0_21] : memref<1x128xf32, #tpu.memory_space<vmem>>, vector<1x128xf32>
      %23 = vector.broadcast %22 : vector<1x128xf32> to vector<2x128xf32>
      %24 = arith.addf %21, %23 : vector<2x128xf32>
      %cst_22 = arith.constant 0.000000e+00 : f32
      %25 = vector.broadcast %cst_22 : f32 to vector<2x128xf32>
      %26 = arith.maximumf %24, %25 : vector<2x128xf32>
      %c0_23 = arith.constant 0 : index
      %c0_24 = arith.constant 0 : index
      %27 = vector.load %arg7[%c0_23, %c0_24] : memref<2x128xf32, #tpu.memory_space<vmem>>, vector<2x128xf32>
      tpu.vector_store %arg7[%c0_23, %c0_24], %26 {strides = array<i32>} : memref<2x128xf32, #tpu.memory_space<vmem>>, vector<2x128xf32>,
    } else {
    }
    return
  }
  func.func @transform_0(%arg0: i32) -> (i32, i32) {
    %c0_i32 = arith.constant 0 : i32
    %c0_i32_0 = arith.constant 0 : i32
    return %arg0, %c0_i32 : i32, i32
  }
  func.func @transform_1(%arg0: i32) -> (i32, i32) {
    %c0_i32 = arith.constant 0 : i32
    %c0_i32_0 = arith.constant 0 : i32
    return %c0_i32, %arg0 : i32, i32
  }
  func.func @transform_2(%arg0: i32) -> (i32, i32) {
    %c0_i32 = arith.constant 0 : i32
    %c0_i32_0 = arith.constant 0 : i32
    %c0_i32_1 = arith.constant 0 : i32
    return %c0_i32, %c0_i32_0 : i32, i32
  }
  func.func @transform_3(%arg0: i32) -> (i32, i32) {
    %c0_i32 = arith.constant 0 : i32
    %c0_i32_0 = arith.constant 0 : i32
    %c0_i32_1 = arith.constant 0 : i32
    return %c0_i32, %c0_i32_0 : i32, i32
  }
  func.func @transform_4(%arg0: i32) -> (i32, i32) {
    %c0_i32 = arith.constant 0 : i32
    %c0_i32_0 = arith.constant 0 : i32
    %c0_i32_1 = arith.constant 0 : i32
    return %c0_i32, %c0_i32_0 : i32, i32
  }
  func.func @transform_5(%arg0: i32) -> (i32, i32) {
    %c0_i32 = arith.constant 0 : i32
    %c0_i32_0 = arith.constant 0 : i32
    %c0_i32_1 = arith.constant 0 : i32
    return %c0_i32, %c0_i32_0 : i32, i32
  }
  func.func @transform_6(%arg0: i32) -> (i32, i32) {
    %c0_i32 = arith.constant 0 : i32
    %c0_i32_0 = arith.constant 0 : i32
    %c0_i32_1 = arith.constant 0 : i32
    return %c0_i32, %c0_i32_0 : i32, i32
  }
}

module attributes {stable_mosaic.version = 11 : i64} {
  func.func @proj_kernel(%arg0: i32, %arg1: memref<18x128xf32, #tpu.memory_space<vmem>>, %arg2: memref<128x128xf32, #tpu.memory_space<vmem>>, %arg3: memref<1x128xf32, #tpu.memory_space<vmem>>, %arg4: memref<18x128xf32, #tpu.memory_space<vmem>>) attributes {dimension_semantics = [#tpu.dimension_semantics<parallel>], iteration_bounds = array<i64: 1>, scalar_prefetch = 0 : i64, scratch_operands = 0 : i64, tpu.core_type = #tpu.core_type<tc>, window_params = [{pipeline_mode = #tpu.pipeline_mode<synchronous>, transform_indices = @transform_0, window_bounds = array<i64: 18, 128>}, {transform_indices = @transform_1, window_bounds = array<i64: 128, 128>}, {transform_indices = @transform_2, window_bounds = array<i64: 1, 128>}, {transform_indices = @transform_3, window_bounds = array<i64: 18, 128>}]} {
    %c0 = arith.constant 0 : index
    %c0_0 = arith.constant 0 : index
    %0 = vector.load %arg1[%c0, %c0_0] : memref<18x128xf32, #tpu.memory_space<vmem>>, vector<18x128xf32>
    %c0_1 = arith.constant 0 : index
    %c0_2 = arith.constant 0 : index
    %1 = vector.load %arg2[%c0_1, %c0_2] : memref<128x128xf32, #tpu.memory_space<vmem>>, vector<128x128xf32>
    %cst = arith.constant dense<0.000000e+00> : vector<18x128xf32>
    %2 = tpu.matmul %0, %1, %cst {dimension_numbers = #tpu.dot_dimension_numbers<[1], [0], [0], [1], [0, 0, 1, 1], [], []>} : vector<18x128xf32>, vector<128x128xf32>, vector<18x128xf32> -> vector<18x128xf32>
    %c0_3 = arith.constant 0 : index
    %c0_4 = arith.constant 0 : index
    %3 = vector.load %arg3[%c0_3, %c0_4] : memref<1x128xf32, #tpu.memory_space<vmem>>, vector<1x128xf32>
    %4 = vector.broadcast %3 : vector<1x128xf32> to vector<18x128xf32>
    %5 = arith.addf %2, %4 : vector<18x128xf32>
    %c0_5 = arith.constant 0 : index
    %c0_6 = arith.constant 0 : index
    %6 = vector.load %arg4[%c0_5, %c0_6] : memref<18x128xf32, #tpu.memory_space<vmem>>, vector<18x128xf32>
    tpu.vector_store %arg4[%c0_5, %c0_6], %5 {strides = array<i32>} : memref<18x128xf32, #tpu.memory_space<vmem>>, vector<18x128xf32>,
    return
  }
  func.func @transform_0(%arg0: i32) -> (i32, i32) {
    %c0_i32 = arith.constant 0 : i32
    %c0_i32_0 = arith.constant 0 : i32
    %c0_i32_1 = arith.constant 0 : i32
    return %c0_i32, %c0_i32_0 : i32, i32
  }
  func.func @transform_1(%arg0: i32) -> (i32, i32) {
    %c0_i32 = arith.constant 0 : i32
    %c0_i32_0 = arith.constant 0 : i32
    return %c0_i32, %arg0 : i32, i32
  }
  func.func @transform_2(%arg0: i32) -> (i32, i32) {
    %c0_i32 = arith.constant 0 : i32
    %c0_i32_0 = arith.constant 0 : i32
    return %c0_i32, %arg0 : i32, i32
  }
  func.func @transform_3(%arg0: i32) -> (i32, i32) {
    %c0_i32 = arith.constant 0 : i32
    %c0_i32_0 = arith.constant 0 : i32
    return %c0_i32, %arg0 : i32, i32
  }
}

module attributes {stable_mosaic.version = 11 : i64} {
  func.func @kernel(%arg0: memref<18x128xf32, #tpu.memory_space<vmem>>, %arg1: memref<128x512xf32, #tpu.memory_space<vmem>>, %arg2: memref<128x512xf32, #tpu.memory_space<vmem>>, %arg3: memref<1x512xf32, #tpu.memory_space<vmem>>, %arg4: memref<128x512xf32, #tpu.memory_space<vmem>>, %arg5: memref<128x512xf32, #tpu.memory_space<vmem>>, %arg6: memref<1x512xf32, #tpu.memory_space<vmem>>, %arg7: memref<18x128xf32, #tpu.memory_space<vmem>>) attributes {dimension_semantics = [], scalar_prefetch = 0 : i64, scratch_operands = 0 : i64, tpu.core_type = #tpu.core_type<tc>} {
    %c0 = arith.constant 0 : index
    %c0_0 = arith.constant 0 : index
    %0 = vector.load %arg0[%c0, %c0_0] : memref<18x128xf32, #tpu.memory_space<vmem>>, vector<18x128xf32>
    %c0_1 = arith.constant 0 : index
    %c0_2 = arith.constant 0 : index
    %1 = vector.load %arg1[%c0_1, %c0_2] : memref<128x512xf32, #tpu.memory_space<vmem>>, vector<128x512xf32>
    %cst = arith.constant dense<0.000000e+00> : vector<18x512xf32>
    %2 = tpu.matmul %0, %1, %cst {dimension_numbers = #tpu.dot_dimension_numbers<[1], [0], [0], [1], [0, 0, 1, 1], [], []>} : vector<18x128xf32>, vector<128x512xf32>, vector<18x512xf32> -> vector<18x512xf32>
    %c0_3 = arith.constant 0 : index
    %c0_4 = arith.constant 0 : index
    %3 = vector.load %arg3[%c0_3, %c0_4] : memref<1x512xf32, #tpu.memory_space<vmem>>, vector<1x512xf32>
    %4 = vector.broadcast %3 : vector<1x512xf32> to vector<18x512xf32>
    %5 = arith.addf %2, %4 : vector<18x512xf32>
    %cst_5 = arith.constant 0.000000e+00 : f32
    %6 = vector.broadcast %cst_5 : f32 to vector<2x128xf32>
    %cst_6 = arith.constant 0.000000e+00 : f32
    %7 = vector.broadcast %cst_6 : f32 to vector<2x128xf32>
    %cst_7 = arith.constant 0.000000e+00 : f32
    %8 = vector.broadcast %cst_7 : f32 to vector<2x128xf32>
    %cst_8 = arith.constant 0.000000e+00 : f32
    %9 = vector.broadcast %cst_8 : f32 to vector<2x128xf32>
    %c0_9 = arith.constant 0 : index
    %c0_10 = arith.constant 0 : index
    %10 = vector.load %arg2[%c0_9, %c0_10] : memref<128x512xf32, #tpu.memory_space<vmem>>, vector<128x512xf32>
    %11 = vector.extract_strided_slice %5 {offsets = [0, 0], sizes = [2, 512], strides = [1, 1]} : vector<18x512xf32> to vector<2x512xf32>
    %cst_11 = arith.constant dense<0.000000e+00> : vector<2x512xf32>
    %12 = tpu.matmul %6, %10, %cst_11 {dimension_numbers = #tpu.dot_dimension_numbers<[1], [0], [0], [1], [0, 0, 1, 1], [], []>} : vector<2x128xf32>, vector<128x512xf32>, vector<2x512xf32> -> vector<2x512xf32>
    %13 = arith.addf %11, %12 : vector<2x512xf32>
    %14 = vector.extract_strided_slice %13 {offsets = [0, 0], sizes = [2, 128], strides = [1, 1]} : vector<2x512xf32> to vector<2x128xf32>
    %15 = arith.negf %14 : vector<2x128xf32>
    %16 = math.exp %15 : vector<2x128xf32>
    %cst_12 = arith.constant 1.000000e+00 : f32
    %17 = vector.broadcast %cst_12 : f32 to vector<2x128xf32>
    %18 = arith.addf %17, %16 : vector<2x128xf32>
    %19 = arith.divf %17, %18 : vector<2x128xf32>
    %20 = vector.extract_strided_slice %13 {offsets = [0, 128], sizes = [2, 128], strides = [1, 1]} : vector<2x512xf32> to vector<2x128xf32>
    %21 = arith.negf %20 : vector<2x128xf32>
    %22 = math.exp %21 : vector<2x128xf32>
    %cst_13 = arith.constant 1.000000e+00 : f32
    %23 = vector.broadcast %cst_13 : f32 to vector<2x128xf32>
    %24 = arith.addf %23, %22 : vector<2x128xf32>
    %25 = arith.divf %23, %24 : vector<2x128xf32>
    %26 = vector.extract_strided_slice %13 {offsets = [0, 256], sizes = [2, 128], strides = [1, 1]} : vector<2x512xf32> to vector<2x128xf32>
    %27 = math.tanh %26 : vector<2x128xf32>
    %28 = vector.extract_strided_slice %13 {offsets = [0, 384], sizes = [2, 128], strides = [1, 1]} : vector<2x512xf32> to vector<2x128xf32>
    %29 = arith.negf %28 : vector<2x128xf32>
    %30 = math.exp %29 : vector<2x128xf32>
    %cst_14 = arith.constant 1.000000e+00 : f32
    %31 = vector.broadcast %cst_14 : f32 to vector<2x128xf32>
    %32 = arith.addf %31, %30 : vector<2x128xf32>
    %33 = arith.divf %31, %32 : vector<2x128xf32>
    %34 = arith.mulf %25, %8 : vector<2x128xf32>
    %35 = arith.mulf %19, %27 : vector<2x128xf32>
    %36 = arith.addf %34, %35 : vector<2x128xf32>
    %37 = math.tanh %36 : vector<2x128xf32>
    %38 = arith.mulf %33, %37 : vector<2x128xf32>
    %c0_15 = arith.constant 0 : index
    %c0_16 = arith.constant 0 : index
    %39 = vector.load %arg5[%c0_15, %c0_16] : memref<128x512xf32, #tpu.memory_space<vmem>>, vector<128x512xf32>
    %c0_17 = arith.constant 0 : index
    %c0_18 = arith.constant 0 : index
    %40 = vector.load %arg4[%c0_17, %c0_18] : memref<128x512xf32, #tpu.memory_space<vmem>>, vector<128x512xf32>
    %cst_19 = arith.constant dense<0.000000e+00> : vector<2x512xf32>
    %41 = tpu.matmul %38, %40, %cst_19 {dimension_numbers = #tpu.dot_dimension_numbers<[1], [0], [0], [1], [0, 0, 1, 1], [], []>} : vector<2x128xf32>, vector<128x512xf32>, vector<2x512xf32> -> vector<2x512xf32>
    %cst_20 = arith.constant dense<0.000000e+00> : vector<2x512xf32>
    %42 = tpu.matmul %7, %39, %cst_20 {dimension_numbers = #tpu.dot_dimension_numbers<[1], [0], [0], [1], [0, 0, 1, 1], [], []>} : vector<2x128xf32>, vector<128x512xf32>, vector<2x512xf32> -> vector<2x512xf32>
    %43 = arith.addf %41, %42 : vector<2x512xf32>
    %c0_21 = arith.constant 0 : index
    %c0_22 = arith.constant 0 : index
    %44 = vector.load %arg6[%c0_21, %c0_22] : memref<1x512xf32, #tpu.memory_space<vmem>>, vector<1x512xf32>
    %45 = vector.broadcast %44 : vector<1x512xf32> to vector<2x512xf32>
    %46 = arith.addf %43, %45 : vector<2x512xf32>
    %47 = vector.extract_strided_slice %46 {offsets = [0, 0], sizes = [2, 128], strides = [1, 1]} : vector<2x512xf32> to vector<2x128xf32>
    %48 = arith.negf %47 : vector<2x128xf32>
    %49 = math.exp %48 : vector<2x128xf32>
    %cst_23 = arith.constant 1.000000e+00 : f32
    %50 = vector.broadcast %cst_23 : f32 to vector<2x128xf32>
    %51 = arith.addf %50, %49 : vector<2x128xf32>
    %52 = arith.divf %50, %51 : vector<2x128xf32>
    %53 = vector.extract_strided_slice %46 {offsets = [0, 128], sizes = [2, 128], strides = [1, 1]} : vector<2x512xf32> to vector<2x128xf32>
    %54 = arith.negf %53 : vector<2x128xf32>
    %55 = math.exp %54 : vector<2x128xf32>
    %cst_24 = arith.constant 1.000000e+00 : f32
    %56 = vector.broadcast %cst_24 : f32 to vector<2x128xf32>
    %57 = arith.addf %56, %55 : vector<2x128xf32>
    %58 = arith.divf %56, %57 : vector<2x128xf32>
    %59 = vector.extract_strided_slice %46 {offsets = [0, 256], sizes = [2, 128], strides = [1, 1]} : vector<2x512xf32> to vector<2x128xf32>
    %60 = math.tanh %59 : vector<2x128xf32>
    %61 = vector.extract_strided_slice %46 {offsets = [0, 384], sizes = [2, 128], strides = [1, 1]} : vector<2x512xf32> to vector<2x128xf32>
    %62 = arith.negf %61 : vector<2x128xf32>
    %63 = math.exp %62 : vector<2x128xf32>
    %cst_25 = arith.constant 1.000000e+00 : f32
    %64 = vector.broadcast %cst_25 : f32 to vector<2x128xf32>
    %65 = arith.addf %64, %63 : vector<2x128xf32>
    %66 = arith.divf %64, %65 : vector<2x128xf32>
    %67 = arith.mulf %58, %9 : vector<2x128xf32>
    %68 = arith.mulf %52, %60 : vector<2x128xf32>
    %69 = arith.addf %67, %68 : vector<2x128xf32>
    %70 = math.tanh %69 : vector<2x128xf32>
    %71 = arith.mulf %66, %70 : vector<2x128xf32>
    %c0_26 = arith.constant 0 : index
    %c0_27 = arith.constant 0 : index
    %72 = vector.load %arg7[%c0_26, %c0_27] : memref<18x128xf32, #tpu.memory_space<vmem>>, vector<2x128xf32>
    tpu.vector_store %arg7[%c0_26, %c0_27], %71 {strides = array<i32>} : memref<18x128xf32, #tpu.memory_space<vmem>>, vector<2x128xf32>,
    %c0_28 = arith.constant 0 : index
    %c0_29 = arith.constant 0 : index
    %73 = vector.load %arg2[%c0_28, %c0_29] : memref<128x512xf32, #tpu.memory_space<vmem>>, vector<128x512xf32>
    %74 = vector.extract_strided_slice %5 {offsets = [2, 0], sizes = [2, 512], strides = [1, 1]} : vector<18x512xf32> to vector<2x512xf32>
    %cst_30 = arith.constant dense<0.000000e+00> : vector<2x512xf32>
    %75 = tpu.matmul %38, %73, %cst_30 {dimension_numbers = #tpu.dot_dimension_numbers<[1], [0], [0], [1], [0, 0, 1, 1], [], []>} : vector<2x128xf32>, vector<128x512xf32>, vector<2x512xf32> -> vector<2x512xf32>
    %76 = arith.addf %74, %75 : vector<2x512xf32>
    %77 = vector.extract_strided_slice %76 {offsets = [0, 0], sizes = [2, 128], strides = [1, 1]} : vector<2x512xf32> to vector<2x128xf32>
    %78 = arith.negf %77 : vector<2x128xf32>
    %79 = math.exp %78 : vector<2x128xf32>
    %cst_31 = arith.constant 1.000000e+00 : f32
    %80 = vector.broadcast %cst_31 : f32 to vector<2x128xf32>
    %81 = arith.addf %80, %79 : vector<2x128xf32>
    %82 = arith.divf %80, %81 : vector<2x128xf32>
    %83 = vector.extract_strided_slice %76 {offsets = [0, 128], sizes = [2, 128], strides = [1, 1]} : vector<2x512xf32> to vector<2x128xf32>
    %84 = arith.negf %83 : vector<2x128xf32>
    %85 = math.exp %84 : vector<2x128xf32>
    %cst_32 = arith.constant 1.000000e+00 : f32
    %86 = vector.broadcast %cst_32 : f32 to vector<2x128xf32>
    %87 = arith.addf %86, %85 : vector<2x128xf32>
    %88 = arith.divf %86, %87 : vector<2x128xf32>
    %89 = vector.extract_strided_slice %76 {offsets = [0, 256], sizes = [2, 128], strides = [1, 1]} : vector<2x512xf32> to vector<2x128xf32>
    %90 = math.tanh %89 : vector<2x128xf32>
    %91 = vector.extract_strided_slice %76 {offsets = [0, 384], sizes = [2, 128], strides = [1, 1]} : vector<2x512xf32> to vector<2x128xf32>
    %92 = arith.negf %91 : vector<2x128xf32>
    %93 = math.exp %92 : vector<2x128xf32>
    %cst_33 = arith.constant 1.000000e+00 : f32
    %94 = vector.broadcast %cst_33 : f32 to vector<2x128xf32>
    %95 = arith.addf %94, %93 : vector<2x128xf32>
    %96 = arith.divf %94, %95 : vector<2x128xf32>
    %97 = arith.mulf %88, %36 : vector<2x128xf32>
    %98 = arith.mulf %82, %90 : vector<2x128xf32>
    %99 = arith.addf %97, %98 : vector<2x128xf32>
    %100 = math.tanh %99 : vector<2x128xf32>
    %101 = arith.mulf %96, %100 : vector<2x128xf32>
    %c0_34 = arith.constant 0 : index
    %c0_35 = arith.constant 0 : index
    %102 = vector.load %arg5[%c0_34, %c0_35] : memref<128x512xf32, #tpu.memory_space<vmem>>, vector<128x512xf32>
    %c0_36 = arith.constant 0 : index
    %c0_37 = arith.constant 0 : index
    %103 = vector.load %arg4[%c0_36, %c0_37] : memref<128x512xf32, #tpu.memory_space<vmem>>, vector<128x512xf32>
    %cst_38 = arith.constant dense<0.000000e+00> : vector<2x512xf32>
    %104 = tpu.matmul %101, %103, %cst_38 {dimension_numbers = #tpu.dot_dimension_numbers<[1], [0], [0], [1], [0, 0, 1, 1], [], []>} : vector<2x128xf32>, vector<128x512xf32>, vector<2x512xf32> -> vector<2x512xf32>
    %cst_39 = arith.constant dense<0.000000e+00> : vector<2x512xf32>
    %105 = tpu.matmul %71, %102, %cst_39 {dimension_numbers = #tpu.dot_dimension_numbers<[1], [0], [0], [1], [0, 0, 1, 1], [], []>} : vector<2x128xf32>, vector<128x512xf32>, vector<2x512xf32> -> vector<2x512xf32>
    %106 = arith.addf %104, %105 : vector<2x512xf32>
    %c0_40 = arith.constant 0 : index
    %c0_41 = arith.constant 0 : index
    %107 = vector.load %arg6[%c0_40, %c0_41] : memref<1x512xf32, #tpu.memory_space<vmem>>, vector<1x512xf32>
    %108 = vector.broadcast %107 : vector<1x512xf32> to vector<2x512xf32>
    %109 = arith.addf %106, %108 : vector<2x512xf32>
    %110 = vector.extract_strided_slice %109 {offsets = [0, 0], sizes = [2, 128], strides = [1, 1]} : vector<2x512xf32> to vector<2x128xf32>
    %111 = arith.negf %110 : vector<2x128xf32>
    %112 = math.exp %111 : vector<2x128xf32>
    %cst_42 = arith.constant 1.000000e+00 : f32
    %113 = vector.broadcast %cst_42 : f32 to vector<2x128xf32>
    %114 = arith.addf %113, %112 : vector<2x128xf32>
    %115 = arith.divf %113, %114 : vector<2x128xf32>
    %116 = vector.extract_strided_slice %109 {offsets = [0, 128], sizes = [2, 128], strides = [1, 1]} : vector<2x512xf32> to vector<2x128xf32>
    %117 = arith.negf %116 : vector<2x128xf32>
    %118 = math.exp %117 : vector<2x128xf32>
    %cst_43 = arith.constant 1.000000e+00 : f32
    %119 = vector.broadcast %cst_43 : f32 to vector<2x128xf32>
    %120 = arith.addf %119, %118 : vector<2x128xf32>
    %121 = arith.divf %119, %120 : vector<2x128xf32>
    %122 = vector.extract_strided_slice %109 {offsets = [0, 256], sizes = [2, 128], strides = [1, 1]} : vector<2x512xf32> to vector<2x128xf32>
    %123 = math.tanh %122 : vector<2x128xf32>
    %124 = vector.extract_strided_slice %109 {offsets = [0, 384], sizes = [2, 128], strides = [1, 1]} : vector<2x512xf32> to vector<2x128xf32>
    %125 = arith.negf %124 : vector<2x128xf32>
    %126 = math.exp %125 : vector<2x128xf32>
    %cst_44 = arith.constant 1.000000e+00 : f32
    %127 = vector.broadcast %cst_44 : f32 to vector<2x128xf32>
    %128 = arith.addf %127, %126 : vector<2x128xf32>
    %129 = arith.divf %127, %128 : vector<2x128xf32>
    %130 = arith.mulf %121, %69 : vector<2x128xf32>
    %131 = arith.mulf %115, %123 : vector<2x128xf32>
    %132 = arith.addf %130, %131 : vector<2x128xf32>
    %133 = math.tanh %132 : vector<2x128xf32>
    %134 = arith.mulf %129, %133 : vector<2x128xf32>
    %c2 = arith.constant 2 : index
    %c0_45 = arith.constant 0 : index
    %135 = vector.load %arg7[%c2, %c0_45] : memref<18x128xf32, #tpu.memory_space<vmem>>, vector<2x128xf32>
    tpu.vector_store %arg7[%c2, %c0_45], %134 {strides = array<i32>} : memref<18x128xf32, #tpu.memory_space<vmem>>, vector<2x128xf32>,
    %c0_46 = arith.constant 0 : index
    %c0_47 = arith.constant 0 : index
    %136 = vector.load %arg2[%c0_46, %c0_47] : memref<128x512xf32, #tpu.memory_space<vmem>>, vector<128x512xf32>
    %137 = vector.extract_strided_slice %5 {offsets = [4, 0], sizes = [2, 512], strides = [1, 1]} : vector<18x512xf32> to vector<2x512xf32>
    %cst_48 = arith.constant dense<0.000000e+00> : vector<2x512xf32>
    %138 = tpu.matmul %101, %136, %cst_48 {dimension_numbers = #tpu.dot_dimension_numbers<[1], [0], [0], [1], [0, 0, 1, 1], [], []>} : vector<2x128xf32>, vector<128x512xf32>, vector<2x512xf32> -> vector<2x512xf32>
    %139 = arith.addf %137, %138 : vector<2x512xf32>
    %140 = vector.extract_strided_slice %139 {offsets = [0, 0], sizes = [2, 128], strides = [1, 1]} : vector<2x512xf32> to vector<2x128xf32>
    %141 = arith.negf %140 : vector<2x128xf32>
    %142 = math.exp %141 : vector<2x128xf32>
    %cst_49 = arith.constant 1.000000e+00 : f32
    %143 = vector.broadcast %cst_49 : f32 to vector<2x128xf32>
    %144 = arith.addf %143, %142 : vector<2x128xf32>
    %145 = arith.divf %143, %144 : vector<2x128xf32>
    %146 = vector.extract_strided_slice %139 {offsets = [0, 128], sizes = [2, 128], strides = [1, 1]} : vector<2x512xf32> to vector<2x128xf32>
    %147 = arith.negf %146 : vector<2x128xf32>
    %148 = math.exp %147 : vector<2x128xf32>
    %cst_50 = arith.constant 1.000000e+00 : f32
    %149 = vector.broadcast %cst_50 : f32 to vector<2x128xf32>
    %150 = arith.addf %149, %148 : vector<2x128xf32>
    %151 = arith.divf %149, %150 : vector<2x128xf32>
    %152 = vector.extract_strided_slice %139 {offsets = [0, 256], sizes = [2, 128], strides = [1, 1]} : vector<2x512xf32> to vector<2x128xf32>
    %153 = math.tanh %152 : vector<2x128xf32>
    %154 = vector.extract_strided_slice %139 {offsets = [0, 384], sizes = [2, 128], strides = [1, 1]} : vector<2x512xf32> to vector<2x128xf32>
    %155 = arith.negf %154 : vector<2x128xf32>
    %156 = math.exp %155 : vector<2x128xf32>
    %cst_51 = arith.constant 1.000000e+00 : f32
    %157 = vector.broadcast %cst_51 : f32 to vector<2x128xf32>
    %158 = arith.addf %157, %156 : vector<2x128xf32>
    %159 = arith.divf %157, %158 : vector<2x128xf32>
    %160 = arith.mulf %151, %99 : vector<2x128xf32>
    %161 = arith.mulf %145, %153 : vector<2x128xf32>
    %162 = arith.addf %160, %161 : vector<2x128xf32>
    %163 = math.tanh %162 : vector<2x128xf32>
    %164 = arith.mulf %159, %163 : vector<2x128xf32>
    %c0_52 = arith.constant 0 : index
    %c0_53 = arith.constant 0 : index
    %165 = vector.load %arg5[%c0_52, %c0_53] : memref<128x512xf32, #tpu.memory_space<vmem>>, vector<128x512xf32>
    %c0_54 = arith.constant 0 : index
    %c0_55 = arith.constant 0 : index
    %166 = vector.load %arg4[%c0_54, %c0_55] : memref<128x512xf32, #tpu.memory_space<vmem>>, vector<128x512xf32>
    %cst_56 = arith.constant dense<0.000000e+00> : vector<2x512xf32>
    %167 = tpu.matmul %164, %166, %cst_56 {dimension_numbers = #tpu.dot_dimension_numbers<[1], [0], [0], [1], [0, 0, 1, 1], [], []>} : vector<2x128xf32>, vector<128x512xf32>, vector<2x512xf32> -> vector<2x512xf32>
    %cst_57 = arith.constant dense<0.000000e+00> : vector<2x512xf32>
    %168 = tpu.matmul %134, %165, %cst_57 {dimension_numbers = #tpu.dot_dimension_numbers<[1], [0], [0], [1], [0, 0, 1, 1], [], []>} : vector<2x128xf32>, vector<128x512xf32>, vector<2x512xf32> -> vector<2x512xf32>
    %169 = arith.addf %167, %168 : vector<2x512xf32>
    %c0_58 = arith.constant 0 : index
    %c0_59 = arith.constant 0 : index
    %170 = vector.load %arg6[%c0_58, %c0_59] : memref<1x512xf32, #tpu.memory_space<vmem>>, vector<1x512xf32>
    %171 = vector.broadcast %170 : vector<1x512xf32> to vector<2x512xf32>
    %172 = arith.addf %169, %171 : vector<2x512xf32>
    %173 = vector.extract_strided_slice %172 {offsets = [0, 0], sizes = [2, 128], strides = [1, 1]} : vector<2x512xf32> to vector<2x128xf32>
    %174 = arith.negf %173 : vector<2x128xf32>
    %175 = math.exp %174 : vector<2x128xf32>
    %cst_60 = arith.constant 1.000000e+00 : f32
    %176 = vector.broadcast %cst_60 : f32 to vector<2x128xf32>
    %177 = arith.addf %176, %175 : vector<2x128xf32>
    %178 = arith.divf %176, %177 : vector<2x128xf32>
    %179 = vector.extract_strided_slice %172 {offsets = [0, 128], sizes = [2, 128], strides = [1, 1]} : vector<2x512xf32> to vector<2x128xf32>
    %180 = arith.negf %179 : vector<2x128xf32>
    %181 = math.exp %180 : vector<2x128xf32>
    %cst_61 = arith.constant 1.000000e+00 : f32
    %182 = vector.broadcast %cst_61 : f32 to vector<2x128xf32>
    %183 = arith.addf %182, %181 : vector<2x128xf32>
    %184 = arith.divf %182, %183 : vector<2x128xf32>
    %185 = vector.extract_strided_slice %172 {offsets = [0, 256], sizes = [2, 128], strides = [1, 1]} : vector<2x512xf32> to vector<2x128xf32>
    %186 = math.tanh %185 : vector<2x128xf32>
    %187 = vector.extract_strided_slice %172 {offsets = [0, 384], sizes = [2, 128], strides = [1, 1]} : vector<2x512xf32> to vector<2x128xf32>
    %188 = arith.negf %187 : vector<2x128xf32>
    %189 = math.exp %188 : vector<2x128xf32>
    %cst_62 = arith.constant 1.000000e+00 : f32
    %190 = vector.broadcast %cst_62 : f32 to vector<2x128xf32>
    %191 = arith.addf %190, %189 : vector<2x128xf32>
    %192 = arith.divf %190, %191 : vector<2x128xf32>
    %193 = arith.mulf %184, %132 : vector<2x128xf32>
    %194 = arith.mulf %178, %186 : vector<2x128xf32>
    %195 = arith.addf %193, %194 : vector<2x128xf32>
    %196 = math.tanh %195 : vector<2x128xf32>
    %197 = arith.mulf %192, %196 : vector<2x128xf32>
    %c4 = arith.constant 4 : index
    %c0_63 = arith.constant 0 : index
    %198 = vector.load %arg7[%c4, %c0_63] : memref<18x128xf32, #tpu.memory_space<vmem>>, vector<2x128xf32>
    tpu.vector_store %arg7[%c4, %c0_63], %197 {strides = array<i32>} : memref<18x128xf32, #tpu.memory_space<vmem>>, vector<2x128xf32>,
    %c0_64 = arith.constant 0 : index
    %c0_65 = arith.constant 0 : index
    %199 = vector.load %arg2[%c0_64, %c0_65] : memref<128x512xf32, #tpu.memory_space<vmem>>, vector<128x512xf32>
    %200 = vector.extract_strided_slice %5 {offsets = [6, 0], sizes = [2, 512], strides = [1, 1]} : vector<18x512xf32> to vector<2x512xf32>
    %cst_66 = arith.constant dense<0.000000e+00> : vector<2x512xf32>
    %201 = tpu.matmul %164, %199, %cst_66 {dimension_numbers = #tpu.dot_dimension_numbers<[1], [0], [0], [1], [0, 0, 1, 1], [], []>} : vector<2x128xf32>, vector<128x512xf32>, vector<2x512xf32> -> vector<2x512xf32>
    %202 = arith.addf %200, %201 : vector<2x512xf32>
    %203 = vector.extract_strided_slice %202 {offsets = [0, 0], sizes = [2, 128], strides = [1, 1]} : vector<2x512xf32> to vector<2x128xf32>
    %204 = arith.negf %203 : vector<2x128xf32>
    %205 = math.exp %204 : vector<2x128xf32>
    %cst_67 = arith.constant 1.000000e+00 : f32
    %206 = vector.broadcast %cst_67 : f32 to vector<2x128xf32>
    %207 = arith.addf %206, %205 : vector<2x128xf32>
    %208 = arith.divf %206, %207 : vector<2x128xf32>
    %209 = vector.extract_strided_slice %202 {offsets = [0, 128], sizes = [2, 128], strides = [1, 1]} : vector<2x512xf32> to vector<2x128xf32>
    %210 = arith.negf %209 : vector<2x128xf32>
    %211 = math.exp %210 : vector<2x128xf32>
    %cst_68 = arith.constant 1.000000e+00 : f32
    %212 = vector.broadcast %cst_68 : f32 to vector<2x128xf32>
    %213 = arith.addf %212, %211 : vector<2x128xf32>
    %214 = arith.divf %212, %213 : vector<2x128xf32>
    %215 = vector.extract_strided_slice %202 {offsets = [0, 256], sizes = [2, 128], strides = [1, 1]} : vector<2x512xf32> to vector<2x128xf32>
    %216 = math.tanh %215 : vector<2x128xf32>
    %217 = vector.extract_strided_slice %202 {offsets = [0, 384], sizes = [2, 128], strides = [1, 1]} : vector<2x512xf32> to vector<2x128xf32>
    %218 = arith.negf %217 : vector<2x128xf32>
    %219 = math.exp %218 : vector<2x128xf32>
    %cst_69 = arith.constant 1.000000e+00 : f32
    %220 = vector.broadcast %cst_69 : f32 to vector<2x128xf32>
    %221 = arith.addf %220, %219 : vector<2x128xf32>
    %222 = arith.divf %220, %221 : vector<2x128xf32>
    %223 = arith.mulf %214, %162 : vector<2x128xf32>
    %224 = arith.mulf %208, %216 : vector<2x128xf32>
    %225 = arith.addf %223, %224 : vector<2x128xf32>
    %226 = math.tanh %225 : vector<2x128xf32>
    %227 = arith.mulf %222, %226 : vector<2x128xf32>
    %c0_70 = arith.constant 0 : index
    %c0_71 = arith.constant 0 : index
    %228 = vector.load %arg5[%c0_70, %c0_71] : memref<128x512xf32, #tpu.memory_space<vmem>>, vector<128x512xf32>
    %c0_72 = arith.constant 0 : index
    %c0_73 = arith.constant 0 : index
    %229 = vector.load %arg4[%c0_72, %c0_73] : memref<128x512xf32, #tpu.memory_space<vmem>>, vector<128x512xf32>
    %cst_74 = arith.constant dense<0.000000e+00> : vector<2x512xf32>
    %230 = tpu.matmul %227, %229, %cst_74 {dimension_numbers = #tpu.dot_dimension_numbers<[1], [0], [0], [1], [0, 0, 1, 1], [], []>} : vector<2x128xf32>, vector<128x512xf32>, vector<2x512xf32> -> vector<2x512xf32>
    %cst_75 = arith.constant dense<0.000000e+00> : vector<2x512xf32>
    %231 = tpu.matmul %197, %228, %cst_75 {dimension_numbers = #tpu.dot_dimension_numbers<[1], [0], [0], [1], [0, 0, 1, 1], [], []>} : vector<2x128xf32>, vector<128x512xf32>, vector<2x512xf32> -> vector<2x512xf32>
    %232 = arith.addf %230, %231 : vector<2x512xf32>
    %c0_76 = arith.constant 0 : index
    %c0_77 = arith.constant 0 : index
    %233 = vector.load %arg6[%c0_76, %c0_77] : memref<1x512xf32, #tpu.memory_space<vmem>>, vector<1x512xf32>
    %234 = vector.broadcast %233 : vector<1x512xf32> to vector<2x512xf32>
    %235 = arith.addf %232, %234 : vector<2x512xf32>
    %236 = vector.extract_strided_slice %235 {offsets = [0, 0], sizes = [2, 128], strides = [1, 1]} : vector<2x512xf32> to vector<2x128xf32>
    %237 = arith.negf %236 : vector<2x128xf32>
    %238 = math.exp %237 : vector<2x128xf32>
    %cst_78 = arith.constant 1.000000e+00 : f32
    %239 = vector.broadcast %cst_78 : f32 to vector<2x128xf32>
    %240 = arith.addf %239, %238 : vector<2x128xf32>
    %241 = arith.divf %239, %240 : vector<2x128xf32>
    %242 = vector.extract_strided_slice %235 {offsets = [0, 128], sizes = [2, 128], strides = [1, 1]} : vector<2x512xf32> to vector<2x128xf32>
    %243 = arith.negf %242 : vector<2x128xf32>
    %244 = math.exp %243 : vector<2x128xf32>
    %cst_79 = arith.constant 1.000000e+00 : f32
    %245 = vector.broadcast %cst_79 : f32 to vector<2x128xf32>
    %246 = arith.addf %245, %244 : vector<2x128xf32>
    %247 = arith.divf %245, %246 : vector<2x128xf32>
    %248 = vector.extract_strided_slice %235 {offsets = [0, 256], sizes = [2, 128], strides = [1, 1]} : vector<2x512xf32> to vector<2x128xf32>
    %249 = math.tanh %248 : vector<2x128xf32>
    %250 = vector.extract_strided_slice %235 {offsets = [0, 384], sizes = [2, 128], strides = [1, 1]} : vector<2x512xf32> to vector<2x128xf32>
    %251 = arith.negf %250 : vector<2x128xf32>
    %252 = math.exp %251 : vector<2x128xf32>
    %cst_80 = arith.constant 1.000000e+00 : f32
    %253 = vector.broadcast %cst_80 : f32 to vector<2x128xf32>
    %254 = arith.addf %253, %252 : vector<2x128xf32>
    %255 = arith.divf %253, %254 : vector<2x128xf32>
    %256 = arith.mulf %247, %195 : vector<2x128xf32>
    %257 = arith.mulf %241, %249 : vector<2x128xf32>
    %258 = arith.addf %256, %257 : vector<2x128xf32>
    %259 = math.tanh %258 : vector<2x128xf32>
    %260 = arith.mulf %255, %259 : vector<2x128xf32>
    %c6 = arith.constant 6 : index
    %c0_81 = arith.constant 0 : index
    %261 = vector.load %arg7[%c6, %c0_81] : memref<18x128xf32, #tpu.memory_space<vmem>>, vector<2x128xf32>
    tpu.vector_store %arg7[%c6, %c0_81], %260 {strides = array<i32>} : memref<18x128xf32, #tpu.memory_space<vmem>>, vector<2x128xf32>,
    %c0_82 = arith.constant 0 : index
    %c0_83 = arith.constant 0 : index
    %262 = vector.load %arg2[%c0_82, %c0_83] : memref<128x512xf32, #tpu.memory_space<vmem>>, vector<128x512xf32>
    %263 = vector.extract_strided_slice %5 {offsets = [8, 0], sizes = [2, 512], strides = [1, 1]} : vector<18x512xf32> to vector<2x512xf32>
    %cst_84 = arith.constant dense<0.000000e+00> : vector<2x512xf32>
    %264 = tpu.matmul %227, %262, %cst_84 {dimension_numbers = #tpu.dot_dimension_numbers<[1], [0], [0], [1], [0, 0, 1, 1], [], []>} : vector<2x128xf32>, vector<128x512xf32>, vector<2x512xf32> -> vector<2x512xf32>
    %265 = arith.addf %263, %264 : vector<2x512xf32>
    %266 = vector.extract_strided_slice %265 {offsets = [0, 0], sizes = [2, 128], strides = [1, 1]} : vector<2x512xf32> to vector<2x128xf32>
    %267 = arith.negf %266 : vector<2x128xf32>
    %268 = math.exp %267 : vector<2x128xf32>
    %cst_85 = arith.constant 1.000000e+00 : f32
    %269 = vector.broadcast %cst_85 : f32 to vector<2x128xf32>
    %270 = arith.addf %269, %268 : vector<2x128xf32>
    %271 = arith.divf %269, %270 : vector<2x128xf32>
    %272 = vector.extract_strided_slice %265 {offsets = [0, 128], sizes = [2, 128], strides = [1, 1]} : vector<2x512xf32> to vector<2x128xf32>
    %273 = arith.negf %272 : vector<2x128xf32>
    %274 = math.exp %273 : vector<2x128xf32>
    %cst_86 = arith.constant 1.000000e+00 : f32
    %275 = vector.broadcast %cst_86 : f32 to vector<2x128xf32>
    %276 = arith.addf %275, %274 : vector<2x128xf32>
    %277 = arith.divf %275, %276 : vector<2x128xf32>
    %278 = vector.extract_strided_slice %265 {offsets = [0, 256], sizes = [2, 128], strides = [1, 1]} : vector<2x512xf32> to vector<2x128xf32>
    %279 = math.tanh %278 : vector<2x128xf32>
    %280 = vector.extract_strided_slice %265 {offsets = [0, 384], sizes = [2, 128], strides = [1, 1]} : vector<2x512xf32> to vector<2x128xf32>
    %281 = arith.negf %280 : vector<2x128xf32>
    %282 = math.exp %281 : vector<2x128xf32>
    %cst_87 = arith.constant 1.000000e+00 : f32
    %283 = vector.broadcast %cst_87 : f32 to vector<2x128xf32>
    %284 = arith.addf %283, %282 : vector<2x128xf32>
    %285 = arith.divf %283, %284 : vector<2x128xf32>
    %286 = arith.mulf %277, %225 : vector<2x128xf32>
    %287 = arith.mulf %271, %279 : vector<2x128xf32>
    %288 = arith.addf %286, %287 : vector<2x128xf32>
    %289 = math.tanh %288 : vector<2x128xf32>
    %290 = arith.mulf %285, %289 : vector<2x128xf32>
    %c0_88 = arith.constant 0 : index
    %c0_89 = arith.constant 0 : index
    %291 = vector.load %arg5[%c0_88, %c0_89] : memref<128x512xf32, #tpu.memory_space<vmem>>, vector<128x512xf32>
    %c0_90 = arith.constant 0 : index
    %c0_91 = arith.constant 0 : index
    %292 = vector.load %arg4[%c0_90, %c0_91] : memref<128x512xf32, #tpu.memory_space<vmem>>, vector<128x512xf32>
    %cst_92 = arith.constant dense<0.000000e+00> : vector<2x512xf32>
    %293 = tpu.matmul %290, %292, %cst_92 {dimension_numbers = #tpu.dot_dimension_numbers<[1], [0], [0], [1], [0, 0, 1, 1], [], []>} : vector<2x128xf32>, vector<128x512xf32>, vector<2x512xf32> -> vector<2x512xf32>
    %cst_93 = arith.constant dense<0.000000e+00> : vector<2x512xf32>
    %294 = tpu.matmul %260, %291, %cst_93 {dimension_numbers = #tpu.dot_dimension_numbers<[1], [0], [0], [1], [0, 0, 1, 1], [], []>} : vector<2x128xf32>, vector<128x512xf32>, vector<2x512xf32> -> vector<2x512xf32>
    %295 = arith.addf %293, %294 : vector<2x512xf32>
    %c0_94 = arith.constant 0 : index
    %c0_95 = arith.constant 0 : index
    %296 = vector.load %arg6[%c0_94, %c0_95] : memref<1x512xf32, #tpu.memory_space<vmem>>, vector<1x512xf32>
    %297 = vector.broadcast %296 : vector<1x512xf32> to vector<2x512xf32>
    %298 = arith.addf %295, %297 : vector<2x512xf32>
    %299 = vector.extract_strided_slice %298 {offsets = [0, 0], sizes = [2, 128], strides = [1, 1]} : vector<2x512xf32> to vector<2x128xf32>
    %300 = arith.negf %299 : vector<2x128xf32>
    %301 = math.exp %300 : vector<2x128xf32>
    %cst_96 = arith.constant 1.000000e+00 : f32
    %302 = vector.broadcast %cst_96 : f32 to vector<2x128xf32>
    %303 = arith.addf %302, %301 : vector<2x128xf32>
    %304 = arith.divf %302, %303 : vector<2x128xf32>
    %305 = vector.extract_strided_slice %298 {offsets = [0, 128], sizes = [2, 128], strides = [1, 1]} : vector<2x512xf32> to vector<2x128xf32>
    %306 = arith.negf %305 : vector<2x128xf32>
    %307 = math.exp %306 : vector<2x128xf32>
    %cst_97 = arith.constant 1.000000e+00 : f32
    %308 = vector.broadcast %cst_97 : f32 to vector<2x128xf32>
    %309 = arith.addf %308, %307 : vector<2x128xf32>
    %310 = arith.divf %308, %309 : vector<2x128xf32>
    %311 = vector.extract_strided_slice %298 {offsets = [0, 256], sizes = [2, 128], strides = [1, 1]} : vector<2x512xf32> to vector<2x128xf32>
    %312 = math.tanh %311 : vector<2x128xf32>
    %313 = vector.extract_strided_slice %298 {offsets = [0, 384], sizes = [2, 128], strides = [1, 1]} : vector<2x512xf32> to vector<2x128xf32>
    %314 = arith.negf %313 : vector<2x128xf32>
    %315 = math.exp %314 : vector<2x128xf32>
    %cst_98 = arith.constant 1.000000e+00 : f32
    %316 = vector.broadcast %cst_98 : f32 to vector<2x128xf32>
    %317 = arith.addf %316, %315 : vector<2x128xf32>
    %318 = arith.divf %316, %317 : vector<2x128xf32>
    %319 = arith.mulf %310, %258 : vector<2x128xf32>
    %320 = arith.mulf %304, %312 : vector<2x128xf32>
    %321 = arith.addf %319, %320 : vector<2x128xf32>
    %322 = math.tanh %321 : vector<2x128xf32>
    %323 = arith.mulf %318, %322 : vector<2x128xf32>
    %c8 = arith.constant 8 : index
    %c0_99 = arith.constant 0 : index
    %324 = vector.load %arg7[%c8, %c0_99] : memref<18x128xf32, #tpu.memory_space<vmem>>, vector<2x128xf32>
    tpu.vector_store %arg7[%c8, %c0_99], %323 {strides = array<i32>} : memref<18x128xf32, #tpu.memory_space<vmem>>, vector<2x128xf32>,
    %c0_100 = arith.constant 0 : index
    %c0_101 = arith.constant 0 : index
    %325 = vector.load %arg2[%c0_100, %c0_101] : memref<128x512xf32, #tpu.memory_space<vmem>>, vector<128x512xf32>
    %326 = vector.extract_strided_slice %5 {offsets = [10, 0], sizes = [2, 512], strides = [1, 1]} : vector<18x512xf32> to vector<2x512xf32>
    %cst_102 = arith.constant dense<0.000000e+00> : vector<2x512xf32>
    %327 = tpu.matmul %290, %325, %cst_102 {dimension_numbers = #tpu.dot_dimension_numbers<[1], [0], [0], [1], [0, 0, 1, 1], [], []>} : vector<2x128xf32>, vector<128x512xf32>, vector<2x512xf32> -> vector<2x512xf32>
    %328 = arith.addf %326, %327 : vector<2x512xf32>
    %329 = vector.extract_strided_slice %328 {offsets = [0, 0], sizes = [2, 128], strides = [1, 1]} : vector<2x512xf32> to vector<2x128xf32>
    %330 = arith.negf %329 : vector<2x128xf32>
    %331 = math.exp %330 : vector<2x128xf32>
    %cst_103 = arith.constant 1.000000e+00 : f32
    %332 = vector.broadcast %cst_103 : f32 to vector<2x128xf32>
    %333 = arith.addf %332, %331 : vector<2x128xf32>
    %334 = arith.divf %332, %333 : vector<2x128xf32>
    %335 = vector.extract_strided_slice %328 {offsets = [0, 128], sizes = [2, 128], strides = [1, 1]} : vector<2x512xf32> to vector<2x128xf32>
    %336 = arith.negf %335 : vector<2x128xf32>
    %337 = math.exp %336 : vector<2x128xf32>
    %cst_104 = arith.constant 1.000000e+00 : f32
    %338 = vector.broadcast %cst_104 : f32 to vector<2x128xf32>
    %339 = arith.addf %338, %337 : vector<2x128xf32>
    %340 = arith.divf %338, %339 : vector<2x128xf32>
    %341 = vector.extract_strided_slice %328 {offsets = [0, 256], sizes = [2, 128], strides = [1, 1]} : vector<2x512xf32> to vector<2x128xf32>
    %342 = math.tanh %341 : vector<2x128xf32>
    %343 = vector.extract_strided_slice %328 {offsets = [0, 384], sizes = [2, 128], strides = [1, 1]} : vector<2x512xf32> to vector<2x128xf32>
    %344 = arith.negf %343 : vector<2x128xf32>
    %345 = math.exp %344 : vector<2x128xf32>
    %cst_105 = arith.constant 1.000000e+00 : f32
    %346 = vector.broadcast %cst_105 : f32 to vector<2x128xf32>
    %347 = arith.addf %346, %345 : vector<2x128xf32>
    %348 = arith.divf %346, %347 : vector<2x128xf32>
    %349 = arith.mulf %340, %288 : vector<2x128xf32>
    %350 = arith.mulf %334, %342 : vector<2x128xf32>
    %351 = arith.addf %349, %350 : vector<2x128xf32>
    %352 = math.tanh %351 : vector<2x128xf32>
    %353 = arith.mulf %348, %352 : vector<2x128xf32>
    %c0_106 = arith.constant 0 : index
    %c0_107 = arith.constant 0 : index
    %354 = vector.load %arg5[%c0_106, %c0_107] : memref<128x512xf32, #tpu.memory_space<vmem>>, vector<128x512xf32>
    %c0_108 = arith.constant 0 : index
    %c0_109 = arith.constant 0 : index
    %355 = vector.load %arg4[%c0_108, %c0_109] : memref<128x512xf32, #tpu.memory_space<vmem>>, vector<128x512xf32>
    %cst_110 = arith.constant dense<0.000000e+00> : vector<2x512xf32>
    %356 = tpu.matmul %353, %355, %cst_110 {dimension_numbers = #tpu.dot_dimension_numbers<[1], [0], [0], [1], [0, 0, 1, 1], [], []>} : vector<2x128xf32>, vector<128x512xf32>, vector<2x512xf32> -> vector<2x512xf32>
    %cst_111 = arith.constant dense<0.000000e+00> : vector<2x512xf32>
    %357 = tpu.matmul %323, %354, %cst_111 {dimension_numbers = #tpu.dot_dimension_numbers<[1], [0], [0], [1], [0, 0, 1, 1], [], []>} : vector<2x128xf32>, vector<128x512xf32>, vector<2x512xf32> -> vector<2x512xf32>
    %358 = arith.addf %356, %357 : vector<2x512xf32>
    %c0_112 = arith.constant 0 : index
    %c0_113 = arith.constant 0 : index
    %359 = vector.load %arg6[%c0_112, %c0_113] : memref<1x512xf32, #tpu.memory_space<vmem>>, vector<1x512xf32>
    %360 = vector.broadcast %359 : vector<1x512xf32> to vector<2x512xf32>
    %361 = arith.addf %358, %360 : vector<2x512xf32>
    %362 = vector.extract_strided_slice %361 {offsets = [0, 0], sizes = [2, 128], strides = [1, 1]} : vector<2x512xf32> to vector<2x128xf32>
    %363 = arith.negf %362 : vector<2x128xf32>
    %364 = math.exp %363 : vector<2x128xf32>
    %cst_114 = arith.constant 1.000000e+00 : f32
    %365 = vector.broadcast %cst_114 : f32 to vector<2x128xf32>
    %366 = arith.addf %365, %364 : vector<2x128xf32>
    %367 = arith.divf %365, %366 : vector<2x128xf32>
    %368 = vector.extract_strided_slice %361 {offsets = [0, 128], sizes = [2, 128], strides = [1, 1]} : vector<2x512xf32> to vector<2x128xf32>
    %369 = arith.negf %368 : vector<2x128xf32>
    %370 = math.exp %369 : vector<2x128xf32>
    %cst_115 = arith.constant 1.000000e+00 : f32
    %371 = vector.broadcast %cst_115 : f32 to vector<2x128xf32>
    %372 = arith.addf %371, %370 : vector<2x128xf32>
    %373 = arith.divf %371, %372 : vector<2x128xf32>
    %374 = vector.extract_strided_slice %361 {offsets = [0, 256], sizes = [2, 128], strides = [1, 1]} : vector<2x512xf32> to vector<2x128xf32>
    %375 = math.tanh %374 : vector<2x128xf32>
    %376 = vector.extract_strided_slice %361 {offsets = [0, 384], sizes = [2, 128], strides = [1, 1]} : vector<2x512xf32> to vector<2x128xf32>
    %377 = arith.negf %376 : vector<2x128xf32>
    %378 = math.exp %377 : vector<2x128xf32>
    %cst_116 = arith.constant 1.000000e+00 : f32
    %379 = vector.broadcast %cst_116 : f32 to vector<2x128xf32>
    %380 = arith.addf %379, %378 : vector<2x128xf32>
    %381 = arith.divf %379, %380 : vector<2x128xf32>
    %382 = arith.mulf %373, %321 : vector<2x128xf32>
    %383 = arith.mulf %367, %375 : vector<2x128xf32>
    %384 = arith.addf %382, %383 : vector<2x128xf32>
    %385 = math.tanh %384 : vector<2x128xf32>
    %386 = arith.mulf %381, %385 : vector<2x128xf32>
    %c10 = arith.constant 10 : index
    %c0_117 = arith.constant 0 : index
    %387 = vector.load %arg7[%c10, %c0_117] : memref<18x128xf32, #tpu.memory_space<vmem>>, vector<2x128xf32>
    tpu.vector_store %arg7[%c10, %c0_117], %386 {strides = array<i32>} : memref<18x128xf32, #tpu.memory_space<vmem>>, vector<2x128xf32>,
    %c0_118 = arith.constant 0 : index
    %c0_119 = arith.constant 0 : index
    %388 = vector.load %arg2[%c0_118, %c0_119] : memref<128x512xf32, #tpu.memory_space<vmem>>, vector<128x512xf32>
    %389 = vector.extract_strided_slice %5 {offsets = [12, 0], sizes = [2, 512], strides = [1, 1]} : vector<18x512xf32> to vector<2x512xf32>
    %cst_120 = arith.constant dense<0.000000e+00> : vector<2x512xf32>
    %390 = tpu.matmul %353, %388, %cst_120 {dimension_numbers = #tpu.dot_dimension_numbers<[1], [0], [0], [1], [0, 0, 1, 1], [], []>} : vector<2x128xf32>, vector<128x512xf32>, vector<2x512xf32> -> vector<2x512xf32>
    %391 = arith.addf %389, %390 : vector<2x512xf32>
    %392 = vector.extract_strided_slice %391 {offsets = [0, 0], sizes = [2, 128], strides = [1, 1]} : vector<2x512xf32> to vector<2x128xf32>
    %393 = arith.negf %392 : vector<2x128xf32>
    %394 = math.exp %393 : vector<2x128xf32>
    %cst_121 = arith.constant 1.000000e+00 : f32
    %395 = vector.broadcast %cst_121 : f32 to vector<2x128xf32>
    %396 = arith.addf %395, %394 : vector<2x128xf32>
    %397 = arith.divf %395, %396 : vector<2x128xf32>
    %398 = vector.extract_strided_slice %391 {offsets = [0, 128], sizes = [2, 128], strides = [1, 1]} : vector<2x512xf32> to vector<2x128xf32>
    %399 = arith.negf %398 : vector<2x128xf32>
    %400 = math.exp %399 : vector<2x128xf32>
    %cst_122 = arith.constant 1.000000e+00 : f32
    %401 = vector.broadcast %cst_122 : f32 to vector<2x128xf32>
    %402 = arith.addf %401, %400 : vector<2x128xf32>
    %403 = arith.divf %401, %402 : vector<2x128xf32>
    %404 = vector.extract_strided_slice %391 {offsets = [0, 256], sizes = [2, 128], strides = [1, 1]} : vector<2x512xf32> to vector<2x128xf32>
    %405 = math.tanh %404 : vector<2x128xf32>
    %406 = vector.extract_strided_slice %391 {offsets = [0, 384], sizes = [2, 128], strides = [1, 1]} : vector<2x512xf32> to vector<2x128xf32>
    %407 = arith.negf %406 : vector<2x128xf32>
    %408 = math.exp %407 : vector<2x128xf32>
    %cst_123 = arith.constant 1.000000e+00 : f32
    %409 = vector.broadcast %cst_123 : f32 to vector<2x128xf32>
    %410 = arith.addf %409, %408 : vector<2x128xf32>
    %411 = arith.divf %409, %410 : vector<2x128xf32>
    %412 = arith.mulf %403, %351 : vector<2x128xf32>
    %413 = arith.mulf %397, %405 : vector<2x128xf32>
    %414 = arith.addf %412, %413 : vector<2x128xf32>
    %415 = math.tanh %414 : vector<2x128xf32>
    %416 = arith.mulf %411, %415 : vector<2x128xf32>
    %c0_124 = arith.constant 0 : index
    %c0_125 = arith.constant 0 : index
    %417 = vector.load %arg5[%c0_124, %c0_125] : memref<128x512xf32, #tpu.memory_space<vmem>>, vector<128x512xf32>
    %c0_126 = arith.constant 0 : index
    %c0_127 = arith.constant 0 : index
    %418 = vector.load %arg4[%c0_126, %c0_127] : memref<128x512xf32, #tpu.memory_space<vmem>>, vector<128x512xf32>
    %cst_128 = arith.constant dense<0.000000e+00> : vector<2x512xf32>
    %419 = tpu.matmul %416, %418, %cst_128 {dimension_numbers = #tpu.dot_dimension_numbers<[1], [0], [0], [1], [0, 0, 1, 1], [], []>} : vector<2x128xf32>, vector<128x512xf32>, vector<2x512xf32> -> vector<2x512xf32>
    %cst_129 = arith.constant dense<0.000000e+00> : vector<2x512xf32>
    %420 = tpu.matmul %386, %417, %cst_129 {dimension_numbers = #tpu.dot_dimension_numbers<[1], [0], [0], [1], [0, 0, 1, 1], [], []>} : vector<2x128xf32>, vector<128x512xf32>, vector<2x512xf32> -> vector<2x512xf32>
    %421 = arith.addf %419, %420 : vector<2x512xf32>
    %c0_130 = arith.constant 0 : index
    %c0_131 = arith.constant 0 : index
    %422 = vector.load %arg6[%c0_130, %c0_131] : memref<1x512xf32, #tpu.memory_space<vmem>>, vector<1x512xf32>
    %423 = vector.broadcast %422 : vector<1x512xf32> to vector<2x512xf32>
    %424 = arith.addf %421, %423 : vector<2x512xf32>
    %425 = vector.extract_strided_slice %424 {offsets = [0, 0], sizes = [2, 128], strides = [1, 1]} : vector<2x512xf32> to vector<2x128xf32>
    %426 = arith.negf %425 : vector<2x128xf32>
    %427 = math.exp %426 : vector<2x128xf32>
    %cst_132 = arith.constant 1.000000e+00 : f32
    %428 = vector.broadcast %cst_132 : f32 to vector<2x128xf32>
    %429 = arith.addf %428, %427 : vector<2x128xf32>
    %430 = arith.divf %428, %429 : vector<2x128xf32>
    %431 = vector.extract_strided_slice %424 {offsets = [0, 128], sizes = [2, 128], strides = [1, 1]} : vector<2x512xf32> to vector<2x128xf32>
    %432 = arith.negf %431 : vector<2x128xf32>
    %433 = math.exp %432 : vector<2x128xf32>
    %cst_133 = arith.constant 1.000000e+00 : f32
    %434 = vector.broadcast %cst_133 : f32 to vector<2x128xf32>
    %435 = arith.addf %434, %433 : vector<2x128xf32>
    %436 = arith.divf %434, %435 : vector<2x128xf32>
    %437 = vector.extract_strided_slice %424 {offsets = [0, 256], sizes = [2, 128], strides = [1, 1]} : vector<2x512xf32> to vector<2x128xf32>
    %438 = math.tanh %437 : vector<2x128xf32>
    %439 = vector.extract_strided_slice %424 {offsets = [0, 384], sizes = [2, 128], strides = [1, 1]} : vector<2x512xf32> to vector<2x128xf32>
    %440 = arith.negf %439 : vector<2x128xf32>
    %441 = math.exp %440 : vector<2x128xf32>
    %cst_134 = arith.constant 1.000000e+00 : f32
    %442 = vector.broadcast %cst_134 : f32 to vector<2x128xf32>
    %443 = arith.addf %442, %441 : vector<2x128xf32>
    %444 = arith.divf %442, %443 : vector<2x128xf32>
    %445 = arith.mulf %436, %384 : vector<2x128xf32>
    %446 = arith.mulf %430, %438 : vector<2x128xf32>
    %447 = arith.addf %445, %446 : vector<2x128xf32>
    %448 = math.tanh %447 : vector<2x128xf32>
    %449 = arith.mulf %444, %448 : vector<2x128xf32>
    %c12 = arith.constant 12 : index
    %c0_135 = arith.constant 0 : index
    %450 = vector.load %arg7[%c12, %c0_135] : memref<18x128xf32, #tpu.memory_space<vmem>>, vector<2x128xf32>
    tpu.vector_store %arg7[%c12, %c0_135], %449 {strides = array<i32>} : memref<18x128xf32, #tpu.memory_space<vmem>>, vector<2x128xf32>,
    %c0_136 = arith.constant 0 : index
    %c0_137 = arith.constant 0 : index
    %451 = vector.load %arg2[%c0_136, %c0_137] : memref<128x512xf32, #tpu.memory_space<vmem>>, vector<128x512xf32>
    %452 = vector.extract_strided_slice %5 {offsets = [14, 0], sizes = [2, 512], strides = [1, 1]} : vector<18x512xf32> to vector<2x512xf32>
    %cst_138 = arith.constant dense<0.000000e+00> : vector<2x512xf32>
    %453 = tpu.matmul %416, %451, %cst_138 {dimension_numbers = #tpu.dot_dimension_numbers<[1], [0], [0], [1], [0, 0, 1, 1], [], []>} : vector<2x128xf32>, vector<128x512xf32>, vector<2x512xf32> -> vector<2x512xf32>
    %454 = arith.addf %452, %453 : vector<2x512xf32>
    %455 = vector.extract_strided_slice %454 {offsets = [0, 0], sizes = [2, 128], strides = [1, 1]} : vector<2x512xf32> to vector<2x128xf32>
    %456 = arith.negf %455 : vector<2x128xf32>
    %457 = math.exp %456 : vector<2x128xf32>
    %cst_139 = arith.constant 1.000000e+00 : f32
    %458 = vector.broadcast %cst_139 : f32 to vector<2x128xf32>
    %459 = arith.addf %458, %457 : vector<2x128xf32>
    %460 = arith.divf %458, %459 : vector<2x128xf32>
    %461 = vector.extract_strided_slice %454 {offsets = [0, 128], sizes = [2, 128], strides = [1, 1]} : vector<2x512xf32> to vector<2x128xf32>
    %462 = arith.negf %461 : vector<2x128xf32>
    %463 = math.exp %462 : vector<2x128xf32>
    %cst_140 = arith.constant 1.000000e+00 : f32
    %464 = vector.broadcast %cst_140 : f32 to vector<2x128xf32>
    %465 = arith.addf %464, %463 : vector<2x128xf32>
    %466 = arith.divf %464, %465 : vector<2x128xf32>
    %467 = vector.extract_strided_slice %454 {offsets = [0, 256], sizes = [2, 128], strides = [1, 1]} : vector<2x512xf32> to vector<2x128xf32>
    %468 = math.tanh %467 : vector<2x128xf32>
    %469 = vector.extract_strided_slice %454 {offsets = [0, 384], sizes = [2, 128], strides = [1, 1]} : vector<2x512xf32> to vector<2x128xf32>
    %470 = arith.negf %469 : vector<2x128xf32>
    %471 = math.exp %470 : vector<2x128xf32>
    %cst_141 = arith.constant 1.000000e+00 : f32
    %472 = vector.broadcast %cst_141 : f32 to vector<2x128xf32>
    %473 = arith.addf %472, %471 : vector<2x128xf32>
    %474 = arith.divf %472, %473 : vector<2x128xf32>
    %475 = arith.mulf %466, %414 : vector<2x128xf32>
    %476 = arith.mulf %460, %468 : vector<2x128xf32>
    %477 = arith.addf %475, %476 : vector<2x128xf32>
    %478 = math.tanh %477 : vector<2x128xf32>
    %479 = arith.mulf %474, %478 : vector<2x128xf32>
    %c0_142 = arith.constant 0 : index
    %c0_143 = arith.constant 0 : index
    %480 = vector.load %arg5[%c0_142, %c0_143] : memref<128x512xf32, #tpu.memory_space<vmem>>, vector<128x512xf32>
    %c0_144 = arith.constant 0 : index
    %c0_145 = arith.constant 0 : index
    %481 = vector.load %arg4[%c0_144, %c0_145] : memref<128x512xf32, #tpu.memory_space<vmem>>, vector<128x512xf32>
    %cst_146 = arith.constant dense<0.000000e+00> : vector<2x512xf32>
    %482 = tpu.matmul %479, %481, %cst_146 {dimension_numbers = #tpu.dot_dimension_numbers<[1], [0], [0], [1], [0, 0, 1, 1], [], []>} : vector<2x128xf32>, vector<128x512xf32>, vector<2x512xf32> -> vector<2x512xf32>
    %cst_147 = arith.constant dense<0.000000e+00> : vector<2x512xf32>
    %483 = tpu.matmul %449, %480, %cst_147 {dimension_numbers = #tpu.dot_dimension_numbers<[1], [0], [0], [1], [0, 0, 1, 1], [], []>} : vector<2x128xf32>, vector<128x512xf32>, vector<2x512xf32> -> vector<2x512xf32>
    %484 = arith.addf %482, %483 : vector<2x512xf32>
    %c0_148 = arith.constant 0 : index
    %c0_149 = arith.constant 0 : index
    %485 = vector.load %arg6[%c0_148, %c0_149] : memref<1x512xf32, #tpu.memory_space<vmem>>, vector<1x512xf32>
    %486 = vector.broadcast %485 : vector<1x512xf32> to vector<2x512xf32>
    %487 = arith.addf %484, %486 : vector<2x512xf32>
    %488 = vector.extract_strided_slice %487 {offsets = [0, 0], sizes = [2, 128], strides = [1, 1]} : vector<2x512xf32> to vector<2x128xf32>
    %489 = arith.negf %488 : vector<2x128xf32>
    %490 = math.exp %489 : vector<2x128xf32>
    %cst_150 = arith.constant 1.000000e+00 : f32
    %491 = vector.broadcast %cst_150 : f32 to vector<2x128xf32>
    %492 = arith.addf %491, %490 : vector<2x128xf32>
    %493 = arith.divf %491, %492 : vector<2x128xf32>
    %494 = vector.extract_strided_slice %487 {offsets = [0, 128], sizes = [2, 128], strides = [1, 1]} : vector<2x512xf32> to vector<2x128xf32>
    %495 = arith.negf %494 : vector<2x128xf32>
    %496 = math.exp %495 : vector<2x128xf32>
    %cst_151 = arith.constant 1.000000e+00 : f32
    %497 = vector.broadcast %cst_151 : f32 to vector<2x128xf32>
    %498 = arith.addf %497, %496 : vector<2x128xf32>
    %499 = arith.divf %497, %498 : vector<2x128xf32>
    %500 = vector.extract_strided_slice %487 {offsets = [0, 256], sizes = [2, 128], strides = [1, 1]} : vector<2x512xf32> to vector<2x128xf32>
    %501 = math.tanh %500 : vector<2x128xf32>
    %502 = vector.extract_strided_slice %487 {offsets = [0, 384], sizes = [2, 128], strides = [1, 1]} : vector<2x512xf32> to vector<2x128xf32>
    %503 = arith.negf %502 : vector<2x128xf32>
    %504 = math.exp %503 : vector<2x128xf32>
    %cst_152 = arith.constant 1.000000e+00 : f32
    %505 = vector.broadcast %cst_152 : f32 to vector<2x128xf32>
    %506 = arith.addf %505, %504 : vector<2x128xf32>
    %507 = arith.divf %505, %506 : vector<2x128xf32>
    %508 = arith.mulf %499, %447 : vector<2x128xf32>
    %509 = arith.mulf %493, %501 : vector<2x128xf32>
    %510 = arith.addf %508, %509 : vector<2x128xf32>
    %511 = math.tanh %510 : vector<2x128xf32>
    %512 = arith.mulf %507, %511 : vector<2x128xf32>
    %c14 = arith.constant 14 : index
    %c0_153 = arith.constant 0 : index
    %513 = vector.load %arg7[%c14, %c0_153] : memref<18x128xf32, #tpu.memory_space<vmem>>, vector<2x128xf32>
    tpu.vector_store %arg7[%c14, %c0_153], %512 {strides = array<i32>} : memref<18x128xf32, #tpu.memory_space<vmem>>, vector<2x128xf32>,
    %c0_154 = arith.constant 0 : index
    %c0_155 = arith.constant 0 : index
    %514 = vector.load %arg2[%c0_154, %c0_155] : memref<128x512xf32, #tpu.memory_space<vmem>>, vector<128x512xf32>
    %515 = vector.extract_strided_slice %5 {offsets = [16, 0], sizes = [2, 512], strides = [1, 1]} : vector<18x512xf32> to vector<2x512xf32>
    %cst_156 = arith.constant dense<0.000000e+00> : vector<2x512xf32>
    %516 = tpu.matmul %479, %514, %cst_156 {dimension_numbers = #tpu.dot_dimension_numbers<[1], [0], [0], [1], [0, 0, 1, 1], [], []>} : vector<2x128xf32>, vector<128x512xf32>, vector<2x512xf32> -> vector<2x512xf32>
    %517 = arith.addf %515, %516 : vector<2x512xf32>
    %518 = vector.extract_strided_slice %517 {offsets = [0, 0], sizes = [2, 128], strides = [1, 1]} : vector<2x512xf32> to vector<2x128xf32>
    %519 = arith.negf %518 : vector<2x128xf32>
    %520 = math.exp %519 : vector<2x128xf32>
    %cst_157 = arith.constant 1.000000e+00 : f32
    %521 = vector.broadcast %cst_157 : f32 to vector<2x128xf32>
    %522 = arith.addf %521, %520 : vector<2x128xf32>
    %523 = arith.divf %521, %522 : vector<2x128xf32>
    %524 = vector.extract_strided_slice %517 {offsets = [0, 128], sizes = [2, 128], strides = [1, 1]} : vector<2x512xf32> to vector<2x128xf32>
    %525 = arith.negf %524 : vector<2x128xf32>
    %526 = math.exp %525 : vector<2x128xf32>
    %cst_158 = arith.constant 1.000000e+00 : f32
    %527 = vector.broadcast %cst_158 : f32 to vector<2x128xf32>
    %528 = arith.addf %527, %526 : vector<2x128xf32>
    %529 = arith.divf %527, %528 : vector<2x128xf32>
    %530 = vector.extract_strided_slice %517 {offsets = [0, 256], sizes = [2, 128], strides = [1, 1]} : vector<2x512xf32> to vector<2x128xf32>
    %531 = math.tanh %530 : vector<2x128xf32>
    %532 = vector.extract_strided_slice %517 {offsets = [0, 384], sizes = [2, 128], strides = [1, 1]} : vector<2x512xf32> to vector<2x128xf32>
    %533 = arith.negf %532 : vector<2x128xf32>
    %534 = math.exp %533 : vector<2x128xf32>
    %cst_159 = arith.constant 1.000000e+00 : f32
    %535 = vector.broadcast %cst_159 : f32 to vector<2x128xf32>
    %536 = arith.addf %535, %534 : vector<2x128xf32>
    %537 = arith.divf %535, %536 : vector<2x128xf32>
    %538 = arith.mulf %529, %477 : vector<2x128xf32>
    %539 = arith.mulf %523, %531 : vector<2x128xf32>
    %540 = arith.addf %538, %539 : vector<2x128xf32>
    %541 = math.tanh %540 : vector<2x128xf32>
    %542 = arith.mulf %537, %541 : vector<2x128xf32>
    %c0_160 = arith.constant 0 : index
    %c0_161 = arith.constant 0 : index
    %543 = vector.load %arg5[%c0_160, %c0_161] : memref<128x512xf32, #tpu.memory_space<vmem>>, vector<128x512xf32>
    %c0_162 = arith.constant 0 : index
    %c0_163 = arith.constant 0 : index
    %544 = vector.load %arg4[%c0_162, %c0_163] : memref<128x512xf32, #tpu.memory_space<vmem>>, vector<128x512xf32>
    %cst_164 = arith.constant dense<0.000000e+00> : vector<2x512xf32>
    %545 = tpu.matmul %542, %544, %cst_164 {dimension_numbers = #tpu.dot_dimension_numbers<[1], [0], [0], [1], [0, 0, 1, 1], [], []>} : vector<2x128xf32>, vector<128x512xf32>, vector<2x512xf32> -> vector<2x512xf32>
    %cst_165 = arith.constant dense<0.000000e+00> : vector<2x512xf32>
    %546 = tpu.matmul %512, %543, %cst_165 {dimension_numbers = #tpu.dot_dimension_numbers<[1], [0], [0], [1], [0, 0, 1, 1], [], []>} : vector<2x128xf32>, vector<128x512xf32>, vector<2x512xf32> -> vector<2x512xf32>
    %547 = arith.addf %545, %546 : vector<2x512xf32>
    %c0_166 = arith.constant 0 : index
    %c0_167 = arith.constant 0 : index
    %548 = vector.load %arg6[%c0_166, %c0_167] : memref<1x512xf32, #tpu.memory_space<vmem>>, vector<1x512xf32>
    %549 = vector.broadcast %548 : vector<1x512xf32> to vector<2x512xf32>
    %550 = arith.addf %547, %549 : vector<2x512xf32>
    %551 = vector.extract_strided_slice %550 {offsets = [0, 0], sizes = [2, 128], strides = [1, 1]} : vector<2x512xf32> to vector<2x128xf32>
    %552 = arith.negf %551 : vector<2x128xf32>
    %553 = math.exp %552 : vector<2x128xf32>
    %cst_168 = arith.constant 1.000000e+00 : f32
    %554 = vector.broadcast %cst_168 : f32 to vector<2x128xf32>
    %555 = arith.addf %554, %553 : vector<2x128xf32>
    %556 = arith.divf %554, %555 : vector<2x128xf32>
    %557 = vector.extract_strided_slice %550 {offsets = [0, 128], sizes = [2, 128], strides = [1, 1]} : vector<2x512xf32> to vector<2x128xf32>
    %558 = arith.negf %557 : vector<2x128xf32>
    %559 = math.exp %558 : vector<2x128xf32>
    %cst_169 = arith.constant 1.000000e+00 : f32
    %560 = vector.broadcast %cst_169 : f32 to vector<2x128xf32>
    %561 = arith.addf %560, %559 : vector<2x128xf32>
    %562 = arith.divf %560, %561 : vector<2x128xf32>
    %563 = vector.extract_strided_slice %550 {offsets = [0, 256], sizes = [2, 128], strides = [1, 1]} : vector<2x512xf32> to vector<2x128xf32>
    %564 = math.tanh %563 : vector<2x128xf32>
    %565 = vector.extract_strided_slice %550 {offsets = [0, 384], sizes = [2, 128], strides = [1, 1]} : vector<2x512xf32> to vector<2x128xf32>
    %566 = arith.negf %565 : vector<2x128xf32>
    %567 = math.exp %566 : vector<2x128xf32>
    %cst_170 = arith.constant 1.000000e+00 : f32
    %568 = vector.broadcast %cst_170 : f32 to vector<2x128xf32>
    %569 = arith.addf %568, %567 : vector<2x128xf32>
    %570 = arith.divf %568, %569 : vector<2x128xf32>
    %571 = arith.mulf %562, %510 : vector<2x128xf32>
    %572 = arith.mulf %556, %564 : vector<2x128xf32>
    %573 = arith.addf %571, %572 : vector<2x128xf32>
    %574 = math.tanh %573 : vector<2x128xf32>
    %575 = arith.mulf %570, %574 : vector<2x128xf32>
    %c16 = arith.constant 16 : index
    %c0_171 = arith.constant 0 : index
    %576 = vector.load %arg7[%c16, %c0_171] : memref<18x128xf32, #tpu.memory_space<vmem>>, vector<2x128xf32>
    tpu.vector_store %arg7[%c16, %c0_171], %575 {strides = array<i32>} : memref<18x128xf32, #tpu.memory_space<vmem>>, vector<2x128xf32>,
    return
  }
}

</mosaic_0001>

<llo_original>
// kernel: cnn_to_rnn_forward.5
$region0: #{cnn_to_rnn_forward.5}
  #allocation0 [shape = 'u32[]', space=smem, size = 0x4, offset = 0x4, fixed_abs, tag = 'smem constant byte address 0x4 - core index']
  #allocation1 [shape = 'u32[144,128]{1,0:T(1,128)}', space=vmem, size = 0x12000, scoped, tag = 'internal scratch']
  %s0 = inlined_call_operand.vmem [shape: f32[18,128], index: 0, kind: input, shape index: {}]
  %s1 = inlined_call_operand.vmem [shape: f32[128,128], index: 1, kind: input, shape index: {}]
  %s2 = inlined_call_operand.vmem [shape: f32[1,128], index: 2, kind: input, shape index: {}]
  %s3 = inlined_call_operand.vmem [shape: f32[18,128], index: 3, kind: output, shape index: {}]
  %s4 = sld [smem:[#allocation0]]
  $region22: #{cnn_to_rnn_forward.5} parent=0
    _
  %s6 = ssub.s32 1, %s4
  %s7 = scalar_select 0, %s6, %s4
  // Predicated region
  $region2: #{cnn_to_rnn_forward.5} parent=0 // pred_check
    _
  $region3: #{cnn_to_rnn_forward.5} parent=0 // pred_check_branch
    %9 = sbr.rel (0) target = $region5
  $region4: #{cnn_to_rnn_forward.5} parent=0 // pred_region
    _
  $region5: #{cnn_to_rnn_forward.5} parent=0 // pred_fallthru
    _
  // Predicated region
  $region6: #{cnn_to_rnn_forward.5} parent=0 // pred_check
    _
  $region7: #{cnn_to_rnn_forward.5} parent=0 // pred_check_branch
    %11 = sbr.rel (0) target = $region9
  $region8: #{cnn_to_rnn_forward.5} parent=0 // pred_region
    _
  $region9: #{cnn_to_rnn_forward.5} parent=0 // pred_fallthru
    _
  // Predicated region
  $region10: #{cnn_to_rnn_forward.5} parent=0 // pred_check
    _
  $region11: #{cnn_to_rnn_forward.5} parent=0 // pred_check_branch
    %13 = sbr.rel (0) target = $region13
  $region12: #{cnn_to_rnn_forward.5} parent=0 // pred_region
    _
  $region13: #{cnn_to_rnn_forward.5} parent=0 // pred_fallthru
    _
  %v14 = vld [vmem:[%s0] sm:$0xff]
  %v15 = vld [vmem:[%s0 + $0x8] sm:$0xff]
  %v16 = vld [vmem:[%s0 + $0x10] sm:$0x3]
  %v17 = vld [vmem:[%s1] sm:$0xff]
  %v18 = vld [vmem:[%s1 + $0x8] sm:$0xff]
  %v19 = vld [vmem:[%s1 + $0x10] sm:$0xff]
  %v20 = vld [vmem:[%s1 + $0x18] sm:$0xff]
  %v21 = vld [vmem:[%s1 + $0x20] sm:$0xff]
  %v22 = vld [vmem:[%s1 + $0x28] sm:$0xff]
  %v23 = vld [vmem:[%s1 + $0x30] sm:$0xff]
  %v24 = vld [vmem:[%s1 + $0x38] sm:$0xff]
  %v25 = vld [vmem:[%s1 + $0x40] sm:$0xff]
  %v26 = vld [vmem:[%s1 + $0x48] sm:$0xff]
  %v27 = vld [vmem:[%s1 + $0x50] sm:$0xff]
  %v28 = vld [vmem:[%s1 + $0x58] sm:$0xff]
  %v29 = vld [vmem:[%s1 + $0x60] sm:$0xff]
  %v30 = vld [vmem:[%s1 + $0x68] sm:$0xff]
  %v31 = vld [vmem:[%s1 + $0x70] sm:$0xff]
  %v32 = vld [vmem:[%s1 + $0x78] sm:$0xff]
  %v33 = vld [vmem:[%s2] sm:$0x1]
  %v35 = vlaneseq
  %v36 = vshrl.u32 %v35, 7
  %v37 = vsub.s32 0, %v36
  %v38 = vrot.slane %v33, %v37
  %40 = vmatprep.subr.mxu0 0.0
  %41 = vmatpush1.msra.mxu0 %v17
  %42 = vmatprep.subr.mxu0 0.0
  %43 = vmatpush1.msra.mxu0 %v18
  %44 = vmatprep.subr.mxu0 0.0
  %45 = vmatpush1.msra.mxu0 %v19
  %46 = vmatprep.subr.mxu0 0.0
  %47 = vmatpush1.msra.mxu0 %v20
  %48 = vmatprep.subr.mxu0 0.0
  %49 = vmatpush1.msra.mxu0 %v21
  %50 = vmatprep.subr.mxu0 0.0
  %51 = vmatpush1.msra.mxu0 %v22
  %52 = vmatprep.subr.mxu0 0.0
  %53 = vmatpush1.msra.mxu0 %v23
  %54 = vmatprep.subr.mxu0 0.0
  %55 = vmatpush1.msra.mxu0 %v24
  %56 = vmatprep.subr.mxu0 0.0
  %57 = vmatpush1.msra.mxu0 %v25
  %58 = vmatprep.subr.mxu0 0.0
  %59 = vmatpush1.msra.mxu0 %v26
  %60 = vmatprep.subr.mxu0 0.0
  %61 = vmatpush1.msra.mxu0 %v27
  %62 = vmatprep.subr.mxu0 0.0
  %63 = vmatpush1.msra.mxu0 %v28
  %64 = vmatprep.subr.mxu0 0.0
  %65 = vmatpush1.msra.mxu0 %v29
  %66 = vmatprep.subr.mxu0 0.0
  %67 = vmatpush1.msra.mxu0 %v30
  %68 = vmatprep.subr.mxu0 0.0
  %69 = vmatpush1.msra.mxu0 %v31
  %70 = vmatprep.subr.mxu0 0.0
  %71 = vmatpush1.msra.mxu0 %v32
  %72 = vmatprep.subr.mxu0 0.0
  %73 = vmatpush1.msra.mxu0 0.0
  %74 = vmatprep.subr.mxu0 0.0
  %75 = vmatpush1.msra.mxu0 0.0
  %76 = vmatprep.subr.mxu0 0.0
  %77 = vmatpush1.msra.mxu0 0.0
  %78 = vmatprep.subr.mxu0 0.0
  %79 = vmatpush1.msra.mxu0 0.0
  %80 = vmatprep.subr.mxu0 0.0
  %81 = vmatpush1.msra.mxu0 0.0
  %82 = vmatprep.subr.mxu0 0.0
  %83 = vmatpush1.msra.mxu0 0.0
  %84 = vmatprep.subr.mxu0 0.0
  %85 = vmatpush1.msra.mxu0 0.0
  %86 = vmatprep.subr.mxu0 0.0
  %87 = vmatpush1.msra.mxu0 0.0
  %88 = vmatprep.subr.mxu0 0.0
  %89 = vmatpush1.msra.mxu0 0.0
  %90 = vmatprep.subr.mxu0 0.0
  %91 = vmatpush1.msra.mxu0 0.0
  %92 = vmatprep.subr.mxu0 0.0
  %93 = vmatpush1.msra.mxu0 0.0
  %94 = vmatprep.subr.mxu0 0.0
  %95 = vmatpush1.msra.mxu0 0.0
  %96 = vmatprep.subr.mxu0 0.0
  %97 = vmatpush1.msra.mxu0 0.0
  %98 = vmatprep.subr.mxu0 0.0
  %99 = vmatpush1.msra.mxu0 0.0
  %100 = vmatprep.subr.mxu0 0.0
  %101 = vmatpush1.msra.mxu0 0.0
  %102 = vmatprep.subr.mxu0 0.0
  %103 = vmatpush1.msra.mxu0 0.0
  %104 = vmatprep.mubr.f32.mxu0 0.0
  %105 = vmatmul.mubr.f32.gmra.mrb[0].mxu0 %v14
  %v106 = vpop.f32.mrb[0].mxu0
  %v107 = vadd.f32 %v38, %v106
  %v108 = vpop.f32.mrb[0].mxu0
  %109 = vmatprep.mubr.f32.mxu0 0.0
  %110 = vmatmul.mubr.f32.gmra.mrb[0].mxu0 %v15
  %v111 = vpop.f32.mrb[0].mxu0
  %v112 = vadd.f32 %v38, %v111
  %v113 = vpop.f32.mrb[0].mxu0
  %114 = vmatprep.mubr.f32.mxu0 0.0
  %115 = vmatmul.mubr.f32.gmra.mrb[0].mxu0 %v16
  %v116 = vpop.f32.mrb[0].mxu0
  %v117 = vadd.f32 %v38, %v116
  %v118 = vpop.f32.mrb[0].mxu0
  %119 = vdwg.mxu0
  %120 = vst [vmem:[%s3] sm:$0xff] %v107
  %121 = vst [vmem:[%s3 + $0x8] sm:$0xff] %v112
  %122 = vst [vmem:[%s3 + $0x10] sm:$0x3] %v117
  // Predicated region
  $region14: #{cnn_to_rnn_forward.5} parent=0 // pred_check
    _
  $region15: #{cnn_to_rnn_forward.5} parent=0 // pred_check_branch
    %124 = sbr.rel (0) target = $region17
  $region16: #{cnn_to_rnn_forward.5} parent=0 // pred_region
    _
  $region17: #{cnn_to_rnn_forward.5} parent=0 // pred_fallthru
    _
  // Predicated region
  $region18: #{cnn_to_rnn_forward.5} parent=0 // pred_check
    _
  $region19: #{cnn_to_rnn_forward.5} parent=0 // pred_check_branch
    %126 = sbr.rel (0) target = $region21
  $region20: #{cnn_to_rnn_forward.5} parent=0 // pred_region
    _
  $region21: #{cnn_to_rnn_forward.5} parent=0 // pred_fallthru
    _

// kernel: cnn_to_rnn_forward.3
$region0: #{cnn_to_rnn_forward.3}
  #allocation0 [shape = 'u32[]', space=smem, size = 0x4, offset = 0x4, fixed_abs, tag = 'smem constant byte address 0x4 - core index']
  #allocation1 [shape = 'u32[144,128]{1,0:T(1,128)}', space=vmem, size = 0x12000, scoped, tag = 'internal scratch']
  #allocation2 [shape = 'f32[2,128]{1,0:T(2,128)}', space=vmem, size = 0x400, scoped, tag = 'scratch operand']
  %s0 = inlined_call_operand.vmem [shape: f32[512,128], index: 0, kind: input, shape index: {}]
  %s1 = inlined_call_operand.vmem [shape: f32[2,512], index: 1, kind: input, shape index: {}]
  %s2 = inlined_call_operand.vmem [shape: f32[128,128], index: 2, kind: input, shape index: {}]
  %s3 = inlined_call_operand.vmem [shape: f32[1,128], index: 3, kind: input, shape index: {}]
  %s4 = inlined_call_operand.vmem [shape: f32[128,128], index: 4, kind: input, shape index: {}]
  %s5 = inlined_call_operand.vmem [shape: f32[1,128], index: 5, kind: input, shape index: {}]
  %s6 = inlined_call_operand.vmem [shape: f32[2,128], index: 6, kind: output, shape index: {}]
  %s7 = sld [smem:[#allocation0]]
  $region65: #{cnn_to_rnn_forward.3} parent=0
    _
  %s9 = ssub.s32 1, %s7
  %s10 = scalar_select 0, %s9, %s7
  loop: start=0, step=1, limit=4
  $region2: #{cnn_to_rnn_forward.3} parent=0 // loop_pre_header
    _
  $region3: #{cnn_to_rnn_forward.3} parent=0 // loop_header
    %s12 = sphi 0, %s16
    %p13 = scmp.ge.s32.totalorder %s12, 4
    %s22 = sphi 0, %s24
    %s25 = sphi 0, %s22
    %s26 = sphi 0, %s25
    %s42 = sphi 0, %s26
    %s48 = sphi 0, %s50
    %s51 = sphi 0, %s48
    %s52 = sphi 0, %s51
    %s68 = sphi 0, %s52
    %s72 = sphi 0, %s72
    %s74 = sphi 0, %s72
    %s75 = sphi 0, %s74
    %s89 = sphi 0, %s75
    %s93 = sphi 0, %s93
    %s95 = sphi 0, %s93
    %s96 = sphi 0, %s95
    %s110 = sphi 0, %s96
    %s114 = sphi 0, %s114
    %s116 = sphi 0, %s114
    %s117 = sphi 0, %s116
    %s131 = sphi 0, %s117
    %s135 = sphi 0, %s135
    %s137 = sphi 0, %s135
    %s138 = sphi 0, %s137
    %s152 = sphi 0, %s138
    %s156 = sphi 0, %s156
    %s158 = sphi 0, %s156
    %s159 = sphi 0, %s158
    %s173 = sphi 0, %s159
  $region4: #{cnn_to_rnn_forward.3} parent=0 // loop_header_branch
    %15 = sbr.rel (%p13) target = $region8
  $region5: #{cnn_to_rnn_forward.3} parent=0 // loop_body
    %s17 = ssub.s32 %s12, 1
    %s18 = ssub.s32 %s12, 2
    %s19 = sadd.s32 %s12, 1
    %s20 = ssub.s32 %s12, %s19
    %p21 = scmp.eq.s32.totalorder %s20, 0
    %s23 = sadd.s32 %s22, 1
    %s24 = scalar_select %p21, %s22, %s23
    %p27 = pneg %p21
    %p28 = scmp.eq.s32.totalorder %s12, 1
    %p29 = por %p27, %p28
    %p30 = scmp.ne.s32.totalorder %s22, %s25
    %p31 = scmp.eq.s32.totalorder %s12, 0
    %p32 = por %p30, %p31
    %p33 = scmp.ne.s32.totalorder %s22, %s25
    %p34 = scmp.eq.s32.totalorder %s17, 1
    %p35 = por %p33, %p34
    %p36 = scmp.ne.s32.totalorder %s25, %s26
    %p37 = scmp.eq.s32.totalorder %s17, 0
    %p38 = por %p36, %p37
    %p39 = scmp.ne.s32.totalorder %s25, %s26
    %p40 = scmp.eq.s32.totalorder %s18, 1
    %p41 = por %p39, %p40
    %p43 = scmp.ne.s32.totalorder %s26, %s42
    %p44 = scmp.eq.s32.totalorder %s18, 0
    %p45 = por %p43, %p44
    %s46 = ssub.s32 %s12, %s19
    %p47 = scmp.eq.s32.totalorder %s46, 0
    %s49 = sadd.s32 %s48, 1
    %s50 = scalar_select %p47, %s48, %s49
    %p53 = pneg %p47
    %p54 = scmp.eq.s32.totalorder %s12, 1
    %p55 = por %p53, %p54
    %p56 = scmp.ne.s32.totalorder %s48, %s51
    %p57 = scmp.eq.s32.totalorder %s12, 0
    %p58 = por %p56, %p57
    %p59 = scmp.ne.s32.totalorder %s48, %s51
    %p60 = scmp.eq.s32.totalorder %s17, 1
    %p61 = por %p59, %p60
    %p62 = scmp.ne.s32.totalorder %s51, %s52
    %p63 = scmp.eq.s32.totalorder %s17, 0
    %p64 = por %p62, %p63
    %p65 = scmp.ne.s32.totalorder %s51, %s52
    %p66 = scmp.eq.s32.totalorder %s18, 1
    %p67 = por %p65, %p66
    %p69 = scmp.ne.s32.totalorder %s52, %s68
    %p70 = scmp.eq.s32.totalorder %s18, 0
    %p71 = por %p69, %p70
    %s73 = sadd.s32 %s72, 1
    %p76 = scmp.eq.s32.totalorder %s12, 1
    %p77 = scmp.ne.s32.totalorder %s72, %s74
    %p78 = scmp.eq.s32.totalorder %s12, 0
    %p79 = por %p77, %p78
    %p80 = scmp.ne.s32.totalorder %s72, %s74
    %p81 = scmp.eq.s32.totalorder %s17, 1
    %p82 = por %p80, %p81
    %p83 = scmp.ne.s32.totalorder %s74, %s75
    %p84 = scmp.eq.s32.totalorder %s17, 0
    %p85 = por %p83, %p84
    %p86 = scmp.ne.s32.totalorder %s74, %s75
    %p87 = scmp.eq.s32.totalorder %s18, 1
    %p88 = por %p86, %p87
    %p90 = scmp.ne.s32.totalorder %s75, %s89
    %p91 = scmp.eq.s32.totalorder %s18, 0
    %p92 = por %p90, %p91
    %s94 = sadd.s32 %s93, 1
    %p97 = scmp.eq.s32.totalorder %s12, 1
    %p98 = scmp.ne.s32.totalorder %s93, %s95
    %p99 = scmp.eq.s32.totalorder %s12, 0
    %p100 = por %p98, %p99
    %p101 = scmp.ne.s32.totalorder %s93, %s95
    %p102 = scmp.eq.s32.totalorder %s17, 1
    %p103 = por %p101, %p102
    %p104 = scmp.ne.s32.totalorder %s95, %s96
    %p105 = scmp.eq.s32.totalorder %s17, 0
    %p106 = por %p104, %p105
    %p107 = scmp.ne.s32.totalorder %s95, %s96
    %p108 = scmp.eq.s32.totalorder %s18, 1
    %p109 = por %p107, %p108
    %p111 = scmp.ne.s32.totalorder %s96, %s110
    %p112 = scmp.eq.s32.totalorder %s18, 0
    %p113 = por %p111, %p112
    %s115 = sadd.s32 %s114, 1
    %p118 = scmp.eq.s32.totalorder %s12, 1
    %p119 = scmp.ne.s32.totalorder %s114, %s116
    %p120 = scmp.eq.s32.totalorder %s12, 0
    %p121 = por %p119, %p120
    %p122 = scmp.ne.s32.totalorder %s114, %s116
    %p123 = scmp.eq.s32.totalorder %s17, 1
    %p124 = por %p122, %p123
    %p125 = scmp.ne.s32.totalorder %s116, %s117
    %p126 = scmp.eq.s32.totalorder %s17, 0
    %p127 = por %p125, %p126
    %p128 = scmp.ne.s32.totalorder %s116, %s117
    %p129 = scmp.eq.s32.totalorder %s18, 1
    %p130 = por %p128, %p129
    %p132 = scmp.ne.s32.totalorder %s117, %s131
    %p133 = scmp.eq.s32.totalorder %s18, 0
    %p134 = por %p132, %p133
    %s136 = sadd.s32 %s135, 1
    %p139 = scmp.eq.s32.totalorder %s12, 1
    %p140 = scmp.ne.s32.totalorder %s135, %s137
    %p141 = scmp.eq.s32.totalorder %s12, 0
    %p142 = por %p140, %p141
    %p143 = scmp.ne.s32.totalorder %s135, %s137
    %p144 = scmp.eq.s32.totalorder %s17, 1
    %p145 = por %p143, %p144
    %p146 = scmp.ne.s32.totalorder %s137, %s138
    %p147 = scmp.eq.s32.totalorder %s17, 0
    %p148 = por %p146, %p147
    %p149 = scmp.ne.s32.totalorder %s137, %s138
    %p150 = scmp.eq.s32.totalorder %s18, 1
    %p151 = por %p149, %p150
    %p153 = scmp.ne.s32.totalorder %s138, %s152
    %p154 = scmp.eq.s32.totalorder %s18, 0
    %p155 = por %p153, %p154
    %s157 = sadd.s32 %s156, 1
    %p160 = scmp.eq.s32.totalorder %s12, 1
    %p161 = scmp.ne.s32.totalorder %s156, %s158
    %p162 = scmp.eq.s32.totalorder %s12, 0
    %p163 = por %p161, %p162
    %p164 = scmp.ne.s32.totalorder %s156, %s158
    %p165 = scmp.eq.s32.totalorder %s17, 1
    %p166 = por %p164, %p165
    %p167 = scmp.ne.s32.totalorder %s158, %s159
    %p168 = scmp.eq.s32.totalorder %s17, 0
    %p169 = por %p167, %p168
    %p170 = scmp.ne.s32.totalorder %s158, %s159
    %p171 = scmp.eq.s32.totalorder %s18, 1
    %p172 = por %p170, %p171
    %p174 = scmp.ne.s32.totalorder %s159, %s173
    %p175 = scmp.eq.s32.totalorder %s18, 0
    %p176 = por %p174, %p175
    %p177 = scmp.le.s32.totalorder 1, %s12
    %p178 = scmp.lt.s32.totalorder %s12, 3
    %p179 = pnand %p177, %p178
    %p180 = pneg %p179
    // Predicated region
    $region9: #{cnn_to_rnn_forward.3} parent=5 // pred_check
      _
    $region10: #{cnn_to_rnn_forward.3} parent=5 // pred_check_branch
      %182 = sbr.rel (%p179) target = $region12
    $region11: #{cnn_to_rnn_forward.3} parent=5 // pred_region
      %s183 = ssub.s32 %s12, 1
      // Predicated region
      $region13: #{cnn_to_rnn_forward.3} parent=11 // pred_check
        %p184 = pneg %p85
      $region14: #{cnn_to_rnn_forward.3} parent=11 // pred_check_branch
        %186 = sbr.rel (%p184) target = $region16
      $region15: #{cnn_to_rnn_forward.3} parent=11 // pred_region
        _
      $region16: #{cnn_to_rnn_forward.3} parent=11 // pred_fallthru
        _
      // Predicated region
      $region17: #{cnn_to_rnn_forward.3} parent=11 // pred_check
        %p187 = pneg %p106
      $region18: #{cnn_to_rnn_forward.3} parent=11 // pred_check_branch
        %189 = sbr.rel (%p187) target = $region20
      $region19: #{cnn_to_rnn_forward.3} parent=11 // pred_region
        _
      $region20: #{cnn_to_rnn_forward.3} parent=11 // pred_fallthru
        _
      // Predicated region
      $region21: #{cnn_to_rnn_forward.3} parent=11 // pred_check
        %p190 = pneg %p127
      $region22: #{cnn_to_rnn_forward.3} parent=11 // pred_check_branch
        %192 = sbr.rel (%p190) target = $region24
      $region23: #{cnn_to_rnn_forward.3} parent=11 // pred_region
        _
      $region24: #{cnn_to_rnn_forward.3} parent=11 // pred_fallthru
        _
      // Predicated region
      $region25: #{cnn_to_rnn_forward.3} parent=11 // pred_check
        %p193 = pneg %p148
      $region26: #{cnn_to_rnn_forward.3} parent=11 // pred_check_branch
        %195 = sbr.rel (%p193) target = $region28
      $region27: #{cnn_to_rnn_forward.3} parent=11 // pred_region
        _
      $region28: #{cnn_to_rnn_forward.3} parent=11 // pred_fallthru
        _
    $region12: #{cnn_to_rnn_forward.3} parent=5 // pred_fallthru
      _
    %p196 = scmp.lt.s32.totalorder %s12, 2
    // Predicated region
    $region29: #{cnn_to_rnn_forward.3} parent=5 // pred_check
      %p197 = pneg %p196
    $region30: #{cnn_to_rnn_forward.3} parent=5 // pred_check_branch
      %199 = sbr.rel (%p197) target = $region32
    $region31: #{cnn_to_rnn_forward.3} parent=5 // pred_region
      // Predicated region
      $region33: #{cnn_to_rnn_forward.3} parent=31 // pred_check
        %p200 = pneg %p32
      $region34: #{cnn_to_rnn_forward.3} parent=31 // pred_check_branch
        %202 = sbr.rel (%p200) target = $region36
      $region35: #{cnn_to_rnn_forward.3} parent=31 // pred_region
        %s203 = smul.u32 32, %s12
        %p204 = scmp.lt.s32.totalorder %s203, 63
        %s205 = scalar_select %p204, %s203, 63
        %s206 = smul.addr %s205, 8
        %s207 = scalar_lea.vmem %s0, %s206
        %s208 = smul.u32 32, %s12
      $region36: #{cnn_to_rnn_forward.3} parent=31 // pred_fallthru
        _
      // Predicated region
      $region37: #{cnn_to_rnn_forward.3} parent=31 // pred_check
        %p209 = pneg %p58
      $region38: #{cnn_to_rnn_forward.3} parent=31 // pred_check_branch
        %211 = sbr.rel (%p209) target = $region40
      $region39: #{cnn_to_rnn_forward.3} parent=31 // pred_region
        %s212 = smul.u32 2, %s12
        %p213 = scmp.lt.s32.totalorder %s212, 3
        %s214 = scalar_select %p213, %s212, 3
        %s215 = smul.addr %s214, 2
        %s216 = scalar_lea.vmem %s1, %s215
        %s217 = smul.u32 2, %s12
      $region40: #{cnn_to_rnn_forward.3} parent=31 // pred_fallthru
        _
    $region32: #{cnn_to_rnn_forward.3} parent=5 // pred_fallthru
      _
    %p218 = scmp.le.s32.totalorder 1, %s12
    %p219 = scmp.lt.s32.totalorder %s12, 3
    %p220 = pnand %p218, %p219
    %p221 = pneg %p220
    // Predicated region
    $region41: #{cnn_to_rnn_forward.3} parent=5 // pred_check
      _
    $region42: #{cnn_to_rnn_forward.3} parent=5 // pred_check_branch
      %223 = sbr.rel (%p220) target = $region44
    $region43: #{cnn_to_rnn_forward.3} parent=5 // pred_region
      %s224 = ssub.s32 %s12, 1
      %s225 = smul.u32 32, %s17
      %p226 = scmp.lt.s32.totalorder %s225, 63
      %s227 = scalar_select %p226, %s225, 63
      %s228 = smul.addr %s227, 8
      %s229 = scalar_lea.vmem %s0, %s228
      %p230 = pneg %p38
      %p231 = pneg %p35
      %s232 = smul.u32 2, %s17
      %p233 = scmp.lt.s32.totalorder %s232, 3
      %s234 = scalar_select %p233, %s232, 3
      %s235 = smul.addr %s234, 2
      %s236 = scalar_lea.vmem %s1, %s235
      %p237 = pneg %p64
      %p238 = pneg %p61
      %p239 = pneg %p85
      %p240 = pneg %p82
      %p241 = pneg %p106
      %p242 = pneg %p103
      %p243 = pneg %p127
      %p244 = pneg %p124
      %p245 = pneg %p148
      %p246 = pneg %p145
      %p247 = pneg %p169
      %p248 = pneg %p166
      %s249 = smul.u32 32, %s17
      %p250 = scmp.lt.s32.totalorder %s249, 63
      %s251 = scalar_select %p250, %s249, 63
      %s252 = smul.addr %s251, 8
      %s253 = scalar_lea.vmem %s0, %s252
      %s254 = smul.u32 32, %s17
      %s255 = smul.u32 2, %s17
      %p256 = scmp.lt.s32.totalorder %s255, 3
      %s257 = scalar_select %p256, %s255, 3
      %s258 = smul.addr %s257, 2
      %s259 = scalar_lea.vmem %s1, %s258
      %s260 = smul.u32 2, %s17
      %p261 = scmp.eq.s32.totalorder %s17, 0
      // Predicated region
      $region45: #{cnn_to_rnn_forward.3} parent=43 // pred_check
        %p262 = pneg %p261
      $region46: #{cnn_to_rnn_forward.3} parent=43 // pred_check_branch
        %264 = sbr.rel (%p262) target = $region48
      $region47: #{cnn_to_rnn_forward.3} parent=43 // pred_region
        %265 = vst [vmem:[#allocation2] sm:$0x3] 0.0
      $region48: #{cnn_to_rnn_forward.3} parent=43 // pred_fallthru
        _
      %v266 = vld [vmem:[%s253] sm:$0xff]
      %v267 = vld [vmem:[%s253 + $0x8] sm:$0xff]
      %v268 = vld [vmem:[%s253 + $0x10] sm:$0xff]
      %v269 = vld [vmem:[%s253 + $0x18] sm:$0xff]
      %v270 = vld [vmem:[%s253 + $0x20] sm:$0xff]
      %v271 = vld [vmem:[%s253 + $0x28] sm:$0xff]
      %v272 = vld [vmem:[%s253 + $0x30] sm:$0xff]
      %v273 = vld [vmem:[%s253 + $0x38] sm:$0xff]
      %v274 = vld [vmem:[%s253 + $0x40] sm:$0xff]
      %v275 = vld [vmem:[%s253 + $0x48] sm:$0xff]
      %v276 = vld [vmem:[%s253 + $0x50] sm:$0xff]
      %v277 = vld [vmem:[%s253 + $0x58] sm:$0xff]
      %v278 = vld [vmem:[%s253 + $0x60] sm:$0xff]
      %v279 = vld [vmem:[%s253 + $0x68] sm:$0xff]
      %v280 = vld [vmem:[%s253 + $0x70] sm:$0xff]
      %v281 = vld [vmem:[%s253 + $0x78] sm:$0xff]
      %v282 = vld [vmem:[%s253 + $0x80] sm:$0xff]
      %v283 = vld [vmem:[%s253 + $0x88] sm:$0xff]
      %v284 = vld [vmem:[%s253 + $0x90] sm:$0xff]
      %v285 = vld [vmem:[%s253 + $0x98] sm:$0xff]
      %v286 = vld [vmem:[%s253 + $0xa0] sm:$0xff]
      %v287 = vld [vmem:[%s253 + $0xa8] sm:$0xff]
      %v288 = vld [vmem:[%s253 + $0xb0] sm:$0xff]
      %v289 = vld [vmem:[%s253 + $0xb8] sm:$0xff]
      %v290 = vld [vmem:[%s253 + $0xc0] sm:$0xff]
      %v291 = vld [vmem:[%s253 + $0xc8] sm:$0xff]
      %v292 = vld [vmem:[%s253 + $0xd0] sm:$0xff]
      %v293 = vld [vmem:[%s253 + $0xd8] sm:$0xff]
      %v294 = vld [vmem:[%s253 + $0xe0] sm:$0xff]
      %v295 = vld [vmem:[%s253 + $0xe8] sm:$0xff]
      %v296 = vld [vmem:[%s253 + $0xf0] sm:$0xff]
      %v297 = vld [vmem:[%s253 + $0xf8] sm:$0xff]
      %v298 = vld [vmem:[%s2] sm:$0xff]
      %v299 = vld [vmem:[%s2 + $0x8] sm:$0xff]
      %v300 = vld [vmem:[%s2 + $0x10] sm:$0xff]
      %v301 = vld [vmem:[%s2 + $0x18] sm:$0xff]
      %v302 = vld [vmem:[%s2 + $0x20] sm:$0xff]
      %v303 = vld [vmem:[%s2 + $0x28] sm:$0xff]
      %v304 = vld [vmem:[%s2 + $0x30] sm:$0xff]
      %v305 = vld [vmem:[%s2 + $0x38] sm:$0xff]
      %v306 = vld [vmem:[%s2 + $0x40] sm:$0xff]
      %v307 = vld [vmem:[%s2 + $0x48] sm:$0xff]
      %v308 = vld [vmem:[%s2 + $0x50] sm:$0xff]
      %v309 = vld [vmem:[%s2 + $0x58] sm:$0xff]
      %v310 = vld [vmem:[%s2 + $0x60] sm:$0xff]
      %v311 = vld [vmem:[%s2 + $0x68] sm:$0xff]
      %v312 = vld [vmem:[%s2 + $0x70] sm:$0xff]
      %v313 = vld [vmem:[%s2 + $0x78] sm:$0xff]
      %v314 = vld [vmem:[%s3] sm:$0x1]
      %v316 = vlaneseq
      %v317 = vshrl.u32 %v316, 7
      %v318 = vsub.s32 0, %v317
      %v319 = vrot.slane %v314, %v318
      %321 = vmatprep.subr.mxu0 0.0
      %322 = vmatpush1.msra.mxu0 %v298
      %323 = vmatprep.subr.mxu0 0.0
      %324 = vmatpush1.msra.mxu0 %v299
      %325 = vmatprep.subr.mxu0 0.0
      %326 = vmatpush1.msra.mxu0 %v300
      %327 = vmatprep.subr.mxu0 0.0
      %328 = vmatpush1.msra.mxu0 %v301
      %329 = vmatprep.subr.mxu0 0.0
      %330 = vmatpush1.msra.mxu0 %v302
      %331 = vmatprep.subr.mxu0 0.0
      %332 = vmatpush1.msra.mxu0 %v303
      %333 = vmatprep.subr.mxu0 0.0
      %334 = vmatpush1.msra.mxu0 %v304
      %335 = vmatprep.subr.mxu0 0.0
      %336 = vmatpush1.msra.mxu0 %v305
      %337 = vmatprep.subr.mxu0 0.0
      %338 = vmatpush1.msra.mxu0 %v306
      %339 = vmatprep.subr.mxu0 0.0
      %340 = vmatpush1.msra.mxu0 %v307
      %341 = vmatprep.subr.mxu0 0.0
      %342 = vmatpush1.msra.mxu0 %v308
      %343 = vmatprep.subr.mxu0 0.0
      %344 = vmatpush1.msra.mxu0 %v309
      %345 = vmatprep.subr.mxu0 0.0
      %346 = vmatpush1.msra.mxu0 %v310
      %347 = vmatprep.subr.mxu0 0.0
      %348 = vmatpush1.msra.mxu0 %v311
      %349 = vmatprep.subr.mxu0 0.0
      %350 = vmatpush1.msra.mxu0 %v312
      %351 = vmatprep.subr.mxu0 0.0
      %352 = vmatpush1.msra.mxu0 %v313
      %353 = vmatprep.subr.mxu0 0.0
      %354 = vmatpush1.msra.mxu0 0.0
      %355 = vmatprep.subr.mxu0 0.0
      %356 = vmatpush1.msra.mxu0 0.0
      %357 = vmatprep.subr.mxu0 0.0
      %358 = vmatpush1.msra.mxu0 0.0
      %359 = vmatprep.subr.mxu0 0.0
      %360 = vmatpush1.msra.mxu0 0.0
      %361 = vmatprep.subr.mxu0 0.0
      %362 = vmatpush1.msra.mxu0 0.0
      %363 = vmatprep.subr.mxu0 0.0
      %364 = vmatpush1.msra.mxu0 0.0
      %365 = vmatprep.subr.mxu0 0.0
      %366 = vmatpush1.msra.mxu0 0.0
      %367 = vmatprep.subr.mxu0 0.0
      %368 = vmatpush1.msra.mxu0 0.0
      %369 = vmatprep.subr.mxu0 0.0
      %370 = vmatpush1.msra.mxu0 0.0
      %371 = vmatprep.subr.mxu0 0.0
      %372 = vmatpush1.msra.mxu0 0.0
      %373 = vmatprep.subr.mxu0 0.0
      %374 = vmatpush1.msra.mxu0 0.0
      %375 = vmatprep.subr.mxu0 0.0
      %376 = vmatpush1.msra.mxu0 0.0
      %377 = vmatprep.subr.mxu0 0.0
      %378 = vmatpush1.msra.mxu0 0.0
      %379 = vmatprep.subr.mxu0 0.0
      %380 = vmatpush1.msra.mxu0 0.0
      %381 = vmatprep.subr.mxu0 0.0
      %382 = vmatpush1.msra.mxu0 0.0
      %383 = vmatprep.subr.mxu0 0.0
      %384 = vmatpush1.msra.mxu0 0.0
      %385 = vmatprep.mubr.f32.mxu0 0.0
      %386 = vmatmul.mubr.f32.gmra.mrb[0].mxu0 %v266
      %v387 = vpop.f32.mrb[0].mxu0
      %v388 = vadd.f32 %v319, %v387
      %v389 = vpop.f32.mrb[0].mxu0
      %390 = vmatprep.mubr.f32.mxu0 0.0
      %391 = vmatmul.mubr.f32.gmra.mrb[0].mxu0 %v267
      %v392 = vpop.f32.mrb[0].mxu0
      %v393 = vadd.f32 %v319, %v392
      %v394 = vpop.f32.mrb[0].mxu0
      %395 = vmatprep.mubr.f32.mxu0 0.0
      %396 = vmatmul.mubr.f32.gmra.mrb[0].mxu0 %v268
      %v397 = vpop.f32.mrb[0].mxu0
      %v398 = vadd.f32 %v319, %v397
      %v399 = vpop.f32.mrb[0].mxu0
      %400 = vmatprep.mubr.f32.mxu0 0.0
      %401 = vmatmul.mubr.f32.gmra.mrb[0].mxu0 %v269
      %v402 = vpop.f32.mrb[0].mxu0
      %v403 = vadd.f32 %v319, %v402
      %v404 = vpop.f32.mrb[0].mxu0
      %405 = vmatprep.mubr.f32.mxu0 0.0
      %406 = vmatmul.mubr.f32.gmra.mrb[0].mxu0 %v270
      %v407 = vpop.f32.mrb[0].mxu0
      %v408 = vadd.f32 %v319, %v407
      %v409 = vpop.f32.mrb[0].mxu0
      %410 = vmatprep.mubr.f32.mxu0 0.0
      %411 = vmatmul.mubr.f32.gmra.mrb[0].mxu0 %v271
      %v412 = vpop.f32.mrb[0].mxu0
      %v413 = vadd.f32 %v319, %v412
      %v414 = vpop.f32.mrb[0].mxu0
      %415 = vmatprep.mubr.f32.mxu0 0.0
      %416 = vmatmul.mubr.f32.gmra.mrb[0].mxu0 %v272
      %v417 = vpop.f32.mrb[0].mxu0
      %v418 = vadd.f32 %v319, %v417
      %v419 = vpop.f32.mrb[0].mxu0
      %420 = vmatprep.mubr.f32.mxu0 0.0
      %421 = vmatmul.mubr.f32.gmra.mrb[0].mxu0 %v273
      %v422 = vpop.f32.mrb[0].mxu0
      %v423 = vadd.f32 %v319, %v422
      %v424 = vpop.f32.mrb[0].mxu0
      %425 = vmatprep.mubr.f32.mxu0 0.0
      %426 = vmatmul.mubr.f32.gmra.mrb[0].mxu0 %v274
      %v427 = vpop.f32.mrb[0].mxu0
      %v428 = vadd.f32 %v319, %v427
      %v429 = vpop.f32.mrb[0].mxu0
      %430 = vmatprep.mubr.f32.mxu0 0.0
      %431 = vmatmul.mubr.f32.gmra.mrb[0].mxu0 %v275
      %v432 = vpop.f32.mrb[0].mxu0
      %v433 = vadd.f32 %v319, %v432
      %v434 = vpop.f32.mrb[0].mxu0
      %435 = vmatprep.mubr.f32.mxu0 0.0
      %436 = vmatmul.mubr.f32.gmra.mrb[0].mxu0 %v276
      %v437 = vpop.f32.mrb[0].mxu0
      %v438 = vadd.f32 %v319, %v437
      %v439 = vpop.f32.mrb[0].mxu0
      %440 = vmatprep.mubr.f32.mxu0 0.0
      %441 = vmatmul.mubr.f32.gmra.mrb[0].mxu0 %v277
      %v442 = vpop.f32.mrb[0].mxu0
      %v443 = vadd.f32 %v319, %v442
      %v444 = vpop.f32.mrb[0].mxu0
      %445 = vmatprep.mubr.f32.mxu0 0.0
      %446 = vmatmul.mubr.f32.gmra.mrb[0].mxu0 %v278
      %v447 = vpop.f32.mrb[0].mxu0
      %v448 = vadd.f32 %v319, %v447
      %v449 = vpop.f32.mrb[0].mxu0
      %450 = vmatprep.mubr.f32.mxu0 0.0
      %451 = vmatmul.mubr.f32.gmra.mrb[0].mxu0 %v279
      %v452 = vpop.f32.mrb[0].mxu0
      %v453 = vadd.f32 %v319, %v452
      %v454 = vpop.f32.mrb[0].mxu0
      %455 = vmatprep.mubr.f32.mxu0 0.0
      %456 = vmatmul.mubr.f32.gmra.mrb[0].mxu0 %v280
      %v457 = vpop.f32.mrb[0].mxu0
      %v458 = vadd.f32 %v319, %v457
      %v459 = vpop.f32.mrb[0].mxu0
      %460 = vmatprep.mubr.f32.mxu0 0.0
      %461 = vmatmul.mubr.f32.gmra.mrb[0].mxu0 %v281
      %v462 = vpop.f32.mrb[0].mxu0
      %v463 = vadd.f32 %v319, %v462
      %v464 = vpop.f32.mrb[0].mxu0
      %465 = vmatprep.mubr.f32.mxu0 0.0
      %466 = vmatmul.mubr.f32.gmra.mrb[0].mxu0 %v282
      %v467 = vpop.f32.mrb[0].mxu0
      %v468 = vadd.f32 %v319, %v467
      %v469 = vpop.f32.mrb[0].mxu0
      %470 = vmatprep.mubr.f32.mxu0 0.0
      %471 = vmatmul.mubr.f32.gmra.mrb[0].mxu0 %v283
      %v472 = vpop.f32.mrb[0].mxu0
      %v473 = vadd.f32 %v319, %v472
      %v474 = vpop.f32.mrb[0].mxu0
      %475 = vmatprep.mubr.f32.mxu0 0.0
      %476 = vmatmul.mubr.f32.gmra.mrb[0].mxu0 %v284
      %v477 = vpop.f32.mrb[0].mxu0
      %v478 = vadd.f32 %v319, %v477
      %v479 = vpop.f32.mrb[0].mxu0
      %480 = vmatprep.mubr.f32.mxu0 0.0
      %481 = vmatmul.mubr.f32.gmra.mrb[0].mxu0 %v285
      %v482 = vpop.f32.mrb[0].mxu0
      %v483 = vadd.f32 %v319, %v482
      %v484 = vpop.f32.mrb[0].mxu0
      %485 = vmatprep.mubr.f32.mxu0 0.0
      %486 = vmatmul.mubr.f32.gmra.mrb[0].mxu0 %v286
      %v487 = vpop.f32.mrb[0].mxu0
      %v488 = vadd.f32 %v319, %v487
      %v489 = vpop.f32.mrb[0].mxu0
      %490 = vmatprep.mubr.f32.mxu0 0.0
      %491 = vmatmul.mubr.f32.gmra.mrb[0].mxu0 %v287
      %v492 = vpop.f32.mrb[0].mxu0
      %v493 = vadd.f32 %v319, %v492
      %v494 = vpop.f32.mrb[0].mxu0
      %495 = vmatprep.mubr.f32.mxu0 0.0
      %496 = vmatmul.mubr.f32.gmra.mrb[0].mxu0 %v288
      %v497 = vpop.f32.mrb[0].mxu0
      %v498 = vadd.f32 %v319, %v497
      %v499 = vpop.f32.mrb[0].mxu0
      %500 = vmatprep.mubr.f32.mxu0 0.0
      %501 = vmatmul.mubr.f32.gmra.mrb[0].mxu0 %v289
      %v502 = vpop.f32.mrb[0].mxu0
      %v503 = vadd.f32 %v319, %v502
      %v504 = vpop.f32.mrb[0].mxu0
      %505 = vmatprep.mubr.f32.mxu0 0.0
      %506 = vmatmul.mubr.f32.gmra.mrb[0].mxu0 %v290
      %v507 = vpop.f32.mrb[0].mxu0
      %v508 = vadd.f32 %v319, %v507
      %v509 = vpop.f32.mrb[0].mxu0
      %510 = vmatprep.mubr.f32.mxu0 0.0
      %511 = vmatmul.mubr.f32.gmra.mrb[0].mxu0 %v291
      %v512 = vpop.f32.mrb[0].mxu0
      %v513 = vadd.f32 %v319, %v512
      %v514 = vpop.f32.mrb[0].mxu0
      %515 = vmatprep.mubr.f32.mxu0 0.0
      %516 = vmatmul.mubr.f32.gmra.mrb[0].mxu0 %v292
      %v517 = vpop.f32.mrb[0].mxu0
      %v518 = vadd.f32 %v319, %v517
      %v519 = vpop.f32.mrb[0].mxu0
      %520 = vmatprep.mubr.f32.mxu0 0.0
      %521 = vmatmul.mubr.f32.gmra.mrb[0].mxu0 %v293
      %v522 = vpop.f32.mrb[0].mxu0
      %v523 = vadd.f32 %v319, %v522
      %v524 = vpop.f32.mrb[0].mxu0
      %525 = vmatprep.mubr.f32.mxu0 0.0
      %526 = vmatmul.mubr.f32.gmra.mrb[0].mxu0 %v294
      %v527 = vpop.f32.mrb[0].mxu0
      %v528 = vadd.f32 %v319, %v527
      %v529 = vpop.f32.mrb[0].mxu0
      %530 = vmatprep.mubr.f32.mxu0 0.0
      %531 = vmatmul.mubr.f32.gmra.mrb[0].mxu0 %v295
      %v532 = vpop.f32.mrb[0].mxu0
      %v533 = vadd.f32 %v319, %v532
      %v534 = vpop.f32.mrb[0].mxu0
      %535 = vmatprep.mubr.f32.mxu0 0.0
      %536 = vmatmul.mubr.f32.gmra.mrb[0].mxu0 %v296
      %v537 = vpop.f32.mrb[0].mxu0
      %v538 = vadd.f32 %v319, %v537
      %v539 = vpop.f32.mrb[0].mxu0
      %540 = vmatprep.mubr.f32.mxu0 0.0
      %541 = vmatmul.mubr.f32.gmra.mrb[0].mxu0 %v297
      %v542 = vpop.f32.mrb[0].mxu0
      %v543 = vadd.f32 %v319, %v542
      %v544 = vpop.f32.mrb[0].mxu0
      %545 = vdwg.mxu0
      %v546 = vmax.f32 %v388, 0.0
      %v547 = vmax.f32 %v393, 0.0
      %v548 = vmax.f32 %v398, 0.0
      %v549 = vmax.f32 %v403, 0.0
      %v550 = vmax.f32 %v408, 0.0
      %v551 = vmax.f32 %v413, 0.0
      %v552 = vmax.f32 %v418, 0.0
      %v553 = vmax.f32 %v423, 0.0
      %v554 = vmax.f32 %v428, 0.0
      %v555 = vmax.f32 %v433, 0.0
      %v556 = vmax.f32 %v438, 0.0
      %v557 = vmax.f32 %v443, 0.0
      %v558 = vmax.f32 %v448, 0.0
      %v559 = vmax.f32 %v453, 0.0
      %v560 = vmax.f32 %v458, 0.0
      %v561 = vmax.f32 %v463, 0.0
      %v562 = vmax.f32 %v468, 0.0
      %v563 = vmax.f32 %v473, 0.0
      %v564 = vmax.f32 %v478, 0.0
      %v565 = vmax.f32 %v483, 0.0
      %v566 = vmax.f32 %v488, 0.0
      %v567 = vmax.f32 %v493, 0.0
      %v568 = vmax.f32 %v498, 0.0
      %v569 = vmax.f32 %v503, 0.0
      %v570 = vmax.f32 %v508, 0.0
      %v571 = vmax.f32 %v513, 0.0
      %v572 = vmax.f32 %v518, 0.0
      %v573 = vmax.f32 %v523, 0.0
      %v574 = vmax.f32 %v528, 0.0
      %v575 = vmax.f32 %v533, 0.0
      %v576 = vmax.f32 %v538, 0.0
      %v577 = vmax.f32 %v543, 0.0
      %v578 = vld [vmem:[#allocation2] sm:$0x3]
      %v579 = vld [vmem:[%s259] sm:$0xf]
      %v582 = vunpack.c.l.s4 1983009808
      %v583 = vunpack.c.0.s8 %v582
      %v584 = vlaneseq
      %v585 = vshrl.u32 %v584, 7
      %v586 = vsub.s32 %v583, %v585
      %v587 = vrot.slane %v579, %v586
      %v588 = vcombine.high %v587, %v587
      %591 = vmatprep.subr.mxu0 0.0
      %592 = vmatpush1.msra.mxu0 %v546
      %593 = vmatprep.subr.mxu0 0.0
      %594 = vmatpush1.msra.mxu0 %v547
      %595 = vmatprep.subr.mxu0 0.0
      %596 = vmatpush1.msra.mxu0 %v548
      %597 = vmatprep.subr.mxu0 0.0
      %598 = vmatpush1.msra.mxu0 %v549
      %599 = vmatprep.subr.mxu0 0.0
      %600 = vmatpush1.msra.mxu0 %v550
      %601 = vmatprep.subr.mxu0 0.0
      %602 = vmatpush1.msra.mxu0 %v551
      %603 = vmatprep.subr.mxu0 0.0
      %604 = vmatpush1.msra.mxu0 %v552
      %605 = vmatprep.subr.mxu0 0.0
      %606 = vmatpush1.msra.mxu0 %v553
      %607 = vmatprep.subr.mxu0 0.0
      %608 = vmatpush1.msra.mxu0 %v554
      %609 = vmatprep.subr.mxu0 0.0
      %610 = vmatpush1.msra.mxu0 %v555
      %611 = vmatprep.subr.mxu0 0.0
      %612 = vmatpush1.msra.mxu0 %v556
      %613 = vmatprep.subr.mxu0 0.0
      %614 = vmatpush1.msra.mxu0 %v557
      %615 = vmatprep.subr.mxu0 0.0
      %616 = vmatpush1.msra.mxu0 %v558
      %617 = vmatprep.subr.mxu0 0.0
      %618 = vmatpush1.msra.mxu0 %v559
      %619 = vmatprep.subr.mxu0 0.0
      %620 = vmatpush1.msra.mxu0 %v560
      %621 = vmatprep.subr.mxu0 0.0
      %622 = vmatpush1.msra.mxu0 %v561
      %623 = vmatprep.subr.mxu0 0.0
      %624 = vmatpush1.msra.mxu0 %v562
      %625 = vmatprep.subr.mxu0 0.0
      %626 = vmatpush1.msra.mxu0 %v563
      %627 = vmatprep.subr.mxu0 0.0
      %628 = vmatpush1.msra.mxu0 %v564
      %629 = vmatprep.subr.mxu0 0.0
      %630 = vmatpush1.msra.mxu0 %v565
      %631 = vmatprep.subr.mxu0 0.0
      %632 = vmatpush1.msra.mxu0 %v566
      %633 = vmatprep.subr.mxu0 0.0
      %634 = vmatpush1.msra.mxu0 %v567
      %635 = vmatprep.subr.mxu0 0.0
      %636 = vmatpush1.msra.mxu0 %v568
      %637 = vmatprep.subr.mxu0 0.0
      %638 = vmatpush1.msra.mxu0 %v569
      %639 = vmatprep.subr.mxu0 0.0
      %640 = vmatpush1.msra.mxu0 %v570
      %641 = vmatprep.subr.mxu0 0.0
      %642 = vmatpush1.msra.mxu0 %v571
      %643 = vmatprep.subr.mxu0 0.0
      %644 = vmatpush1.msra.mxu0 %v572
      %645 = vmatprep.subr.mxu0 0.0
      %646 = vmatpush1.msra.mxu0 %v573
      %647 = vmatprep.subr.mxu0 0.0
      %648 = vmatpush1.msra.mxu0 %v574
      %649 = vmatprep.subr.mxu0 0.0
      %650 = vmatpush1.msra.mxu0 %v575
      %651 = vmatprep.subr.mxu0 0.0
      %652 = vmatpush1.msra.mxu0 %v576
      %653 = vmatprep.subr.mxu0 0.0
      %654 = vmatpush1.msra.mxu0 %v577
      %655 = vmatprep.mubr.f32.mxu0 %v588
      %656 = vmatmul.mubr.f32.gmra.mrb[0].mxu0 %v587
      %v657 = vpop.f32.mrb[0].mxu0
      %v658 = vadd.f32 0.0, %v657
      %v659 = vpop.f32.mrb[0].mxu0
      %660 = vdwg.mxu0
      %v661 = vadd.f32 %v578, %v658
      %662 = vst [vmem:[#allocation2] sm:$0x3] %v661
      %p663 = scmp.eq.s32.totalorder %s17, 1
      // Predicated region
      $region49: #{cnn_to_rnn_forward.3} parent=43 // pred_check
        %p664 = pneg %p663
      $region50: #{cnn_to_rnn_forward.3} parent=43 // pred_check_branch
        %666 = sbr.rel (%p664) target = $region52
      $region51: #{cnn_to_rnn_forward.3} parent=43 // pred_region
        %v667 = vld [vmem:[#allocation2] sm:$0x3]
        %v668 = vld [vmem:[%s4] sm:$0xff]
        %v669 = vld [vmem:[%s4 + $0x8] sm:$0xff]
        %v670 = vld [vmem:[%s4 + $0x10] sm:$0xff]
        %v671 = vld [vmem:[%s4 + $0x18] sm:$0xff]
        %v672 = vld [vmem:[%s4 + $0x20] sm:$0xff]
        %v673 = vld [vmem:[%s4 + $0x28] sm:$0xff]
        %v674 = vld [vmem:[%s4 + $0x30] sm:$0xff]
        %v675 = vld [vmem:[%s4 + $0x38] sm:$0xff]
        %v676 = vld [vmem:[%s4 + $0x40] sm:$0xff]
        %v677 = vld [vmem:[%s4 + $0x48] sm:$0xff]
        %v678 = vld [vmem:[%s4 + $0x50] sm:$0xff]
        %v679 = vld [vmem:[%s4 + $0x58] sm:$0xff]
        %v680 = vld [vmem:[%s4 + $0x60] sm:$0xff]
        %v681 = vld [vmem:[%s4 + $0x68] sm:$0xff]
        %v682 = vld [vmem:[%s4 + $0x70] sm:$0xff]
        %v683 = vld [vmem:[%s4 + $0x78] sm:$0xff]
        %v684 = vld [vmem:[%s5] sm:$0x1]
        %v686 = vlaneseq
        %v687 = vshrl.u32 %v686, 7
        %v688 = vsub.s32 0, %v687
        %v689 = vrot.slane %v684, %v688
        %691 = vmatprep.subr.mxu0 0.0
        %692 = vmatpush1.msra.mxu0 %v668
        %693 = vmatprep.subr.mxu0 0.0
        %694 = vmatpush1.msra.mxu0 %v669
        %695 = vmatprep.subr.mxu0 0.0
        %696 = vmatpush1.msra.mxu0 %v670
        %697 = vmatprep.subr.mxu0 0.0
        %698 = vmatpush1.msra.mxu0 %v671
        %699 = vmatprep.subr.mxu0 0.0
        %700 = vmatpush1.msra.mxu0 %v672
        %701 = vmatprep.subr.mxu0 0.0
        %702 = vmatpush1.msra.mxu0 %v673
        %703 = vmatprep.subr.mxu0 0.0
        %704 = vmatpush1.msra.mxu0 %v674
        %705 = vmatprep.subr.mxu0 0.0
        %706 = vmatpush1.msra.mxu0 %v675
        %707 = vmatprep.subr.mxu0 0.0
        %708 = vmatpush1.msra.mxu0 %v676
        %709 = vmatprep.subr.mxu0 0.0
        %710 = vmatpush1.msra.mxu0 %v677
        %711 = vmatprep.subr.mxu0 0.0
        %712 = vmatpush1.msra.mxu0 %v678
        %713 = vmatprep.subr.mxu0 0.0
        %714 = vmatpush1.msra.mxu0 %v679
        %715 = vmatprep.subr.mxu0 0.0
        %716 = vmatpush1.msra.mxu0 %v680
        %717 = vmatprep.subr.mxu0 0.0
        %718 = vmatpush1.msra.mxu0 %v681
        %719 = vmatprep.subr.mxu0 0.0
        %720 = vmatpush1.msra.mxu0 %v682
        %721 = vmatprep.subr.mxu0 0.0
        %722 = vmatpush1.msra.mxu0 %v683
        %723 = vmatprep.subr.mxu0 0.0
        %724 = vmatpush1.msra.mxu0 0.0
        %725 = vmatprep.subr.mxu0 0.0
        %726 = vmatpush1.msra.mxu0 0.0
        %727 = vmatprep.subr.mxu0 0.0
        %728 = vmatpush1.msra.mxu0 0.0
        %729 = vmatprep.subr.mxu0 0.0
        %730 = vmatpush1.msra.mxu0 0.0
        %731 = vmatprep.subr.mxu0 0.0
        %732 = vmatpush1.msra.mxu0 0.0
        %733 = vmatprep.subr.mxu0 0.0
        %734 = vmatpush1.msra.mxu0 0.0
        %735 = vmatprep.subr.mxu0 0.0
        %736 = vmatpush1.msra.mxu0 0.0
        %737 = vmatprep.subr.mxu0 0.0
        %738 = vmatpush1.msra.mxu0 0.0
        %739 = vmatprep.subr.mxu0 0.0
        %740 = vmatpush1.msra.mxu0 0.0
        %741 = vmatprep.subr.mxu0 0.0
        %742 = vmatpush1.msra.mxu0 0.0
        %743 = vmatprep.subr.mxu0 0.0
        %744 = vmatpush1.msra.mxu0 0.0
        %745 = vmatprep.subr.mxu0 0.0
        %746 = vmatpush1.msra.mxu0 0.0
        %747 = vmatprep.subr.mxu0 0.0
        %748 = vmatpush1.msra.mxu0 0.0
        %749 = vmatprep.subr.mxu0 0.0
        %750 = vmatpush1.msra.mxu0 0.0
        %751 = vmatprep.subr.mxu0 0.0
        %752 = vmatpush1.msra.mxu0 0.0
        %753 = vmatprep.subr.mxu0 0.0
        %754 = vmatpush1.msra.mxu0 0.0
        %755 = vmatprep.mubr.f32.mxu0 0.0
        %756 = vmatmul.mubr.f32.gmra.mrb[0].mxu0 %v667
        %v757 = vpop.f32.mrb[0].mxu0
        %v758 = vadd.f32 %v689, %v757
        %v759 = vpop.f32.mrb[0].mxu0
        %760 = vdwg.mxu0
        %v761 = vmax.f32 %v758, 0.0
        %762 = vst [vmem:[%s6] sm:$0x3] %v761
      $region52: #{cnn_to_rnn_forward.3} parent=43 // pred_fallthru
        _
      // Predicated region
      $region53: #{cnn_to_rnn_forward.3} parent=43 // pred_check
        %p763 = pneg %p166
      $region54: #{cnn_to_rnn_forward.3} parent=43 // pred_check_branch
        %765 = sbr.rel (%p763) target = $region56
      $region55: #{cnn_to_rnn_forward.3} parent=43 // pred_region
        _
      $region56: #{cnn_to_rnn_forward.3} parent=43 // pred_fallthru
        _
      // Predicated region
      $region57: #{cnn_to_rnn_forward.3} parent=43 // pred_check
        %p766 = pneg %p166
      $region58: #{cnn_to_rnn_forward.3} parent=43 // pred_check_branch
        %768 = sbr.rel (%p766) target = $region60
      $region59: #{cnn_to_rnn_forward.3} parent=43 // pred_region
        _
      $region60: #{cnn_to_rnn_forward.3} parent=43 // pred_fallthru
        _
    $region44: #{cnn_to_rnn_forward.3} parent=5 // pred_fallthru
      _
    %p769 = scmp.le.s32.totalorder 2, %s12
    // Predicated region
    $region61: #{cnn_to_rnn_forward.3} parent=5 // pred_check
      %p770 = pneg %p769
    $region62: #{cnn_to_rnn_forward.3} parent=5 // pred_check_branch
      %772 = sbr.rel (%p770) target = $region64
    $region63: #{cnn_to_rnn_forward.3} parent=5 // pred_region
      %s773 = ssub.s32 %s12, 2
    $region64: #{cnn_to_rnn_forward.3} parent=5 // pred_fallthru
      _
  $region6: #{cnn_to_rnn_forward.3} parent=0 // loop_footer
    %s16 = sadd.s32 1, %s12
  $region7: #{cnn_to_rnn_forward.3} parent=0 // loop_footer_branch
    %11 = sbr.rel target = $region3
  $region8: #{cnn_to_rnn_forward.3} parent=0 // loop_exit
    _

// kernel: cnn_to_rnn_forward.4
$region0: #{cnn_to_rnn_forward.4}
  #allocation0 [shape = 'u32[]', space=smem, size = 0x4, offset = 0x4, fixed_abs, tag = 'smem constant byte address 0x4 - core index']
  #allocation1 [shape = 'u32[144,128]{1,0:T(1,128)}', space=vmem, size = 0x12000, scoped, tag = 'internal scratch']
  %s0 = inlined_call_operand.vmem [shape: f32[18,128], index: 0, kind: input, shape index: {}]
  %s1 = inlined_call_operand.vmem [shape: f32[128,512], index: 1, kind: input, shape index: {}]
  %s2 = inlined_call_operand.vmem [shape: f32[128,512], index: 2, kind: input, shape index: {}]
  %s3 = inlined_call_operand.vmem [shape: f32[1,512], index: 3, kind: input, shape index: {}]
  %s4 = inlined_call_operand.vmem [shape: f32[128,512], index: 4, kind: input, shape index: {}]
  %s5 = inlined_call_operand.vmem [shape: f32[128,512], index: 5, kind: input, shape index: {}]
  %s6 = inlined_call_operand.vmem [shape: f32[1,512], index: 6, kind: input, shape index: {}]
  %s7 = inlined_call_operand.vmem [shape: f32[18,128], index: 7, kind: output, shape index: {}]
  %s8 = sld [smem:[#allocation0]]
  $region38: #{cnn_to_rnn_forward.4} parent=0
    _
  %s10 = ssub.s32 1, %s8
  %s11 = scalar_select 0, %s10, %s8
  // Predicated region
  $region2: #{cnn_to_rnn_forward.4} parent=0 // pred_check
    _
  $region3: #{cnn_to_rnn_forward.4} parent=0 // pred_check_branch
    %13 = sbr.rel (0) target = $region5
  $region4: #{cnn_to_rnn_forward.4} parent=0 // pred_region
    _
  $region5: #{cnn_to_rnn_forward.4} parent=0 // pred_fallthru
    _
  // Predicated region
  $region6: #{cnn_to_rnn_forward.4} parent=0 // pred_check
    _
  $region7: #{cnn_to_rnn_forward.4} parent=0 // pred_check_branch
    %15 = sbr.rel (0) target = $region9
  $region8: #{cnn_to_rnn_forward.4} parent=0 // pred_region
    _
  $region9: #{cnn_to_rnn_forward.4} parent=0 // pred_fallthru
    _
  // Predicated region
  $region10: #{cnn_to_rnn_forward.4} parent=0 // pred_check
    _
  $region11: #{cnn_to_rnn_forward.4} parent=0 // pred_check_branch
    %17 = sbr.rel (0) target = $region13
  $region12: #{cnn_to_rnn_forward.4} parent=0 // pred_region
    _
  $region13: #{cnn_to_rnn_forward.4} parent=0 // pred_fallthru
    _
  // Predicated region
  $region14: #{cnn_to_rnn_forward.4} parent=0 // pred_check
    _
  $region15: #{cnn_to_rnn_forward.4} parent=0 // pred_check_branch
    %19 = sbr.rel (0) target = $region17
  $region16: #{cnn_to_rnn_forward.4} parent=0 // pred_region
    _
  $region17: #{cnn_to_rnn_forward.4} parent=0 // pred_fallthru
    _
  // Predicated region
  $region18: #{cnn_to_rnn_forward.4} parent=0 // pred_check
    _
  $region19: #{cnn_to_rnn_forward.4} parent=0 // pred_check_branch
    %21 = sbr.rel (0) target = $region21
  $region20: #{cnn_to_rnn_forward.4} parent=0 // pred_region
    _
  $region21: #{cnn_to_rnn_forward.4} parent=0 // pred_fallthru
    _
  // Predicated region
  $region22: #{cnn_to_rnn_forward.4} parent=0 // pred_check
    _
  $region23: #{cnn_to_rnn_forward.4} parent=0 // pred_check_branch
    %23 = sbr.rel (0) target = $region25
  $region24: #{cnn_to_rnn_forward.4} parent=0 // pred_region
    _
  $region25: #{cnn_to_rnn_forward.4} parent=0 // pred_fallthru
    _
  // Predicated region
  $region26: #{cnn_to_rnn_forward.4} parent=0 // pred_check
    _
  $region27: #{cnn_to_rnn_forward.4} parent=0 // pred_check_branch
    %25 = sbr.rel (0) target = $region29
  $region28: #{cnn_to_rnn_forward.4} parent=0 // pred_region
    _
  $region29: #{cnn_to_rnn_forward.4} parent=0 // pred_fallthru
    _
  %v26 = vld [vmem:[%s0] sm:$0xff]
  %v27 = vld [vmem:[%s0 + $0x8] sm:$0xff]
  %v28 = vld [vmem:[%s0 + $0x10] sm:$0x3]
  %v29 = vld [vmem:[%s1] sm:$0xff]
  %v30 = vld [vmem:[%s1 + $0x8] sm:$0xff]
  %v31 = vld [vmem:[%s1 + $0x10] sm:$0xff]
  %v32 = vld [vmem:[%s1 + $0x18] sm:$0xff]
  %v33 = vld [vmem:[%s1 + $0x20] sm:$0xff]
  %v34 = vld [vmem:[%s1 + $0x28] sm:$0xff]
  %v35 = vld [vmem:[%s1 + $0x30] sm:$0xff]
  %v36 = vld [vmem:[%s1 + $0x38] sm:$0xff]
  %v37 = vld [vmem:[%s1 + $0x40] sm:$0xff]
  %v38 = vld [vmem:[%s1 + $0x48] sm:$0xff]
  %v39 = vld [vmem:[%s1 + $0x50] sm:$0xff]
  %v40 = vld [vmem:[%s1 + $0x58] sm:$0xff]
  %v41 = vld [vmem:[%s1 + $0x60] sm:$0xff]
  %v42 = vld [vmem:[%s1 + $0x68] sm:$0xff]
  %v43 = vld [vmem:[%s1 + $0x70] sm:$0xff]
  %v44 = vld [vmem:[%s1 + $0x78] sm:$0xff]
  %v45 = vld [vmem:[%s1 + $0x80] sm:$0xff]
  %v46 = vld [vmem:[%s1 + $0x88] sm:$0xff]
  %v47 = vld [vmem:[%s1 + $0x90] sm:$0xff]
  %v48 = vld [vmem:[%s1 + $0x98] sm:$0xff]
  %v49 = vld [vmem:[%s1 + $0xa0] sm:$0xff]
  %v50 = vld [vmem:[%s1 + $0xa8] sm:$0xff]
  %v51 = vld [vmem:[%s1 + $0xb0] sm:$0xff]
  %v52 = vld [vmem:[%s1 + $0xb8] sm:$0xff]
  %v53 = vld [vmem:[%s1 + $0xc0] sm:$0xff]
  %v54 = vld [vmem:[%s1 + $0xc8] sm:$0xff]
  %v55 = vld [vmem:[%s1 + $0xd0] sm:$0xff]
  %v56 = vld [vmem:[%s1 + $0xd8] sm:$0xff]
  %v57 = vld [vmem:[%s1 + $0xe0] sm:$0xff]
  %v58 = vld [vmem:[%s1 + $0xe8] sm:$0xff]
  %v59 = vld [vmem:[%s1 + $0xf0] sm:$0xff]
  %v60 = vld [vmem:[%s1 + $0xf8] sm:$0xff]
  %v61 = vld [vmem:[%s1 + $0x100] sm:$0xff]
  %v62 = vld [vmem:[%s1 + $0x108] sm:$0xff]
  %v63 = vld [vmem:[%s1 + $0x110] sm:$0xff]
  %v64 = vld [vmem:[%s1 + $0x118] sm:$0xff]
  %v65 = vld [vmem:[%s1 + $0x120] sm:$0xff]
  %v66 = vld [vmem:[%s1 + $0x128] sm:$0xff]
  %v67 = vld [vmem:[%s1 + $0x130] sm:$0xff]
  %v68 = vld [vmem:[%s1 + $0x138] sm:$0xff]
  %v69 = vld [vmem:[%s1 + $0x140] sm:$0xff]
  %v70 = vld [vmem:[%s1 + $0x148] sm:$0xff]
  %v71 = vld [vmem:[%s1 + $0x150] sm:$0xff]
  %v72 = vld [vmem:[%s1 + $0x158] sm:$0xff]
  %v73 = vld [vmem:[%s1 + $0x160] sm:$0xff]
  %v74 = vld [vmem:[%s1 + $0x168] sm:$0xff]
  %v75 = vld [vmem:[%s1 + $0x170] sm:$0xff]
  %v76 = vld [vmem:[%s1 + $0x178] sm:$0xff]
  %v77 = vld [vmem:[%s1 + $0x180] sm:$0xff]
  %v78 = vld [vmem:[%s1 + $0x188] sm:$0xff]
  %v79 = vld [vmem:[%s1 + $0x190] sm:$0xff]
  %v80 = vld [vmem:[%s1 + $0x198] sm:$0xff]
  %v81 = vld [vmem:[%s1 + $0x1a0] sm:$0xff]
  %v82 = vld [vmem:[%s1 + $0x1a8] sm:$0xff]
  %v83 = vld [vmem:[%s1 + $0x1b0] sm:$0xff]
  %v84 = vld [vmem:[%s1 + $0x1b8] sm:$0xff]
  %v85 = vld [vmem:[%s1 + $0x1c0] sm:$0xff]
  %v86 = vld [vmem:[%s1 + $0x1c8] sm:$0xff]
  %v87 = vld [vmem:[%s1 + $0x1d0] sm:$0xff]
  %v88 = vld [vmem:[%s1 + $0x1d8] sm:$0xff]
  %v89 = vld [vmem:[%s1 + $0x1e0] sm:$0xff]
  %v90 = vld [vmem:[%s1 + $0x1e8] sm:$0xff]
  %v91 = vld [vmem:[%s1 + $0x1f0] sm:$0xff]
  %v92 = vld [vmem:[%s1 + $0x1f8] sm:$0xff]
  %v93 = vld [vmem:[%s3] sm:$0xf]
  %v95 = vlaneseq
  %v96 = vshrl.u32 %v95, 7
  %v97 = vsub.s32 0, %v96
  %v98 = vrot.slane %v93, %v97
  %v99 = vlaneseq
  %v100 = vshrl.u32 %v99, 7
  %v101 = vsub.s32 1, %v100
  %v102 = vrot.slane %v93, %v101
  %v103 = vlaneseq
  %v104 = vshrl.u32 %v103, 7
  %v105 = vsub.s32 2, %v104
  %v106 = vrot.slane %v93, %v105
  %v107 = vlaneseq
  %v108 = vshrl.u32 %v107, 7
  %v109 = vsub.s32 3, %v108
  %v110 = vrot.slane %v93, %v109
  %115 = vmatprep.subr.mxu0 %v30
  %116 = vmatpush1.msra.mxu0 %v29
  %117 = vmatprep.subr.mxu0 %v34
  %118 = vmatpush1.msra.mxu0 %v33
  %119 = vmatprep.subr.mxu0 %v38
  %120 = vmatpush1.msra.mxu0 %v37
  %121 = vmatprep.subr.mxu0 %v42
  %122 = vmatpush1.msra.mxu0 %v41
  %123 = vmatprep.subr.mxu0 %v46
  %124 = vmatpush1.msra.mxu0 %v45
  %125 = vmatprep.subr.mxu0 %v50
  %126 = vmatpush1.msra.mxu0 %v49
  %127 = vmatprep.subr.mxu0 %v54
  %128 = vmatpush1.msra.mxu0 %v53
  %129 = vmatprep.subr.mxu0 %v58
  %130 = vmatpush1.msra.mxu0 %v57
  %131 = vmatprep.subr.mxu0 %v62
  %132 = vmatpush1.msra.mxu0 %v61
  %133 = vmatprep.subr.mxu0 %v66
  %134 = vmatpush1.msra.mxu0 %v65
  %135 = vmatprep.subr.mxu0 %v70
  %136 = vmatpush1.msra.mxu0 %v69
  %137 = vmatprep.subr.mxu0 %v74
  %138 = vmatpush1.msra.mxu0 %v73
  %139 = vmatprep.subr.mxu0 %v78
  %140 = vmatpush1.msra.mxu0 %v77
  %141 = vmatprep.subr.mxu0 %v82
  %142 = vmatpush1.msra.mxu0 %v81
  %143 = vmatprep.subr.mxu0 %v86
  %144 = vmatpush1.msra.mxu0 %v85
  %145 = vmatprep.subr.mxu0 %v90
  %146 = vmatpush1.msra.mxu0 %v89
  %147 = vmatprep.subr.mxu0 0.0
  %148 = vmatpush1.msra.mxu0 0.0
  %149 = vmatprep.subr.mxu0 0.0
  %150 = vmatpush1.msra.mxu0 0.0
  %151 = vmatprep.subr.mxu0 0.0
  %152 = vmatpush1.msra.mxu0 0.0
  %153 = vmatprep.subr.mxu0 0.0
  %154 = vmatpush1.msra.mxu0 0.0
  %155 = vmatprep.subr.mxu0 0.0
  %156 = vmatpush1.msra.mxu0 0.0
  %157 = vmatprep.subr.mxu0 0.0
  %158 = vmatpush1.msra.mxu0 0.0
  %159 = vmatprep.subr.mxu0 0.0
  %160 = vmatpush1.msra.mxu0 0.0
  %161 = vmatprep.subr.mxu0 0.0
  %162 = vmatpush1.msra.mxu0 0.0
  %163 = vmatprep.subr.mxu0 0.0
  %164 = vmatpush1.msra.mxu0 0.0
  %165 = vmatprep.subr.mxu0 0.0
  %166 = vmatpush1.msra.mxu0 0.0
  %167 = vmatprep.subr.mxu0 0.0
  %168 = vmatpush1.msra.mxu0 0.0
  %169 = vmatprep.subr.mxu0 0.0
  %170 = vmatpush1.msra.mxu0 0.0
  %171 = vmatprep.subr.mxu0 0.0
  %172 = vmatpush1.msra.mxu0 0.0
  %173 = vmatprep.subr.mxu0 0.0
  %174 = vmatpush1.msra.mxu0 0.0
  %175 = vmatprep.subr.mxu0 0.0
  %176 = vmatpush1.msra.mxu0 0.0
  %177 = vmatprep.subr.mxu0 0.0
  %178 = vmatpush1.msra.mxu0 0.0
  %179 = vmatprep.mubr.f32.mxu0 0.0
  %180 = vmatmul.mubr.f32.gmra.mrb[0].mxu0 %v26
  %v181 = vpop.f32.mrb[0].mxu0
  %v182 = vadd.f32 %v98, %v181
  %v183 = vpop.f32.mrb[0].mxu0
  %v184 = vadd.f32 %v102, %v183
  %185 = vmatprep.mubr.f32.mxu0 0.0
  %186 = vmatmul.mubr.f32.gmra.mrb[0].mxu0 %v27
  %v187 = vpop.f32.mrb[0].mxu0
  %v188 = vadd.f32 %v98, %v187
  %v189 = vpop.f32.mrb[0].mxu0
  %v190 = vadd.f32 %v102, %v189
  %191 = vmatprep.mubr.f32.mxu0 0.0
  %192 = vmatmul.mubr.f32.gmra.mrb[0].mxu0 %v28
  %v193 = vpop.f32.mrb[0].mxu0
  %v194 = vadd.f32 %v98, %v193
  %v195 = vpop.f32.mrb[0].mxu0
  %v196 = vadd.f32 %v102, %v195
  %197 = vdwg.mxu0
  %198 = vmatprep.subr.mxu0 %v32
  %199 = vmatpush1.msra.mxu0 %v31
  %200 = vmatprep.subr.mxu0 %v36
  %201 = vmatpush1.msra.mxu0 %v35
  %202 = vmatprep.subr.mxu0 %v40
  %203 = vmatpush1.msra.mxu0 %v39
  %204 = vmatprep.subr.mxu0 %v44
  %205 = vmatpush1.msra.mxu0 %v43
  %206 = vmatprep.subr.mxu0 %v48
  %207 = vmatpush1.msra.mxu0 %v47
  %208 = vmatprep.subr.mxu0 %v52
  %209 = vmatpush1.msra.mxu0 %v51
  %210 = vmatprep.subr.mxu0 %v56
  %211 = vmatpush1.msra.mxu0 %v55
  %212 = vmatprep.subr.mxu0 %v60
  %213 = vmatpush1.msra.mxu0 %v59
  %214 = vmatprep.subr.mxu0 %v64
  %215 = vmatpush1.msra.mxu0 %v63
  %216 = vmatprep.subr.mxu0 %v68
  %217 = vmatpush1.msra.mxu0 %v67
  %218 = vmatprep.subr.mxu0 %v72
  %219 = vmatpush1.msra.mxu0 %v71
  %220 = vmatprep.subr.mxu0 %v76
  %221 = vmatpush1.msra.mxu0 %v75
  %222 = vmatprep.subr.mxu0 %v80
  %223 = vmatpush1.msra.mxu0 %v79
  %224 = vmatprep.subr.mxu0 %v84
  %225 = vmatpush1.msra.mxu0 %v83
  %226 = vmatprep.subr.mxu0 %v88
  %227 = vmatpush1.msra.mxu0 %v87
  %228 = vmatprep.subr.mxu0 %v92
  %229 = vmatpush1.msra.mxu0 %v91
  %230 = vmatprep.subr.mxu0 0.0
  %231 = vmatpush1.msra.mxu0 0.0
  %232 = vmatprep.subr.mxu0 0.0
  %233 = vmatpush1.msra.mxu0 0.0
  %234 = vmatprep.subr.mxu0 0.0
  %235 = vmatpush1.msra.mxu0 0.0
  %236 = vmatprep.subr.mxu0 0.0
  %237 = vmatpush1.msra.mxu0 0.0
  %238 = vmatprep.subr.mxu0 0.0
  %239 = vmatpush1.msra.mxu0 0.0
  %240 = vmatprep.subr.mxu0 0.0
  %241 = vmatpush1.msra.mxu0 0.0
  %242 = vmatprep.subr.mxu0 0.0
  %243 = vmatpush1.msra.mxu0 0.0
  %244 = vmatprep.subr.mxu0 0.0
  %245 = vmatpush1.msra.mxu0 0.0
  %246 = vmatprep.subr.mxu0 0.0
  %247 = vmatpush1.msra.mxu0 0.0
  %248 = vmatprep.subr.mxu0 0.0
  %249 = vmatpush1.msra.mxu0 0.0
  %250 = vmatprep.subr.mxu0 0.0
  %251 = vmatpush1.msra.mxu0 0.0
  %252 = vmatprep.subr.mxu0 0.0
  %253 = vmatpush1.msra.mxu0 0.0
  %254 = vmatprep.subr.mxu0 0.0
  %255 = vmatpush1.msra.mxu0 0.0
  %256 = vmatprep.subr.mxu0 0.0
  %257 = vmatpush1.msra.mxu0 0.0
  %258 = vmatprep.subr.mxu0 0.0
  %259 = vmatpush1.msra.mxu0 0.0
  %260 = vmatprep.subr.mxu0 0.0
  %261 = vmatpush1.msra.mxu0 0.0
  %262 = vmatprep.mubr.f32.mxu0 0.0
  %263 = vmatmul.mubr.f32.gmra.mrb[0].mxu0 %v26
  %v264 = vpop.f32.mrb[0].mxu0
  %v265 = vadd.f32 %v106, %v264
  %v266 = vpop.f32.mrb[0].mxu0
  %v267 = vadd.f32 %v110, %v266
  %268 = vmatprep.mubr.f32.mxu0 0.0
  %269 = vmatmul.mubr.f32.gmra.mrb[0].mxu0 %v27
  %v270 = vpop.f32.mrb[0].mxu0
  %v271 = vadd.f32 %v106, %v270
  %v272 = vpop.f32.mrb[0].mxu0
  %v273 = vadd.f32 %v110, %v272
  %274 = vmatprep.mubr.f32.mxu0 0.0
  %275 = vmatmul.mubr.f32.gmra.mrb[0].mxu0 %v28
  %v276 = vpop.f32.mrb[0].mxu0
  %v277 = vadd.f32 %v106, %v276
  %v278 = vpop.f32.mrb[0].mxu0
  %v279 = vadd.f32 %v110, %v278
  %280 = vdwg.mxu0
  %v281 = vld [vmem:[%s2] sm:$0xff]
  %v282 = vld [vmem:[%s2 + $0x8] sm:$0xff]
  %v283 = vld [vmem:[%s2 + $0x10] sm:$0xff]
  %v284 = vld [vmem:[%s2 + $0x18] sm:$0xff]
  %v285 = vld [vmem:[%s2 + $0x20] sm:$0xff]
  %v286 = vld [vmem:[%s2 + $0x28] sm:$0xff]
  %v287 = vld [vmem:[%s2 + $0x30] sm:$0xff]
  %v288 = vld [vmem:[%s2 + $0x38] sm:$0xff]
  %v289 = vld [vmem:[%s2 + $0x40] sm:$0xff]
  %v290 = vld [vmem:[%s2 + $0x48] sm:$0xff]
  %v291 = vld [vmem:[%s2 + $0x50] sm:$0xff]
  %v292 = vld [vmem:[%s2 + $0x58] sm:$0xff]
  %v293 = vld [vmem:[%s2 + $0x60] sm:$0xff]
  %v294 = vld [vmem:[%s2 + $0x68] sm:$0xff]
  %v295 = vld [vmem:[%s2 + $0x70] sm:$0xff]
  %v296 = vld [vmem:[%s2 + $0x78] sm:$0xff]
  %v297 = vld [vmem:[%s2 + $0x80] sm:$0xff]
  %v298 = vld [vmem:[%s2 + $0x88] sm:$0xff]
  %v299 = vld [vmem:[%s2 + $0x90] sm:$0xff]
  %v300 = vld [vmem:[%s2 + $0x98] sm:$0xff]
  %v301 = vld [vmem:[%s2 + $0xa0] sm:$0xff]
  %v302 = vld [vmem:[%s2 + $0xa8] sm:$0xff]
  %v303 = vld [vmem:[%s2 + $0xb0] sm:$0xff]
  %v304 = vld [vmem:[%s2 + $0xb8] sm:$0xff]
  %v305 = vld [vmem:[%s2 + $0xc0] sm:$0xff]
  %v306 = vld [vmem:[%s2 + $0xc8] sm:$0xff]
  %v307 = vld [vmem:[%s2 + $0xd0] sm:$0xff]
  %v308 = vld [vmem:[%s2 + $0xd8] sm:$0xff]
  %v309 = vld [vmem:[%s2 + $0xe0] sm:$0xff]
  %v310 = vld [vmem:[%s2 + $0xe8] sm:$0xff]
  %v311 = vld [vmem:[%s2 + $0xf0] sm:$0xff]
  %v312 = vld [vmem:[%s2 + $0xf8] sm:$0xff]
  %v313 = vld [vmem:[%s2 + $0x100] sm:$0xff]
  %v314 = vld [vmem:[%s2 + $0x108] sm:$0xff]
  %v315 = vld [vmem:[%s2 + $0x110] sm:$0xff]
  %v316 = vld [vmem:[%s2 + $0x118] sm:$0xff]
  %v317 = vld [vmem:[%s2 + $0x120] sm:$0xff]
  %v318 = vld [vmem:[%s2 + $0x128] sm:$0xff]
  %v319 = vld [vmem:[%s2 + $0x130] sm:$0xff]
  %v320 = vld [vmem:[%s2 + $0x138] sm:$0xff]
  %v321 = vld [vmem:[%s2 + $0x140] sm:$0xff]
  %v322 = vld [vmem:[%s2 + $0x148] sm:$0xff]
  %v323 = vld [vmem:[%s2 + $0x150] sm:$0xff]
  %v324 = vld [vmem:[%s2 + $0x158] sm:$0xff]
  %v325 = vld [vmem:[%s2 + $0x160] sm:$0xff]
  %v326 = vld [vmem:[%s2 + $0x168] sm:$0xff]
  %v327 = vld [vmem:[%s2 + $0x170] sm:$0xff]
  %v328 = vld [vmem:[%s2 + $0x178] sm:$0xff]
  %v329 = vld [vmem:[%s2 + $0x180] sm:$0xff]
  %v330 = vld [vmem:[%s2 + $0x188] sm:$0xff]
  %v331 = vld [vmem:[%s2 + $0x190] sm:$0xff]
  %v332 = vld [vmem:[%s2 + $0x198] sm:$0xff]
  %v333 = vld [vmem:[%s2 + $0x1a0] sm:$0xff]
  %v334 = vld [vmem:[%s2 + $0x1a8] sm:$0xff]
  %v335 = vld [vmem:[%s2 + $0x1b0] sm:$0xff]
  %v336 = vld [vmem:[%s2 + $0x1b8] sm:$0xff]
  %v337 = vld [vmem:[%s2 + $0x1c0] sm:$0xff]
  %v338 = vld [vmem:[%s2 + $0x1c8] sm:$0xff]
  %v339 = vld [vmem:[%s2 + $0x1d0] sm:$0xff]
  %v340 = vld [vmem:[%s2 + $0x1d8] sm:$0xff]
  %v341 = vld [vmem:[%s2 + $0x1e0] sm:$0xff]
  %v342 = vld [vmem:[%s2 + $0x1e8] sm:$0xff]
  %v343 = vld [vmem:[%s2 + $0x1f0] sm:$0xff]
  %v344 = vld [vmem:[%s2 + $0x1f8] sm:$0xff]
  %345 = vmatprep.subr.mxu0 %v282
  %346 = vmatpush1.msra.mxu0 %v281
  %347 = vmatprep.subr.mxu0 %v286
  %348 = vmatpush1.msra.mxu0 %v285
  %349 = vmatprep.subr.mxu0 %v290
  %350 = vmatpush1.msra.mxu0 %v289
  %351 = vmatprep.subr.mxu0 %v294
  %352 = vmatpush1.msra.mxu0 %v293
  %353 = vmatprep.subr.mxu0 %v298
  %354 = vmatpush1.msra.mxu0 %v297
  %355 = vmatprep.subr.mxu0 %v302
  %356 = vmatpush1.msra.mxu0 %v301
  %357 = vmatprep.subr.mxu0 %v306
  %358 = vmatpush1.msra.mxu0 %v305
  %359 = vmatprep.subr.mxu0 %v310
  %360 = vmatpush1.msra.mxu0 %v309
  %361 = vmatprep.subr.mxu0 %v314
  %362 = vmatpush1.msra.mxu0 %v313
  %363 = vmatprep.subr.mxu0 %v318
  %364 = vmatpush1.msra.mxu0 %v317
  %365 = vmatprep.subr.mxu0 %v322
  %366 = vmatpush1.msra.mxu0 %v321
  %367 = vmatprep.subr.mxu0 %v326
  %368 = vmatpush1.msra.mxu0 %v325
  %369 = vmatprep.subr.mxu0 %v330
  %370 = vmatpush1.msra.mxu0 %v329
  %371 = vmatprep.subr.mxu0 %v334
  %372 = vmatpush1.msra.mxu0 %v333
  %373 = vmatprep.subr.mxu0 %v338
  %374 = vmatpush1.msra.mxu0 %v337
  %375 = vmatprep.subr.mxu0 %v342
  %376 = vmatpush1.msra.mxu0 %v341
  %377 = vmatprep.subr.mxu0 0.0
  %378 = vmatpush1.msra.mxu0 0.0
  %379 = vmatprep.subr.mxu0 0.0
  %380 = vmatpush1.msra.mxu0 0.0
  %381 = vmatprep.subr.mxu0 0.0
  %382 = vmatpush1.msra.mxu0 0.0
  %383 = vmatprep.subr.mxu0 0.0
  %384 = vmatpush1.msra.mxu0 0.0
  %385 = vmatprep.subr.mxu0 0.0
  %386 = vmatpush1.msra.mxu0 0.0
  %387 = vmatprep.subr.mxu0 0.0
  %388 = vmatpush1.msra.mxu0 0.0
  %389 = vmatprep.subr.mxu0 0.0
  %390 = vmatpush1.msra.mxu0 0.0
  %391 = vmatprep.subr.mxu0 0.0
  %392 = vmatpush1.msra.mxu0 0.0
  %393 = vmatprep.subr.mxu0 0.0
  %394 = vmatpush1.msra.mxu0 0.0
  %395 = vmatprep.subr.mxu0 0.0
  %396 = vmatpush1.msra.mxu0 0.0
  %397 = vmatprep.subr.mxu0 0.0
  %398 = vmatpush1.msra.mxu0 0.0
  %399 = vmatprep.subr.mxu0 0.0
  %400 = vmatpush1.msra.mxu0 0.0
  %401 = vmatprep.subr.mxu0 0.0
  %402 = vmatpush1.msra.mxu0 0.0
  %403 = vmatprep.subr.mxu0 0.0
  %404 = vmatpush1.msra.mxu0 0.0
  %405 = vmatprep.subr.mxu0 0.0
  %406 = vmatpush1.msra.mxu0 0.0
  %407 = vmatprep.subr.mxu0 0.0
  %408 = vmatpush1.msra.mxu0 0.0
  %409 = vmatprep.mubr.f32.mxu0 0.0
  %410 = vmatmul.mubr.f32.gmra.mrb[0].mxu0 0.0
  %v411 = vpop.f32.mrb[0].mxu0
  %v412 = vadd.f32 0.0, %v411
  %v413 = vpop.f32.mrb[0].mxu0
  %v414 = vadd.f32 0.0, %v413
  %415 = vdwg.mxu0
  %416 = vmatprep.subr.mxu0 %v284
  %417 = vmatpush1.msra.mxu0 %v283
  %418 = vmatprep.subr.mxu0 %v288
  %419 = vmatpush1.msra.mxu0 %v287
  %420 = vmatprep.subr.mxu0 %v292
  %421 = vmatpush1.msra.mxu0 %v291
  %422 = vmatprep.subr.mxu0 %v296
  %423 = vmatpush1.msra.mxu0 %v295
  %424 = vmatprep.subr.mxu0 %v300
  %425 = vmatpush1.msra.mxu0 %v299
  %426 = vmatprep.subr.mxu0 %v304
  %427 = vmatpush1.msra.mxu0 %v303
  %428 = vmatprep.subr.mxu0 %v308
  %429 = vmatpush1.msra.mxu0 %v307
  %430 = vmatprep.subr.mxu0 %v312
  %431 = vmatpush1.msra.mxu0 %v311
  %432 = vmatprep.subr.mxu0 %v316
  %433 = vmatpush1.msra.mxu0 %v315
  %434 = vmatprep.subr.mxu0 %v320
  %435 = vmatpush1.msra.mxu0 %v319
  %436 = vmatprep.subr.mxu0 %v324
  %437 = vmatpush1.msra.mxu0 %v323
  %438 = vmatprep.subr.mxu0 %v328
  %439 = vmatpush1.msra.mxu0 %v327
  %440 = vmatprep.subr.mxu0 %v332
  %441 = vmatpush1.msra.mxu0 %v331
  %442 = vmatprep.subr.mxu0 %v336
  %443 = vmatpush1.msra.mxu0 %v335
  %444 = vmatprep.subr.mxu0 %v340
  %445 = vmatpush1.msra.mxu0 %v339
  %446 = vmatprep.subr.mxu0 %v344
  %447 = vmatpush1.msra.mxu0 %v343
  %448 = vmatprep.subr.mxu0 0.0
  %449 = vmatpush1.msra.mxu0 0.0
  %450 = vmatprep.subr.mxu0 0.0
  %451 = vmatpush1.msra.mxu0 0.0
  %452 = vmatprep.subr.mxu0 0.0
  %453 = vmatpush1.msra.mxu0 0.0
  %454 = vmatprep.subr.mxu0 0.0
  %455 = vmatpush1.msra.mxu0 0.0
  %456 = vmatprep.subr.mxu0 0.0
  %457 = vmatpush1.msra.mxu0 0.0
  %458 = vmatprep.subr.mxu0 0.0
  %459 = vmatpush1.msra.mxu0 0.0
  %460 = vmatprep.subr.mxu0 0.0
  %461 = vmatpush1.msra.mxu0 0.0
  %462 = vmatprep.subr.mxu0 0.0
  %463 = vmatpush1.msra.mxu0 0.0
  %464 = vmatprep.subr.mxu0 0.0
  %465 = vmatpush1.msra.mxu0 0.0
  %466 = vmatprep.subr.mxu0 0.0
  %467 = vmatpush1.msra.mxu0 0.0
  %468 = vmatprep.subr.mxu0 0.0
  %469 = vmatpush1.msra.mxu0 0.0
  %470 = vmatprep.subr.mxu0 0.0
  %471 = vmatpush1.msra.mxu0 0.0
  %472 = vmatprep.subr.mxu0 0.0
  %473 = vmatpush1.msra.mxu0 0.0
  %474 = vmatprep.subr.mxu0 0.0
  %475 = vmatpush1.msra.mxu0 0.0
  %476 = vmatprep.subr.mxu0 0.0
  %477 = vmatpush1.msra.mxu0 0.0
  %478 = vmatprep.subr.mxu0 0.0
  %479 = vmatpush1.msra.mxu0 0.0
  %480 = vmatprep.mubr.f32.mxu0 0.0
  %481 = vmatmul.mubr.f32.gmra.mrb[0].mxu0 0.0
  %v482 = vpop.f32.mrb[0].mxu0
  %v483 = vadd.f32 0.0, %v482
  %v484 = vpop.f32.mrb[0].mxu0
  %v485 = vadd.f32 0.0, %v484
  %486 = vdwg.mxu0
  %v487 = vadd.f32 %v182, %v412
  %v488 = vadd.f32 %v184, %v414
  %v489 = vadd.f32 %v265, %v483
  %v490 = vadd.f32 %v267, %v485
  %v491 = vxor.u32 %v487, 2147483648
  %v492 = vmul.f32 %v491, 1.442695
  %v493 = vpow.pop %v492
  %v494 = vadd.f32 %v493, 1.0
  %v495 = vrcp.pop %v494
  %v496 = vmul.f32 1.0, %v495
  %v497 = vxor.u32 %v488, 2147483648
  %v498 = vmul.f32 %v497, 1.442695
  %v499 = vpow.pop %v498
  %v500 = vadd.f32 %v499, 1.0
  %v501 = vrcp.pop %v500
  %v502 = vmul.f32 1.0, %v501
  %v503 = vtanh.pop %v489
  %v504 = vxor.u32 %v490, 2147483648
  %v505 = vmul.f32 %v504, 1.442695
  %v506 = vpow.pop %v505
  %v507 = vadd.f32 %v506, 1.0
  %v508 = vrcp.pop %v507
  %v509 = vmul.f32 1.0, %v508
  %v510 = vmul.f32 %v502, 0.0
  %v511 = vmul.f32 %v496, %v503
  %v512 = vadd.f32 %v510, %v511
  %v513 = vtanh.pop %v512
  %v514 = vmul.f32 %v509, %v513
  %v515 = vld [vmem:[%s5] sm:$0xff]
  %v516 = vld [vmem:[%s5 + $0x8] sm:$0xff]
  %v517 = vld [vmem:[%s5 + $0x10] sm:$0xff]
  %v518 = vld [vmem:[%s5 + $0x18] sm:$0xff]
  %v519 = vld [vmem:[%s5 + $0x20] sm:$0xff]
  %v520 = vld [vmem:[%s5 + $0x28] sm:$0xff]
  %v521 = vld [vmem:[%s5 + $0x30] sm:$0xff]
  %v522 = vld [vmem:[%s5 + $0x38] sm:$0xff]
  %v523 = vld [vmem:[%s5 + $0x40] sm:$0xff]
  %v524 = vld [vmem:[%s5 + $0x48] sm:$0xff]
  %v525 = vld [vmem:[%s5 + $0x50] sm:$0xff]
  %v526 = vld [vmem:[%s5 + $0x58] sm:$0xff]
  %v527 = vld [vmem:[%s5 + $0x60] sm:$0xff]
  %v528 = vld [vmem:[%s5 + $0x68] sm:$0xff]
  %v529 = vld [vmem:[%s5 + $0x70] sm:$0xff]
  %v530 = vld [vmem:[%s5 + $0x78] sm:$0xff]
  %v531 = vld [vmem:[%s5 + $0x80] sm:$0xff]
  %v532 = vld [vmem:[%s5 + $0x88] sm:$0xff]
  %v533 = vld [vmem:[%s5 + $0x90] sm:$0xff]
  %v534 = vld [vmem:[%s5 + $0x98] sm:$0xff]
  %v535 = vld [vmem:[%s5 + $0xa0] sm:$0xff]
  %v536 = vld [vmem:[%s5 + $0xa8] sm:$0xff]
  %v537 = vld [vmem:[%s5 + $0xb0] sm:$0xff]
  %v538 = vld [vmem:[%s5 + $0xb8] sm:$0xff]
  %v539 = vld [vmem:[%s5 + $0xc0] sm:$0xff]
  %v540 = vld [vmem:[%s5 + $0xc8] sm:$0xff]
  %v541 = vld [vmem:[%s5 + $0xd0] sm:$0xff]
  %v542 = vld [vmem:[%s5 + $0xd8] sm:$0xff]
  %v543 = vld [vmem:[%s5 + $0xe0] sm:$0xff]
  %v544 = vld [vmem:[%s5 + $0xe8] sm:$0xff]
  %v545 = vld [vmem:[%s5 + $0xf0] sm:$0xff]
  %v546 = vld [vmem:[%s5 + $0xf8] sm:$0xff]
  %v547 = vld [vmem:[%s5 + $0x100] sm:$0xff]
  %v548 = vld [vmem:[%s5 + $0x108] sm:$0xff]
  %v549 = vld [vmem:[%s5 + $0x110] sm:$0xff]
  %v550 = vld [vmem:[%s5 + $0x118] sm:$0xff]
  %v551 = vld [vmem:[%s5 + $0x120] sm:$0xff]
  %v552 = vld [vmem:[%s5 + $0x128] sm:$0xff]
  %v553 = vld [vmem:[%s5 + $0x130] sm:$0xff]
  %v554 = vld [vmem:[%s5 + $0x138] sm:$0xff]
  %v555 = vld [vmem:[%s5 + $0x140] sm:$0xff]
  %v556 = vld [vmem:[%s5 + $0x148] sm:$0xff]
  %v557 = vld [vmem:[%s5 + $0x150] sm:$0xff]
  %v558 = vld [vmem:[%s5 + $0x158] sm:$0xff]
  %v559 = vld [vmem:[%s5 + $0x160] sm:$0xff]
  %v560 = vld [vmem:[%s5 + $0x168] sm:$0xff]
  %v561 = vld [vmem:[%s5 + $0x170] sm:$0xff]
  %v562 = vld [vmem:[%s5 + $0x178] sm:$0xff]
  %v563 = vld [vmem:[%s5 + $0x180] sm:$0xff]
  %v564 = vld [vmem:[%s5 + $0x188] sm:$0xff]
  %v565 = vld [vmem:[%s5 + $0x190] sm:$0xff]
  %v566 = vld [vmem:[%s5 + $0x198] sm:$0xff]
  %v567 = vld [vmem:[%s5 + $0x1a0] sm:$0xff]
  %v568 = vld [vmem:[%s5 + $0x1a8] sm:$0xff]
  %v569 = vld [vmem:[%s5 + $0x1b0] sm:$0xff]
  %v570 = vld [vmem:[%s5 + $0x1b8] sm:$0xff]
  %v571 = vld [vmem:[%s5 + $0x1c0] sm:$0xff]
  %v572 = vld [vmem:[%s5 + $0x1c8] sm:$0xff]
  %v573 = vld [vmem:[%s5 + $0x1d0] sm:$0xff]
  %v574 = vld [vmem:[%s5 + $0x1d8] sm:$0xff]
  %v575 = vld [vmem:[%s5 + $0x1e0] sm:$0xff]
  %v576 = vld [vmem:[%s5 + $0x1e8] sm:$0xff]
  %v577 = vld [vmem:[%s5 + $0x1f0] sm:$0xff]
  %v578 = vld [vmem:[%s5 + $0x1f8] sm:$0xff]
  %v579 = vld [vmem:[%s4] sm:$0xff]
  %v580 = vld [vmem:[%s4 + $0x8] sm:$0xff]
  %v581 = vld [vmem:[%s4 + $0x10] sm:$0xff]
  %v582 = vld [vmem:[%s4 + $0x18] sm:$0xff]
  %v583 = vld [vmem:[%s4 + $0x20] sm:$0xff]
  %v584 = vld [vmem:[%s4 + $0x28] sm:$0xff]
  %v585 = vld [vmem:[%s4 + $0x30] sm:$0xff]
  %v586 = vld [vmem:[%s4 + $0x38] sm:$0xff]
  %v587 = vld [vmem:[%s4 + $0x40] sm:$0xff]
  %v588 = vld [vmem:[%s4 + $0x48] sm:$0xff]
  %v589 = vld [vmem:[%s4 + $0x50] sm:$0xff]
  %v590 = vld [vmem:[%s4 + $0x58] sm:$0xff]
  %v591 = vld [vmem:[%s4 + $0x60] sm:$0xff]
  %v592 = vld [vmem:[%s4 + $0x68] sm:$0xff]
  %v593 = vld [vmem:[%s4 + $0x70] sm:$0xff]
  %v594 = vld [vmem:[%s4 + $0x78] sm:$0xff]
  %v595 = vld [vmem:[%s4 + $0x80] sm:$0xff]
  %v596 = vld [vmem:[%s4 + $0x88] sm:$0xff]
  %v597 = vld [vmem:[%s4 + $0x90] sm:$0xff]
  %v598 = vld [vmem:[%s4 + $0x98] sm:$0xff]
  %v599 = vld [vmem:[%s4 + $0xa0] sm:$0xff]
  %v600 = vld [vmem:[%s4 + $0xa8] sm:$0xff]
  %v601 = vld [vmem:[%s4 + $0xb0] sm:$0xff]
  %v602 = vld [vmem:[%s4 + $0xb8] sm:$0xff]
  %v603 = vld [vmem:[%s4 + $0xc0] sm:$0xff]
  %v604 = vld [vmem:[%s4 + $0xc8] sm:$0xff]
  %v605 = vld [vmem:[%s4 + $0xd0] sm:$0xff]
  %v606 = vld [vmem:[%s4 + $0xd8] sm:$0xff]
  %v607 = vld [vmem:[%s4 + $0xe0] sm:$0xff]
  %v608 = vld [vmem:[%s4 + $0xe8] sm:$0xff]
  %v609 = vld [vmem:[%s4 + $0xf0] sm:$0xff]
  %v610 = vld [vmem:[%s4 + $0xf8] sm:$0xff]
  %v611 = vld [vmem:[%s4 + $0x100] sm:$0xff]
  %v612 = vld [vmem:[%s4 + $0x108] sm:$0xff]
  %v613 = vld [vmem:[%s4 + $0x110] sm:$0xff]
  %v614 = vld [vmem:[%s4 + $0x118] sm:$0xff]
  %v615 = vld [vmem:[%s4 + $0x120] sm:$0xff]
  %v616 = vld [vmem:[%s4 + $0x128] sm:$0xff]
  %v617 = vld [vmem:[%s4 + $0x130] sm:$0xff]
  %v618 = vld [vmem:[%s4 + $0x138] sm:$0xff]
  %v619 = vld [vmem:[%s4 + $0x140] sm:$0xff]
  %v620 = vld [vmem:[%s4 + $0x148] sm:$0xff]
  %v621 = vld [vmem:[%s4 + $0x150] sm:$0xff]
  %v622 = vld [vmem:[%s4 + $0x158] sm:$0xff]
  %v623 = vld [vmem:[%s4 + $0x160] sm:$0xff]
  %v624 = vld [vmem:[%s4 + $0x168] sm:$0xff]
  %v625 = vld [vmem:[%s4 + $0x170] sm:$0xff]
  %v626 = vld [vmem:[%s4 + $0x178] sm:$0xff]
  %v627 = vld [vmem:[%s4 + $0x180] sm:$0xff]
  %v628 = vld [vmem:[%s4 + $0x188] sm:$0xff]
  %v629 = vld [vmem:[%s4 + $0x190] sm:$0xff]
  %v630 = vld [vmem:[%s4 + $0x198] sm:$0xff]
  %v631 = vld [vmem:[%s4 + $0x1a0] sm:$0xff]
  %v632 = vld [vmem:[%s4 + $0x1a8] sm:$0xff]
  %v633 = vld [vmem:[%s4 + $0x1b0] sm:$0xff]
  %v634 = vld [vmem:[%s4 + $0x1b8] sm:$0xff]
  %v635 = vld [vmem:[%s4 + $0x1c0] sm:$0xff]
  %v636 = vld [vmem:[%s4 + $0x1c8] sm:$0xff]
  %v637 = vld [vmem:[%s4 + $0x1d0] sm:$0xff]
  %v638 = vld [vmem:[%s4 + $0x1d8] sm:$0xff]
  %v639 = vld [vmem:[%s4 + $0x1e0] sm:$0xff]
  %v640 = vld [vmem:[%s4 + $0x1e8] sm:$0xff]
  %v641 = vld [vmem:[%s4 + $0x1f0] sm:$0xff]
  %v642 = vld [vmem:[%s4 + $0x1f8] sm:$0xff]
  %643 = vmatprep.subr.mxu0 %v516
  %644 = vmatpush1.msra.mxu0 %v515
  %645 = vmatprep.subr.mxu0 %v520
  %646 = vmatpush1.msra.mxu0 %v519
  %647 = vmatprep.subr.mxu0 %v524
  %648 = vmatpush1.msra.mxu0 %v523
  %649 = vmatprep.subr.mxu0 %v528
  %650 = vmatpush1.msra.mxu0 %v527
  %651 = vmatprep.subr.mxu0 %v532
  %652 = vmatpush1.msra.mxu0 %v531
  %653 = vmatprep.subr.mxu0 %v536
  %654 = vmatpush1.msra.mxu0 %v535
  %655 = vmatprep.subr.mxu0 %v540
  %656 = vmatpush1.msra.mxu0 %v539
  %657 = vmatprep.subr.mxu0 %v544
  %658 = vmatpush1.msra.mxu0 %v543
  %659 = vmatprep.subr.mxu0 %v548
  %660 = vmatpush1.msra.mxu0 %v547
  %661 = vmatprep.subr.mxu0 %v552
  %662 = vmatpush1.msra.mxu0 %v551
  %663 = vmatprep.subr.mxu0 %v556
  %664 = vmatpush1.msra.mxu0 %v555
  %665 = vmatprep.subr.mxu0 %v560
  %666 = vmatpush1.msra.mxu0 %v559
  %667 = vmatprep.subr.mxu0 %v564
  %668 = vmatpush1.msra.mxu0 %v563
  %669 = vmatprep.subr.mxu0 %v568
  %670 = vmatpush1.msra.mxu0 %v567
  %671 = vmatprep.subr.mxu0 %v572
  %672 = vmatpush1.msra.mxu0 %v571
  %673 = vmatprep.subr.mxu0 %v576
  %674 = vmatpush1.msra.mxu0 %v575
  %675 = vmatprep.subr.mxu0 0.0
  %676 = vmatpush1.msra.mxu0 0.0
  %677 = vmatprep.subr.mxu0 0.0
  %678 = vmatpush1.msra.mxu0 0.0
  %679 = vmatprep.subr.mxu0 0.0
  %680 = vmatpush1.msra.mxu0 0.0
  %681 = vmatprep.subr.mxu0 0.0
  %682 = vmatpush1.msra.mxu0 0.0
  %683 = vmatprep.subr.mxu0 0.0
  %684 = vmatpush1.msra.mxu0 0.0
  %685 = vmatprep.subr.mxu0 0.0
  %686 = vmatpush1.msra.mxu0 0.0
  %687 = vmatprep.subr.mxu0 0.0
  %688 = vmatpush1.msra.mxu0 0.0
  %689 = vmatprep.subr.mxu0 0.0
  %690 = vmatpush1.msra.mxu0 0.0
  %691 = vmatprep.subr.mxu0 0.0
  %692 = vmatpush1.msra.mxu0 0.0
  %693 = vmatprep.subr.mxu0 0.0
  %694 = vmatpush1.msra.mxu0 0.0
  %695 = vmatprep.subr.mxu0 0.0
  %696 = vmatpush1.msra.mxu0 0.0
  %697 = vmatprep.subr.mxu0 0.0
  %698 = vmatpush1.msra.mxu0 0.0
  %699 = vmatprep.subr.mxu0 0.0
  %700 = vmatpush1.msra.mxu0 0.0
  %701 = vmatprep.subr.mxu0 0.0
  %702 = vmatpush1.msra.mxu0 0.0
  %703 = vmatprep.subr.mxu0 0.0
  %704 = vmatpush1.msra.mxu0 0.0
  %705 = vmatprep.subr.mxu0 0.0
  %706 = vmatpush1.msra.mxu0 0.0
  %707 = vmatprep.mubr.f32.mxu0 0.0
  %708 = vmatmul.mubr.f32.gmra.mrb[0].mxu0 0.0
  %v709 = vpop.f32.mrb[0].mxu0
  %v710 = vadd.f32 0.0, %v709
  %v711 = vpop.f32.mrb[0].mxu0
  %v712 = vadd.f32 0.0, %v711
  %713 = vdwg.mxu0
  %714 = vmatprep.subr.mxu0 %v518
  %715 = vmatpush1.msra.mxu0 %v517
  %716 = vmatprep.subr.mxu0 %v522
  %717 = vmatpush1.msra.mxu0 %v521
  %718 = vmatprep.subr.mxu0 %v526
  %719 = vmatpush1.msra.mxu0 %v525
  %720 = vmatprep.subr.mxu0 %v530
  %721 = vmatpush1.msra.mxu0 %v529
  %722 = vmatprep.subr.mxu0 %v534
  %723 = vmatpush1.msra.mxu0 %v533
  %724 = vmatprep.subr.mxu0 %v538
  %725 = vmatpush1.msra.mxu0 %v537
  %726 = vmatprep.subr.mxu0 %v542
  %727 = vmatpush1.msra.mxu0 %v541
  %728 = vmatprep.subr.mxu0 %v546
  %729 = vmatpush1.msra.mxu0 %v545
  %730 = vmatprep.subr.mxu0 %v550
  %731 = vmatpush1.msra.mxu0 %v549
  %732 = vmatprep.subr.mxu0 %v554
  %733 = vmatpush1.msra.mxu0 %v553
  %734 = vmatprep.subr.mxu0 %v558
  %735 = vmatpush1.msra.mxu0 %v557
  %736 = vmatprep.subr.mxu0 %v562
  %737 = vmatpush1.msra.mxu0 %v561
  %738 = vmatprep.subr.mxu0 %v566
  %739 = vmatpush1.msra.mxu0 %v565
  %740 = vmatprep.subr.mxu0 %v570
  %741 = vmatpush1.msra.mxu0 %v569
  %742 = vmatprep.subr.mxu0 %v574
  %743 = vmatpush1.msra.mxu0 %v573
  %744 = vmatprep.subr.mxu0 %v578
  %745 = vmatpush1.msra.mxu0 %v577
  %746 = vmatprep.subr.mxu0 0.0
  %747 = vmatpush1.msra.mxu0 0.0
  %748 = vmatprep.subr.mxu0 0.0
  %749 = vmatpush1.msra.mxu0 0.0
  %750 = vmatprep.subr.mxu0 0.0
  %751 = vmatpush1.msra.mxu0 0.0
  %752 = vmatprep.subr.mxu0 0.0
  %753 = vmatpush1.msra.mxu0 0.0
  %754 = vmatprep.subr.mxu0 0.0
  %755 = vmatpush1.msra.mxu0 0.0
  %756 = vmatprep.subr.mxu0 0.0
  %757 = vmatpush1.msra.mxu0 0.0
  %758 = vmatprep.subr.mxu0 0.0
  %759 = vmatpush1.msra.mxu0 0.0
  %760 = vmatprep.subr.mxu0 0.0
  %761 = vmatpush1.msra.mxu0 0.0
  %762 = vmatprep.subr.mxu0 0.0
  %763 = vmatpush1.msra.mxu0 0.0
  %764 = vmatprep.subr.mxu0 0.0
  %765 = vmatpush1.msra.mxu0 0.0
  %766 = vmatprep.subr.mxu0 0.0
  %767 = vmatpush1.msra.mxu0 0.0
  %768 = vmatprep.subr.mxu0 0.0
  %769 = vmatpush1.msra.mxu0 0.0
  %770 = vmatprep.subr.mxu0 0.0
  %771 = vmatpush1.msra.mxu0 0.0
  %772 = vmatprep.subr.mxu0 0.0
  %773 = vmatpush1.msra.mxu0 0.0
  %774 = vmatprep.subr.mxu0 0.0
  %775 = vmatpush1.msra.mxu0 0.0
  %776 = vmatprep.subr.mxu0 0.0
  %777 = vmatpush1.msra.mxu0 0.0
  %778 = vmatprep.mubr.f32.mxu0 0.0
  %779 = vmatmul.mubr.f32.gmra.mrb[0].mxu0 0.0
  %v780 = vpop.f32.mrb[0].mxu0
  %v781 = vadd.f32 0.0, %v780
  %v782 = vpop.f32.mrb[0].mxu0
  %v783 = vadd.f32 0.0, %v782
  %784 = vdwg.mxu0
  %785 = vmatprep.subr.mxu0 %v580
  %786 = vmatpush1.msra.mxu0 %v579
  %787 = vmatprep.subr.mxu0 %v584
  %788 = vmatpush1.msra.mxu0 %v583
  %789 = vmatprep.subr.mxu0 %v588
  %790 = vmatpush1.msra.mxu0 %v587
  %791 = vmatprep.subr.mxu0 %v592
  %792 = vmatpush1.msra.mxu0 %v591
  %793 = vmatprep.subr.mxu0 %v596
  %794 = vmatpush1.msra.mxu0 %v595
  %795 = vmatprep.subr.mxu0 %v600
  %796 = vmatpush1.msra.mxu0 %v599
  %797 = vmatprep.subr.mxu0 %v604
  %798 = vmatpush1.msra.mxu0 %v603
  %799 = vmatprep.subr.mxu0 %v608
  %800 = vmatpush1.msra.mxu0 %v607
  %801 = vmatprep.subr.mxu0 %v612
  %802 = vmatpush1.msra.mxu0 %v611
  %803 = vmatprep.subr.mxu0 %v616
  %804 = vmatpush1.msra.mxu0 %v615
  %805 = vmatprep.subr.mxu0 %v620
  %806 = vmatpush1.msra.mxu0 %v619
  %807 = vmatprep.subr.mxu0 %v624
  %808 = vmatpush1.msra.mxu0 %v623
  %809 = vmatprep.subr.mxu0 %v628
  %810 = vmatpush1.msra.mxu0 %v627
  %811 = vmatprep.subr.mxu0 %v632
  %812 = vmatpush1.msra.mxu0 %v631
  %813 = vmatprep.subr.mxu0 %v636
  %814 = vmatpush1.msra.mxu0 %v635
  %815 = vmatprep.subr.mxu0 %v640
  %816 = vmatpush1.msra.mxu0 %v639
  %817 = vmatprep.subr.mxu0 0.0
  %818 = vmatpush1.msra.mxu0 0.0
  %819 = vmatprep.subr.mxu0 0.0
  %820 = vmatpush1.msra.mxu0 0.0
  %821 = vmatprep.subr.mxu0 0.0
  %822 = vmatpush1.msra.mxu0 0.0
  %823 = vmatprep.subr.mxu0 0.0
  %824 = vmatpush1.msra.mxu0 0.0
  %825 = vmatprep.subr.mxu0 0.0
  %826 = vmatpush1.msra.mxu0 0.0
  %827 = vmatprep.subr.mxu0 0.0
  %828 = vmatpush1.msra.mxu0 0.0
  %829 = vmatprep.subr.mxu0 0.0
  %830 = vmatpush1.msra.mxu0 0.0
  %831 = vmatprep.subr.mxu0 0.0
  %832 = vmatpush1.msra.mxu0 0.0
  %833 = vmatprep.subr.mxu0 0.0
  %834 = vmatpush1.msra.mxu0 0.0
  %835 = vmatprep.subr.mxu0 0.0
  %836 = vmatpush1.msra.mxu0 0.0
  %837 = vmatprep.subr.mxu0 0.0
  %838 = vmatpush1.msra.mxu0 0.0
  %839 = vmatprep.subr.mxu0 0.0
  %840 = vmatpush1.msra.mxu0 0.0
  %841 = vmatprep.subr.mxu0 0.0
  %842 = vmatpush1.msra.mxu0 0.0
  %843 = vmatprep.subr.mxu0 0.0
  %844 = vmatpush1.msra.mxu0 0.0
  %845 = vmatprep.subr.mxu0 0.0
  %846 = vmatpush1.msra.mxu0 0.0
  %847 = vmatprep.subr.mxu0 0.0
  %848 = vmatpush1.msra.mxu0 0.0
  %849 = vmatprep.mubr.f32.mxu0 0.0
  %850 = vmatmul.mubr.f32.gmra.mrb[0].mxu0 %v514
  %v851 = vpop.f32.mrb[0].mxu0
  %v852 = vadd.f32 %v710, %v851
  %v853 = vpop.f32.mrb[0].mxu0
  %v854 = vadd.f32 %v712, %v853
  %855 = vdwg.mxu0
  %856 = vmatprep.subr.mxu0 %v582
  %857 = vmatpush1.msra.mxu0 %v581
  %858 = vmatprep.subr.mxu0 %v586
  %859 = vmatpush1.msra.mxu0 %v585
  %860 = vmatprep.subr.mxu0 %v590
  %861 = vmatpush1.msra.mxu0 %v589
  %862 = vmatprep.subr.mxu0 %v594
  %863 = vmatpush1.msra.mxu0 %v593
  %864 = vmatprep.subr.mxu0 %v598
  %865 = vmatpush1.msra.mxu0 %v597
  %866 = vmatprep.subr.mxu0 %v602
  %867 = vmatpush1.msra.mxu0 %v601
  %868 = vmatprep.subr.mxu0 %v606
  %869 = vmatpush1.msra.mxu0 %v605
  %870 = vmatprep.subr.mxu0 %v610
  %871 = vmatpush1.msra.mxu0 %v609
  %872 = vmatprep.subr.mxu0 %v614
  %873 = vmatpush1.msra.mxu0 %v613
  %874 = vmatprep.subr.mxu0 %v618
  %875 = vmatpush1.msra.mxu0 %v617
  %876 = vmatprep.subr.mxu0 %v622
  %877 = vmatpush1.msra.mxu0 %v621
  %878 = vmatprep.subr.mxu0 %v626
  %879 = vmatpush1.msra.mxu0 %v625
  %880 = vmatprep.subr.mxu0 %v630
  %881 = vmatpush1.msra.mxu0 %v629
  %882 = vmatprep.subr.mxu0 %v634
  %883 = vmatpush1.msra.mxu0 %v633
  %884 = vmatprep.subr.mxu0 %v638
  %885 = vmatpush1.msra.mxu0 %v637
  %886 = vmatprep.subr.mxu0 %v642
  %887 = vmatpush1.msra.mxu0 %v641
  %888 = vmatprep.subr.mxu0 0.0
  %889 = vmatpush1.msra.mxu0 0.0
  %890 = vmatprep.subr.mxu0 0.0
  %891 = vmatpush1.msra.mxu0 0.0
  %892 = vmatprep.subr.mxu0 0.0
  %893 = vmatpush1.msra.mxu0 0.0
  %894 = vmatprep.subr.mxu0 0.0
  %895 = vmatpush1.msra.mxu0 0.0
  %896 = vmatprep.subr.mxu0 0.0
  %897 = vmatpush1.msra.mxu0 0.0
  %898 = vmatprep.subr.mxu0 0.0
  %899 = vmatpush1.msra.mxu0 0.0
  %900 = vmatprep.subr.mxu0 0.0
  %901 = vmatpush1.msra.mxu0 0.0
  %902 = vmatprep.subr.mxu0 0.0
  %903 = vmatpush1.msra.mxu0 0.0
  %904 = vmatprep.subr.mxu0 0.0
  %905 = vmatpush1.msra.mxu0 0.0
  %906 = vmatprep.subr.mxu0 0.0
  %907 = vmatpush1.msra.mxu0 0.0
  %908 = vmatprep.subr.mxu0 0.0
  %909 = vmatpush1.msra.mxu0 0.0
  %910 = vmatprep.subr.mxu0 0.0
  %911 = vmatpush1.msra.mxu0 0.0
  %912 = vmatprep.subr.mxu0 0.0
  %913 = vmatpush1.msra.mxu0 0.0
  %914 = vmatprep.subr.mxu0 0.0
  %915 = vmatpush1.msra.mxu0 0.0
  %916 = vmatprep.subr.mxu0 0.0
  %917 = vmatpush1.msra.mxu0 0.0
  %918 = vmatprep.subr.mxu0 0.0
  %919 = vmatpush1.msra.mxu0 0.0
  %920 = vmatprep.mubr.f32.mxu0 0.0
  %921 = vmatmul.mubr.f32.gmra.mrb[0].mxu0 %v514
  %v922 = vpop.f32.mrb[0].mxu0
  %v923 = vadd.f32 %v781, %v922
  %v924 = vpop.f32.mrb[0].mxu0
  %v925 = vadd.f32 %v783, %v924
  %926 = vdwg.mxu0
  %v927 = vld [vmem:[%s6] sm:$0xf]
  %v929 = vlaneseq
  %v930 = vshrl.u32 %v929, 7
  %v931 = vsub.s32 0, %v930
  %v932 = vrot.slane %v927, %v931
  %v933 = vlaneseq
  %v934 = vshrl.u32 %v933, 7
  %v935 = vsub.s32 1, %v934
  %v936 = vrot.slane %v927, %v935
  %v937 = vlaneseq
  %v938 = vshrl.u32 %v937, 7
  %v939 = vsub.s32 2, %v938
  %v940 = vrot.slane %v927, %v939
  %v941 = vlaneseq
  %v942 = vshrl.u32 %v941, 7
  %v943 = vsub.s32 3, %v942
  %v944 = vrot.slane %v927, %v943
  %v949 = vadd.f32 %v852, %v932
  %v950 = vadd.f32 %v854, %v936
  %v951 = vadd.f32 %v923, %v940
  %v952 = vadd.f32 %v925, %v944
  %v953 = vxor.u32 %v949, 2147483648
  %v954 = vmul.f32 %v953, 1.442695
  %v955 = vpow.pop %v954
  %v956 = vadd.f32 %v955, 1.0
  %v957 = vrcp.pop %v956
  %v958 = vmul.f32 1.0, %v957
  %v959 = vxor.u32 %v950, 2147483648
  %v960 = vmul.f32 %v959, 1.442695
  %v961 = vpow.pop %v960
  %v962 = vadd.f32 %v961, 1.0
  %v963 = vrcp.pop %v962
  %v964 = vmul.f32 1.0, %v963
  %v965 = vtanh.pop %v951
  %v966 = vxor.u32 %v952, 2147483648
  %v967 = vmul.f32 %v966, 1.442695
  %v968 = vpow.pop %v967
  %v969 = vadd.f32 %v968, 1.0
  %v970 = vrcp.pop %v969
  %v971 = vmul.f32 1.0, %v970
  %v972 = vmul.f32 %v964, 0.0
  %v973 = vmul.f32 %v958, %v965
  %v974 = vadd.f32 %v972, %v973
  %v975 = vtanh.pop %v974
  %v976 = vmul.f32 %v971, %v975
  %977 = vst [vmem:[%s7] sm:$0x3] %v976
  %v978 = vld [vmem:[%s2] sm:$0xff]
  %v979 = vld [vmem:[%s2 + $0x8] sm:$0xff]
  %v980 = vld [vmem:[%s2 + $0x10] sm:$0xff]
  %v981 = vld [vmem:[%s2 + $0x18] sm:$0xff]
  %v982 = vld [vmem:[%s2 + $0x20] sm:$0xff]
  %v983 = vld [vmem:[%s2 + $0x28] sm:$0xff]
  %v984 = vld [vmem:[%s2 + $0x30] sm:$0xff]
  %v985 = vld [vmem:[%s2 + $0x38] sm:$0xff]
  %v986 = vld [vmem:[%s2 + $0x40] sm:$0xff]
  %v987 = vld [vmem:[%s2 + $0x48] sm:$0xff]
  %v988 = vld [vmem:[%s2 + $0x50] sm:$0xff]
  %v989 = vld [vmem:[%s2 + $0x58] sm:$0xff]
  %v990 = vld [vmem:[%s2 + $0x60] sm:$0xff]
  %v991 = vld [vmem:[%s2 + $0x68] sm:$0xff]
  %v992 = vld [vmem:[%s2 + $0x70] sm:$0xff]
  %v993 = vld [vmem:[%s2 + $0x78] sm:$0xff]
  %v994 = vld [vmem:[%s2 + $0x80] sm:$0xff]
  %v995 = vld [vmem:[%s2 + $0x88] sm:$0xff]
  %v996 = vld [vmem:[%s2 + $0x90] sm:$0xff]
  %v997 = vld [vmem:[%s2 + $0x98] sm:$0xff]
  %v998 = vld [vmem:[%s2 + $0xa0] sm:$0xff]
  %v999 = vld [vmem:[%s2 + $0xa8] sm:$0xff]
  %v1000 = vld [vmem:[%s2 + $0xb0] sm:$0xff]
  %v1001 = vld [vmem:[%s2 + $0xb8] sm:$0xff]
  %v1002 = vld [vmem:[%s2 + $0xc0] sm:$0xff]
  %v1003 = vld [vmem:[%s2 + $0xc8] sm:$0xff]
  %v1004 = vld [vmem:[%s2 + $0xd0] sm:$0xff]
  %v1005 = vld [vmem:[%s2 + $0xd8] sm:$0xff]
  %v1006 = vld [vmem:[%s2 + $0xe0] sm:$0xff]
  %v1007 = vld [vmem:[%s2 + $0xe8] sm:$0xff]
  %v1008 = vld [vmem:[%s2 + $0xf0] sm:$0xff]
  %v1009 = vld [vmem:[%s2 + $0xf8] sm:$0xff]
  %v1010 = vld [vmem:[%s2 + $0x100] sm:$0xff]
  %v1011 = vld [vmem:[%s2 + $0x108] sm:$0xff]
  %v1012 = vld [vmem:[%s2 + $0x110] sm:$0xff]
  %v1013 = vld [vmem:[%s2 + $0x118] sm:$0xff]
  %v1014 = vld [vmem:[%s2 + $0x120] sm:$0xff]
  %v1015 = vld [vmem:[%s2 + $0x128] sm:$0xff]
  %v1016 = vld [vmem:[%s2 + $0x130] sm:$0xff]
  %v1017 = vld [vmem:[%s2 + $0x138] sm:$0xff]
  %v1018 = vld [vmem:[%s2 + $0x140] sm:$0xff]
  %v1019 = vld [vmem:[%s2 + $0x148] sm:$0xff]
  %v1020 = vld [vmem:[%s2 + $0x150] sm:$0xff]
  %v1021 = vld [vmem:[%s2 + $0x158] sm:$0xff]
  %v1022 = vld [vmem:[%s2 + $0x160] sm:$0xff]
  %v1023 = vld [vmem:[%s2 + $0x168] sm:$0xff]
  %v1024 = vld [vmem:[%s2 + $0x170] sm:$0xff]
  %v1025 = vld [vmem:[%s2 + $0x178] sm:$0xff]
  %v1026 = vld [vmem:[%s2 + $0x180] sm:$0xff]
  %v1027 = vld [vmem:[%s2 + $0x188] sm:$0xff]
  %v1028 = vld [vmem:[%s2 + $0x190] sm:$0xff]
  %v1029 = vld [vmem:[%s2 + $0x198] sm:$0xff]
  %v1030 = vld [vmem:[%s2 + $0x1a0] sm:$0xff]
  %v1031 = vld [vmem:[%s2 + $0x1a8] sm:$0xff]
  %v1032 = vld [vmem:[%s2 + $0x1b0] sm:$0xff]
  %v1033 = vld [vmem:[%s2 + $0x1b8] sm:$0xff]
  %v1034 = vld [vmem:[%s2 + $0x1c0] sm:$0xff]
  %v1035 = vld [vmem:[%s2 + $0x1c8] sm:$0xff]
  %v1036 = vld [vmem:[%s2 + $0x1d0] sm:$0xff]
  %v1037 = vld [vmem:[%s2 + $0x1d8] sm:$0xff]
  %v1038 = vld [vmem:[%s2 + $0x1e0] sm:$0xff]
  %v1039 = vld [vmem:[%s2 + $0x1e8] sm:$0xff]
  %v1040 = vld [vmem:[%s2 + $0x1f0] sm:$0xff]
  %v1041 = vld [vmem:[%s2 + $0x1f8] sm:$0xff]
  %1042 = vmatprep.subr.mxu0 %v979
  %1043 = vmatpush1.msra.mxu0 %v978
  %1044 = vmatprep.subr.mxu0 %v983
  %1045 = vmatpush1.msra.mxu0 %v982
  %1046 = vmatprep.subr.mxu0 %v987
  %1047 = vmatpush1.msra.mxu0 %v986
  %1048 = vmatprep.subr.mxu0 %v991
  %1049 = vmatpush1.msra.mxu0 %v990
  %1050 = vmatprep.subr.mxu0 %v995
  %1051 = vmatpush1.msra.mxu0 %v994
  %1052 = vmatprep.subr.mxu0 %v999
  %1053 = vmatpush1.msra.mxu0 %v998
  %1054 = vmatprep.subr.mxu0 %v1003
  %1055 = vmatpush1.msra.mxu0 %v1002
  %1056 = vmatprep.subr.mxu0 %v1007
  %1057 = vmatpush1.msra.mxu0 %v1006
  %1058 = vmatprep.subr.mxu0 %v1011
  %1059 = vmatpush1.msra.mxu0 %v1010
  %1060 = vmatprep.subr.mxu0 %v1015
  %1061 = vmatpush1.msra.mxu0 %v1014
  %1062 = vmatprep.subr.mxu0 %v1019
  %1063 = vmatpush1.msra.mxu0 %v1018
  %1064 = vmatprep.subr.mxu0 %v1023
  %1065 = vmatpush1.msra.mxu0 %v1022
  %1066 = vmatprep.subr.mxu0 %v1027
  %1067 = vmatpush1.msra.mxu0 %v1026
  %1068 = vmatprep.subr.mxu0 %v1031
  %1069 = vmatpush1.msra.mxu0 %v1030
  %1070 = vmatprep.subr.mxu0 %v1035
  %1071 = vmatpush1.msra.mxu0 %v1034
  %1072 = vmatprep.subr.mxu0 %v1039
  %1073 = vmatpush1.msra.mxu0 %v1038
  %1074 = vmatprep.subr.mxu0 0.0
  %1075 = vmatpush1.msra.mxu0 0.0
  %1076 = vmatprep.subr.mxu0 0.0
  %1077 = vmatpush1.msra.mxu0 0.0
  %1078 = vmatprep.subr.mxu0 0.0
  %1079 = vmatpush1.msra.mxu0 0.0
  %1080 = vmatprep.subr.mxu0 0.0
  %1081 = vmatpush1.msra.mxu0 0.0
  %1082 = vmatprep.subr.mxu0 0.0
  %1083 = vmatpush1.msra.mxu0 0.0
  %1084 = vmatprep.subr.mxu0 0.0
  %1085 = vmatpush1.msra.mxu0 0.0
  %1086 = vmatprep.subr.mxu0 0.0
  %1087 = vmatpush1.msra.mxu0 0.0
  %1088 = vmatprep.subr.mxu0 0.0
  %1089 = vmatpush1.msra.mxu0 0.0
  %1090 = vmatprep.subr.mxu0 0.0
  %1091 = vmatpush1.msra.mxu0 0.0
  %1092 = vmatprep.subr.mxu0 0.0
  %1093 = vmatpush1.msra.mxu0 0.0
  %1094 = vmatprep.subr.mxu0 0.0
  %1095 = vmatpush1.msra.mxu0 0.0
  %1096 = vmatprep.subr.mxu0 0.0
  %1097 = vmatpush1.msra.mxu0 0.0
  %1098 = vmatprep.subr.mxu0 0.0
  %1099 = vmatpush1.msra.mxu0 0.0
  %1100 = vmatprep.subr.mxu0 0.0
  %1101 = vmatpush1.msra.mxu0 0.0
  %1102 = vmatprep.subr.mxu0 0.0
  %1103 = vmatpush1.msra.mxu0 0.0
  %1104 = vmatprep.subr.mxu0 0.0
  %1105 = vmatpush1.msra.mxu0 0.0
  %1106 = vmatprep.mubr.f32.mxu0 0.0
  %1107 = vmatmul.mubr.f32.gmra.mrb[0].mxu0 %v514
  %v1108 = vpop.f32.mrb[0].mxu0
  %v1109 = vadd.f32 0.0, %v1108
  %v1110 = vpop.f32.mrb[0].mxu0
  %v1111 = vadd.f32 0.0, %v1110
  %1112 = vdwg.mxu0
  %1113 = vmatprep.subr.mxu0 %v981
  %1114 = vmatpush1.msra.mxu0 %v980
  %1115 = vmatprep.subr.mxu0 %v985
  %1116 = vmatpush1.msra.mxu0 %v984
  %1117 = vmatprep.subr.mxu0 %v989
  %1118 = vmatpush1.msra.mxu0 %v988
  %1119 = vmatprep.subr.mxu0 %v993
  %1120 = vmatpush1.msra.mxu0 %v992
  %1121 = vmatprep.subr.mxu0 %v997
  %1122 = vmatpush1.msra.mxu0 %v996
  %1123 = vmatprep.subr.mxu0 %v1001
  %1124 = vmatpush1.msra.mxu0 %v1000
  %1125 = vmatprep.subr.mxu0 %v1005
  %1126 = vmatpush1.msra.mxu0 %v1004
  %1127 = vmatprep.subr.mxu0 %v1009
  %1128 = vmatpush1.msra.mxu0 %v1008
  %1129 = vmatprep.subr.mxu0 %v1013
  %1130 = vmatpush1.msra.mxu0 %v1012
  %1131 = vmatprep.subr.mxu0 %v1017
  %1132 = vmatpush1.msra.mxu0 %v1016
  %1133 = vmatprep.subr.mxu0 %v1021
  %1134 = vmatpush1.msra.mxu0 %v1020
  %1135 = vmatprep.subr.mxu0 %v1025
  %1136 = vmatpush1.msra.mxu0 %v1024
  %1137 = vmatprep.subr.mxu0 %v1029
  %1138 = vmatpush1.msra.mxu0 %v1028
  %1139 = vmatprep.subr.mxu0 %v1033
  %1140 = vmatpush1.msra.mxu0 %v1032
  %1141 = vmatprep.subr.mxu0 %v1037
  %1142 = vmatpush1.msra.mxu0 %v1036
  %1143 = vmatprep.subr.mxu0 %v1041
  %1144 = vmatpush1.msra.mxu0 %v1040
  %1145 = vmatprep.subr.mxu0 0.0
  %1146 = vmatpush1.msra.mxu0 0.0
  %1147 = vmatprep.subr.mxu0 0.0
  %1148 = vmatpush1.msra.mxu0 0.0
  %1149 = vmatprep.subr.mxu0 0.0
  %1150 = vmatpush1.msra.mxu0 0.0
  %1151 = vmatprep.subr.mxu0 0.0
  %1152 = vmatpush1.msra.mxu0 0.0
  %1153 = vmatprep.subr.mxu0 0.0
  %1154 = vmatpush1.msra.mxu0 0.0
  %1155 = vmatprep.subr.mxu0 0.0
  %1156 = vmatpush1.msra.mxu0 0.0
  %1157 = vmatprep.subr.mxu0 0.0
  %1158 = vmatpush1.msra.mxu0 0.0
  %1159 = vmatprep.subr.mxu0 0.0
  %1160 = vmatpush1.msra.mxu0 0.0
  %1161 = vmatprep.subr.mxu0 0.0
  %1162 = vmatpush1.msra.mxu0 0.0
  %1163 = vmatprep.subr.mxu0 0.0
  %1164 = vmatpush1.msra.mxu0 0.0
  %1165 = vmatprep.subr.mxu0 0.0
  %1166 = vmatpush1.msra.mxu0 0.0
  %1167 = vmatprep.subr.mxu0 0.0
  %1168 = vmatpush1.msra.mxu0 0.0
  %1169 = vmatprep.subr.mxu0 0.0
  %1170 = vmatpush1.msra.mxu0 0.0
  %1171 = vmatprep.subr.mxu0 0.0
  %1172 = vmatpush1.msra.mxu0 0.0
  %1173 = vmatprep.subr.mxu0 0.0
  %1174 = vmatpush1.msra.mxu0 0.0
  %1175 = vmatprep.subr.mxu0 0.0
  %1176 = vmatpush1.msra.mxu0 0.0
  %1177 = vmatprep.mubr.f32.mxu0 0.0
  %1178 = vmatmul.mubr.f32.gmra.mrb[0].mxu0 %v514
  %v1179 = vpop.f32.mrb[0].mxu0
  %v1180 = vadd.f32 0.0, %v1179
  %v1181 = vpop.f32.mrb[0].mxu0
  %v1182 = vadd.f32 0.0, %v1181
  %1183 = vdwg.mxu0
  %v1188 = vrot.slane %v1109, 6
  %v1189 = vrot.slane %v1111, 6
  %v1190 = vrot.slane %v1180, 6
  %v1191 = vrot.slane %v1182, 6
  %v1196 = vadd.f32 %v182, %v1188
  %v1197 = vadd.f32 %v184, %v1189
  %v1198 = vadd.f32 %v265, %v1190
  %v1199 = vadd.f32 %v267, %v1191
  %v1200 = vxor.u32 %v1196, 2147483648
  %v1201 = vmul.f32 %v1200, 1.442695
  %v1202 = vpow.pop %v1201
  %v1203 = vadd.f32 %v1202, 1.0
  %v1204 = vrcp.pop %v1203
  %v1205 = vmul.f32 1.0, %v1204
  %v1206 = vxor.u32 %v1197, 2147483648
  %v1207 = vmul.f32 %v1206, 1.442695
  %v1208 = vpow.pop %v1207
  %v1209 = vadd.f32 %v1208, 1.0
  %v1210 = vrcp.pop %v1209
  %v1211 = vmul.f32 1.0, %v1210
  %v1212 = vtanh.pop %v1198
  %v1213 = vxor.u32 %v1199, 2147483648
  %v1214 = vmul.f32 %v1213, 1.442695
  %v1215 = vpow.pop %v1214
  %v1216 = vadd.f32 %v1215, 1.0
  %v1217 = vrcp.pop %v1216
  %v1218 = vmul.f32 1.0, %v1217
  %v1220 = vrot.slane %v512, 6
  %v1222 = vmul.f32 %v1211, %v1220
  %v1223 = vmul.f32 %v1205, %v1212
  %v1224 = vadd.f32 %v1222, %v1223
  %v1225 = vtanh.pop %v1224
  %v1226 = vmul.f32 %v1218, %v1225
  %v1227 = vld [vmem:[%s5] sm:$0xff]
  %v1228 = vld [vmem:[%s5 + $0x8] sm:$0xff]
  %v1229 = vld [vmem:[%s5 + $0x10] sm:$0xff]
  %v1230 = vld [vmem:[%s5 + $0x18] sm:$0xff]
  %v1231 = vld [vmem:[%s5 + $0x20] sm:$0xff]
  %v1232 = vld [vmem:[%s5 + $0x28] sm:$0xff]
  %v1233 = vld [vmem:[%s5 + $0x30] sm:$0xff]
  %v1234 = vld [vmem:[%s5 + $0x38] sm:$0xff]
  %v1235 = vld [vmem:[%s5 + $0x40] sm:$0xff]
  %v1236 = vld [vmem:[%s5 + $0x48] sm:$0xff]
  %v1237 = vld [vmem:[%s5 + $0x50] sm:$0xff]
  %v1238 = vld [vmem:[%s5 + $0x58] sm:$0xff]
  %v1239 = vld [vmem:[%s5 + $0x60] sm:$0xff]
  %v1240 = vld [vmem:[%s5 + $0x68] sm:$0xff]
  %v1241 = vld [vmem:[%s5 + $0x70] sm:$0xff]
  %v1242 = vld [vmem:[%s5 + $0x78] sm:$0xff]
  %v1243 = vld [vmem:[%s5 + $0x80] sm:$0xff]
  %v1244 = vld [vmem:[%s5 + $0x88] sm:$0xff]
  %v1245 = vld [vmem:[%s5 + $0x90] sm:$0xff]
  %v1246 = vld [vmem:[%s5 + $0x98] sm:$0xff]
  %v1247 = vld [vmem:[%s5 + $0xa0] sm:$0xff]
  %v1248 = vld [vmem:[%s5 + $0xa8] sm:$0xff]
  %v1249 = vld [vmem:[%s5 + $0xb0] sm:$0xff]
  %v1250 = vld [vmem:[%s5 + $0xb8] sm:$0xff]
  %v1251 = vld [vmem:[%s5 + $0xc0] sm:$0xff]
  %v1252 = vld [vmem:[%s5 + $0xc8] sm:$0xff]
  %v1253 = vld [vmem:[%s5 + $0xd0] sm:$0xff]
  %v1254 = vld [vmem:[%s5 + $0xd8] sm:$0xff]
  %v1255 = vld [vmem:[%s5 + $0xe0] sm:$0xff]
  %v1256 = vld [vmem:[%s5 + $0xe8] sm:$0xff]
  %v1257 = vld [vmem:[%s5 + $0xf0] sm:$0xff]
  %v1258 = vld [vmem:[%s5 + $0xf8] sm:$0xff]
  %v1259 = vld [vmem:[%s5 + $0x100] sm:$0xff]
  %v1260 = vld [vmem:[%s5 + $0x108] sm:$0xff]
  %v1261 = vld [vmem:[%s5 + $0x110] sm:$0xff]
  %v1262 = vld [vmem:[%s5 + $0x118] sm:$0xff]
  %v1263 = vld [vmem:[%s5 + $0x120] sm:$0xff]
  %v1264 = vld [vmem:[%s5 + $0x128] sm:$0xff]
  %v1265 = vld [vmem:[%s5 + $0x130] sm:$0xff]
  %v1266 = vld [vmem:[%s5 + $0x138] sm:$0xff]
  %v1267 = vld [vmem:[%s5 + $0x140] sm:$0xff]
  %v1268 = vld [vmem:[%s5 + $0x148] sm:$0xff]
  %v1269 = vld [vmem:[%s5 + $0x150] sm:$0xff]
  %v1270 = vld [vmem:[%s5 + $0x158] sm:$0xff]
  %v1271 = vld [vmem:[%s5 + $0x160] sm:$0xff]
  %v1272 = vld [vmem:[%s5 + $0x168] sm:$0xff]
  %v1273 = vld [vmem:[%s5 + $0x170] sm:$0xff]
  %v1274 = vld [vmem:[%s5 + $0x178] sm:$0xff]
  %v1275 = vld [vmem:[%s5 + $0x180] sm:$0xff]
  %v1276 = vld [vmem:[%s5 + $0x188] sm:$0xff]
  %v1277 = vld [vmem:[%s5 + $0x190] sm:$0xff]
  %v1278 = vld [vmem:[%s5 + $0x198] sm:$0xff]
  %v1279 = vld [vmem:[%s5 + $0x1a0] sm:$0xff]
  %v1280 = vld [vmem:[%s5 + $0x1a8] sm:$0xff]
  %v1281 = vld [vmem:[%s5 + $0x1b0] sm:$0xff]
  %v1282 = vld [vmem:[%s5 + $0x1b8] sm:$0xff]
  %v1283 = vld [vmem:[%s5 + $0x1c0] sm:$0xff]
  %v1284 = vld [vmem:[%s5 + $0x1c8] sm:$0xff]
  %v1285 = vld [vmem:[%s5 + $0x1d0] sm:$0xff]
  %v1286 = vld [vmem:[%s5 + $0x1d8] sm:$0xff]
  %v1287 = vld [vmem:[%s5 + $0x1e0] sm:$0xff]
  %v1288 = vld [vmem:[%s5 + $0x1e8] sm:$0xff]
  %v1289 = vld [vmem:[%s5 + $0x1f0] sm:$0xff]
  %v1290 = vld [vmem:[%s5 + $0x1f8] sm:$0xff]
  %v1291 = vld [vmem:[%s4] sm:$0xff]
  %v1292 = vld [vmem:[%s4 + $0x8] sm:$0xff]
  %v1293 = vld [vmem:[%s4 + $0x10] sm:$0xff]
  %v1294 = vld [vmem:[%s4 + $0x18] sm:$0xff]
  %v1295 = vld [vmem:[%s4 + $0x20] sm:$0xff]
  %v1296 = vld [vmem:[%s4 + $0x28] sm:$0xff]
  %v1297 = vld [vmem:[%s4 + $0x30] sm:$0xff]
  %v1298 = vld [vmem:[%s4 + $0x38] sm:$0xff]
  %v1299 = vld [vmem:[%s4 + $0x40] sm:$0xff]
  %v1300 = vld [vmem:[%s4 + $0x48] sm:$0xff]
  %v1301 = vld [vmem:[%s4 + $0x50] sm:$0xff]
  %v1302 = vld [vmem:[%s4 + $0x58] sm:$0xff]
  %v1303 = vld [vmem:[%s4 + $0x60] sm:$0xff]
  %v1304 = vld [vmem:[%s4 + $0x68] sm:$0xff]
  %v1305 = vld [vmem:[%s4 + $0x70] sm:$0xff]
  %v1306 = vld [vmem:[%s4 + $0x78] sm:$0xff]
  %v1307 = vld [vmem:[%s4 + $0x80] sm:$0xff]
  %v1308 = vld [vmem:[%s4 + $0x88] sm:$0xff]
  %v1309 = vld [vmem:[%s4 + $0x90] sm:$0xff]
  %v1310 = vld [vmem:[%s4 + $0x98] sm:$0xff]
  %v1311 = vld [vmem:[%s4 + $0xa0] sm:$0xff]
  %v1312 = vld [vmem:[%s4 + $0xa8] sm:$0xff]
  %v1313 = vld [vmem:[%s4 + $0xb0] sm:$0xff]
  %v1314 = vld [vmem:[%s4 + $0xb8] sm:$0xff]
  %v1315 = vld [vmem:[%s4 + $0xc0] sm:$0xff]
  %v1316 = vld [vmem:[%s4 + $0xc8] sm:$0xff]
  %v1317 = vld [vmem:[%s4 + $0xd0] sm:$0xff]
  %v1318 = vld [vmem:[%s4 + $0xd8] sm:$0xff]
  %v1319 = vld [vmem:[%s4 + $0xe0] sm:$0xff]
  %v1320 = vld [vmem:[%s4 + $0xe8] sm:$0xff]
  %v1321 = vld [vmem:[%s4 + $0xf0] sm:$0xff]
  %v1322 = vld [vmem:[%s4 + $0xf8] sm:$0xff]
  %v1323 = vld [vmem:[%s4 + $0x100] sm:$0xff]
  %v1324 = vld [vmem:[%s4 + $0x108] sm:$0xff]
  %v1325 = vld [vmem:[%s4 + $0x110] sm:$0xff]
  %v1326 = vld [vmem:[%s4 + $0x118] sm:$0xff]
  %v1327 = vld [vmem:[%s4 + $0x120] sm:$0xff]
  %v1328 = vld [vmem:[%s4 + $0x128] sm:$0xff]
  %v1329 = vld [vmem:[%s4 + $0x130] sm:$0xff]
  %v1330 = vld [vmem:[%s4 + $0x138] sm:$0xff]
  %v1331 = vld [vmem:[%s4 + $0x140] sm:$0xff]
  %v1332 = vld [vmem:[%s4 + $0x148] sm:$0xff]
  %v1333 = vld [vmem:[%s4 + $0x150] sm:$0xff]
  %v1334 = vld [vmem:[%s4 + $0x158] sm:$0xff]
  %v1335 = vld [vmem:[%s4 + $0x160] sm:$0xff]
  %v1336 = vld [vmem:[%s4 + $0x168] sm:$0xff]
  %v1337 = vld [vmem:[%s4 + $0x170] sm:$0xff]
  %v1338 = vld [vmem:[%s4 + $0x178] sm:$0xff]
  %v1339 = vld [vmem:[%s4 + $0x180] sm:$0xff]
  %v1340 = vld [vmem:[%s4 + $0x188] sm:$0xff]
  %v1341 = vld [vmem:[%s4 + $0x190] sm:$0xff]
  %v1342 = vld [vmem:[%s4 + $0x198] sm:$0xff]
  %v1343 = vld [vmem:[%s4 + $0x1a0] sm:$0xff]
  %v1344 = vld [vmem:[%s4 + $0x1a8] sm:$0xff]
  %v1345 = vld [vmem:[%s4 + $0x1b0] sm:$0xff]
  %v1346 = vld [vmem:[%s4 + $0x1b8] sm:$0xff]
  %v1347 = vld [vmem:[%s4 + $0x1c0] sm:$0xff]
  %v1348 = vld [vmem:[%s4 + $0x1c8] sm:$0xff]
  %v1349 = vld [vmem:[%s4 + $0x1d0] sm:$0xff]
  %v1350 = vld [vmem:[%s4 + $0x1d8] sm:$0xff]
  %v1351 = vld [vmem:[%s4 + $0x1e0] sm:$0xff]
  %v1352 = vld [vmem:[%s4 + $0x1e8] sm:$0xff]
  %v1353 = vld [vmem:[%s4 + $0x1f0] sm:$0xff]
  %v1354 = vld [vmem:[%s4 + $0x1f8] sm:$0xff]
  %1355 = vmatprep.subr.mxu0 %v1228
  %1356 = vmatpush1.msra.mxu0 %v1227
  %1357 = vmatprep.subr.mxu0 %v1232
  %1358 = vmatpush1.msra.mxu0 %v1231
  %1359 = vmatprep.subr.mxu0 %v1236
  %1360 = vmatpush1.msra.mxu0 %v1235
  %1361 = vmatprep.subr.mxu0 %v1240
  %1362 = vmatpush1.msra.mxu0 %v1239
  %1363 = vmatprep.subr.mxu0 %v1244
  %1364 = vmatpush1.msra.mxu0 %v1243
  %1365 = vmatprep.subr.mxu0 %v1248
  %1366 = vmatpush1.msra.mxu0 %v1247
  %1367 = vmatprep.subr.mxu0 %v1252
  %1368 = vmatpush1.msra.mxu0 %v1251
  %1369 = vmatprep.subr.mxu0 %v1256
  %1370 = vmatpush1.msra.mxu0 %v1255
  %1371 = vmatprep.subr.mxu0 %v1260
  %1372 = vmatpush1.msra.mxu0 %v1259
  %1373 = vmatprep.subr.mxu0 %v1264
  %1374 = vmatpush1.msra.mxu0 %v1263
  %1375 = vmatprep.subr.mxu0 %v1268
  %1376 = vmatpush1.msra.mxu0 %v1267
  %1377 = vmatprep.subr.mxu0 %v1272
  %1378 = vmatpush1.msra.mxu0 %v1271
  %1379 = vmatprep.subr.mxu0 %v1276
  %1380 = vmatpush1.msra.mxu0 %v1275
  %1381 = vmatprep.subr.mxu0 %v1280
  %1382 = vmatpush1.msra.mxu0 %v1279
  %1383 = vmatprep.subr.mxu0 %v1284
  %1384 = vmatpush1.msra.mxu0 %v1283
  %1385 = vmatprep.subr.mxu0 %v1288
  %1386 = vmatpush1.msra.mxu0 %v1287
  %1387 = vmatprep.subr.mxu0 0.0
  %1388 = vmatpush1.msra.mxu0 0.0
  %1389 = vmatprep.subr.mxu0 0.0
  %1390 = vmatpush1.msra.mxu0 0.0
  %1391 = vmatprep.subr.mxu0 0.0
  %1392 = vmatpush1.msra.mxu0 0.0
  %1393 = vmatprep.subr.mxu0 0.0
  %1394 = vmatpush1.msra.mxu0 0.0
  %1395 = vmatprep.subr.mxu0 0.0
  %1396 = vmatpush1.msra.mxu0 0.0
  %1397 = vmatprep.subr.mxu0 0.0
  %1398 = vmatpush1.msra.mxu0 0.0
  %1399 = vmatprep.subr.mxu0 0.0
  %1400 = vmatpush1.msra.mxu0 0.0
  %1401 = vmatprep.subr.mxu0 0.0
  %1402 = vmatpush1.msra.mxu0 0.0
  %1403 = vmatprep.subr.mxu0 0.0
  %1404 = vmatpush1.msra.mxu0 0.0
  %1405 = vmatprep.subr.mxu0 0.0
  %1406 = vmatpush1.msra.mxu0 0.0
  %1407 = vmatprep.subr.mxu0 0.0
  %1408 = vmatpush1.msra.mxu0 0.0
  %1409 = vmatprep.subr.mxu0 0.0
  %1410 = vmatpush1.msra.mxu0 0.0
  %1411 = vmatprep.subr.mxu0 0.0
  %1412 = vmatpush1.msra.mxu0 0.0
  %1413 = vmatprep.subr.mxu0 0.0
  %1414 = vmatpush1.msra.mxu0 0.0
  %1415 = vmatprep.subr.mxu0 0.0
  %1416 = vmatpush1.msra.mxu0 0.0
  %1417 = vmatprep.subr.mxu0 0.0
  %1418 = vmatpush1.msra.mxu0 0.0
  %1419 = vmatprep.mubr.f32.mxu0 0.0
  %1420 = vmatmul.mubr.f32.gmra.mrb[0].mxu0 %v976
  %v1421 = vpop.f32.mrb[0].mxu0
  %v1422 = vadd.f32 0.0, %v1421
  %v1423 = vpop.f32.mrb[0].mxu0
  %v1424 = vadd.f32 0.0, %v1423
  %1425 = vdwg.mxu0
  %1426 = vmatprep.subr.mxu0 %v1230
  %1427 = vmatpush1.msra.mxu0 %v1229
  %1428 = vmatprep.subr.mxu0 %v1234
  %1429 = vmatpush1.msra.mxu0 %v1233
  %1430 = vmatprep.subr.mxu0 %v1238
  %1431 = vmatpush1.msra.mxu0 %v1237
  %1432 = vmatprep.subr.mxu0 %v1242
  %1433 = vmatpush1.msra.mxu0 %v1241
  %1434 = vmatprep.subr.mxu0 %v1246
  %1435 = vmatpush1.msra.mxu0 %v1245
  %1436 = vmatprep.subr.mxu0 %v1250
  %1437 = vmatpush1.msra.mxu0 %v1249
  %1438 = vmatprep.subr.mxu0 %v1254
  %1439 = vmatpush1.msra.mxu0 %v1253
  %1440 = vmatprep.subr.mxu0 %v1258
  %1441 = vmatpush1.msra.mxu0 %v1257
  %1442 = vmatprep.subr.mxu0 %v1262
  %1443 = vmatpush1.msra.mxu0 %v1261
  %1444 = vmatprep.subr.mxu0 %v1266
  %1445 = vmatpush1.msra.mxu0 %v1265
  %1446 = vmatprep.subr.mxu0 %v1270
  %1447 = vmatpush1.msra.mxu0 %v1269
  %1448 = vmatprep.subr.mxu0 %v1274
  %1449 = vmatpush1.msra.mxu0 %v1273
  %1450 = vmatprep.subr.mxu0 %v1278
  %1451 = vmatpush1.msra.mxu0 %v1277
  %1452 = vmatprep.subr.mxu0 %v1282
  %1453 = vmatpush1.msra.mxu0 %v1281
  %1454 = vmatprep.subr.mxu0 %v1286
  %1455 = vmatpush1.msra.mxu0 %v1285
  %1456 = vmatprep.subr.mxu0 %v1290
  %1457 = vmatpush1.msra.mxu0 %v1289
  %1458 = vmatprep.subr.mxu0 0.0
  %1459 = vmatpush1.msra.mxu0 0.0
  %1460 = vmatprep.subr.mxu0 0.0
  %1461 = vmatpush1.msra.mxu0 0.0
  %1462 = vmatprep.subr.mxu0 0.0
  %1463 = vmatpush1.msra.mxu0 0.0
  %1464 = vmatprep.subr.mxu0 0.0
  %1465 = vmatpush1.msra.mxu0 0.0
  %1466 = vmatprep.subr.mxu0 0.0
  %1467 = vmatpush1.msra.mxu0 0.0
  %1468 = vmatprep.subr.mxu0 0.0
  %1469 = vmatpush1.msra.mxu0 0.0
  %1470 = vmatprep.subr.mxu0 0.0
  %1471 = vmatpush1.msra.mxu0 0.0
  %1472 = vmatprep.subr.mxu0 0.0
  %1473 = vmatpush1.msra.mxu0 0.0
  %1474 = vmatprep.subr.mxu0 0.0
  %1475 = vmatpush1.msra.mxu0 0.0
  %1476 = vmatprep.subr.mxu0 0.0
  %1477 = vmatpush1.msra.mxu0 0.0
  %1478 = vmatprep.subr.mxu0 0.0
  %1479 = vmatpush1.msra.mxu0 0.0
  %1480 = vmatprep.subr.mxu0 0.0
  %1481 = vmatpush1.msra.mxu0 0.0
  %1482 = vmatprep.subr.mxu0 0.0
  %1483 = vmatpush1.msra.mxu0 0.0
  %1484 = vmatprep.subr.mxu0 0.0
  %1485 = vmatpush1.msra.mxu0 0.0
  %1486 = vmatprep.subr.mxu0 0.0
  %1487 = vmatpush1.msra.mxu0 0.0
  %1488 = vmatprep.subr.mxu0 0.0
  %1489 = vmatpush1.msra.mxu0 0.0
  %1490 = vmatprep.mubr.f32.mxu0 0.0
  %1491 = vmatmul.mubr.f32.gmra.mrb[0].mxu0 %v976
  %v1492 = vpop.f32.mrb[0].mxu0
  %v1493 = vadd.f32 0.0, %v1492
  %v1494 = vpop.f32.mrb[0].mxu0
  %v1495 = vadd.f32 0.0, %v1494
  %1496 = vdwg.mxu0
  %v1498 = vrot.slane %v1226, 2
  %1500 = vmatprep.subr.mxu0 %v1292
  %1501 = vmatpush1.msra.mxu0 %v1291
  %1502 = vmatprep.subr.mxu0 %v1296
  %1503 = vmatpush1.msra.mxu0 %v1295
  %1504 = vmatprep.subr.mxu0 %v1300
  %1505 = vmatpush1.msra.mxu0 %v1299
  %1506 = vmatprep.subr.mxu0 %v1304
  %1507 = vmatpush1.msra.mxu0 %v1303
  %1508 = vmatprep.subr.mxu0 %v1308
  %1509 = vmatpush1.msra.mxu0 %v1307
  %1510 = vmatprep.subr.mxu0 %v1312
  %1511 = vmatpush1.msra.mxu0 %v1311
  %1512 = vmatprep.subr.mxu0 %v1316
  %1513 = vmatpush1.msra.mxu0 %v1315
  %1514 = vmatprep.subr.mxu0 %v1320
  %1515 = vmatpush1.msra.mxu0 %v1319
  %1516 = vmatprep.subr.mxu0 %v1324
  %1517 = vmatpush1.msra.mxu0 %v1323
  %1518 = vmatprep.subr.mxu0 %v1328
  %1519 = vmatpush1.msra.mxu0 %v1327
  %1520 = vmatprep.subr.mxu0 %v1332
  %1521 = vmatpush1.msra.mxu0 %v1331
  %1522 = vmatprep.subr.mxu0 %v1336
  %1523 = vmatpush1.msra.mxu0 %v1335
  %1524 = vmatprep.subr.mxu0 %v1340
  %1525 = vmatpush1.msra.mxu0 %v1339
  %1526 = vmatprep.subr.mxu0 %v1344
  %1527 = vmatpush1.msra.mxu0 %v1343
  %1528 = vmatprep.subr.mxu0 %v1348
  %1529 = vmatpush1.msra.mxu0 %v1347
  %1530 = vmatprep.subr.mxu0 %v1352
  %1531 = vmatpush1.msra.mxu0 %v1351
  %1532 = vmatprep.subr.mxu0 0.0
  %1533 = vmatpush1.msra.mxu0 0.0
  %1534 = vmatprep.subr.mxu0 0.0
  %1535 = vmatpush1.msra.mxu0 0.0
  %1536 = vmatprep.subr.mxu0 0.0
  %1537 = vmatpush1.msra.mxu0 0.0
  %1538 = vmatprep.subr.mxu0 0.0
  %1539 = vmatpush1.msra.mxu0 0.0
  %1540 = vmatprep.subr.mxu0 0.0
  %1541 = vmatpush1.msra.mxu0 0.0
  %1542 = vmatprep.subr.mxu0 0.0
  %1543 = vmatpush1.msra.mxu0 0.0
  %1544 = vmatprep.subr.mxu0 0.0
  %1545 = vmatpush1.msra.mxu0 0.0
  %1546 = vmatprep.subr.mxu0 0.0
  %1547 = vmatpush1.msra.mxu0 0.0
  %1548 = vmatprep.subr.mxu0 0.0
  %1549 = vmatpush1.msra.mxu0 0.0
  %1550 = vmatprep.subr.mxu0 0.0
  %1551 = vmatpush1.msra.mxu0 0.0
  %1552 = vmatprep.subr.mxu0 0.0
  %1553 = vmatpush1.msra.mxu0 0.0
  %1554 = vmatprep.subr.mxu0 0.0
  %1555 = vmatpush1.msra.mxu0 0.0
  %1556 = vmatprep.subr.mxu0 0.0
  %1557 = vmatpush1.msra.mxu0 0.0
  %1558 = vmatprep.subr.mxu0 0.0
  %1559 = vmatpush1.msra.mxu0 0.0
  %1560 = vmatprep.subr.mxu0 0.0
  %1561 = vmatpush1.msra.mxu0 0.0
  %1562 = vmatprep.subr.mxu0 0.0
  %1563 = vmatpush1.msra.mxu0 0.0
  %1564 = vmatprep.mubr.f32.mxu0 0.0
  %1565 = vmatmul.mubr.f32.gmra.mrb[0].mxu0 %v1498
  %v1566 = vpop.f32.mrb[0].mxu0
  %v1567 = vadd.f32 %v1422, %v1566
  %v1568 = vpop.f32.mrb[0].mxu0
  %v1569 = vadd.f32 %v1424, %v1568
  %1570 = vdwg.mxu0
  %1571 = vmatprep.subr.mxu0 %v1294
  %1572 = vmatpush1.msra.mxu0 %v1293
  %1573 = vmatprep.subr.mxu0 %v1298
  %1574 = vmatpush1.msra.mxu0 %v1297
  %1575 = vmatprep.subr.mxu0 %v1302
  %1576 = vmatpush1.msra.mxu0 %v1301
  %1577 = vmatprep.subr.mxu0 %v1306
  %1578 = vmatpush1.msra.mxu0 %v1305
  %1579 = vmatprep.subr.mxu0 %v1310
  %1580 = vmatpush1.msra.mxu0 %v1309
  %1581 = vmatprep.subr.mxu0 %v1314
  %1582 = vmatpush1.msra.mxu0 %v1313
  %1583 = vmatprep.subr.mxu0 %v1318
  %1584 = vmatpush1.msra.mxu0 %v1317
  %1585 = vmatprep.subr.mxu0 %v1322
  %1586 = vmatpush1.msra.mxu0 %v1321
  %1587 = vmatprep.subr.mxu0 %v1326
  %1588 = vmatpush1.msra.mxu0 %v1325
  %1589 = vmatprep.subr.mxu0 %v1330
  %1590 = vmatpush1.msra.mxu0 %v1329
  %1591 = vmatprep.subr.mxu0 %v1334
  %1592 = vmatpush1.msra.mxu0 %v1333
  %1593 = vmatprep.subr.mxu0 %v1338
  %1594 = vmatpush1.msra.mxu0 %v1337
  %1595 = vmatprep.subr.mxu0 %v1342
  %1596 = vmatpush1.msra.mxu0 %v1341
  %1597 = vmatprep.subr.mxu0 %v1346
  %1598 = vmatpush1.msra.mxu0 %v1345
  %1599 = vmatprep.subr.mxu0 %v1350
  %1600 = vmatpush1.msra.mxu0 %v1349
  %1601 = vmatprep.subr.mxu0 %v1354
  %1602 = vmatpush1.msra.mxu0 %v1353
  %1603 = vmatprep.subr.mxu0 0.0
  %1604 = vmatpush1.msra.mxu0 0.0
  %1605 = vmatprep.subr.mxu0 0.0
  %1606 = vmatpush1.msra.mxu0 0.0
  %1607 = vmatprep.subr.mxu0 0.0
  %1608 = vmatpush1.msra.mxu0 0.0
  %1609 = vmatprep.subr.mxu0 0.0
  %1610 = vmatpush1.msra.mxu0 0.0
  %1611 = vmatprep.subr.mxu0 0.0
  %1612 = vmatpush1.msra.mxu0 0.0
  %1613 = vmatprep.subr.mxu0 0.0
  %1614 = vmatpush1.msra.mxu0 0.0
  %1615 = vmatprep.subr.mxu0 0.0
  %1616 = vmatpush1.msra.mxu0 0.0
  %1617 = vmatprep.subr.mxu0 0.0
  %1618 = vmatpush1.msra.mxu0 0.0
  %1619 = vmatprep.subr.mxu0 0.0
  %1620 = vmatpush1.msra.mxu0 0.0
  %1621 = vmatprep.subr.mxu0 0.0
  %1622 = vmatpush1.msra.mxu0 0.0
  %1623 = vmatprep.subr.mxu0 0.0
  %1624 = vmatpush1.msra.mxu0 0.0
  %1625 = vmatprep.subr.mxu0 0.0
  %1626 = vmatpush1.msra.mxu0 0.0
  %1627 = vmatprep.subr.mxu0 0.0
  %1628 = vmatpush1.msra.mxu0 0.0
  %1629 = vmatprep.subr.mxu0 0.0
  %1630 = vmatpush1.msra.mxu0 0.0
  %1631 = vmatprep.subr.mxu0 0.0
  %1632 = vmatpush1.msra.mxu0 0.0
  %1633 = vmatprep.subr.mxu0 0.0
  %1634 = vmatpush1.msra.mxu0 0.0
  %1635 = vmatprep.mubr.f32.mxu0 0.0
  %1636 = vmatmul.mubr.f32.gmra.mrb[0].mxu0 %v1498
  %v1637 = vpop.f32.mrb[0].mxu0
  %v1638 = vadd.f32 %v1493, %v1637
  %v1639 = vpop.f32.mrb[0].mxu0
  %v1640 = vadd.f32 %v1495, %v1639
  %1641 = vdwg.mxu0
  %v1642 = vld [vmem:[%s6] sm:$0xf]
  %v1644 = vlaneseq
  %v1645 = vshrl.u32 %v1644, 7
  %v1646 = vsub.s32 0, %v1645
  %v1647 = vrot.slane %v1642, %v1646
  %v1648 = vlaneseq
  %v1649 = vshrl.u32 %v1648, 7
  %v1650 = vsub.s32 1, %v1649
  %v1651 = vrot.slane %v1642, %v1650
  %v1652 = vlaneseq
  %v1653 = vshrl.u32 %v1652, 7
  %v1654 = vsub.s32 2, %v1653
  %v1655 = vrot.slane %v1642, %v1654
  %v1656 = vlaneseq
  %v1657 = vshrl.u32 %v1656, 7
  %v1658 = vsub.s32 3, %v1657
  %v1659 = vrot.slane %v1642, %v1658
  %v1664 = vadd.f32 %v1567, %v1647
  %v1665 = vadd.f32 %v1569, %v1651
  %v1666 = vadd.f32 %v1638, %v1655
  %v1667 = vadd.f32 %v1640, %v1659
  %v1668 = vxor.u32 %v1664, 2147483648
  %v1669 = vmul.f32 %v1668, 1.442695
  %v1670 = vpow.pop %v1669
  %v1671 = vadd.f32 %v1670, 1.0
  %v1672 = vrcp.pop %v1671
  %v1673 = vmul.f32 1.0, %v1672
  %v1674 = vxor.u32 %v1665, 2147483648
  %v1675 = vmul.f32 %v1674, 1.442695
  %v1676 = vpow.pop %v1675
  %v1677 = vadd.f32 %v1676, 1.0
  %v1678 = vrcp.pop %v1677
  %v1679 = vmul.f32 1.0, %v1678
  %v1680 = vtanh.pop %v1666
  %v1681 = vxor.u32 %v1667, 2147483648
  %v1682 = vmul.f32 %v1681, 1.442695
  %v1683 = vpow.pop %v1682
  %v1684 = vadd.f32 %v1683, 1.0
  %v1685 = vrcp.pop %v1684
  %v1686 = vmul.f32 1.0, %v1685
  %v1687 = vmul.f32 %v1679, %v974
  %v1688 = vmul.f32 %v1673, %v1680
  %v1689 = vadd.f32 %v1687, %v1688
  %v1690 = vtanh.pop %v1689
  %v1691 = vmul.f32 %v1686, %v1690
  %1692 = vst [vmem:[%s7 + $0x2] sm:$0x3] %v1691
  %v1693 = vld [vmem:[%s2] sm:$0xff]
  %v1694 = vld [vmem:[%s2 + $0x8] sm:$0xff]
  %v1695 = vld [vmem:[%s2 + $0x10] sm:$0xff]
  %v1696 = vld [vmem:[%s2 + $0x18] sm:$0xff]
  %v1697 = vld [vmem:[%s2 + $0x20] sm:$0xff]
  %v1698 = vld [vmem:[%s2 + $0x28] sm:$0xff]
  %v1699 = vld [vmem:[%s2 + $0x30] sm:$0xff]
  %v1700 = vld [vmem:[%s2 + $0x38] sm:$0xff]
  %v1701 = vld [vmem:[%s2 + $0x40] sm:$0xff]
  %v1702 = vld [vmem:[%s2 + $0x48] sm:$0xff]
  %v1703 = vld [vmem:[%s2 + $0x50] sm:$0xff]
  %v1704 = vld [vmem:[%s2 + $0x58] sm:$0xff]
  %v1705 = vld [vmem:[%s2 + $0x60] sm:$0xff]
  %v1706 = vld [vmem:[%s2 + $0x68] sm:$0xff]
  %v1707 = vld [vmem:[%s2 + $0x70] sm:$0xff]
  %v1708 = vld [vmem:[%s2 + $0x78] sm:$0xff]
  %v1709 = vld [vmem:[%s2 + $0x80] sm:$0xff]
  %v1710 = vld [vmem:[%s2 + $0x88] sm:$0xff]
  %v1711 = vld [vmem:[%s2 + $0x90] sm:$0xff]
  %v1712 = vld [vmem:[%s2 + $0x98] sm:$0xff]
  %v1713 = vld [vmem:[%s2 + $0xa0] sm:$0xff]
  %v1714 = vld [vmem:[%s2 + $0xa8] sm:$0xff]
  %v1715 = vld [vmem:[%s2 + $0xb0] sm:$0xff]
  %v1716 = vld [vmem:[%s2 + $0xb8] sm:$0xff]
  %v1717 = vld [vmem:[%s2 + $0xc0] sm:$0xff]
  %v1718 = vld [vmem:[%s2 + $0xc8] sm:$0xff]
  %v1719 = vld [vmem:[%s2 + $0xd0] sm:$0xff]
  %v1720 = vld [vmem:[%s2 + $0xd8] sm:$0xff]
  %v1721 = vld [vmem:[%s2 + $0xe0] sm:$0xff]
  %v1722 = vld [vmem:[%s2 + $0xe8] sm:$0xff]
  %v1723 = vld [vmem:[%s2 + $0xf0] sm:$0xff]
  %v1724 = vld [vmem:[%s2 + $0xf8] sm:$0xff]
  %v1725 = vld [vmem:[%s2 + $0x100] sm:$0xff]
  %v1726 = vld [vmem:[%s2 + $0x108] sm:$0xff]
  %v1727 = vld [vmem:[%s2 + $0x110] sm:$0xff]
  %v1728 = vld [vmem:[%s2 + $0x118] sm:$0xff]
  %v1729 = vld [vmem:[%s2 + $0x120] sm:$0xff]
  %v1730 = vld [vmem:[%s2 + $0x128] sm:$0xff]
  %v1731 = vld [vmem:[%s2 + $0x130] sm:$0xff]
  %v1732 = vld [vmem:[%s2 + $0x138] sm:$0xff]
  %v1733 = vld [vmem:[%s2 + $0x140] sm:$0xff]
  %v1734 = vld [vmem:[%s2 + $0x148] sm:$0xff]
  %v1735 = vld [vmem:[%s2 + $0x150] sm:$0xff]
  %v1736 = vld [vmem:[%s2 + $0x158] sm:$0xff]
  %v1737 = vld [vmem:[%s2 + $0x160] sm:$0xff]
  %v1738 = vld [vmem:[%s2 + $0x168] sm:$0xff]
  %v1739 = vld [vmem:[%s2 + $0x170] sm:$0xff]
  %v1740 = vld [vmem:[%s2 + $0x178] sm:$0xff]
  %v1741 = vld [vmem:[%s2 + $0x180] sm:$0xff]
  %v1742 = vld [vmem:[%s2 + $0x188] sm:$0xff]
  %v1743 = vld [vmem:[%s2 + $0x190] sm:$0xff]
  %v1744 = vld [vmem:[%s2 + $0x198] sm:$0xff]
  %v1745 = vld [vmem:[%s2 + $0x1a0] sm:$0xff]
  %v1746 = vld [vmem:[%s2 + $0x1a8] sm:$0xff]
  %v1747 = vld [vmem:[%s2 + $0x1b0] sm:$0xff]
  %v1748 = vld [vmem:[%s2 + $0x1b8] sm:$0xff]
  %v1749 = vld [vmem:[%s2 + $0x1c0] sm:$0xff]
  %v1750 = vld [vmem:[%s2 + $0x1c8] sm:$0xff]
  %v1751 = vld [vmem:[%s2 + $0x1d0] sm:$0xff]
  %v1752 = vld [vmem:[%s2 + $0x1d8] sm:$0xff]
  %v1753 = vld [vmem:[%s2 + $0x1e0] sm:$0xff]
  %v1754 = vld [vmem:[%s2 + $0x1e8] sm:$0xff]
  %v1755 = vld [vmem:[%s2 + $0x1f0] sm:$0xff]
  %v1756 = vld [vmem:[%s2 + $0x1f8] sm:$0xff]
  %1757 = vmatprep.subr.mxu0 %v1694
  %1758 = vmatpush1.msra.mxu0 %v1693
  %1759 = vmatprep.subr.mxu0 %v1698
  %1760 = vmatpush1.msra.mxu0 %v1697
  %1761 = vmatprep.subr.mxu0 %v1702
  %1762 = vmatpush1.msra.mxu0 %v1701
  %1763 = vmatprep.subr.mxu0 %v1706
  %1764 = vmatpush1.msra.mxu0 %v1705
  %1765 = vmatprep.subr.mxu0 %v1710
  %1766 = vmatpush1.msra.mxu0 %v1709
  %1767 = vmatprep.subr.mxu0 %v1714
  %1768 = vmatpush1.msra.mxu0 %v1713
  %1769 = vmatprep.subr.mxu0 %v1718
  %1770 = vmatpush1.msra.mxu0 %v1717
  %1771 = vmatprep.subr.mxu0 %v1722
  %1772 = vmatpush1.msra.mxu0 %v1721
  %1773 = vmatprep.subr.mxu0 %v1726
  %1774 = vmatpush1.msra.mxu0 %v1725
  %1775 = vmatprep.subr.mxu0 %v1730
  %1776 = vmatpush1.msra.mxu0 %v1729
  %1777 = vmatprep.subr.mxu0 %v1734
  %1778 = vmatpush1.msra.mxu0 %v1733
  %1779 = vmatprep.subr.mxu0 %v1738
  %1780 = vmatpush1.msra.mxu0 %v1737
  %1781 = vmatprep.subr.mxu0 %v1742
  %1782 = vmatpush1.msra.mxu0 %v1741
  %1783 = vmatprep.subr.mxu0 %v1746
  %1784 = vmatpush1.msra.mxu0 %v1745
  %1785 = vmatprep.subr.mxu0 %v1750
  %1786 = vmatpush1.msra.mxu0 %v1749
  %1787 = vmatprep.subr.mxu0 %v1754
  %1788 = vmatpush1.msra.mxu0 %v1753
  %1789 = vmatprep.subr.mxu0 0.0
  %1790 = vmatpush1.msra.mxu0 0.0
  %1791 = vmatprep.subr.mxu0 0.0
  %1792 = vmatpush1.msra.mxu0 0.0
  %1793 = vmatprep.subr.mxu0 0.0
  %1794 = vmatpush1.msra.mxu0 0.0
  %1795 = vmatprep.subr.mxu0 0.0
  %1796 = vmatpush1.msra.mxu0 0.0
  %1797 = vmatprep.subr.mxu0 0.0
  %1798 = vmatpush1.msra.mxu0 0.0
  %1799 = vmatprep.subr.mxu0 0.0
  %1800 = vmatpush1.msra.mxu0 0.0
  %1801 = vmatprep.subr.mxu0 0.0
  %1802 = vmatpush1.msra.mxu0 0.0
  %1803 = vmatprep.subr.mxu0 0.0
  %1804 = vmatpush1.msra.mxu0 0.0
  %1805 = vmatprep.subr.mxu0 0.0
  %1806 = vmatpush1.msra.mxu0 0.0
  %1807 = vmatprep.subr.mxu0 0.0
  %1808 = vmatpush1.msra.mxu0 0.0
  %1809 = vmatprep.subr.mxu0 0.0
  %1810 = vmatpush1.msra.mxu0 0.0
  %1811 = vmatprep.subr.mxu0 0.0
  %1812 = vmatpush1.msra.mxu0 0.0
  %1813 = vmatprep.subr.mxu0 0.0
  %1814 = vmatpush1.msra.mxu0 0.0
  %1815 = vmatprep.subr.mxu0 0.0
  %1816 = vmatpush1.msra.mxu0 0.0
  %1817 = vmatprep.subr.mxu0 0.0
  %1818 = vmatpush1.msra.mxu0 0.0
  %1819 = vmatprep.subr.mxu0 0.0
  %1820 = vmatpush1.msra.mxu0 0.0
  %1821 = vmatprep.mubr.f32.mxu0 0.0
  %1822 = vmatmul.mubr.f32.gmra.mrb[0].mxu0 %v1498
  %v1823 = vpop.f32.mrb[0].mxu0
  %v1824 = vadd.f32 0.0, %v1823
  %v1825 = vpop.f32.mrb[0].mxu0
  %v1826 = vadd.f32 0.0, %v1825
  %1827 = vdwg.mxu0
  %1828 = vmatprep.subr.mxu0 %v1696
  %1829 = vmatpush1.msra.mxu0 %v1695
  %1830 = vmatprep.subr.mxu0 %v1700
  %1831 = vmatpush1.msra.mxu0 %v1699
  %1832 = vmatprep.subr.mxu0 %v1704
  %1833 = vmatpush1.msra.mxu0 %v1703
  %1834 = vmatprep.subr.mxu0 %v1708
  %1835 = vmatpush1.msra.mxu0 %v1707
  %1836 = vmatprep.subr.mxu0 %v1712
  %1837 = vmatpush1.msra.mxu0 %v1711
  %1838 = vmatprep.subr.mxu0 %v1716
  %1839 = vmatpush1.msra.mxu0 %v1715
  %1840 = vmatprep.subr.mxu0 %v1720
  %1841 = vmatpush1.msra.mxu0 %v1719
  %1842 = vmatprep.subr.mxu0 %v1724
  %1843 = vmatpush1.msra.mxu0 %v1723
  %1844 = vmatprep.subr.mxu0 %v1728
  %1845 = vmatpush1.msra.mxu0 %v1727
  %1846 = vmatprep.subr.mxu0 %v1732
  %1847 = vmatpush1.msra.mxu0 %v1731
  %1848 = vmatprep.subr.mxu0 %v1736
  %1849 = vmatpush1.msra.mxu0 %v1735
  %1850 = vmatprep.subr.mxu0 %v1740
  %1851 = vmatpush1.msra.mxu0 %v1739
  %1852 = vmatprep.subr.mxu0 %v1744
  %1853 = vmatpush1.msra.mxu0 %v1743
  %1854 = vmatprep.subr.mxu0 %v1748
  %1855 = vmatpush1.msra.mxu0 %v1747
  %1856 = vmatprep.subr.mxu0 %v1752
  %1857 = vmatpush1.msra.mxu0 %v1751
  %1858 = vmatprep.subr.mxu0 %v1756
  %1859 = vmatpush1.msra.mxu0 %v1755
  %1860 = vmatprep.subr.mxu0 0.0
  %1861 = vmatpush1.msra.mxu0 0.0
  %1862 = vmatprep.subr.mxu0 0.0
  %1863 = vmatpush1.msra.mxu0 0.0
  %1864 = vmatprep.subr.mxu0 0.0
  %1865 = vmatpush1.msra.mxu0 0.0
  %1866 = vmatprep.subr.mxu0 0.0
  %1867 = vmatpush1.msra.mxu0 0.0
  %1868 = vmatprep.subr.mxu0 0.0
  %1869 = vmatpush1.msra.mxu0 0.0
  %1870 = vmatprep.subr.mxu0 0.0
  %1871 = vmatpush1.msra.mxu0 0.0
  %1872 = vmatprep.subr.mxu0 0.0
  %1873 = vmatpush1.msra.mxu0 0.0
  %1874 = vmatprep.subr.mxu0 0.0
  %1875 = vmatpush1.msra.mxu0 0.0
  %1876 = vmatprep.subr.mxu0 0.0
  %1877 = vmatpush1.msra.mxu0 0.0
  %1878 = vmatprep.subr.mxu0 0.0
  %1879 = vmatpush1.msra.mxu0 0.0
  %1880 = vmatprep.subr.mxu0 0.0
  %1881 = vmatpush1.msra.mxu0 0.0
  %1882 = vmatprep.subr.mxu0 0.0
  %1883 = vmatpush1.msra.mxu0 0.0
  %1884 = vmatprep.subr.mxu0 0.0
  %1885 = vmatpush1.msra.mxu0 0.0
  %1886 = vmatprep.subr.mxu0 0.0
  %1887 = vmatpush1.msra.mxu0 0.0
  %1888 = vmatprep.subr.mxu0 0.0
  %1889 = vmatpush1.msra.mxu0 0.0
  %1890 = vmatprep.subr.mxu0 0.0
  %1891 = vmatpush1.msra.mxu0 0.0
  %1892 = vmatprep.mubr.f32.mxu0 0.0
  %1893 = vmatmul.mubr.f32.gmra.mrb[0].mxu0 %v1498
  %v1894 = vpop.f32.mrb[0].mxu0
  %v1895 = vadd.f32 0.0, %v1894
  %v1896 = vpop.f32.mrb[0].mxu0
  %v1897 = vadd.f32 0.0, %v1896
  %1898 = vdwg.mxu0
  %v1903 = vrot.slane %v1824, 4
  %v1904 = vrot.slane %v1826, 4
  %v1905 = vrot.slane %v1895, 4
  %v1906 = vrot.slane %v1897, 4
  %v1911 = vadd.f32 %v182, %v1903
  %v1912 = vadd.f32 %v184, %v1904
  %v1913 = vadd.f32 %v265, %v1905
  %v1914 = vadd.f32 %v267, %v1906
  %v1915 = vxor.u32 %v1911, 2147483648
  %v1916 = vmul.f32 %v1915, 1.442695
  %v1917 = vpow.pop %v1916
  %v1918 = vadd.f32 %v1917, 1.0
  %v1919 = vrcp.pop %v1918
  %v1920 = vmul.f32 1.0, %v1919
  %v1921 = vxor.u32 %v1912, 2147483648
  %v1922 = vmul.f32 %v1921, 1.442695
  %v1923 = vpow.pop %v1922
  %v1924 = vadd.f32 %v1923, 1.0
  %v1925 = vrcp.pop %v1924
  %v1926 = vmul.f32 1.0, %v1925
  %v1927 = vtanh.pop %v1913
  %v1928 = vxor.u32 %v1914, 2147483648
  %v1929 = vmul.f32 %v1928, 1.442695
  %v1930 = vpow.pop %v1929
  %v1931 = vadd.f32 %v1930, 1.0
  %v1932 = vrcp.pop %v1931
  %v1933 = vmul.f32 1.0, %v1932
  %v1935 = vrot.slane %v1224, 6
  %v1937 = vmul.f32 %v1926, %v1935
  %v1938 = vmul.f32 %v1920, %v1927
  %v1939 = vadd.f32 %v1937, %v1938
  %v1940 = vtanh.pop %v1939
  %v1941 = vmul.f32 %v1933, %v1940
  %v1942 = vld [vmem:[%s5] sm:$0xff]
  %v1943 = vld [vmem:[%s5 + $0x8] sm:$0xff]
  %v1944 = vld [vmem:[%s5 + $0x10] sm:$0xff]
  %v1945 = vld [vmem:[%s5 + $0x18] sm:$0xff]
  %v1946 = vld [vmem:[%s5 + $0x20] sm:$0xff]
  %v1947 = vld [vmem:[%s5 + $0x28] sm:$0xff]
  %v1948 = vld [vmem:[%s5 + $0x30] sm:$0xff]
  %v1949 = vld [vmem:[%s5 + $0x38] sm:$0xff]
  %v1950 = vld [vmem:[%s5 + $0x40] sm:$0xff]
  %v1951 = vld [vmem:[%s5 + $0x48] sm:$0xff]
  %v1952 = vld [vmem:[%s5 + $0x50] sm:$0xff]
  %v1953 = vld [vmem:[%s5 + $0x58] sm:$0xff]
  %v1954 = vld [vmem:[%s5 + $0x60] sm:$0xff]
  %v1955 = vld [vmem:[%s5 + $0x68] sm:$0xff]
  %v1956 = vld [vmem:[%s5 + $0x70] sm:$0xff]
  %v1957 = vld [vmem:[%s5 + $0x78] sm:$0xff]
  %v1958 = vld [vmem:[%s5 + $0x80] sm:$0xff]
  %v1959 = vld [vmem:[%s5 + $0x88] sm:$0xff]
  %v1960 = vld [vmem:[%s5 + $0x90] sm:$0xff]
  %v1961 = vld [vmem:[%s5 + $0x98] sm:$0xff]
  %v1962 = vld [vmem:[%s5 + $0xa0] sm:$0xff]
  %v1963 = vld [vmem:[%s5 + $0xa8] sm:$0xff]
  %v1964 = vld [vmem:[%s5 + $0xb0] sm:$0xff]
  %v1965 = vld [vmem:[%s5 + $0xb8] sm:$0xff]
  %v1966 = vld [vmem:[%s5 + $0xc0] sm:$0xff]
  %v1967 = vld [vmem:[%s5 + $0xc8] sm:$0xff]
  %v1968 = vld [vmem:[%s5 + $0xd0] sm:$0xff]
  %v1969 = vld [vmem:[%s5 + $0xd8] sm:$0xff]
  %v1970 = vld [vmem:[%s5 + $0xe0] sm:$0xff]
  %v1971 = vld [vmem:[%s5 + $0xe8] sm:$0xff]
  %v1972 = vld [vmem:[%s5 + $0xf0] sm:$0xff]
  %v1973 = vld [vmem:[%s5 + $0xf8] sm:$0xff]
  %v1974 = vld [vmem:[%s5 + $0x100] sm:$0xff]
  %v1975 = vld [vmem:[%s5 + $0x108] sm:$0xff]
  %v1976 = vld [vmem:[%s5 + $0x110] sm:$0xff]
  %v1977 = vld [vmem:[%s5 + $0x118] sm:$0xff]
  %v1978 = vld [vmem:[%s5 + $0x120] sm:$0xff]
  %v1979 = vld [vmem:[%s5 + $0x128] sm:$0xff]
  %v1980 = vld [vmem:[%s5 + $0x130] sm:$0xff]
  %v1981 = vld [vmem:[%s5 + $0x138] sm:$0xff]
  %v1982 = vld [vmem:[%s5 + $0x140] sm:$0xff]
  %v1983 = vld [vmem:[%s5 + $0x148] sm:$0xff]
  %v1984 = vld [vmem:[%s5 + $0x150] sm:$0xff]
  %v1985 = vld [vmem:[%s5 + $0x158] sm:$0xff]
  %v1986 = vld [vmem:[%s5 + $0x160] sm:$0xff]
  %v1987 = vld [vmem:[%s5 + $0x168] sm:$0xff]
  %v1988 = vld [vmem:[%s5 + $0x170] sm:$0xff]
  %v1989 = vld [vmem:[%s5 + $0x178] sm:$0xff]
  %v1990 = vld [vmem:[%s5 + $0x180] sm:$0xff]
  %v1991 = vld [vmem:[%s5 + $0x188] sm:$0xff]
  %v1992 = vld [vmem:[%s5 + $0x190] sm:$0xff]
  %v1993 = vld [vmem:[%s5 + $0x198] sm:$0xff]
  %v1994 = vld [vmem:[%s5 + $0x1a0] sm:$0xff]
  %v1995 = vld [vmem:[%s5 + $0x1a8] sm:$0xff]
  %v1996 = vld [vmem:[%s5 + $0x1b0] sm:$0xff]
  %v1997 = vld [vmem:[%s5 + $0x1b8] sm:$0xff]
  %v1998 = vld [vmem:[%s5 + $0x1c0] sm:$0xff]
  %v1999 = vld [vmem:[%s5 + $0x1c8] sm:$0xff]
  %v2000 = vld [vmem:[%s5 + $0x1d0] sm:$0xff]
  %v2001 = vld [vmem:[%s5 + $0x1d8] sm:$0xff]
  %v2002 = vld [vmem:[%s5 + $0x1e0] sm:$0xff]
  %v2003 = vld [vmem:[%s5 + $0x1e8] sm:$0xff]
  %v2004 = vld [vmem:[%s5 + $0x1f0] sm:$0xff]
  %v2005 = vld [vmem:[%s5 + $0x1f8] sm:$0xff]
  %v2006 = vld [vmem:[%s4] sm:$0xff]
  %v2007 = vld [vmem:[%s4 + $0x8] sm:$0xff]
  %v2008 = vld [vmem:[%s4 + $0x10] sm:$0xff]
  %v2009 = vld [vmem:[%s4 + $0x18] sm:$0xff]
  %v2010 = vld [vmem:[%s4 + $0x20] sm:$0xff]
  %v2011 = vld [vmem:[%s4 + $0x28] sm:$0xff]
  %v2012 = vld [vmem:[%s4 + $0x30] sm:$0xff]
  %v2013 = vld [vmem:[%s4 + $0x38] sm:$0xff]
  %v2014 = vld [vmem:[%s4 + $0x40] sm:$0xff]
  %v2015 = vld [vmem:[%s4 + $0x48] sm:$0xff]
  %v2016 = vld [vmem:[%s4 + $0x50] sm:$0xff]
  %v2017 = vld [vmem:[%s4 + $0x58] sm:$0xff]
  %v2018 = vld [vmem:[%s4 + $0x60] sm:$0xff]
  %v2019 = vld [vmem:[%s4 + $0x68] sm:$0xff]
  %v2020 = vld [vmem:[%s4 + $0x70] sm:$0xff]
  %v2021 = vld [vmem:[%s4 + $0x78] sm:$0xff]
  %v2022 = vld [vmem:[%s4 + $0x80] sm:$0xff]
  %v2023 = vld [vmem:[%s4 + $0x88] sm:$0xff]
  %v2024 = vld [vmem:[%s4 + $0x90] sm:$0xff]
  %v2025 = vld [vmem:[%s4 + $0x98] sm:$0xff]
  %v2026 = vld [vmem:[%s4 + $0xa0] sm:$0xff]
  %v2027 = vld [vmem:[%s4 + $0xa8] sm:$0xff]
  %v2028 = vld [vmem:[%s4 + $0xb0] sm:$0xff]
  %v2029 = vld [vmem:[%s4 + $0xb8] sm:$0xff]
  %v2030 = vld [vmem:[%s4 + $0xc0] sm:$0xff]
  %v2031 = vld [vmem:[%s4 + $0xc8] sm:$0xff]
  %v2032 = vld [vmem:[%s4 + $0xd0] sm:$0xff]
  %v2033 = vld [vmem:[%s4 + $0xd8] sm:$0xff]
  %v2034 = vld [vmem:[%s4 + $0xe0] sm:$0xff]
  %v2035 = vld [vmem:[%s4 + $0xe8] sm:$0xff]
  %v2036 = vld [vmem:[%s4 + $0xf0] sm:$0xff]
  %v2037 = vld [vmem:[%s4 + $0xf8] sm:$0xff]
  %v2038 = vld [vmem:[%s4 + $0x100] sm:$0xff]
  %v2039 = vld [vmem:[%s4 + $0x108] sm:$0xff]
  %v2040 = vld [vmem:[%s4 + $0x110] sm:$0xff]
  %v2041 = vld [vmem:[%s4 + $0x118] sm:$0xff]
  %v2042 = vld [vmem:[%s4 + $0x120] sm:$0xff]
  %v2043 = vld [vmem:[%s4 + $0x128] sm:$0xff]
  %v2044 = vld [vmem:[%s4 + $0x130] sm:$0xff]
  %v2045 = vld [vmem:[%s4 + $0x138] sm:$0xff]
  %v2046 = vld [vmem:[%s4 + $0x140] sm:$0xff]
  %v2047 = vld [vmem:[%s4 + $0x148] sm:$0xff]
  %v2048 = vld [vmem:[%s4 + $0x150] sm:$0xff]
  %v2049 = vld [vmem:[%s4 + $0x158] sm:$0xff]
  %v2050 = vld [vmem:[%s4 + $0x160] sm:$0xff]
  %v2051 = vld [vmem:[%s4 + $0x168] sm:$0xff]
  %v2052 = vld [vmem:[%s4 + $0x170] sm:$0xff]
  %v2053 = vld [vmem:[%s4 + $0x178] sm:$0xff]
  %v2054 = vld [vmem:[%s4 + $0x180] sm:$0xff]
  %v2055 = vld [vmem:[%s4 + $0x188] sm:$0xff]
  %v2056 = vld [vmem:[%s4 + $0x190] sm:$0xff]
  %v2057 = vld [vmem:[%s4 + $0x198] sm:$0xff]
  %v2058 = vld [vmem:[%s4 + $0x1a0] sm:$0xff]
  %v2059 = vld [vmem:[%s4 + $0x1a8] sm:$0xff]
  %v2060 = vld [vmem:[%s4 + $0x1b0] sm:$0xff]
  %v2061 = vld [vmem:[%s4 + $0x1b8] sm:$0xff]
  %v2062 = vld [vmem:[%s4 + $0x1c0] sm:$0xff]
  %v2063 = vld [vmem:[%s4 + $0x1c8] sm:$0xff]
  %v2064 = vld [vmem:[%s4 + $0x1d0] sm:$0xff]
  %v2065 = vld [vmem:[%s4 + $0x1d8] sm:$0xff]
  %v2066 = vld [vmem:[%s4 + $0x1e0] sm:$0xff]
  %v2067 = vld [vmem:[%s4 + $0x1e8] sm:$0xff]
  %v2068 = vld [vmem:[%s4 + $0x1f0] sm:$0xff]
  %v2069 = vld [vmem:[%s4 + $0x1f8] sm:$0xff]
  %2070 = vmatprep.subr.mxu0 %v1943
  %2071 = vmatpush1.msra.mxu0 %v1942
  %2072 = vmatprep.subr.mxu0 %v1947
  %2073 = vmatpush1.msra.mxu0 %v1946
  %2074 = vmatprep.subr.mxu0 %v1951
  %2075 = vmatpush1.msra.mxu0 %v1950
  %2076 = vmatprep.subr.mxu0 %v1955
  %2077 = vmatpush1.msra.mxu0 %v1954
  %2078 = vmatprep.subr.mxu0 %v1959
  %2079 = vmatpush1.msra.mxu0 %v1958
  %2080 = vmatprep.subr.mxu0 %v1963
  %2081 = vmatpush1.msra.mxu0 %v1962
  %2082 = vmatprep.subr.mxu0 %v1967
  %2083 = vmatpush1.msra.mxu0 %v1966
  %2084 = vmatprep.subr.mxu0 %v1971
  %2085 = vmatpush1.msra.mxu0 %v1970
  %2086 = vmatprep.subr.mxu0 %v1975
  %2087 = vmatpush1.msra.mxu0 %v1974
  %2088 = vmatprep.subr.mxu0 %v1979
  %2089 = vmatpush1.msra.mxu0 %v1978
  %2090 = vmatprep.subr.mxu0 %v1983
  %2091 = vmatpush1.msra.mxu0 %v1982
  %2092 = vmatprep.subr.mxu0 %v1987
  %2093 = vmatpush1.msra.mxu0 %v1986
  %2094 = vmatprep.subr.mxu0 %v1991
  %2095 = vmatpush1.msra.mxu0 %v1990
  %2096 = vmatprep.subr.mxu0 %v1995
  %2097 = vmatpush1.msra.mxu0 %v1994
  %2098 = vmatprep.subr.mxu0 %v1999
  %2099 = vmatpush1.msra.mxu0 %v1998
  %2100 = vmatprep.subr.mxu0 %v2003
  %2101 = vmatpush1.msra.mxu0 %v2002
  %2102 = vmatprep.subr.mxu0 0.0
  %2103 = vmatpush1.msra.mxu0 0.0
  %2104 = vmatprep.subr.mxu0 0.0
  %2105 = vmatpush1.msra.mxu0 0.0
  %2106 = vmatprep.subr.mxu0 0.0
  %2107 = vmatpush1.msra.mxu0 0.0
  %2108 = vmatprep.subr.mxu0 0.0
  %2109 = vmatpush1.msra.mxu0 0.0
  %2110 = vmatprep.subr.mxu0 0.0
  %2111 = vmatpush1.msra.mxu0 0.0
  %2112 = vmatprep.subr.mxu0 0.0
  %2113 = vmatpush1.msra.mxu0 0.0
  %2114 = vmatprep.subr.mxu0 0.0
  %2115 = vmatpush1.msra.mxu0 0.0
  %2116 = vmatprep.subr.mxu0 0.0
  %2117 = vmatpush1.msra.mxu0 0.0
  %2118 = vmatprep.subr.mxu0 0.0
  %2119 = vmatpush1.msra.mxu0 0.0
  %2120 = vmatprep.subr.mxu0 0.0
  %2121 = vmatpush1.msra.mxu0 0.0
  %2122 = vmatprep.subr.mxu0 0.0
  %2123 = vmatpush1.msra.mxu0 0.0
  %2124 = vmatprep.subr.mxu0 0.0
  %2125 = vmatpush1.msra.mxu0 0.0
  %2126 = vmatprep.subr.mxu0 0.0
  %2127 = vmatpush1.msra.mxu0 0.0
  %2128 = vmatprep.subr.mxu0 0.0
  %2129 = vmatpush1.msra.mxu0 0.0
  %2130 = vmatprep.subr.mxu0 0.0
  %2131 = vmatpush1.msra.mxu0 0.0
  %2132 = vmatprep.subr.mxu0 0.0
  %2133 = vmatpush1.msra.mxu0 0.0
  %2134 = vmatprep.mubr.f32.mxu0 0.0
  %2135 = vmatmul.mubr.f32.gmra.mrb[0].mxu0 %v1691
  %v2136 = vpop.f32.mrb[0].mxu0
  %v2137 = vadd.f32 0.0, %v2136
  %v2138 = vpop.f32.mrb[0].mxu0
  %v2139 = vadd.f32 0.0, %v2138
  %2140 = vdwg.mxu0
  %2141 = vmatprep.subr.mxu0 %v1945
  %2142 = vmatpush1.msra.mxu0 %v1944
  %2143 = vmatprep.subr.mxu0 %v1949
  %2144 = vmatpush1.msra.mxu0 %v1948
  %2145 = vmatprep.subr.mxu0 %v1953
  %2146 = vmatpush1.msra.mxu0 %v1952
  %2147 = vmatprep.subr.mxu0 %v1957
  %2148 = vmatpush1.msra.mxu0 %v1956
  %2149 = vmatprep.subr.mxu0 %v1961
  %2150 = vmatpush1.msra.mxu0 %v1960
  %2151 = vmatprep.subr.mxu0 %v1965
  %2152 = vmatpush1.msra.mxu0 %v1964
  %2153 = vmatprep.subr.mxu0 %v1969
  %2154 = vmatpush1.msra.mxu0 %v1968
  %2155 = vmatprep.subr.mxu0 %v1973
  %2156 = vmatpush1.msra.mxu0 %v1972
  %2157 = vmatprep.subr.mxu0 %v1977
  %2158 = vmatpush1.msra.mxu0 %v1976
  %2159 = vmatprep.subr.mxu0 %v1981
  %2160 = vmatpush1.msra.mxu0 %v1980
  %2161 = vmatprep.subr.mxu0 %v1985
  %2162 = vmatpush1.msra.mxu0 %v1984
  %2163 = vmatprep.subr.mxu0 %v1989
  %2164 = vmatpush1.msra.mxu0 %v1988
  %2165 = vmatprep.subr.mxu0 %v1993
  %2166 = vmatpush1.msra.mxu0 %v1992
  %2167 = vmatprep.subr.mxu0 %v1997
  %2168 = vmatpush1.msra.mxu0 %v1996
  %2169 = vmatprep.subr.mxu0 %v2001
  %2170 = vmatpush1.msra.mxu0 %v2000
  %2171 = vmatprep.subr.mxu0 %v2005
  %2172 = vmatpush1.msra.mxu0 %v2004
  %2173 = vmatprep.subr.mxu0 0.0
  %2174 = vmatpush1.msra.mxu0 0.0
  %2175 = vmatprep.subr.mxu0 0.0
  %2176 = vmatpush1.msra.mxu0 0.0
  %2177 = vmatprep.subr.mxu0 0.0
  %2178 = vmatpush1.msra.mxu0 0.0
  %2179 = vmatprep.subr.mxu0 0.0
  %2180 = vmatpush1.msra.mxu0 0.0
  %2181 = vmatprep.subr.mxu0 0.0
  %2182 = vmatpush1.msra.mxu0 0.0
  %2183 = vmatprep.subr.mxu0 0.0
  %2184 = vmatpush1.msra.mxu0 0.0
  %2185 = vmatprep.subr.mxu0 0.0
  %2186 = vmatpush1.msra.mxu0 0.0
  %2187 = vmatprep.subr.mxu0 0.0
  %2188 = vmatpush1.msra.mxu0 0.0
  %2189 = vmatprep.subr.mxu0 0.0
  %2190 = vmatpush1.msra.mxu0 0.0
  %2191 = vmatprep.subr.mxu0 0.0
  %2192 = vmatpush1.msra.mxu0 0.0
  %2193 = vmatprep.subr.mxu0 0.0
  %2194 = vmatpush1.msra.mxu0 0.0
  %2195 = vmatprep.subr.mxu0 0.0
  %2196 = vmatpush1.msra.mxu0 0.0
  %2197 = vmatprep.subr.mxu0 0.0
  %2198 = vmatpush1.msra.mxu0 0.0
  %2199 = vmatprep.subr.mxu0 0.0
  %2200 = vmatpush1.msra.mxu0 0.0
  %2201 = vmatprep.subr.mxu0 0.0
  %2202 = vmatpush1.msra.mxu0 0.0
  %2203 = vmatprep.subr.mxu0 0.0
  %2204 = vmatpush1.msra.mxu0 0.0
  %2205 = vmatprep.mubr.f32.mxu0 0.0
  %2206 = vmatmul.mubr.f32.gmra.mrb[0].mxu0 %v1691
  %v2207 = vpop.f32.mrb[0].mxu0
  %v2208 = vadd.f32 0.0, %v2207
  %v2209 = vpop.f32.mrb[0].mxu0
  %v2210 = vadd.f32 0.0, %v2209
  %2211 = vdwg.mxu0
  %v2213 = vrot.slane %v1941, 4
  %2215 = vmatprep.subr.mxu0 %v2007
  %2216 = vmatpush1.msra.mxu0 %v2006
  %2217 = vmatprep.subr.mxu0 %v2011
  %2218 = vmatpush1.msra.mxu0 %v2010
  %2219 = vmatprep.subr.mxu0 %v2015
  %2220 = vmatpush1.msra.mxu0 %v2014
  %2221 = vmatprep.subr.mxu0 %v2019
  %2222 = vmatpush1.msra.mxu0 %v2018
  %2223 = vmatprep.subr.mxu0 %v2023
  %2224 = vmatpush1.msra.mxu0 %v2022
  %2225 = vmatprep.subr.mxu0 %v2027
  %2226 = vmatpush1.msra.mxu0 %v2026
  %2227 = vmatprep.subr.mxu0 %v2031
  %2228 = vmatpush1.msra.mxu0 %v2030
  %2229 = vmatprep.subr.mxu0 %v2035
  %2230 = vmatpush1.msra.mxu0 %v2034
  %2231 = vmatprep.subr.mxu0 %v2039
  %2232 = vmatpush1.msra.mxu0 %v2038
  %2233 = vmatprep.subr.mxu0 %v2043
  %2234 = vmatpush1.msra.mxu0 %v2042
  %2235 = vmatprep.subr.mxu0 %v2047
  %2236 = vmatpush1.msra.mxu0 %v2046
  %2237 = vmatprep.subr.mxu0 %v2051
  %2238 = vmatpush1.msra.mxu0 %v2050
  %2239 = vmatprep.subr.mxu0 %v2055
  %2240 = vmatpush1.msra.mxu0 %v2054
  %2241 = vmatprep.subr.mxu0 %v2059
  %2242 = vmatpush1.msra.mxu0 %v2058
  %2243 = vmatprep.subr.mxu0 %v2063
  %2244 = vmatpush1.msra.mxu0 %v2062
  %2245 = vmatprep.subr.mxu0 %v2067
  %2246 = vmatpush1.msra.mxu0 %v2066
  %2247 = vmatprep.subr.mxu0 0.0
  %2248 = vmatpush1.msra.mxu0 0.0
  %2249 = vmatprep.subr.mxu0 0.0
  %2250 = vmatpush1.msra.mxu0 0.0
  %2251 = vmatprep.subr.mxu0 0.0
  %2252 = vmatpush1.msra.mxu0 0.0
  %2253 = vmatprep.subr.mxu0 0.0
  %2254 = vmatpush1.msra.mxu0 0.0
  %2255 = vmatprep.subr.mxu0 0.0
  %2256 = vmatpush1.msra.mxu0 0.0
  %2257 = vmatprep.subr.mxu0 0.0
  %2258 = vmatpush1.msra.mxu0 0.0
  %2259 = vmatprep.subr.mxu0 0.0
  %2260 = vmatpush1.msra.mxu0 0.0
  %2261 = vmatprep.subr.mxu0 0.0
  %2262 = vmatpush1.msra.mxu0 0.0
  %2263 = vmatprep.subr.mxu0 0.0
  %2264 = vmatpush1.msra.mxu0 0.0
  %2265 = vmatprep.subr.mxu0 0.0
  %2266 = vmatpush1.msra.mxu0 0.0
  %2267 = vmatprep.subr.mxu0 0.0
  %2268 = vmatpush1.msra.mxu0 0.0
  %2269 = vmatprep.subr.mxu0 0.0
  %2270 = vmatpush1.msra.mxu0 0.0
  %2271 = vmatprep.subr.mxu0 0.0
  %2272 = vmatpush1.msra.mxu0 0.0
  %2273 = vmatprep.subr.mxu0 0.0
  %2274 = vmatpush1.msra.mxu0 0.0
  %2275 = vmatprep.subr.mxu0 0.0
  %2276 = vmatpush1.msra.mxu0 0.0
  %2277 = vmatprep.subr.mxu0 0.0
  %2278 = vmatpush1.msra.mxu0 0.0
  %2279 = vmatprep.mubr.f32.mxu0 0.0
  %2280 = vmatmul.mubr.f32.gmra.mrb[0].mxu0 %v2213
  %v2281 = vpop.f32.mrb[0].mxu0
  %v2282 = vadd.f32 %v2137, %v2281
  %v2283 = vpop.f32.mrb[0].mxu0
  %v2284 = vadd.f32 %v2139, %v2283
  %2285 = vdwg.mxu0
  %2286 = vmatprep.subr.mxu0 %v2009
  %2287 = vmatpush1.msra.mxu0 %v2008
  %2288 = vmatprep.subr.mxu0 %v2013
  %2289 = vmatpush1.msra.mxu0 %v2012
  %2290 = vmatprep.subr.mxu0 %v2017
  %2291 = vmatpush1.msra.mxu0 %v2016
  %2292 = vmatprep.subr.mxu0 %v2021
  %2293 = vmatpush1.msra.mxu0 %v2020
  %2294 = vmatprep.subr.mxu0 %v2025
  %2295 = vmatpush1.msra.mxu0 %v2024
  %2296 = vmatprep.subr.mxu0 %v2029
  %2297 = vmatpush1.msra.mxu0 %v2028
  %2298 = vmatprep.subr.mxu0 %v2033
  %2299 = vmatpush1.msra.mxu0 %v2032
  %2300 = vmatprep.subr.mxu0 %v2037
  %2301 = vmatpush1.msra.mxu0 %v2036
  %2302 = vmatprep.subr.mxu0 %v2041
  %2303 = vmatpush1.msra.mxu0 %v2040
  %2304 = vmatprep.subr.mxu0 %v2045
  %2305 = vmatpush1.msra.mxu0 %v2044
  %2306 = vmatprep.subr.mxu0 %v2049
  %2307 = vmatpush1.msra.mxu0 %v2048
  %2308 = vmatprep.subr.mxu0 %v2053
  %2309 = vmatpush1.msra.mxu0 %v2052
  %2310 = vmatprep.subr.mxu0 %v2057
  %2311 = vmatpush1.msra.mxu0 %v2056
  %2312 = vmatprep.subr.mxu0 %v2061
  %2313 = vmatpush1.msra.mxu0 %v2060
  %2314 = vmatprep.subr.mxu0 %v2065
  %2315 = vmatpush1.msra.mxu0 %v2064
  %2316 = vmatprep.subr.mxu0 %v2069
  %2317 = vmatpush1.msra.mxu0 %v2068
  %2318 = vmatprep.subr.mxu0 0.0
  %2319 = vmatpush1.msra.mxu0 0.0
  %2320 = vmatprep.subr.mxu0 0.0
  %2321 = vmatpush1.msra.mxu0 0.0
  %2322 = vmatprep.subr.mxu0 0.0
  %2323 = vmatpush1.msra.mxu0 0.0
  %2324 = vmatprep.subr.mxu0 0.0
  %2325 = vmatpush1.msra.mxu0 0.0
  %2326 = vmatprep.subr.mxu0 0.0
  %2327 = vmatpush1.msra.mxu0 0.0
  %2328 = vmatprep.subr.mxu0 0.0
  %2329 = vmatpush1.msra.mxu0 0.0
  %2330 = vmatprep.subr.mxu0 0.0
  %2331 = vmatpush1.msra.mxu0 0.0
  %2332 = vmatprep.subr.mxu0 0.0
  %2333 = vmatpush1.msra.mxu0 0.0
  %2334 = vmatprep.subr.mxu0 0.0
  %2335 = vmatpush1.msra.mxu0 0.0
  %2336 = vmatprep.subr.mxu0 0.0
  %2337 = vmatpush1.msra.mxu0 0.0
  %2338 = vmatprep.subr.mxu0 0.0
  %2339 = vmatpush1.msra.mxu0 0.0
  %2340 = vmatprep.subr.mxu0 0.0
  %2341 = vmatpush1.msra.mxu0 0.0
  %2342 = vmatprep.subr.mxu0 0.0
  %2343 = vmatpush1.msra.mxu0 0.0
  %2344 = vmatprep.subr.mxu0 0.0
  %2345 = vmatpush1.msra.mxu0 0.0
  %2346 = vmatprep.subr.mxu0 0.0
  %2347 = vmatpush1.msra.mxu0 0.0
  %2348 = vmatprep.subr.mxu0 0.0
  %2349 = vmatpush1.msra.mxu0 0.0
  %2350 = vmatprep.mubr.f32.mxu0 0.0
  %2351 = vmatmul.mubr.f32.gmra.mrb[0].mxu0 %v2213
  %v2352 = vpop.f32.mrb[0].mxu0
  %v2353 = vadd.f32 %v2208, %v2352
  %v2354 = vpop.f32.mrb[0].mxu0
  %v2355 = vadd.f32 %v2210, %v2354
  %2356 = vdwg.mxu0
  %v2357 = vld [vmem:[%s6] sm:$0xf]
  %v2359 = vlaneseq
  %v2360 = vshrl.u32 %v2359, 7
  %v2361 = vsub.s32 0, %v2360
  %v2362 = vrot.slane %v2357, %v2361
  %v2363 = vlaneseq
  %v2364 = vshrl.u32 %v2363, 7
  %v2365 = vsub.s32 1, %v2364
  %v2366 = vrot.slane %v2357, %v2365
  %v2367 = vlaneseq
  %v2368 = vshrl.u32 %v2367, 7
  %v2369 = vsub.s32 2, %v2368
  %v2370 = vrot.slane %v2357, %v2369
  %v2371 = vlaneseq
  %v2372 = vshrl.u32 %v2371, 7
  %v2373 = vsub.s32 3, %v2372
  %v2374 = vrot.slane %v2357, %v2373
  %v2379 = vadd.f32 %v2282, %v2362
  %v2380 = vadd.f32 %v2284, %v2366
  %v2381 = vadd.f32 %v2353, %v2370
  %v2382 = vadd.f32 %v2355, %v2374
  %v2383 = vxor.u32 %v2379, 2147483648
  %v2384 = vmul.f32 %v2383, 1.442695
  %v2385 = vpow.pop %v2384
  %v2386 = vadd.f32 %v2385, 1.0
  %v2387 = vrcp.pop %v2386
  %v2388 = vmul.f32 1.0, %v2387
  %v2389 = vxor.u32 %v2380, 2147483648
  %v2390 = vmul.f32 %v2389, 1.442695
  %v2391 = vpow.pop %v2390
  %v2392 = vadd.f32 %v2391, 1.0
  %v2393 = vrcp.pop %v2392
  %v2394 = vmul.f32 1.0, %v2393
  %v2395 = vtanh.pop %v2381
  %v2396 = vxor.u32 %v2382, 2147483648
  %v2397 = vmul.f32 %v2396, 1.442695
  %v2398 = vpow.pop %v2397
  %v2399 = vadd.f32 %v2398, 1.0
  %v2400 = vrcp.pop %v2399
  %v2401 = vmul.f32 1.0, %v2400
  %v2402 = vmul.f32 %v2394, %v1689
  %v2403 = vmul.f32 %v2388, %v2395
  %v2404 = vadd.f32 %v2402, %v2403
  %v2405 = vtanh.pop %v2404
  %v2406 = vmul.f32 %v2401, %v2405
  %2407 = vst [vmem:[%s7 + $0x4] sm:$0x3] %v2406
  %v2408 = vld [vmem:[%s2] sm:$0xff]
  %v2409 = vld [vmem:[%s2 + $0x8] sm:$0xff]
  %v2410 = vld [vmem:[%s2 + $0x10] sm:$0xff]
  %v2411 = vld [vmem:[%s2 + $0x18] sm:$0xff]
  %v2412 = vld [vmem:[%s2 + $0x20] sm:$0xff]
  %v2413 = vld [vmem:[%s2 + $0x28] sm:$0xff]
  %v2414 = vld [vmem:[%s2 + $0x30] sm:$0xff]
  %v2415 = vld [vmem:[%s2 + $0x38] sm:$0xff]
  %v2416 = vld [vmem:[%s2 + $0x40] sm:$0xff]
  %v2417 = vld [vmem:[%s2 + $0x48] sm:$0xff]
  %v2418 = vld [vmem:[%s2 + $0x50] sm:$0xff]
  %v2419 = vld [vmem:[%s2 + $0x58] sm:$0xff]
  %v2420 = vld [vmem:[%s2 + $0x60] sm:$0xff]
  %v2421 = vld [vmem:[%s2 + $0x68] sm:$0xff]
  %v2422 = vld [vmem:[%s2 + $0x70] sm:$0xff]
  %v2423 = vld [vmem:[%s2 + $0x78] sm:$0xff]
  %v2424 = vld [vmem:[%s2 + $0x80] sm:$0xff]
  %v2425 = vld [vmem:[%s2 + $0x88] sm:$0xff]
  %v2426 = vld [vmem:[%s2 + $0x90] sm:$0xff]
  %v2427 = vld [vmem:[%s2 + $0x98] sm:$0xff]
  %v2428 = vld [vmem:[%s2 + $0xa0] sm:$0xff]
  %v2429 = vld [vmem:[%s2 + $0xa8] sm:$0xff]
  %v2430 = vld [vmem:[%s2 + $0xb0] sm:$0xff]
  %v2431 = vld [vmem:[%s2 + $0xb8] sm:$0xff]
  %v2432 = vld [vmem:[%s2 + $0xc0] sm:$0xff]
  %v2433 = vld [vmem:[%s2 + $0xc8] sm:$0xff]
  %v2434 = vld [vmem:[%s2 + $0xd0] sm:$0xff]
  %v2435 = vld [vmem:[%s2 + $0xd8] sm:$0xff]
  %v2436 = vld [vmem:[%s2 + $0xe0] sm:$0xff]
  %v2437 = vld [vmem:[%s2 + $0xe8] sm:$0xff]
  %v2438 = vld [vmem:[%s2 + $0xf0] sm:$0xff]
  %v2439 = vld [vmem:[%s2 + $0xf8] sm:$0xff]
  %v2440 = vld [vmem:[%s2 + $0x100] sm:$0xff]
  %v2441 = vld [vmem:[%s2 + $0x108] sm:$0xff]
  %v2442 = vld [vmem:[%s2 + $0x110] sm:$0xff]
  %v2443 = vld [vmem:[%s2 + $0x118] sm:$0xff]
  %v2444 = vld [vmem:[%s2 + $0x120] sm:$0xff]
  %v2445 = vld [vmem:[%s2 + $0x128] sm:$0xff]
  %v2446 = vld [vmem:[%s2 + $0x130] sm:$0xff]
  %v2447 = vld [vmem:[%s2 + $0x138] sm:$0xff]
  %v2448 = vld [vmem:[%s2 + $0x140] sm:$0xff]
  %v2449 = vld [vmem:[%s2 + $0x148] sm:$0xff]
  %v2450 = vld [vmem:[%s2 + $0x150] sm:$0xff]
  %v2451 = vld [vmem:[%s2 + $0x158] sm:$0xff]
  %v2452 = vld [vmem:[%s2 + $0x160] sm:$0xff]
  %v2453 = vld [vmem:[%s2 + $0x168] sm:$0xff]
  %v2454 = vld [vmem:[%s2 + $0x170] sm:$0xff]
  %v2455 = vld [vmem:[%s2 + $0x178] sm:$0xff]
  %v2456 = vld [vmem:[%s2 + $0x180] sm:$0xff]
  %v2457 = vld [vmem:[%s2 + $0x188] sm:$0xff]
  %v2458 = vld [vmem:[%s2 + $0x190] sm:$0xff]
  %v2459 = vld [vmem:[%s2 + $0x198] sm:$0xff]
  %v2460 = vld [vmem:[%s2 + $0x1a0] sm:$0xff]
  %v2461 = vld [vmem:[%s2 + $0x1a8] sm:$0xff]
  %v2462 = vld [vmem:[%s2 + $0x1b0] sm:$0xff]
  %v2463 = vld [vmem:[%s2 + $0x1b8] sm:$0xff]
  %v2464 = vld [vmem:[%s2 + $0x1c0] sm:$0xff]
  %v2465 = vld [vmem:[%s2 + $0x1c8] sm:$0xff]
  %v2466 = vld [vmem:[%s2 + $0x1d0] sm:$0xff]
  %v2467 = vld [vmem:[%s2 + $0x1d8] sm:$0xff]
  %v2468 = vld [vmem:[%s2 + $0x1e0] sm:$0xff]
  %v2469 = vld [vmem:[%s2 + $0x1e8] sm:$0xff]
  %v2470 = vld [vmem:[%s2 + $0x1f0] sm:$0xff]
  %v2471 = vld [vmem:[%s2 + $0x1f8] sm:$0xff]
  %2472 = vmatprep.subr.mxu0 %v2409
  %2473 = vmatpush1.msra.mxu0 %v2408
  %2474 = vmatprep.subr.mxu0 %v2413
  %2475 = vmatpush1.msra.mxu0 %v2412
  %2476 = vmatprep.subr.mxu0 %v2417
  %2477 = vmatpush1.msra.mxu0 %v2416
  %2478 = vmatprep.subr.mxu0 %v2421
  %2479 = vmatpush1.msra.mxu0 %v2420
  %2480 = vmatprep.subr.mxu0 %v2425
  %2481 = vmatpush1.msra.mxu0 %v2424
  %2482 = vmatprep.subr.mxu0 %v2429
  %2483 = vmatpush1.msra.mxu0 %v2428
  %2484 = vmatprep.subr.mxu0 %v2433
  %2485 = vmatpush1.msra.mxu0 %v2432
  %2486 = vmatprep.subr.mxu0 %v2437
  %2487 = vmatpush1.msra.mxu0 %v2436
  %2488 = vmatprep.subr.mxu0 %v2441
  %2489 = vmatpush1.msra.mxu0 %v2440
  %2490 = vmatprep.subr.mxu0 %v2445
  %2491 = vmatpush1.msra.mxu0 %v2444
  %2492 = vmatprep.subr.mxu0 %v2449
  %2493 = vmatpush1.msra.mxu0 %v2448
  %2494 = vmatprep.subr.mxu0 %v2453
  %2495 = vmatpush1.msra.mxu0 %v2452
  %2496 = vmatprep.subr.mxu0 %v2457
  %2497 = vmatpush1.msra.mxu0 %v2456
  %2498 = vmatprep.subr.mxu0 %v2461
  %2499 = vmatpush1.msra.mxu0 %v2460
  %2500 = vmatprep.subr.mxu0 %v2465
  %2501 = vmatpush1.msra.mxu0 %v2464
  %2502 = vmatprep.subr.mxu0 %v2469
  %2503 = vmatpush1.msra.mxu0 %v2468
  %2504 = vmatprep.subr.mxu0 0.0
  %2505 = vmatpush1.msra.mxu0 0.0
  %2506 = vmatprep.subr.mxu0 0.0
  %2507 = vmatpush1.msra.mxu0 0.0
  %2508 = vmatprep.subr.mxu0 0.0
  %2509 = vmatpush1.msra.mxu0 0.0
  %2510 = vmatprep.subr.mxu0 0.0
  %2511 = vmatpush1.msra.mxu0 0.0
  %2512 = vmatprep.subr.mxu0 0.0
  %2513 = vmatpush1.msra.mxu0 0.0
  %2514 = vmatprep.subr.mxu0 0.0
  %2515 = vmatpush1.msra.mxu0 0.0
  %2516 = vmatprep.subr.mxu0 0.0
  %2517 = vmatpush1.msra.mxu0 0.0
  %2518 = vmatprep.subr.mxu0 0.0
  %2519 = vmatpush1.msra.mxu0 0.0
  %2520 = vmatprep.subr.mxu0 0.0
  %2521 = vmatpush1.msra.mxu0 0.0
  %2522 = vmatprep.subr.mxu0 0.0
  %2523 = vmatpush1.msra.mxu0 0.0
  %2524 = vmatprep.subr.mxu0 0.0
  %2525 = vmatpush1.msra.mxu0 0.0
  %2526 = vmatprep.subr.mxu0 0.0
  %2527 = vmatpush1.msra.mxu0 0.0
  %2528 = vmatprep.subr.mxu0 0.0
  %2529 = vmatpush1.msra.mxu0 0.0
  %2530 = vmatprep.subr.mxu0 0.0
  %2531 = vmatpush1.msra.mxu0 0.0
  %2532 = vmatprep.subr.mxu0 0.0
  %2533 = vmatpush1.msra.mxu0 0.0
  %2534 = vmatprep.subr.mxu0 0.0
  %2535 = vmatpush1.msra.mxu0 0.0
  %2536 = vmatprep.mubr.f32.mxu0 0.0
  %2537 = vmatmul.mubr.f32.gmra.mrb[0].mxu0 %v2213
  %v2538 = vpop.f32.mrb[0].mxu0
  %v2539 = vadd.f32 0.0, %v2538
  %v2540 = vpop.f32.mrb[0].mxu0
  %v2541 = vadd.f32 0.0, %v2540
  %2542 = vdwg.mxu0
  %2543 = vmatprep.subr.mxu0 %v2411
  %2544 = vmatpush1.msra.mxu0 %v2410
  %2545 = vmatprep.subr.mxu0 %v2415
  %2546 = vmatpush1.msra.mxu0 %v2414
  %2547 = vmatprep.subr.mxu0 %v2419
  %2548 = vmatpush1.msra.mxu0 %v2418
  %2549 = vmatprep.subr.mxu0 %v2423
  %2550 = vmatpush1.msra.mxu0 %v2422
  %2551 = vmatprep.subr.mxu0 %v2427
  %2552 = vmatpush1.msra.mxu0 %v2426
  %2553 = vmatprep.subr.mxu0 %v2431
  %2554 = vmatpush1.msra.mxu0 %v2430
  %2555 = vmatprep.subr.mxu0 %v2435
  %2556 = vmatpush1.msra.mxu0 %v2434
  %2557 = vmatprep.subr.mxu0 %v2439
  %2558 = vmatpush1.msra.mxu0 %v2438
  %2559 = vmatprep.subr.mxu0 %v2443
  %2560 = vmatpush1.msra.mxu0 %v2442
  %2561 = vmatprep.subr.mxu0 %v2447
  %2562 = vmatpush1.msra.mxu0 %v2446
  %2563 = vmatprep.subr.mxu0 %v2451
  %2564 = vmatpush1.msra.mxu0 %v2450
  %2565 = vmatprep.subr.mxu0 %v2455
  %2566 = vmatpush1.msra.mxu0 %v2454
  %2567 = vmatprep.subr.mxu0 %v2459
  %2568 = vmatpush1.msra.mxu0 %v2458
  %2569 = vmatprep.subr.mxu0 %v2463
  %2570 = vmatpush1.msra.mxu0 %v2462
  %2571 = vmatprep.subr.mxu0 %v2467
  %2572 = vmatpush1.msra.mxu0 %v2466
  %2573 = vmatprep.subr.mxu0 %v2471
  %2574 = vmatpush1.msra.mxu0 %v2470
  %2575 = vmatprep.subr.mxu0 0.0
  %2576 = vmatpush1.msra.mxu0 0.0
  %2577 = vmatprep.subr.mxu0 0.0
  %2578 = vmatpush1.msra.mxu0 0.0
  %2579 = vmatprep.subr.mxu0 0.0
  %2580 = vmatpush1.msra.mxu0 0.0
  %2581 = vmatprep.subr.mxu0 0.0
  %2582 = vmatpush1.msra.mxu0 0.0
  %2583 = vmatprep.subr.mxu0 0.0
  %2584 = vmatpush1.msra.mxu0 0.0
  %2585 = vmatprep.subr.mxu0 0.0
  %2586 = vmatpush1.msra.mxu0 0.0
  %2587 = vmatprep.subr.mxu0 0.0
  %2588 = vmatpush1.msra.mxu0 0.0
  %2589 = vmatprep.subr.mxu0 0.0
  %2590 = vmatpush1.msra.mxu0 0.0
  %2591 = vmatprep.subr.mxu0 0.0
  %2592 = vmatpush1.msra.mxu0 0.0
  %2593 = vmatprep.subr.mxu0 0.0
  %2594 = vmatpush1.msra.mxu0 0.0
  %2595 = vmatprep.subr.mxu0 0.0
  %2596 = vmatpush1.msra.mxu0 0.0
  %2597 = vmatprep.subr.mxu0 0.0
  %2598 = vmatpush1.msra.mxu0 0.0
  %2599 = vmatprep.subr.mxu0 0.0
  %2600 = vmatpush1.msra.mxu0 0.0
  %2601 = vmatprep.subr.mxu0 0.0
  %2602 = vmatpush1.msra.mxu0 0.0
  %2603 = vmatprep.subr.mxu0 0.0
  %2604 = vmatpush1.msra.mxu0 0.0
  %2605 = vmatprep.subr.mxu0 0.0
  %2606 = vmatpush1.msra.mxu0 0.0
  %2607 = vmatprep.mubr.f32.mxu0 0.0
  %2608 = vmatmul.mubr.f32.gmra.mrb[0].mxu0 %v2213
  %v2609 = vpop.f32.mrb[0].mxu0
  %v2610 = vadd.f32 0.0, %v2609
  %v2611 = vpop.f32.mrb[0].mxu0
  %v2612 = vadd.f32 0.0, %v2611
  %2613 = vdwg.mxu0
  %v2618 = vrot.slane %v2539, 2
  %v2619 = vrot.slane %v2541, 2
  %v2620 = vrot.slane %v2610, 2
  %v2621 = vrot.slane %v2612, 2
  %v2626 = vadd.f32 %v182, %v2618
  %v2627 = vadd.f32 %v184, %v2619
  %v2628 = vadd.f32 %v265, %v2620
  %v2629 = vadd.f32 %v267, %v2621
  %v2630 = vxor.u32 %v2626, 2147483648
  %v2631 = vmul.f32 %v2630, 1.442695
  %v2632 = vpow.pop %v2631
  %v2633 = vadd.f32 %v2632, 1.0
  %v2634 = vrcp.pop %v2633
  %v2635 = vmul.f32 1.0, %v2634
  %v2636 = vxor.u32 %v2627, 2147483648
  %v2637 = vmul.f32 %v2636, 1.442695
  %v2638 = vpow.pop %v2637
  %v2639 = vadd.f32 %v2638, 1.0
  %v2640 = vrcp.pop %v2639
  %v2641 = vmul.f32 1.0, %v2640
  %v2642 = vtanh.pop %v2628
  %v2643 = vxor.u32 %v2629, 2147483648
  %v2644 = vmul.f32 %v2643, 1.442695
  %v2645 = vpow.pop %v2644
  %v2646 = vadd.f32 %v2645, 1.0
  %v2647 = vrcp.pop %v2646
  %v2648 = vmul.f32 1.0, %v2647
  %v2650 = vrot.slane %v1939, 6
  %v2652 = vmul.f32 %v2641, %v2650
  %v2653 = vmul.f32 %v2635, %v2642
  %v2654 = vadd.f32 %v2652, %v2653
  %v2655 = vtanh.pop %v2654
  %v2656 = vmul.f32 %v2648, %v2655
  %v2657 = vld [vmem:[%s5] sm:$0xff]
  %v2658 = vld [vmem:[%s5 + $0x8] sm:$0xff]
  %v2659 = vld [vmem:[%s5 + $0x10] sm:$0xff]
  %v2660 = vld [vmem:[%s5 + $0x18] sm:$0xff]
  %v2661 = vld [vmem:[%s5 + $0x20] sm:$0xff]
  %v2662 = vld [vmem:[%s5 + $0x28] sm:$0xff]
  %v2663 = vld [vmem:[%s5 + $0x30] sm:$0xff]
  %v2664 = vld [vmem:[%s5 + $0x38] sm:$0xff]
  %v2665 = vld [vmem:[%s5 + $0x40] sm:$0xff]
  %v2666 = vld [vmem:[%s5 + $0x48] sm:$0xff]
  %v2667 = vld [vmem:[%s5 + $0x50] sm:$0xff]
  %v2668 = vld [vmem:[%s5 + $0x58] sm:$0xff]
  %v2669 = vld [vmem:[%s5 + $0x60] sm:$0xff]
  %v2670 = vld [vmem:[%s5 + $0x68] sm:$0xff]
  %v2671 = vld [vmem:[%s5 + $0x70] sm:$0xff]
  %v2672 = vld [vmem:[%s5 + $0x78] sm:$0xff]
  %v2673 = vld [vmem:[%s5 + $0x80] sm:$0xff]
  %v2674 = vld [vmem:[%s5 + $0x88] sm:$0xff]
  %v2675 = vld [vmem:[%s5 + $0x90] sm:$0xff]
  %v2676 = vld [vmem:[%s5 + $0x98] sm:$0xff]
  %v2677 = vld [vmem:[%s5 + $0xa0] sm:$0xff]
  %v2678 = vld [vmem:[%s5 + $0xa8] sm:$0xff]
  %v2679 = vld [vmem:[%s5 + $0xb0] sm:$0xff]
  %v2680 = vld [vmem:[%s5 + $0xb8] sm:$0xff]
  %v2681 = vld [vmem:[%s5 + $0xc0] sm:$0xff]
  %v2682 = vld [vmem:[%s5 + $0xc8] sm:$0xff]
  %v2683 = vld [vmem:[%s5 + $0xd0] sm:$0xff]
  %v2684 = vld [vmem:[%s5 + $0xd8] sm:$0xff]
  %v2685 = vld [vmem:[%s5 + $0xe0] sm:$0xff]
  %v2686 = vld [vmem:[%s5 + $0xe8] sm:$0xff]
  %v2687 = vld [vmem:[%s5 + $0xf0] sm:$0xff]
  %v2688 = vld [vmem:[%s5 + $0xf8] sm:$0xff]
  %v2689 = vld [vmem:[%s5 + $0x100] sm:$0xff]
  %v2690 = vld [vmem:[%s5 + $0x108] sm:$0xff]
  %v2691 = vld [vmem:[%s5 + $0x110] sm:$0xff]
  %v2692 = vld [vmem:[%s5 + $0x118] sm:$0xff]
  %v2693 = vld [vmem:[%s5 + $0x120] sm:$0xff]
  %v2694 = vld [vmem:[%s5 + $0x128] sm:$0xff]
  %v2695 = vld [vmem:[%s5 + $0x130] sm:$0xff]
  %v2696 = vld [vmem:[%s5 + $0x138] sm:$0xff]
  %v2697 = vld [vmem:[%s5 + $0x140] sm:$0xff]
  %v2698 = vld [vmem:[%s5 + $0x148] sm:$0xff]
  %v2699 = vld [vmem:[%s5 + $0x150] sm:$0xff]
  %v2700 = vld [vmem:[%s5 + $0x158] sm:$0xff]
  %v2701 = vld [vmem:[%s5 + $0x160] sm:$0xff]
  %v2702 = vld [vmem:[%s5 + $0x168] sm:$0xff]
  %v2703 = vld [vmem:[%s5 + $0x170] sm:$0xff]
  %v2704 = vld [vmem:[%s5 + $0x178] sm:$0xff]
  %v2705 = vld [vmem:[%s5 + $0x180] sm:$0xff]
  %v2706 = vld [vmem:[%s5 + $0x188] sm:$0xff]
  %v2707 = vld [vmem:[%s5 + $0x190] sm:$0xff]
  %v2708 = vld [vmem:[%s5 + $0x198] sm:$0xff]
  %v2709 = vld [vmem:[%s5 + $0x1a0] sm:$0xff]
  %v2710 = vld [vmem:[%s5 + $0x1a8] sm:$0xff]
  %v2711 = vld [vmem:[%s5 + $0x1b0] sm:$0xff]
  %v2712 = vld [vmem:[%s5 + $0x1b8] sm:$0xff]
  %v2713 = vld [vmem:[%s5 + $0x1c0] sm:$0xff]
  %v2714 = vld [vmem:[%s5 + $0x1c8] sm:$0xff]
  %v2715 = vld [vmem:[%s5 + $0x1d0] sm:$0xff]
  %v2716 = vld [vmem:[%s5 + $0x1d8] sm:$0xff]
  %v2717 = vld [vmem:[%s5 + $0x1e0] sm:$0xff]
  %v2718 = vld [vmem:[%s5 + $0x1e8] sm:$0xff]
  %v2719 = vld [vmem:[%s5 + $0x1f0] sm:$0xff]
  %v2720 = vld [vmem:[%s5 + $0x1f8] sm:$0xff]
  %v2721 = vld [vmem:[%s4] sm:$0xff]
  %v2722 = vld [vmem:[%s4 + $0x8] sm:$0xff]
  %v2723 = vld [vmem:[%s4 + $0x10] sm:$0xff]
  %v2724 = vld [vmem:[%s4 + $0x18] sm:$0xff]
  %v2725 = vld [vmem:[%s4 + $0x20] sm:$0xff]
  %v2726 = vld [vmem:[%s4 + $0x28] sm:$0xff]
  %v2727 = vld [vmem:[%s4 + $0x30] sm:$0xff]
  %v2728 = vld [vmem:[%s4 + $0x38] sm:$0xff]
  %v2729 = vld [vmem:[%s4 + $0x40] sm:$0xff]
  %v2730 = vld [vmem:[%s4 + $0x48] sm:$0xff]
  %v2731 = vld [vmem:[%s4 + $0x50] sm:$0xff]
  %v2732 = vld [vmem:[%s4 + $0x58] sm:$0xff]
  %v2733 = vld [vmem:[%s4 + $0x60] sm:$0xff]
  %v2734 = vld [vmem:[%s4 + $0x68] sm:$0xff]
  %v2735 = vld [vmem:[%s4 + $0x70] sm:$0xff]
  %v2736 = vld [vmem:[%s4 + $0x78] sm:$0xff]
  %v2737 = vld [vmem:[%s4 + $0x80] sm:$0xff]
  %v2738 = vld [vmem:[%s4 + $0x88] sm:$0xff]
  %v2739 = vld [vmem:[%s4 + $0x90] sm:$0xff]
  %v2740 = vld [vmem:[%s4 + $0x98] sm:$0xff]
  %v2741 = vld [vmem:[%s4 + $0xa0] sm:$0xff]
  %v2742 = vld [vmem:[%s4 + $0xa8] sm:$0xff]
  %v2743 = vld [vmem:[%s4 + $0xb0] sm:$0xff]
  %v2744 = vld [vmem:[%s4 + $0xb8] sm:$0xff]
  %v2745 = vld [vmem:[%s4 + $0xc0] sm:$0xff]
  %v2746 = vld [vmem:[%s4 + $0xc8] sm:$0xff]
  %v2747 = vld [vmem:[%s4 + $0xd0] sm:$0xff]
  %v2748 = vld [vmem:[%s4 + $0xd8] sm:$0xff]
  %v2749 = vld [vmem:[%s4 + $0xe0] sm:$0xff]
  %v2750 = vld [vmem:[%s4 + $0xe8] sm:$0xff]
  %v2751 = vld [vmem:[%s4 + $0xf0] sm:$0xff]
  %v2752 = vld [vmem:[%s4 + $0xf8] sm:$0xff]
  %v2753 = vld [vmem:[%s4 + $0x100] sm:$0xff]
  %v2754 = vld [vmem:[%s4 + $0x108] sm:$0xff]
  %v2755 = vld [vmem:[%s4 + $0x110] sm:$0xff]
  %v2756 = vld [vmem:[%s4 + $0x118] sm:$0xff]
  %v2757 = vld [vmem:[%s4 + $0x120] sm:$0xff]
  %v2758 = vld [vmem:[%s4 + $0x128] sm:$0xff]
  %v2759 = vld [vmem:[%s4 + $0x130] sm:$0xff]
  %v2760 = vld [vmem:[%s4 + $0x138] sm:$0xff]
  %v2761 = vld [vmem:[%s4 + $0x140] sm:$0xff]
  %v2762 = vld [vmem:[%s4 + $0x148] sm:$0xff]
  %v2763 = vld [vmem:[%s4 + $0x150] sm:$0xff]
  %v2764 = vld [vmem:[%s4 + $0x158] sm:$0xff]
  %v2765 = vld [vmem:[%s4 + $0x160] sm:$0xff]
  %v2766 = vld [vmem:[%s4 + $0x168] sm:$0xff]
  %v2767 = vld [vmem:[%s4 + $0x170] sm:$0xff]
  %v2768 = vld [vmem:[%s4 + $0x178] sm:$0xff]
  %v2769 = vld [vmem:[%s4 + $0x180] sm:$0xff]
  %v2770 = vld [vmem:[%s4 + $0x188] sm:$0xff]
  %v2771 = vld [vmem:[%s4 + $0x190] sm:$0xff]
  %v2772 = vld [vmem:[%s4 + $0x198] sm:$0xff]
  %v2773 = vld [vmem:[%s4 + $0x1a0] sm:$0xff]
  %v2774 = vld [vmem:[%s4 + $0x1a8] sm:$0xff]
  %v2775 = vld [vmem:[%s4 + $0x1b0] sm:$0xff]
  %v2776 = vld [vmem:[%s4 + $0x1b8] sm:$0xff]
  %v2777 = vld [vmem:[%s4 + $0x1c0] sm:$0xff]
  %v2778 = vld [vmem:[%s4 + $0x1c8] sm:$0xff]
  %v2779 = vld [vmem:[%s4 + $0x1d0] sm:$0xff]
  %v2780 = vld [vmem:[%s4 + $0x1d8] sm:$0xff]
  %v2781 = vld [vmem:[%s4 + $0x1e0] sm:$0xff]
  %v2782 = vld [vmem:[%s4 + $0x1e8] sm:$0xff]
  %v2783 = vld [vmem:[%s4 + $0x1f0] sm:$0xff]
  %v2784 = vld [vmem:[%s4 + $0x1f8] sm:$0xff]
  %2785 = vmatprep.subr.mxu0 %v2658
  %2786 = vmatpush1.msra.mxu0 %v2657
  %2787 = vmatprep.subr.mxu0 %v2662
  %2788 = vmatpush1.msra.mxu0 %v2661
  %2789 = vmatprep.subr.mxu0 %v2666
  %2790 = vmatpush1.msra.mxu0 %v2665
  %2791 = vmatprep.subr.mxu0 %v2670
  %2792 = vmatpush1.msra.mxu0 %v2669
  %2793 = vmatprep.subr.mxu0 %v2674
  %2794 = vmatpush1.msra.mxu0 %v2673
  %2795 = vmatprep.subr.mxu0 %v2678
  %2796 = vmatpush1.msra.mxu0 %v2677
  %2797 = vmatprep.subr.mxu0 %v2682
  %2798 = vmatpush1.msra.mxu0 %v2681
  %2799 = vmatprep.subr.mxu0 %v2686
  %2800 = vmatpush1.msra.mxu0 %v2685
  %2801 = vmatprep.subr.mxu0 %v2690
  %2802 = vmatpush1.msra.mxu0 %v2689
  %2803 = vmatprep.subr.mxu0 %v2694
  %2804 = vmatpush1.msra.mxu0 %v2693
  %2805 = vmatprep.subr.mxu0 %v2698
  %2806 = vmatpush1.msra.mxu0 %v2697
  %2807 = vmatprep.subr.mxu0 %v2702
  %2808 = vmatpush1.msra.mxu0 %v2701
  %2809 = vmatprep.subr.mxu0 %v2706
  %2810 = vmatpush1.msra.mxu0 %v2705
  %2811 = vmatprep.subr.mxu0 %v2710
  %2812 = vmatpush1.msra.mxu0 %v2709
  %2813 = vmatprep.subr.mxu0 %v2714
  %2814 = vmatpush1.msra.mxu0 %v2713
  %2815 = vmatprep.subr.mxu0 %v2718
  %2816 = vmatpush1.msra.mxu0 %v2717
  %2817 = vmatprep.subr.mxu0 0.0
  %2818 = vmatpush1.msra.mxu0 0.0
  %2819 = vmatprep.subr.mxu0 0.0
  %2820 = vmatpush1.msra.mxu0 0.0
  %2821 = vmatprep.subr.mxu0 0.0
  %2822 = vmatpush1.msra.mxu0 0.0
  %2823 = vmatprep.subr.mxu0 0.0
  %2824 = vmatpush1.msra.mxu0 0.0
  %2825 = vmatprep.subr.mxu0 0.0
  %2826 = vmatpush1.msra.mxu0 0.0
  %2827 = vmatprep.subr.mxu0 0.0
  %2828 = vmatpush1.msra.mxu0 0.0
  %2829 = vmatprep.subr.mxu0 0.0
  %2830 = vmatpush1.msra.mxu0 0.0
  %2831 = vmatprep.subr.mxu0 0.0
  %2832 = vmatpush1.msra.mxu0 0.0
  %2833 = vmatprep.subr.mxu0 0.0
  %2834 = vmatpush1.msra.mxu0 0.0
  %2835 = vmatprep.subr.mxu0 0.0
  %2836 = vmatpush1.msra.mxu0 0.0
  %2837 = vmatprep.subr.mxu0 0.0
  %2838 = vmatpush1.msra.mxu0 0.0
  %2839 = vmatprep.subr.mxu0 0.0
  %2840 = vmatpush1.msra.mxu0 0.0
  %2841 = vmatprep.subr.mxu0 0.0
  %2842 = vmatpush1.msra.mxu0 0.0
  %2843 = vmatprep.subr.mxu0 0.0
  %2844 = vmatpush1.msra.mxu0 0.0
  %2845 = vmatprep.subr.mxu0 0.0
  %2846 = vmatpush1.msra.mxu0 0.0
  %2847 = vmatprep.subr.mxu0 0.0
  %2848 = vmatpush1.msra.mxu0 0.0
  %2849 = vmatprep.mubr.f32.mxu0 0.0
  %2850 = vmatmul.mubr.f32.gmra.mrb[0].mxu0 %v2406
  %v2851 = vpop.f32.mrb[0].mxu0
  %v2852 = vadd.f32 0.0, %v2851
  %v2853 = vpop.f32.mrb[0].mxu0
  %v2854 = vadd.f32 0.0, %v2853
  %2855 = vdwg.mxu0
  %2856 = vmatprep.subr.mxu0 %v2660
  %2857 = vmatpush1.msra.mxu0 %v2659
  %2858 = vmatprep.subr.mxu0 %v2664
  %2859 = vmatpush1.msra.mxu0 %v2663
  %2860 = vmatprep.subr.mxu0 %v2668
  %2861 = vmatpush1.msra.mxu0 %v2667
  %2862 = vmatprep.subr.mxu0 %v2672
  %2863 = vmatpush1.msra.mxu0 %v2671
  %2864 = vmatprep.subr.mxu0 %v2676
  %2865 = vmatpush1.msra.mxu0 %v2675
  %2866 = vmatprep.subr.mxu0 %v2680
  %2867 = vmatpush1.msra.mxu0 %v2679
  %2868 = vmatprep.subr.mxu0 %v2684
  %2869 = vmatpush1.msra.mxu0 %v2683
  %2870 = vmatprep.subr.mxu0 %v2688
  %2871 = vmatpush1.msra.mxu0 %v2687
  %2872 = vmatprep.subr.mxu0 %v2692
  %2873 = vmatpush1.msra.mxu0 %v2691
  %2874 = vmatprep.subr.mxu0 %v2696
  %2875 = vmatpush1.msra.mxu0 %v2695
  %2876 = vmatprep.subr.mxu0 %v2700
  %2877 = vmatpush1.msra.mxu0 %v2699
  %2878 = vmatprep.subr.mxu0 %v2704
  %2879 = vmatpush1.msra.mxu0 %v2703
  %2880 = vmatprep.subr.mxu0 %v2708
  %2881 = vmatpush1.msra.mxu0 %v2707
  %2882 = vmatprep.subr.mxu0 %v2712
  %2883 = vmatpush1.msra.mxu0 %v2711
  %2884 = vmatprep.subr.mxu0 %v2716
  %2885 = vmatpush1.msra.mxu0 %v2715
  %2886 = vmatprep.subr.mxu0 %v2720
  %2887 = vmatpush1.msra.mxu0 %v2719
  %2888 = vmatprep.subr.mxu0 0.0
  %2889 = vmatpush1.msra.mxu0 0.0
  %2890 = vmatprep.subr.mxu0 0.0
  %2891 = vmatpush1.msra.mxu0 0.0
  %2892 = vmatprep.subr.mxu0 0.0
  %2893 = vmatpush1.msra.mxu0 0.0
  %2894 = vmatprep.subr.mxu0 0.0
  %2895 = vmatpush1.msra.mxu0 0.0
  %2896 = vmatprep.subr.mxu0 0.0
  %2897 = vmatpush1.msra.mxu0 0.0
  %2898 = vmatprep.subr.mxu0 0.0
  %2899 = vmatpush1.msra.mxu0 0.0
  %2900 = vmatprep.subr.mxu0 0.0
  %2901 = vmatpush1.msra.mxu0 0.0
  %2902 = vmatprep.subr.mxu0 0.0
  %2903 = vmatpush1.msra.mxu0 0.0
  %2904 = vmatprep.subr.mxu0 0.0
  %2905 = vmatpush1.msra.mxu0 0.0
  %2906 = vmatprep.subr.mxu0 0.0
  %2907 = vmatpush1.msra.mxu0 0.0
  %2908 = vmatprep.subr.mxu0 0.0
  %2909 = vmatpush1.msra.mxu0 0.0
  %2910 = vmatprep.subr.mxu0 0.0
  %2911 = vmatpush1.msra.mxu0 0.0
  %2912 = vmatprep.subr.mxu0 0.0
  %2913 = vmatpush1.msra.mxu0 0.0
  %2914 = vmatprep.subr.mxu0 0.0
  %2915 = vmatpush1.msra.mxu0 0.0
  %2916 = vmatprep.subr.mxu0 0.0
  %2917 = vmatpush1.msra.mxu0 0.0
  %2918 = vmatprep.subr.mxu0 0.0
  %2919 = vmatpush1.msra.mxu0 0.0
  %2920 = vmatprep.mubr.f32.mxu0 0.0
  %2921 = vmatmul.mubr.f32.gmra.mrb[0].mxu0 %v2406
  %v2922 = vpop.f32.mrb[0].mxu0
  %v2923 = vadd.f32 0.0, %v2922
  %v2924 = vpop.f32.mrb[0].mxu0
  %v2925 = vadd.f32 0.0, %v2924
  %2926 = vdwg.mxu0
  %v2928 = vrot.slane %v2656, 6
  %2930 = vmatprep.subr.mxu0 %v2722
  %2931 = vmatpush1.msra.mxu0 %v2721
  %2932 = vmatprep.subr.mxu0 %v2726
  %2933 = vmatpush1.msra.mxu0 %v2725
  %2934 = vmatprep.subr.mxu0 %v2730
  %2935 = vmatpush1.msra.mxu0 %v2729
  %2936 = vmatprep.subr.mxu0 %v2734
  %2937 = vmatpush1.msra.mxu0 %v2733
  %2938 = vmatprep.subr.mxu0 %v2738
  %2939 = vmatpush1.msra.mxu0 %v2737
  %2940 = vmatprep.subr.mxu0 %v2742
  %2941 = vmatpush1.msra.mxu0 %v2741
  %2942 = vmatprep.subr.mxu0 %v2746
  %2943 = vmatpush1.msra.mxu0 %v2745
  %2944 = vmatprep.subr.mxu0 %v2750
  %2945 = vmatpush1.msra.mxu0 %v2749
  %2946 = vmatprep.subr.mxu0 %v2754
  %2947 = vmatpush1.msra.mxu0 %v2753
  %2948 = vmatprep.subr.mxu0 %v2758
  %2949 = vmatpush1.msra.mxu0 %v2757
  %2950 = vmatprep.subr.mxu0 %v2762
  %2951 = vmatpush1.msra.mxu0 %v2761
  %2952 = vmatprep.subr.mxu0 %v2766
  %2953 = vmatpush1.msra.mxu0 %v2765
  %2954 = vmatprep.subr.mxu0 %v2770
  %2955 = vmatpush1.msra.mxu0 %v2769
  %2956 = vmatprep.subr.mxu0 %v2774
  %2957 = vmatpush1.msra.mxu0 %v2773
  %2958 = vmatprep.subr.mxu0 %v2778
  %2959 = vmatpush1.msra.mxu0 %v2777
  %2960 = vmatprep.subr.mxu0 %v2782
  %2961 = vmatpush1.msra.mxu0 %v2781
  %2962 = vmatprep.subr.mxu0 0.0
  %2963 = vmatpush1.msra.mxu0 0.0
  %2964 = vmatprep.subr.mxu0 0.0
  %2965 = vmatpush1.msra.mxu0 0.0
  %2966 = vmatprep.subr.mxu0 0.0
  %2967 = vmatpush1.msra.mxu0 0.0
  %2968 = vmatprep.subr.mxu0 0.0
  %2969 = vmatpush1.msra.mxu0 0.0
  %2970 = vmatprep.subr.mxu0 0.0
  %2971 = vmatpush1.msra.mxu0 0.0
  %2972 = vmatprep.subr.mxu0 0.0
  %2973 = vmatpush1.msra.mxu0 0.0
  %2974 = vmatprep.subr.mxu0 0.0
  %2975 = vmatpush1.msra.mxu0 0.0
  %2976 = vmatprep.subr.mxu0 0.0
  %2977 = vmatpush1.msra.mxu0 0.0
  %2978 = vmatprep.subr.mxu0 0.0
  %2979 = vmatpush1.msra.mxu0 0.0
  %2980 = vmatprep.subr.mxu0 0.0
  %2981 = vmatpush1.msra.mxu0 0.0
  %2982 = vmatprep.subr.mxu0 0.0
  %2983 = vmatpush1.msra.mxu0 0.0
  %2984 = vmatprep.subr.mxu0 0.0
  %2985 = vmatpush1.msra.mxu0 0.0
  %2986 = vmatprep.subr.mxu0 0.0
  %2987 = vmatpush1.msra.mxu0 0.0
  %2988 = vmatprep.subr.mxu0 0.0
  %2989 = vmatpush1.msra.mxu0 0.0
  %2990 = vmatprep.subr.mxu0 0.0
  %2991 = vmatpush1.msra.mxu0 0.0
  %2992 = vmatprep.subr.mxu0 0.0
  %2993 = vmatpush1.msra.mxu0 0.0
  %2994 = vmatprep.mubr.f32.mxu0 0.0
  %2995 = vmatmul.mubr.f32.gmra.mrb[0].mxu0 %v2928
  %v2996 = vpop.f32.mrb[0].mxu0
  %v2997 = vadd.f32 %v2852, %v2996
  %v2998 = vpop.f32.mrb[0].mxu0
  %v2999 = vadd.f32 %v2854, %v2998
  %3000 = vdwg.mxu0
  %3001 = vmatprep.subr.mxu0 %v2724
  %3002 = vmatpush1.msra.mxu0 %v2723
  %3003 = vmatprep.subr.mxu0 %v2728
  %3004 = vmatpush1.msra.mxu0 %v2727
  %3005 = vmatprep.subr.mxu0 %v2732
  %3006 = vmatpush1.msra.mxu0 %v2731
  %3007 = vmatprep.subr.mxu0 %v2736
  %3008 = vmatpush1.msra.mxu0 %v2735
  %3009 = vmatprep.subr.mxu0 %v2740
  %3010 = vmatpush1.msra.mxu0 %v2739
  %3011 = vmatprep.subr.mxu0 %v2744
  %3012 = vmatpush1.msra.mxu0 %v2743
  %3013 = vmatprep.subr.mxu0 %v2748
  %3014 = vmatpush1.msra.mxu0 %v2747
  %3015 = vmatprep.subr.mxu0 %v2752
  %3016 = vmatpush1.msra.mxu0 %v2751
  %3017 = vmatprep.subr.mxu0 %v2756
  %3018 = vmatpush1.msra.mxu0 %v2755
  %3019 = vmatprep.subr.mxu0 %v2760
  %3020 = vmatpush1.msra.mxu0 %v2759
  %3021 = vmatprep.subr.mxu0 %v2764
  %3022 = vmatpush1.msra.mxu0 %v2763
  %3023 = vmatprep.subr.mxu0 %v2768
  %3024 = vmatpush1.msra.mxu0 %v2767
  %3025 = vmatprep.subr.mxu0 %v2772
  %3026 = vmatpush1.msra.mxu0 %v2771
  %3027 = vmatprep.subr.mxu0 %v2776
  %3028 = vmatpush1.msra.mxu0 %v2775
  %3029 = vmatprep.subr.mxu0 %v2780
  %3030 = vmatpush1.msra.mxu0 %v2779
  %3031 = vmatprep.subr.mxu0 %v2784
  %3032 = vmatpush1.msra.mxu0 %v2783
  %3033 = vmatprep.subr.mxu0 0.0
  %3034 = vmatpush1.msra.mxu0 0.0
  %3035 = vmatprep.subr.mxu0 0.0
  %3036 = vmatpush1.msra.mxu0 0.0
  %3037 = vmatprep.subr.mxu0 0.0
  %3038 = vmatpush1.msra.mxu0 0.0
  %3039 = vmatprep.subr.mxu0 0.0
  %3040 = vmatpush1.msra.mxu0 0.0
  %3041 = vmatprep.subr.mxu0 0.0
  %3042 = vmatpush1.msra.mxu0 0.0
  %3043 = vmatprep.subr.mxu0 0.0
  %3044 = vmatpush1.msra.mxu0 0.0
  %3045 = vmatprep.subr.mxu0 0.0
  %3046 = vmatpush1.msra.mxu0 0.0
  %3047 = vmatprep.subr.mxu0 0.0
  %3048 = vmatpush1.msra.mxu0 0.0
  %3049 = vmatprep.subr.mxu0 0.0
  %3050 = vmatpush1.msra.mxu0 0.0
  %3051 = vmatprep.subr.mxu0 0.0
  %3052 = vmatpush1.msra.mxu0 0.0
  %3053 = vmatprep.subr.mxu0 0.0
  %3054 = vmatpush1.msra.mxu0 0.0
  %3055 = vmatprep.subr.mxu0 0.0
  %3056 = vmatpush1.msra.mxu0 0.0
  %3057 = vmatprep.subr.mxu0 0.0
  %3058 = vmatpush1.msra.mxu0 0.0
  %3059 = vmatprep.subr.mxu0 0.0
  %3060 = vmatpush1.msra.mxu0 0.0
  %3061 = vmatprep.subr.mxu0 0.0
  %3062 = vmatpush1.msra.mxu0 0.0
  %3063 = vmatprep.subr.mxu0 0.0
  %3064 = vmatpush1.msra.mxu0 0.0
  %3065 = vmatprep.mubr.f32.mxu0 0.0
  %3066 = vmatmul.mubr.f32.gmra.mrb[0].mxu0 %v2928
  %v3067 = vpop.f32.mrb[0].mxu0
  %v3068 = vadd.f32 %v2923, %v3067
  %v3069 = vpop.f32.mrb[0].mxu0
  %v3070 = vadd.f32 %v2925, %v3069
  %3071 = vdwg.mxu0
  %v3072 = vld [vmem:[%s6] sm:$0xf]
  %v3074 = vlaneseq
  %v3075 = vshrl.u32 %v3074, 7
  %v3076 = vsub.s32 0, %v3075
  %v3077 = vrot.slane %v3072, %v3076
  %v3078 = vlaneseq
  %v3079 = vshrl.u32 %v3078, 7
  %v3080 = vsub.s32 1, %v3079
  %v3081 = vrot.slane %v3072, %v3080
  %v3082 = vlaneseq
  %v3083 = vshrl.u32 %v3082, 7
  %v3084 = vsub.s32 2, %v3083
  %v3085 = vrot.slane %v3072, %v3084
  %v3086 = vlaneseq
  %v3087 = vshrl.u32 %v3086, 7
  %v3088 = vsub.s32 3, %v3087
  %v3089 = vrot.slane %v3072, %v3088
  %v3094 = vadd.f32 %v2997, %v3077
  %v3095 = vadd.f32 %v2999, %v3081
  %v3096 = vadd.f32 %v3068, %v3085
  %v3097 = vadd.f32 %v3070, %v3089
  %v3098 = vxor.u32 %v3094, 2147483648
  %v3099 = vmul.f32 %v3098, 1.442695
  %v3100 = vpow.pop %v3099
  %v3101 = vadd.f32 %v3100, 1.0
  %v3102 = vrcp.pop %v3101
  %v3103 = vmul.f32 1.0, %v3102
  %v3104 = vxor.u32 %v3095, 2147483648
  %v3105 = vmul.f32 %v3104, 1.442695
  %v3106 = vpow.pop %v3105
  %v3107 = vadd.f32 %v3106, 1.0
  %v3108 = vrcp.pop %v3107
  %v3109 = vmul.f32 1.0, %v3108
  %v3110 = vtanh.pop %v3096
  %v3111 = vxor.u32 %v3097, 2147483648
  %v3112 = vmul.f32 %v3111, 1.442695
  %v3113 = vpow.pop %v3112
  %v3114 = vadd.f32 %v3113, 1.0
  %v3115 = vrcp.pop %v3114
  %v3116 = vmul.f32 1.0, %v3115
  %v3117 = vmul.f32 %v3109, %v2404
  %v3118 = vmul.f32 %v3103, %v3110
  %v3119 = vadd.f32 %v3117, %v3118
  %v3120 = vtanh.pop %v3119
  %v3121 = vmul.f32 %v3116, %v3120
  %3122 = vst [vmem:[%s7 + $0x6] sm:$0x3] %v3121
  %v3123 = vld [vmem:[%s2] sm:$0xff]
  %v3124 = vld [vmem:[%s2 + $0x8] sm:$0xff]
  %v3125 = vld [vmem:[%s2 + $0x10] sm:$0xff]
  %v3126 = vld [vmem:[%s2 + $0x18] sm:$0xff]
  %v3127 = vld [vmem:[%s2 + $0x20] sm:$0xff]
  %v3128 = vld [vmem:[%s2 + $0x28] sm:$0xff]
  %v3129 = vld [vmem:[%s2 + $0x30] sm:$0xff]
  %v3130 = vld [vmem:[%s2 + $0x38] sm:$0xff]
  %v3131 = vld [vmem:[%s2 + $0x40] sm:$0xff]
  %v3132 = vld [vmem:[%s2 + $0x48] sm:$0xff]
  %v3133 = vld [vmem:[%s2 + $0x50] sm:$0xff]
  %v3134 = vld [vmem:[%s2 + $0x58] sm:$0xff]
  %v3135 = vld [vmem:[%s2 + $0x60] sm:$0xff]
  %v3136 = vld [vmem:[%s2 + $0x68] sm:$0xff]
  %v3137 = vld [vmem:[%s2 + $0x70] sm:$0xff]
  %v3138 = vld [vmem:[%s2 + $0x78] sm:$0xff]
  %v3139 = vld [vmem:[%s2 + $0x80] sm:$0xff]
  %v3140 = vld [vmem:[%s2 + $0x88] sm:$0xff]
  %v3141 = vld [vmem:[%s2 + $0x90] sm:$0xff]
  %v3142 = vld [vmem:[%s2 + $0x98] sm:$0xff]
  %v3143 = vld [vmem:[%s2 + $0xa0] sm:$0xff]
  %v3144 = vld [vmem:[%s2 + $0xa8] sm:$0xff]
  %v3145 = vld [vmem:[%s2 + $0xb0] sm:$0xff]
  %v3146 = vld [vmem:[%s2 + $0xb8] sm:$0xff]
  %v3147 = vld [vmem:[%s2 + $0xc0] sm:$0xff]
  %v3148 = vld [vmem:[%s2 + $0xc8] sm:$0xff]
  %v3149 = vld [vmem:[%s2 + $0xd0] sm:$0xff]
  %v3150 = vld [vmem:[%s2 + $0xd8] sm:$0xff]
  %v3151 = vld [vmem:[%s2 + $0xe0] sm:$0xff]
  %v3152 = vld [vmem:[%s2 + $0xe8] sm:$0xff]
  %v3153 = vld [vmem:[%s2 + $0xf0] sm:$0xff]
  %v3154 = vld [vmem:[%s2 + $0xf8] sm:$0xff]
  %v3155 = vld [vmem:[%s2 + $0x100] sm:$0xff]
  %v3156 = vld [vmem:[%s2 + $0x108] sm:$0xff]
  %v3157 = vld [vmem:[%s2 + $0x110] sm:$0xff]
  %v3158 = vld [vmem:[%s2 + $0x118] sm:$0xff]
  %v3159 = vld [vmem:[%s2 + $0x120] sm:$0xff]
  %v3160 = vld [vmem:[%s2 + $0x128] sm:$0xff]
  %v3161 = vld [vmem:[%s2 + $0x130] sm:$0xff]
  %v3162 = vld [vmem:[%s2 + $0x138] sm:$0xff]
  %v3163 = vld [vmem:[%s2 + $0x140] sm:$0xff]
  %v3164 = vld [vmem:[%s2 + $0x148] sm:$0xff]
  %v3165 = vld [vmem:[%s2 + $0x150] sm:$0xff]
  %v3166 = vld [vmem:[%s2 + $0x158] sm:$0xff]
  %v3167 = vld [vmem:[%s2 + $0x160] sm:$0xff]
  %v3168 = vld [vmem:[%s2 + $0x168] sm:$0xff]
  %v3169 = vld [vmem:[%s2 + $0x170] sm:$0xff]
  %v3170 = vld [vmem:[%s2 + $0x178] sm:$0xff]
  %v3171 = vld [vmem:[%s2 + $0x180] sm:$0xff]
  %v3172 = vld [vmem:[%s2 + $0x188] sm:$0xff]
  %v3173 = vld [vmem:[%s2 + $0x190] sm:$0xff]
  %v3174 = vld [vmem:[%s2 + $0x198] sm:$0xff]
  %v3175 = vld [vmem:[%s2 + $0x1a0] sm:$0xff]
  %v3176 = vld [vmem:[%s2 + $0x1a8] sm:$0xff]
  %v3177 = vld [vmem:[%s2 + $0x1b0] sm:$0xff]
  %v3178 = vld [vmem:[%s2 + $0x1b8] sm:$0xff]
  %v3179 = vld [vmem:[%s2 + $0x1c0] sm:$0xff]
  %v3180 = vld [vmem:[%s2 + $0x1c8] sm:$0xff]
  %v3181 = vld [vmem:[%s2 + $0x1d0] sm:$0xff]
  %v3182 = vld [vmem:[%s2 + $0x1d8] sm:$0xff]
  %v3183 = vld [vmem:[%s2 + $0x1e0] sm:$0xff]
  %v3184 = vld [vmem:[%s2 + $0x1e8] sm:$0xff]
  %v3185 = vld [vmem:[%s2 + $0x1f0] sm:$0xff]
  %v3186 = vld [vmem:[%s2 + $0x1f8] sm:$0xff]
  %3187 = vmatprep.subr.mxu0 %v3124
  %3188 = vmatpush1.msra.mxu0 %v3123
  %3189 = vmatprep.subr.mxu0 %v3128
  %3190 = vmatpush1.msra.mxu0 %v3127
  %3191 = vmatprep.subr.mxu0 %v3132
  %3192 = vmatpush1.msra.mxu0 %v3131
  %3193 = vmatprep.subr.mxu0 %v3136
  %3194 = vmatpush1.msra.mxu0 %v3135
  %3195 = vmatprep.subr.mxu0 %v3140
  %3196 = vmatpush1.msra.mxu0 %v3139
  %3197 = vmatprep.subr.mxu0 %v3144
  %3198 = vmatpush1.msra.mxu0 %v3143
  %3199 = vmatprep.subr.mxu0 %v3148
  %3200 = vmatpush1.msra.mxu0 %v3147
  %3201 = vmatprep.subr.mxu0 %v3152
  %3202 = vmatpush1.msra.mxu0 %v3151
  %3203 = vmatprep.subr.mxu0 %v3156
  %3204 = vmatpush1.msra.mxu0 %v3155
  %3205 = vmatprep.subr.mxu0 %v3160
  %3206 = vmatpush1.msra.mxu0 %v3159
  %3207 = vmatprep.subr.mxu0 %v3164
  %3208 = vmatpush1.msra.mxu0 %v3163
  %3209 = vmatprep.subr.mxu0 %v3168
  %3210 = vmatpush1.msra.mxu0 %v3167
  %3211 = vmatprep.subr.mxu0 %v3172
  %3212 = vmatpush1.msra.mxu0 %v3171
  %3213 = vmatprep.subr.mxu0 %v3176
  %3214 = vmatpush1.msra.mxu0 %v3175
  %3215 = vmatprep.subr.mxu0 %v3180
  %3216 = vmatpush1.msra.mxu0 %v3179
  %3217 = vmatprep.subr.mxu0 %v3184
  %3218 = vmatpush1.msra.mxu0 %v3183
  %3219 = vmatprep.subr.mxu0 0.0
  %3220 = vmatpush1.msra.mxu0 0.0
  %3221 = vmatprep.subr.mxu0 0.0
  %3222 = vmatpush1.msra.mxu0 0.0
  %3223 = vmatprep.subr.mxu0 0.0
  %3224 = vmatpush1.msra.mxu0 0.0
  %3225 = vmatprep.subr.mxu0 0.0
  %3226 = vmatpush1.msra.mxu0 0.0
  %3227 = vmatprep.subr.mxu0 0.0
  %3228 = vmatpush1.msra.mxu0 0.0
  %3229 = vmatprep.subr.mxu0 0.0
  %3230 = vmatpush1.msra.mxu0 0.0
  %3231 = vmatprep.subr.mxu0 0.0
  %3232 = vmatpush1.msra.mxu0 0.0
  %3233 = vmatprep.subr.mxu0 0.0
  %3234 = vmatpush1.msra.mxu0 0.0
  %3235 = vmatprep.subr.mxu0 0.0
  %3236 = vmatpush1.msra.mxu0 0.0
  %3237 = vmatprep.subr.mxu0 0.0
  %3238 = vmatpush1.msra.mxu0 0.0
  %3239 = vmatprep.subr.mxu0 0.0
  %3240 = vmatpush1.msra.mxu0 0.0
  %3241 = vmatprep.subr.mxu0 0.0
  %3242 = vmatpush1.msra.mxu0 0.0
  %3243 = vmatprep.subr.mxu0 0.0
  %3244 = vmatpush1.msra.mxu0 0.0
  %3245 = vmatprep.subr.mxu0 0.0
  %3246 = vmatpush1.msra.mxu0 0.0
  %3247 = vmatprep.subr.mxu0 0.0
  %3248 = vmatpush1.msra.mxu0 0.0
  %3249 = vmatprep.subr.mxu0 0.0
  %3250 = vmatpush1.msra.mxu0 0.0
  %3251 = vmatprep.mubr.f32.mxu0 0.0
  %3252 = vmatmul.mubr.f32.gmra.mrb[0].mxu0 %v2928
  %v3253 = vpop.f32.mrb[0].mxu0
  %v3254 = vadd.f32 0.0, %v3253
  %v3255 = vpop.f32.mrb[0].mxu0
  %v3256 = vadd.f32 0.0, %v3255
  %3257 = vdwg.mxu0
  %3258 = vmatprep.subr.mxu0 %v3126
  %3259 = vmatpush1.msra.mxu0 %v3125
  %3260 = vmatprep.subr.mxu0 %v3130
  %3261 = vmatpush1.msra.mxu0 %v3129
  %3262 = vmatprep.subr.mxu0 %v3134
  %3263 = vmatpush1.msra.mxu0 %v3133
  %3264 = vmatprep.subr.mxu0 %v3138
  %3265 = vmatpush1.msra.mxu0 %v3137
  %3266 = vmatprep.subr.mxu0 %v3142
  %3267 = vmatpush1.msra.mxu0 %v3141
  %3268 = vmatprep.subr.mxu0 %v3146
  %3269 = vmatpush1.msra.mxu0 %v3145
  %3270 = vmatprep.subr.mxu0 %v3150
  %3271 = vmatpush1.msra.mxu0 %v3149
  %3272 = vmatprep.subr.mxu0 %v3154
  %3273 = vmatpush1.msra.mxu0 %v3153
  %3274 = vmatprep.subr.mxu0 %v3158
  %3275 = vmatpush1.msra.mxu0 %v3157
  %3276 = vmatprep.subr.mxu0 %v3162
  %3277 = vmatpush1.msra.mxu0 %v3161
  %3278 = vmatprep.subr.mxu0 %v3166
  %3279 = vmatpush1.msra.mxu0 %v3165
  %3280 = vmatprep.subr.mxu0 %v3170
  %3281 = vmatpush1.msra.mxu0 %v3169
  %3282 = vmatprep.subr.mxu0 %v3174
  %3283 = vmatpush1.msra.mxu0 %v3173
  %3284 = vmatprep.subr.mxu0 %v3178
  %3285 = vmatpush1.msra.mxu0 %v3177
  %3286 = vmatprep.subr.mxu0 %v3182
  %3287 = vmatpush1.msra.mxu0 %v3181
  %3288 = vmatprep.subr.mxu0 %v3186
  %3289 = vmatpush1.msra.mxu0 %v3185
  %3290 = vmatprep.subr.mxu0 0.0
  %3291 = vmatpush1.msra.mxu0 0.0
  %3292 = vmatprep.subr.mxu0 0.0
  %3293 = vmatpush1.msra.mxu0 0.0
  %3294 = vmatprep.subr.mxu0 0.0
  %3295 = vmatpush1.msra.mxu0 0.0
  %3296 = vmatprep.subr.mxu0 0.0
  %3297 = vmatpush1.msra.mxu0 0.0
  %3298 = vmatprep.subr.mxu0 0.0
  %3299 = vmatpush1.msra.mxu0 0.0
  %3300 = vmatprep.subr.mxu0 0.0
  %3301 = vmatpush1.msra.mxu0 0.0
  %3302 = vmatprep.subr.mxu0 0.0
  %3303 = vmatpush1.msra.mxu0 0.0
  %3304 = vmatprep.subr.mxu0 0.0
  %3305 = vmatpush1.msra.mxu0 0.0
  %3306 = vmatprep.subr.mxu0 0.0
  %3307 = vmatpush1.msra.mxu0 0.0
  %3308 = vmatprep.subr.mxu0 0.0
  %3309 = vmatpush1.msra.mxu0 0.0
  %3310 = vmatprep.subr.mxu0 0.0
  %3311 = vmatpush1.msra.mxu0 0.0
  %3312 = vmatprep.subr.mxu0 0.0
  %3313 = vmatpush1.msra.mxu0 0.0
  %3314 = vmatprep.subr.mxu0 0.0
  %3315 = vmatpush1.msra.mxu0 0.0
  %3316 = vmatprep.subr.mxu0 0.0
  %3317 = vmatpush1.msra.mxu0 0.0
  %3318 = vmatprep.subr.mxu0 0.0
  %3319 = vmatpush1.msra.mxu0 0.0
  %3320 = vmatprep.subr.mxu0 0.0
  %3321 = vmatpush1.msra.mxu0 0.0
  %3322 = vmatprep.mubr.f32.mxu0 0.0
  %3323 = vmatmul.mubr.f32.gmra.mrb[0].mxu0 %v2928
  %v3324 = vpop.f32.mrb[0].mxu0
  %v3325 = vadd.f32 0.0, %v3324
  %v3326 = vpop.f32.mrb[0].mxu0
  %v3327 = vadd.f32 0.0, %v3326
  %3328 = vdwg.mxu0
  %v3329 = vadd.f32 %v188, %v3254
  %v3330 = vadd.f32 %v190, %v3256
  %v3331 = vadd.f32 %v271, %v3325
  %v3332 = vadd.f32 %v273, %v3327
  %v3333 = vxor.u32 %v3329, 2147483648
  %v3334 = vmul.f32 %v3333, 1.442695
  %v3335 = vpow.pop %v3334
  %v3336 = vadd.f32 %v3335, 1.0
  %v3337 = vrcp.pop %v3336
  %v3338 = vmul.f32 1.0, %v3337
  %v3339 = vxor.u32 %v3330, 2147483648
  %v3340 = vmul.f32 %v3339, 1.442695
  %v3341 = vpow.pop %v3340
  %v3342 = vadd.f32 %v3341, 1.0
  %v3343 = vrcp.pop %v3342
  %v3344 = vmul.f32 1.0, %v3343
  %v3345 = vtanh.pop %v3331
  %v3346 = vxor.u32 %v3332, 2147483648
  %v3347 = vmul.f32 %v3346, 1.442695
  %v3348 = vpow.pop %v3347
  %v3349 = vadd.f32 %v3348, 1.0
  %v3350 = vrcp.pop %v3349
  %v3351 = vmul.f32 1.0, %v3350
  %v3353 = vrot.slane %v2654, 6
  %v3355 = vmul.f32 %v3344, %v3353
  %v3356 = vmul.f32 %v3338, %v3345
  %v3357 = vadd.f32 %v3355, %v3356
  %v3358 = vtanh.pop %v3357
  %v3359 = vmul.f32 %v3351, %v3358
  %v3360 = vld [vmem:[%s5] sm:$0xff]
  %v3361 = vld [vmem:[%s5 + $0x8] sm:$0xff]
  %v3362 = vld [vmem:[%s5 + $0x10] sm:$0xff]
  %v3363 = vld [vmem:[%s5 + $0x18] sm:$0xff]
  %v3364 = vld [vmem:[%s5 + $0x20] sm:$0xff]
  %v3365 = vld [vmem:[%s5 + $0x28] sm:$0xff]
  %v3366 = vld [vmem:[%s5 + $0x30] sm:$0xff]
  %v3367 = vld [vmem:[%s5 + $0x38] sm:$0xff]
  %v3368 = vld [vmem:[%s5 + $0x40] sm:$0xff]
  %v3369 = vld [vmem:[%s5 + $0x48] sm:$0xff]
  %v3370 = vld [vmem:[%s5 + $0x50] sm:$0xff]
  %v3371 = vld [vmem:[%s5 + $0x58] sm:$0xff]
  %v3372 = vld [vmem:[%s5 + $0x60] sm:$0xff]
  %v3373 = vld [vmem:[%s5 + $0x68] sm:$0xff]
  %v3374 = vld [vmem:[%s5 + $0x70] sm:$0xff]
  %v3375 = vld [vmem:[%s5 + $0x78] sm:$0xff]
  %v3376 = vld [vmem:[%s5 + $0x80] sm:$0xff]
  %v3377 = vld [vmem:[%s5 + $0x88] sm:$0xff]
  %v3378 = vld [vmem:[%s5 + $0x90] sm:$0xff]
  %v3379 = vld [vmem:[%s5 + $0x98] sm:$0xff]
  %v3380 = vld [vmem:[%s5 + $0xa0] sm:$0xff]
  %v3381 = vld [vmem:[%s5 + $0xa8] sm:$0xff]
  %v3382 = vld [vmem:[%s5 + $0xb0] sm:$0xff]
  %v3383 = vld [vmem:[%s5 + $0xb8] sm:$0xff]
  %v3384 = vld [vmem:[%s5 + $0xc0] sm:$0xff]
  %v3385 = vld [vmem:[%s5 + $0xc8] sm:$0xff]
  %v3386 = vld [vmem:[%s5 + $0xd0] sm:$0xff]
  %v3387 = vld [vmem:[%s5 + $0xd8] sm:$0xff]
  %v3388 = vld [vmem:[%s5 + $0xe0] sm:$0xff]
  %v3389 = vld [vmem:[%s5 + $0xe8] sm:$0xff]
  %v3390 = vld [vmem:[%s5 + $0xf0] sm:$0xff]
  %v3391 = vld [vmem:[%s5 + $0xf8] sm:$0xff]
  %v3392 = vld [vmem:[%s5 + $0x100] sm:$0xff]
  %v3393 = vld [vmem:[%s5 + $0x108] sm:$0xff]
  %v3394 = vld [vmem:[%s5 + $0x110] sm:$0xff]
  %v3395 = vld [vmem:[%s5 + $0x118] sm:$0xff]
  %v3396 = vld [vmem:[%s5 + $0x120] sm:$0xff]
  %v3397 = vld [vmem:[%s5 + $0x128] sm:$0xff]
  %v3398 = vld [vmem:[%s5 + $0x130] sm:$0xff]
  %v3399 = vld [vmem:[%s5 + $0x138] sm:$0xff]
  %v3400 = vld [vmem:[%s5 + $0x140] sm:$0xff]
  %v3401 = vld [vmem:[%s5 + $0x148] sm:$0xff]
  %v3402 = vld [vmem:[%s5 + $0x150] sm:$0xff]
  %v3403 = vld [vmem:[%s5 + $0x158] sm:$0xff]
  %v3404 = vld [vmem:[%s5 + $0x160] sm:$0xff]
  %v3405 = vld [vmem:[%s5 + $0x168] sm:$0xff]
  %v3406 = vld [vmem:[%s5 + $0x170] sm:$0xff]
  %v3407 = vld [vmem:[%s5 + $0x178] sm:$0xff]
  %v3408 = vld [vmem:[%s5 + $0x180] sm:$0xff]
  %v3409 = vld [vmem:[%s5 + $0x188] sm:$0xff]
  %v3410 = vld [vmem:[%s5 + $0x190] sm:$0xff]
  %v3411 = vld [vmem:[%s5 + $0x198] sm:$0xff]
  %v3412 = vld [vmem:[%s5 + $0x1a0] sm:$0xff]
  %v3413 = vld [vmem:[%s5 + $0x1a8] sm:$0xff]
  %v3414 = vld [vmem:[%s5 + $0x1b0] sm:$0xff]
  %v3415 = vld [vmem:[%s5 + $0x1b8] sm:$0xff]
  %v3416 = vld [vmem:[%s5 + $0x1c0] sm:$0xff]
  %v3417 = vld [vmem:[%s5 + $0x1c8] sm:$0xff]
  %v3418 = vld [vmem:[%s5 + $0x1d0] sm:$0xff]
  %v3419 = vld [vmem:[%s5 + $0x1d8] sm:$0xff]
  %v3420 = vld [vmem:[%s5 + $0x1e0] sm:$0xff]
  %v3421 = vld [vmem:[%s5 + $0x1e8] sm:$0xff]
  %v3422 = vld [vmem:[%s5 + $0x1f0] sm:$0xff]
  %v3423 = vld [vmem:[%s5 + $0x1f8] sm:$0xff]
  %v3424 = vld [vmem:[%s4] sm:$0xff]
  %v3425 = vld [vmem:[%s4 + $0x8] sm:$0xff]
  %v3426 = vld [vmem:[%s4 + $0x10] sm:$0xff]
  %v3427 = vld [vmem:[%s4 + $0x18] sm:$0xff]
  %v3428 = vld [vmem:[%s4 + $0x20] sm:$0xff]
  %v3429 = vld [vmem:[%s4 + $0x28] sm:$0xff]
  %v3430 = vld [vmem:[%s4 + $0x30] sm:$0xff]
  %v3431 = vld [vmem:[%s4 + $0x38] sm:$0xff]
  %v3432 = vld [vmem:[%s4 + $0x40] sm:$0xff]
  %v3433 = vld [vmem:[%s4 + $0x48] sm:$0xff]
  %v3434 = vld [vmem:[%s4 + $0x50] sm:$0xff]
  %v3435 = vld [vmem:[%s4 + $0x58] sm:$0xff]
  %v3436 = vld [vmem:[%s4 + $0x60] sm:$0xff]
  %v3437 = vld [vmem:[%s4 + $0x68] sm:$0xff]
  %v3438 = vld [vmem:[%s4 + $0x70] sm:$0xff]
  %v3439 = vld [vmem:[%s4 + $0x78] sm:$0xff]
  %v3440 = vld [vmem:[%s4 + $0x80] sm:$0xff]
  %v3441 = vld [vmem:[%s4 + $0x88] sm:$0xff]
  %v3442 = vld [vmem:[%s4 + $0x90] sm:$0xff]
  %v3443 = vld [vmem:[%s4 + $0x98] sm:$0xff]
  %v3444 = vld [vmem:[%s4 + $0xa0] sm:$0xff]
  %v3445 = vld [vmem:[%s4 + $0xa8] sm:$0xff]
  %v3446 = vld [vmem:[%s4 + $0xb0] sm:$0xff]
  %v3447 = vld [vmem:[%s4 + $0xb8] sm:$0xff]
  %v3448 = vld [vmem:[%s4 + $0xc0] sm:$0xff]
  %v3449 = vld [vmem:[%s4 + $0xc8] sm:$0xff]
  %v3450 = vld [vmem:[%s4 + $0xd0] sm:$0xff]
  %v3451 = vld [vmem:[%s4 + $0xd8] sm:$0xff]
  %v3452 = vld [vmem:[%s4 + $0xe0] sm:$0xff]
  %v3453 = vld [vmem:[%s4 + $0xe8] sm:$0xff]
  %v3454 = vld [vmem:[%s4 + $0xf0] sm:$0xff]
  %v3455 = vld [vmem:[%s4 + $0xf8] sm:$0xff]
  %v3456 = vld [vmem:[%s4 + $0x100] sm:$0xff]
  %v3457 = vld [vmem:[%s4 + $0x108] sm:$0xff]
  %v3458 = vld [vmem:[%s4 + $0x110] sm:$0xff]
  %v3459 = vld [vmem:[%s4 + $0x118] sm:$0xff]
  %v3460 = vld [vmem:[%s4 + $0x120] sm:$0xff]
  %v3461 = vld [vmem:[%s4 + $0x128] sm:$0xff]
  %v3462 = vld [vmem:[%s4 + $0x130] sm:$0xff]
  %v3463 = vld [vmem:[%s4 + $0x138] sm:$0xff]
  %v3464 = vld [vmem:[%s4 + $0x140] sm:$0xff]
  %v3465 = vld [vmem:[%s4 + $0x148] sm:$0xff]
  %v3466 = vld [vmem:[%s4 + $0x150] sm:$0xff]
  %v3467 = vld [vmem:[%s4 + $0x158] sm:$0xff]
  %v3468 = vld [vmem:[%s4 + $0x160] sm:$0xff]
  %v3469 = vld [vmem:[%s4 + $0x168] sm:$0xff]
  %v3470 = vld [vmem:[%s4 + $0x170] sm:$0xff]
  %v3471 = vld [vmem:[%s4 + $0x178] sm:$0xff]
  %v3472 = vld [vmem:[%s4 + $0x180] sm:$0xff]
  %v3473 = vld [vmem:[%s4 + $0x188] sm:$0xff]
  %v3474 = vld [vmem:[%s4 + $0x190] sm:$0xff]
  %v3475 = vld [vmem:[%s4 + $0x198] sm:$0xff]
  %v3476 = vld [vmem:[%s4 + $0x1a0] sm:$0xff]
  %v3477 = vld [vmem:[%s4 + $0x1a8] sm:$0xff]
  %v3478 = vld [vmem:[%s4 + $0x1b0] sm:$0xff]
  %v3479 = vld [vmem:[%s4 + $0x1b8] sm:$0xff]
  %v3480 = vld [vmem:[%s4 + $0x1c0] sm:$0xff]
  %v3481 = vld [vmem:[%s4 + $0x1c8] sm:$0xff]
  %v3482 = vld [vmem:[%s4 + $0x1d0] sm:$0xff]
  %v3483 = vld [vmem:[%s4 + $0x1d8] sm:$0xff]
  %v3484 = vld [vmem:[%s4 + $0x1e0] sm:$0xff]
  %v3485 = vld [vmem:[%s4 + $0x1e8] sm:$0xff]
  %v3486 = vld [vmem:[%s4 + $0x1f0] sm:$0xff]
  %v3487 = vld [vmem:[%s4 + $0x1f8] sm:$0xff]
  %3488 = vmatprep.subr.mxu0 %v3361
  %3489 = vmatpush1.msra.mxu0 %v3360
  %3490 = vmatprep.subr.mxu0 %v3365
  %3491 = vmatpush1.msra.mxu0 %v3364
  %3492 = vmatprep.subr.mxu0 %v3369
  %3493 = vmatpush1.msra.mxu0 %v3368
  %3494 = vmatprep.subr.mxu0 %v3373
  %3495 = vmatpush1.msra.mxu0 %v3372
  %3496 = vmatprep.subr.mxu0 %v3377
  %3497 = vmatpush1.msra.mxu0 %v3376
  %3498 = vmatprep.subr.mxu0 %v3381
  %3499 = vmatpush1.msra.mxu0 %v3380
  %3500 = vmatprep.subr.mxu0 %v3385
  %3501 = vmatpush1.msra.mxu0 %v3384
  %3502 = vmatprep.subr.mxu0 %v3389
  %3503 = vmatpush1.msra.mxu0 %v3388
  %3504 = vmatprep.subr.mxu0 %v3393
  %3505 = vmatpush1.msra.mxu0 %v3392
  %3506 = vmatprep.subr.mxu0 %v3397
  %3507 = vmatpush1.msra.mxu0 %v3396
  %3508 = vmatprep.subr.mxu0 %v3401
  %3509 = vmatpush1.msra.mxu0 %v3400
  %3510 = vmatprep.subr.mxu0 %v3405
  %3511 = vmatpush1.msra.mxu0 %v3404
  %3512 = vmatprep.subr.mxu0 %v3409
  %3513 = vmatpush1.msra.mxu0 %v3408
  %3514 = vmatprep.subr.mxu0 %v3413
  %3515 = vmatpush1.msra.mxu0 %v3412
  %3516 = vmatprep.subr.mxu0 %v3417
  %3517 = vmatpush1.msra.mxu0 %v3416
  %3518 = vmatprep.subr.mxu0 %v3421
  %3519 = vmatpush1.msra.mxu0 %v3420
  %3520 = vmatprep.subr.mxu0 0.0
  %3521 = vmatpush1.msra.mxu0 0.0
  %3522 = vmatprep.subr.mxu0 0.0
  %3523 = vmatpush1.msra.mxu0 0.0
  %3524 = vmatprep.subr.mxu0 0.0
  %3525 = vmatpush1.msra.mxu0 0.0
  %3526 = vmatprep.subr.mxu0 0.0
  %3527 = vmatpush1.msra.mxu0 0.0
  %3528 = vmatprep.subr.mxu0 0.0
  %3529 = vmatpush1.msra.mxu0 0.0
  %3530 = vmatprep.subr.mxu0 0.0
  %3531 = vmatpush1.msra.mxu0 0.0
  %3532 = vmatprep.subr.mxu0 0.0
  %3533 = vmatpush1.msra.mxu0 0.0
  %3534 = vmatprep.subr.mxu0 0.0
  %3535 = vmatpush1.msra.mxu0 0.0
  %3536 = vmatprep.subr.mxu0 0.0
  %3537 = vmatpush1.msra.mxu0 0.0
  %3538 = vmatprep.subr.mxu0 0.0
  %3539 = vmatpush1.msra.mxu0 0.0
  %3540 = vmatprep.subr.mxu0 0.0
  %3541 = vmatpush1.msra.mxu0 0.0
  %3542 = vmatprep.subr.mxu0 0.0
  %3543 = vmatpush1.msra.mxu0 0.0
  %3544 = vmatprep.subr.mxu0 0.0
  %3545 = vmatpush1.msra.mxu0 0.0
  %3546 = vmatprep.subr.mxu0 0.0
  %3547 = vmatpush1.msra.mxu0 0.0
  %3548 = vmatprep.subr.mxu0 0.0
  %3549 = vmatpush1.msra.mxu0 0.0
  %3550 = vmatprep.subr.mxu0 0.0
  %3551 = vmatpush1.msra.mxu0 0.0
  %3552 = vmatprep.mubr.f32.mxu0 0.0
  %3553 = vmatmul.mubr.f32.gmra.mrb[0].mxu0 %v3121
  %v3554 = vpop.f32.mrb[0].mxu0
  %v3555 = vadd.f32 0.0, %v3554
  %v3556 = vpop.f32.mrb[0].mxu0
  %v3557 = vadd.f32 0.0, %v3556
  %3558 = vdwg.mxu0
  %3559 = vmatprep.subr.mxu0 %v3363
  %3560 = vmatpush1.msra.mxu0 %v3362
  %3561 = vmatprep.subr.mxu0 %v3367
  %3562 = vmatpush1.msra.mxu0 %v3366
  %3563 = vmatprep.subr.mxu0 %v3371
  %3564 = vmatpush1.msra.mxu0 %v3370
  %3565 = vmatprep.subr.mxu0 %v3375
  %3566 = vmatpush1.msra.mxu0 %v3374
  %3567 = vmatprep.subr.mxu0 %v3379
  %3568 = vmatpush1.msra.mxu0 %v3378
  %3569 = vmatprep.subr.mxu0 %v3383
  %3570 = vmatpush1.msra.mxu0 %v3382
  %3571 = vmatprep.subr.mxu0 %v3387
  %3572 = vmatpush1.msra.mxu0 %v3386
  %3573 = vmatprep.subr.mxu0 %v3391
  %3574 = vmatpush1.msra.mxu0 %v3390
  %3575 = vmatprep.subr.mxu0 %v3395
  %3576 = vmatpush1.msra.mxu0 %v3394
  %3577 = vmatprep.subr.mxu0 %v3399
  %3578 = vmatpush1.msra.mxu0 %v3398
  %3579 = vmatprep.subr.mxu0 %v3403
  %3580 = vmatpush1.msra.mxu0 %v3402
  %3581 = vmatprep.subr.mxu0 %v3407
  %3582 = vmatpush1.msra.mxu0 %v3406
  %3583 = vmatprep.subr.mxu0 %v3411
  %3584 = vmatpush1.msra.mxu0 %v3410
  %3585 = vmatprep.subr.mxu0 %v3415
  %3586 = vmatpush1.msra.mxu0 %v3414
  %3587 = vmatprep.subr.mxu0 %v3419
  %3588 = vmatpush1.msra.mxu0 %v3418
  %3589 = vmatprep.subr.mxu0 %v3423
  %3590 = vmatpush1.msra.mxu0 %v3422
  %3591 = vmatprep.subr.mxu0 0.0
  %3592 = vmatpush1.msra.mxu0 0.0
  %3593 = vmatprep.subr.mxu0 0.0
  %3594 = vmatpush1.msra.mxu0 0.0
  %3595 = vmatprep.subr.mxu0 0.0
  %3596 = vmatpush1.msra.mxu0 0.0
  %3597 = vmatprep.subr.mxu0 0.0
  %3598 = vmatpush1.msra.mxu0 0.0
  %3599 = vmatprep.subr.mxu0 0.0
  %3600 = vmatpush1.msra.mxu0 0.0
  %3601 = vmatprep.subr.mxu0 0.0
  %3602 = vmatpush1.msra.mxu0 0.0
  %3603 = vmatprep.subr.mxu0 0.0
  %3604 = vmatpush1.msra.mxu0 0.0
  %3605 = vmatprep.subr.mxu0 0.0
  %3606 = vmatpush1.msra.mxu0 0.0
  %3607 = vmatprep.subr.mxu0 0.0
  %3608 = vmatpush1.msra.mxu0 0.0
  %3609 = vmatprep.subr.mxu0 0.0
  %3610 = vmatpush1.msra.mxu0 0.0
  %3611 = vmatprep.subr.mxu0 0.0
  %3612 = vmatpush1.msra.mxu0 0.0
  %3613 = vmatprep.subr.mxu0 0.0
  %3614 = vmatpush1.msra.mxu0 0.0
  %3615 = vmatprep.subr.mxu0 0.0
  %3616 = vmatpush1.msra.mxu0 0.0
  %3617 = vmatprep.subr.mxu0 0.0
  %3618 = vmatpush1.msra.mxu0 0.0
  %3619 = vmatprep.subr.mxu0 0.0
  %3620 = vmatpush1.msra.mxu0 0.0
  %3621 = vmatprep.subr.mxu0 0.0
  %3622 = vmatpush1.msra.mxu0 0.0
  %3623 = vmatprep.mubr.f32.mxu0 0.0
  %3624 = vmatmul.mubr.f32.gmra.mrb[0].mxu0 %v3121
  %v3625 = vpop.f32.mrb[0].mxu0
  %v3626 = vadd.f32 0.0, %v3625
  %v3627 = vpop.f32.mrb[0].mxu0
  %v3628 = vadd.f32 0.0, %v3627
  %3629 = vdwg.mxu0
  %3630 = vmatprep.subr.mxu0 %v3425
  %3631 = vmatpush1.msra.mxu0 %v3424
  %3632 = vmatprep.subr.mxu0 %v3429
  %3633 = vmatpush1.msra.mxu0 %v3428
  %3634 = vmatprep.subr.mxu0 %v3433
  %3635 = vmatpush1.msra.mxu0 %v3432
  %3636 = vmatprep.subr.mxu0 %v3437
  %3637 = vmatpush1.msra.mxu0 %v3436
  %3638 = vmatprep.subr.mxu0 %v3441
  %3639 = vmatpush1.msra.mxu0 %v3440
  %3640 = vmatprep.subr.mxu0 %v3445
  %3641 = vmatpush1.msra.mxu0 %v3444
  %3642 = vmatprep.subr.mxu0 %v3449
  %3643 = vmatpush1.msra.mxu0 %v3448
  %3644 = vmatprep.subr.mxu0 %v3453
  %3645 = vmatpush1.msra.mxu0 %v3452
  %3646 = vmatprep.subr.mxu0 %v3457
  %3647 = vmatpush1.msra.mxu0 %v3456
  %3648 = vmatprep.subr.mxu0 %v3461
  %3649 = vmatpush1.msra.mxu0 %v3460
  %3650 = vmatprep.subr.mxu0 %v3465
  %3651 = vmatpush1.msra.mxu0 %v3464
  %3652 = vmatprep.subr.mxu0 %v3469
  %3653 = vmatpush1.msra.mxu0 %v3468
  %3654 = vmatprep.subr.mxu0 %v3473
  %3655 = vmatpush1.msra.mxu0 %v3472
  %3656 = vmatprep.subr.mxu0 %v3477
  %3657 = vmatpush1.msra.mxu0 %v3476
  %3658 = vmatprep.subr.mxu0 %v3481
  %3659 = vmatpush1.msra.mxu0 %v3480
  %3660 = vmatprep.subr.mxu0 %v3485
  %3661 = vmatpush1.msra.mxu0 %v3484
  %3662 = vmatprep.subr.mxu0 0.0
  %3663 = vmatpush1.msra.mxu0 0.0
  %3664 = vmatprep.subr.mxu0 0.0
  %3665 = vmatpush1.msra.mxu0 0.0
  %3666 = vmatprep.subr.mxu0 0.0
  %3667 = vmatpush1.msra.mxu0 0.0
  %3668 = vmatprep.subr.mxu0 0.0
  %3669 = vmatpush1.msra.mxu0 0.0
  %3670 = vmatprep.subr.mxu0 0.0
  %3671 = vmatpush1.msra.mxu0 0.0
  %3672 = vmatprep.subr.mxu0 0.0
  %3673 = vmatpush1.msra.mxu0 0.0
  %3674 = vmatprep.subr.mxu0 0.0
  %3675 = vmatpush1.msra.mxu0 0.0
  %3676 = vmatprep.subr.mxu0 0.0
  %3677 = vmatpush1.msra.mxu0 0.0
  %3678 = vmatprep.subr.mxu0 0.0
  %3679 = vmatpush1.msra.mxu0 0.0
  %3680 = vmatprep.subr.mxu0 0.0
  %3681 = vmatpush1.msra.mxu0 0.0
  %3682 = vmatprep.subr.mxu0 0.0
  %3683 = vmatpush1.msra.mxu0 0.0
  %3684 = vmatprep.subr.mxu0 0.0
  %3685 = vmatpush1.msra.mxu0 0.0
  %3686 = vmatprep.subr.mxu0 0.0
  %3687 = vmatpush1.msra.mxu0 0.0
  %3688 = vmatprep.subr.mxu0 0.0
  %3689 = vmatpush1.msra.mxu0 0.0
  %3690 = vmatprep.subr.mxu0 0.0
  %3691 = vmatpush1.msra.mxu0 0.0
  %3692 = vmatprep.subr.mxu0 0.0
  %3693 = vmatpush1.msra.mxu0 0.0
  %3694 = vmatprep.mubr.f32.mxu0 0.0
  %3695 = vmatmul.mubr.f32.gmra.mrb[0].mxu0 %v3359
  %v3696 = vpop.f32.mrb[0].mxu0
  %v3697 = vadd.f32 %v3555, %v3696
  %v3698 = vpop.f32.mrb[0].mxu0
  %v3699 = vadd.f32 %v3557, %v3698
  %3700 = vdwg.mxu0
  %3701 = vmatprep.subr.mxu0 %v3427
  %3702 = vmatpush1.msra.mxu0 %v3426
  %3703 = vmatprep.subr.mxu0 %v3431
  %3704 = vmatpush1.msra.mxu0 %v3430
  %3705 = vmatprep.subr.mxu0 %v3435
  %3706 = vmatpush1.msra.mxu0 %v3434
  %3707 = vmatprep.subr.mxu0 %v3439
  %3708 = vmatpush1.msra.mxu0 %v3438
  %3709 = vmatprep.subr.mxu0 %v3443
  %3710 = vmatpush1.msra.mxu0 %v3442
  %3711 = vmatprep.subr.mxu0 %v3447
  %3712 = vmatpush1.msra.mxu0 %v3446
  %3713 = vmatprep.subr.mxu0 %v3451
  %3714 = vmatpush1.msra.mxu0 %v3450
  %3715 = vmatprep.subr.mxu0 %v3455
  %3716 = vmatpush1.msra.mxu0 %v3454
  %3717 = vmatprep.subr.mxu0 %v3459
  %3718 = vmatpush1.msra.mxu0 %v3458
  %3719 = vmatprep.subr.mxu0 %v3463
  %3720 = vmatpush1.msra.mxu0 %v3462
  %3721 = vmatprep.subr.mxu0 %v3467
  %3722 = vmatpush1.msra.mxu0 %v3466
  %3723 = vmatprep.subr.mxu0 %v3471
  %3724 = vmatpush1.msra.mxu0 %v3470
  %3725 = vmatprep.subr.mxu0 %v3475
  %3726 = vmatpush1.msra.mxu0 %v3474
  %3727 = vmatprep.subr.mxu0 %v3479
  %3728 = vmatpush1.msra.mxu0 %v3478
  %3729 = vmatprep.subr.mxu0 %v3483
  %3730 = vmatpush1.msra.mxu0 %v3482
  %3731 = vmatprep.subr.mxu0 %v3487
  %3732 = vmatpush1.msra.mxu0 %v3486
  %3733 = vmatprep.subr.mxu0 0.0
  %3734 = vmatpush1.msra.mxu0 0.0
  %3735 = vmatprep.subr.mxu0 0.0
  %3736 = vmatpush1.msra.mxu0 0.0
  %3737 = vmatprep.subr.mxu0 0.0
  %3738 = vmatpush1.msra.mxu0 0.0
  %3739 = vmatprep.subr.mxu0 0.0
  %3740 = vmatpush1.msra.mxu0 0.0
  %3741 = vmatprep.subr.mxu0 0.0
  %3742 = vmatpush1.msra.mxu0 0.0
  %3743 = vmatprep.subr.mxu0 0.0
  %3744 = vmatpush1.msra.mxu0 0.0
  %3745 = vmatprep.subr.mxu0 0.0
  %3746 = vmatpush1.msra.mxu0 0.0
  %3747 = vmatprep.subr.mxu0 0.0
  %3748 = vmatpush1.msra.mxu0 0.0
  %3749 = vmatprep.subr.mxu0 0.0
  %3750 = vmatpush1.msra.mxu0 0.0
  %3751 = vmatprep.subr.mxu0 0.0
  %3752 = vmatpush1.msra.mxu0 0.0
  %3753 = vmatprep.subr.mxu0 0.0
  %3754 = vmatpush1.msra.mxu0 0.0
  %3755 = vmatprep.subr.mxu0 0.0
  %3756 = vmatpush1.msra.mxu0 0.0
  %3757 = vmatprep.subr.mxu0 0.0
  %3758 = vmatpush1.msra.mxu0 0.0
  %3759 = vmatprep.subr.mxu0 0.0
  %3760 = vmatpush1.msra.mxu0 0.0
  %3761 = vmatprep.subr.mxu0 0.0
  %3762 = vmatpush1.msra.mxu0 0.0
  %3763 = vmatprep.subr.mxu0 0.0
  %3764 = vmatpush1.msra.mxu0 0.0
  %3765 = vmatprep.mubr.f32.mxu0 0.0
  %3766 = vmatmul.mubr.f32.gmra.mrb[0].mxu0 %v3359
  %v3767 = vpop.f32.mrb[0].mxu0
  %v3768 = vadd.f32 %v3626, %v3767
  %v3769 = vpop.f32.mrb[0].mxu0
  %v3770 = vadd.f32 %v3628, %v3769
  %3771 = vdwg.mxu0
  %v3772 = vld [vmem:[%s6] sm:$0xf]
  %v3774 = vlaneseq
  %v3775 = vshrl.u32 %v3774, 7
  %v3776 = vsub.s32 0, %v3775
  %v3777 = vrot.slane %v3772, %v3776
  %v3778 = vlaneseq
  %v3779 = vshrl.u32 %v3778, 7
  %v3780 = vsub.s32 1, %v3779
  %v3781 = vrot.slane %v3772, %v3780
  %v3782 = vlaneseq
  %v3783 = vshrl.u32 %v3782, 7
  %v3784 = vsub.s32 2, %v3783
  %v3785 = vrot.slane %v3772, %v3784
  %v3786 = vlaneseq
  %v3787 = vshrl.u32 %v3786, 7
  %v3788 = vsub.s32 3, %v3787
  %v3789 = vrot.slane %v3772, %v3788
  %v3794 = vadd.f32 %v3697, %v3777
  %v3795 = vadd.f32 %v3699, %v3781
  %v3796 = vadd.f32 %v3768, %v3785
  %v3797 = vadd.f32 %v3770, %v3789
  %v3798 = vxor.u32 %v3794, 2147483648
  %v3799 = vmul.f32 %v3798, 1.442695
  %v3800 = vpow.pop %v3799
  %v3801 = vadd.f32 %v3800, 1.0
  %v3802 = vrcp.pop %v3801
  %v3803 = vmul.f32 1.0, %v3802
  %v3804 = vxor.u32 %v3795, 2147483648
  %v3805 = vmul.f32 %v3804, 1.442695
  %v3806 = vpow.pop %v3805
  %v3807 = vadd.f32 %v3806, 1.0
  %v3808 = vrcp.pop %v3807
  %v3809 = vmul.f32 1.0, %v3808
  %v3810 = vtanh.pop %v3796
  %v3811 = vxor.u32 %v3797, 2147483648
  %v3812 = vmul.f32 %v3811, 1.442695
  %v3813 = vpow.pop %v3812
  %v3814 = vadd.f32 %v3813, 1.0
  %v3815 = vrcp.pop %v3814
  %v3816 = vmul.f32 1.0, %v3815
  %v3817 = vmul.f32 %v3809, %v3119
  %v3818 = vmul.f32 %v3803, %v3810
  %v3819 = vadd.f32 %v3817, %v3818
  %v3820 = vtanh.pop %v3819
  %v3821 = vmul.f32 %v3816, %v3820
  %3822 = vst [vmem:[%s7 + $0x8] sm:$0x3] %v3821
  %v3823 = vld [vmem:[%s2] sm:$0xff]
  %v3824 = vld [vmem:[%s2 + $0x8] sm:$0xff]
  %v3825 = vld [vmem:[%s2 + $0x10] sm:$0xff]
  %v3826 = vld [vmem:[%s2 + $0x18] sm:$0xff]
  %v3827 = vld [vmem:[%s2 + $0x20] sm:$0xff]
  %v3828 = vld [vmem:[%s2 + $0x28] sm:$0xff]
  %v3829 = vld [vmem:[%s2 + $0x30] sm:$0xff]
  %v3830 = vld [vmem:[%s2 + $0x38] sm:$0xff]
  %v3831 = vld [vmem:[%s2 + $0x40] sm:$0xff]
  %v3832 = vld [vmem:[%s2 + $0x48] sm:$0xff]
  %v3833 = vld [vmem:[%s2 + $0x50] sm:$0xff]
  %v3834 = vld [vmem:[%s2 + $0x58] sm:$0xff]
  %v3835 = vld [vmem:[%s2 + $0x60] sm:$0xff]
  %v3836 = vld [vmem:[%s2 + $0x68] sm:$0xff]
  %v3837 = vld [vmem:[%s2 + $0x70] sm:$0xff]
  %v3838 = vld [vmem:[%s2 + $0x78] sm:$0xff]
  %v3839 = vld [vmem:[%s2 + $0x80] sm:$0xff]
  %v3840 = vld [vmem:[%s2 + $0x88] sm:$0xff]
  %v3841 = vld [vmem:[%s2 + $0x90] sm:$0xff]
  %v3842 = vld [vmem:[%s2 + $0x98] sm:$0xff]
  %v3843 = vld [vmem:[%s2 + $0xa0] sm:$0xff]
  %v3844 = vld [vmem:[%s2 + $0xa8] sm:$0xff]
  %v3845 = vld [vmem:[%s2 + $0xb0] sm:$0xff]
  %v3846 = vld [vmem:[%s2 + $0xb8] sm:$0xff]
  %v3847 = vld [vmem:[%s2 + $0xc0] sm:$0xff]
  %v3848 = vld [vmem:[%s2 + $0xc8] sm:$0xff]
  %v3849 = vld [vmem:[%s2 + $0xd0] sm:$0xff]
  %v3850 = vld [vmem:[%s2 + $0xd8] sm:$0xff]
  %v3851 = vld [vmem:[%s2 + $0xe0] sm:$0xff]
  %v3852 = vld [vmem:[%s2 + $0xe8] sm:$0xff]
  %v3853 = vld [vmem:[%s2 + $0xf0] sm:$0xff]
  %v3854 = vld [vmem:[%s2 + $0xf8] sm:$0xff]
  %v3855 = vld [vmem:[%s2 + $0x100] sm:$0xff]
  %v3856 = vld [vmem:[%s2 + $0x108] sm:$0xff]
  %v3857 = vld [vmem:[%s2 + $0x110] sm:$0xff]
  %v3858 = vld [vmem:[%s2 + $0x118] sm:$0xff]
  %v3859 = vld [vmem:[%s2 + $0x120] sm:$0xff]
  %v3860 = vld [vmem:[%s2 + $0x128] sm:$0xff]
  %v3861 = vld [vmem:[%s2 + $0x130] sm:$0xff]
  %v3862 = vld [vmem:[%s2 + $0x138] sm:$0xff]
  %v3863 = vld [vmem:[%s2 + $0x140] sm:$0xff]
  %v3864 = vld [vmem:[%s2 + $0x148] sm:$0xff]
  %v3865 = vld [vmem:[%s2 + $0x150] sm:$0xff]
  %v3866 = vld [vmem:[%s2 + $0x158] sm:$0xff]
  %v3867 = vld [vmem:[%s2 + $0x160] sm:$0xff]
  %v3868 = vld [vmem:[%s2 + $0x168] sm:$0xff]
  %v3869 = vld [vmem:[%s2 + $0x170] sm:$0xff]
  %v3870 = vld [vmem:[%s2 + $0x178] sm:$0xff]
  %v3871 = vld [vmem:[%s2 + $0x180] sm:$0xff]
  %v3872 = vld [vmem:[%s2 + $0x188] sm:$0xff]
  %v3873 = vld [vmem:[%s2 + $0x190] sm:$0xff]
  %v3874 = vld [vmem:[%s2 + $0x198] sm:$0xff]
  %v3875 = vld [vmem:[%s2 + $0x1a0] sm:$0xff]
  %v3876 = vld [vmem:[%s2 + $0x1a8] sm:$0xff]
  %v3877 = vld [vmem:[%s2 + $0x1b0] sm:$0xff]
  %v3878 = vld [vmem:[%s2 + $0x1b8] sm:$0xff]
  %v3879 = vld [vmem:[%s2 + $0x1c0] sm:$0xff]
  %v3880 = vld [vmem:[%s2 + $0x1c8] sm:$0xff]
  %v3881 = vld [vmem:[%s2 + $0x1d0] sm:$0xff]
  %v3882 = vld [vmem:[%s2 + $0x1d8] sm:$0xff]
  %v3883 = vld [vmem:[%s2 + $0x1e0] sm:$0xff]
  %v3884 = vld [vmem:[%s2 + $0x1e8] sm:$0xff]
  %v3885 = vld [vmem:[%s2 + $0x1f0] sm:$0xff]
  %v3886 = vld [vmem:[%s2 + $0x1f8] sm:$0xff]
  %3887 = vmatprep.subr.mxu0 %v3824
  %3888 = vmatpush1.msra.mxu0 %v3823
  %3889 = vmatprep.subr.mxu0 %v3828
  %3890 = vmatpush1.msra.mxu0 %v3827
  %3891 = vmatprep.subr.mxu0 %v3832
  %3892 = vmatpush1.msra.mxu0 %v3831
  %3893 = vmatprep.subr.mxu0 %v3836
  %3894 = vmatpush1.msra.mxu0 %v3835
  %3895 = vmatprep.subr.mxu0 %v3840
  %3896 = vmatpush1.msra.mxu0 %v3839
  %3897 = vmatprep.subr.mxu0 %v3844
  %3898 = vmatpush1.msra.mxu0 %v3843
  %3899 = vmatprep.subr.mxu0 %v3848
  %3900 = vmatpush1.msra.mxu0 %v3847
  %3901 = vmatprep.subr.mxu0 %v3852
  %3902 = vmatpush1.msra.mxu0 %v3851
  %3903 = vmatprep.subr.mxu0 %v3856
  %3904 = vmatpush1.msra.mxu0 %v3855
  %3905 = vmatprep.subr.mxu0 %v3860
  %3906 = vmatpush1.msra.mxu0 %v3859
  %3907 = vmatprep.subr.mxu0 %v3864
  %3908 = vmatpush1.msra.mxu0 %v3863
  %3909 = vmatprep.subr.mxu0 %v3868
  %3910 = vmatpush1.msra.mxu0 %v3867
  %3911 = vmatprep.subr.mxu0 %v3872
  %3912 = vmatpush1.msra.mxu0 %v3871
  %3913 = vmatprep.subr.mxu0 %v3876
  %3914 = vmatpush1.msra.mxu0 %v3875
  %3915 = vmatprep.subr.mxu0 %v3880
  %3916 = vmatpush1.msra.mxu0 %v3879
  %3917 = vmatprep.subr.mxu0 %v3884
  %3918 = vmatpush1.msra.mxu0 %v3883
  %3919 = vmatprep.subr.mxu0 0.0
  %3920 = vmatpush1.msra.mxu0 0.0
  %3921 = vmatprep.subr.mxu0 0.0
  %3922 = vmatpush1.msra.mxu0 0.0
  %3923 = vmatprep.subr.mxu0 0.0
  %3924 = vmatpush1.msra.mxu0 0.0
  %3925 = vmatprep.subr.mxu0 0.0
  %3926 = vmatpush1.msra.mxu0 0.0
  %3927 = vmatprep.subr.mxu0 0.0
  %3928 = vmatpush1.msra.mxu0 0.0
  %3929 = vmatprep.subr.mxu0 0.0
  %3930 = vmatpush1.msra.mxu0 0.0
  %3931 = vmatprep.subr.mxu0 0.0
  %3932 = vmatpush1.msra.mxu0 0.0
  %3933 = vmatprep.subr.mxu0 0.0
  %3934 = vmatpush1.msra.mxu0 0.0
  %3935 = vmatprep.subr.mxu0 0.0
  %3936 = vmatpush1.msra.mxu0 0.0
  %3937 = vmatprep.subr.mxu0 0.0
  %3938 = vmatpush1.msra.mxu0 0.0
  %3939 = vmatprep.subr.mxu0 0.0
  %3940 = vmatpush1.msra.mxu0 0.0
  %3941 = vmatprep.subr.mxu0 0.0
  %3942 = vmatpush1.msra.mxu0 0.0
  %3943 = vmatprep.subr.mxu0 0.0
  %3944 = vmatpush1.msra.mxu0 0.0
  %3945 = vmatprep.subr.mxu0 0.0
  %3946 = vmatpush1.msra.mxu0 0.0
  %3947 = vmatprep.subr.mxu0 0.0
  %3948 = vmatpush1.msra.mxu0 0.0
  %3949 = vmatprep.subr.mxu0 0.0
  %3950 = vmatpush1.msra.mxu0 0.0
  %3951 = vmatprep.mubr.f32.mxu0 0.0
  %3952 = vmatmul.mubr.f32.gmra.mrb[0].mxu0 %v3359
  %v3953 = vpop.f32.mrb[0].mxu0
  %v3954 = vadd.f32 0.0, %v3953
  %v3955 = vpop.f32.mrb[0].mxu0
  %v3956 = vadd.f32 0.0, %v3955
  %3957 = vdwg.mxu0
  %3958 = vmatprep.subr.mxu0 %v3826
  %3959 = vmatpush1.msra.mxu0 %v3825
  %3960 = vmatprep.subr.mxu0 %v3830
  %3961 = vmatpush1.msra.mxu0 %v3829
  %3962 = vmatprep.subr.mxu0 %v3834
  %3963 = vmatpush1.msra.mxu0 %v3833
  %3964 = vmatprep.subr.mxu0 %v3838
  %3965 = vmatpush1.msra.mxu0 %v3837
  %3966 = vmatprep.subr.mxu0 %v3842
  %3967 = vmatpush1.msra.mxu0 %v3841
  %3968 = vmatprep.subr.mxu0 %v3846
  %3969 = vmatpush1.msra.mxu0 %v3845
  %3970 = vmatprep.subr.mxu0 %v3850
  %3971 = vmatpush1.msra.mxu0 %v3849
  %3972 = vmatprep.subr.mxu0 %v3854
  %3973 = vmatpush1.msra.mxu0 %v3853
  %3974 = vmatprep.subr.mxu0 %v3858
  %3975 = vmatpush1.msra.mxu0 %v3857
  %3976 = vmatprep.subr.mxu0 %v3862
  %3977 = vmatpush1.msra.mxu0 %v3861
  %3978 = vmatprep.subr.mxu0 %v3866
  %3979 = vmatpush1.msra.mxu0 %v3865
  %3980 = vmatprep.subr.mxu0 %v3870
  %3981 = vmatpush1.msra.mxu0 %v3869
  %3982 = vmatprep.subr.mxu0 %v3874
  %3983 = vmatpush1.msra.mxu0 %v3873
  %3984 = vmatprep.subr.mxu0 %v3878
  %3985 = vmatpush1.msra.mxu0 %v3877
  %3986 = vmatprep.subr.mxu0 %v3882
  %3987 = vmatpush1.msra.mxu0 %v3881
  %3988 = vmatprep.subr.mxu0 %v3886
  %3989 = vmatpush1.msra.mxu0 %v3885
  %3990 = vmatprep.subr.mxu0 0.0
  %3991 = vmatpush1.msra.mxu0 0.0
  %3992 = vmatprep.subr.mxu0 0.0
  %3993 = vmatpush1.msra.mxu0 0.0
  %3994 = vmatprep.subr.mxu0 0.0
  %3995 = vmatpush1.msra.mxu0 0.0
  %3996 = vmatprep.subr.mxu0 0.0
  %3997 = vmatpush1.msra.mxu0 0.0
  %3998 = vmatprep.subr.mxu0 0.0
  %3999 = vmatpush1.msra.mxu0 0.0
  %4000 = vmatprep.subr.mxu0 0.0
  %4001 = vmatpush1.msra.mxu0 0.0
  %4002 = vmatprep.subr.mxu0 0.0
  %4003 = vmatpush1.msra.mxu0 0.0
  %4004 = vmatprep.subr.mxu0 0.0
  %4005 = vmatpush1.msra.mxu0 0.0
  %4006 = vmatprep.subr.mxu0 0.0
  %4007 = vmatpush1.msra.mxu0 0.0
  %4008 = vmatprep.subr.mxu0 0.0
  %4009 = vmatpush1.msra.mxu0 0.0
  %4010 = vmatprep.subr.mxu0 0.0
  %4011 = vmatpush1.msra.mxu0 0.0
  %4012 = vmatprep.subr.mxu0 0.0
  %4013 = vmatpush1.msra.mxu0 0.0
  %4014 = vmatprep.subr.mxu0 0.0
  %4015 = vmatpush1.msra.mxu0 0.0
  %4016 = vmatprep.subr.mxu0 0.0
  %4017 = vmatpush1.msra.mxu0 0.0
  %4018 = vmatprep.subr.mxu0 0.0
  %4019 = vmatpush1.msra.mxu0 0.0
  %4020 = vmatprep.subr.mxu0 0.0
  %4021 = vmatpush1.msra.mxu0 0.0
  %4022 = vmatprep.mubr.f32.mxu0 0.0
  %4023 = vmatmul.mubr.f32.gmra.mrb[0].mxu0 %v3359
  %v4024 = vpop.f32.mrb[0].mxu0
  %v4025 = vadd.f32 0.0, %v4024
  %v4026 = vpop.f32.mrb[0].mxu0
  %v4027 = vadd.f32 0.0, %v4026
  %4028 = vdwg.mxu0
  %v4033 = vrot.slane %v3954, 6
  %v4034 = vrot.slane %v3956, 6
  %v4035 = vrot.slane %v4025, 6
  %v4036 = vrot.slane %v4027, 6
  %v4041 = vadd.f32 %v188, %v4033
  %v4042 = vadd.f32 %v190, %v4034
  %v4043 = vadd.f32 %v271, %v4035
  %v4044 = vadd.f32 %v273, %v4036
  %v4045 = vxor.u32 %v4041, 2147483648
  %v4046 = vmul.f32 %v4045, 1.442695
  %v4047 = vpow.pop %v4046
  %v4048 = vadd.f32 %v4047, 1.0
  %v4049 = vrcp.pop %v4048
  %v4050 = vmul.f32 1.0, %v4049
  %v4051 = vxor.u32 %v4042, 2147483648
  %v4052 = vmul.f32 %v4051, 1.442695
  %v4053 = vpow.pop %v4052
  %v4054 = vadd.f32 %v4053, 1.0
  %v4055 = vrcp.pop %v4054
  %v4056 = vmul.f32 1.0, %v4055
  %v4057 = vtanh.pop %v4043
  %v4058 = vxor.u32 %v4044, 2147483648
  %v4059 = vmul.f32 %v4058, 1.442695
  %v4060 = vpow.pop %v4059
  %v4061 = vadd.f32 %v4060, 1.0
  %v4062 = vrcp.pop %v4061
  %v4063 = vmul.f32 1.0, %v4062
  %v4065 = vrot.slane %v3357, 6
  %v4067 = vmul.f32 %v4056, %v4065
  %v4068 = vmul.f32 %v4050, %v4057
  %v4069 = vadd.f32 %v4067, %v4068
  %v4070 = vtanh.pop %v4069
  %v4071 = vmul.f32 %v4063, %v4070
  %v4072 = vld [vmem:[%s5] sm:$0xff]
  %v4073 = vld [vmem:[%s5 + $0x8] sm:$0xff]
  %v4074 = vld [vmem:[%s5 + $0x10] sm:$0xff]
  %v4075 = vld [vmem:[%s5 + $0x18] sm:$0xff]
  %v4076 = vld [vmem:[%s5 + $0x20] sm:$0xff]
  %v4077 = vld [vmem:[%s5 + $0x28] sm:$0xff]
  %v4078 = vld [vmem:[%s5 + $0x30] sm:$0xff]
  %v4079 = vld [vmem:[%s5 + $0x38] sm:$0xff]
  %v4080 = vld [vmem:[%s5 + $0x40] sm:$0xff]
  %v4081 = vld [vmem:[%s5 + $0x48] sm:$0xff]
  %v4082 = vld [vmem:[%s5 + $0x50] sm:$0xff]
  %v4083 = vld [vmem:[%s5 + $0x58] sm:$0xff]
  %v4084 = vld [vmem:[%s5 + $0x60] sm:$0xff]
  %v4085 = vld [vmem:[%s5 + $0x68] sm:$0xff]
  %v4086 = vld [vmem:[%s5 + $0x70] sm:$0xff]
  %v4087 = vld [vmem:[%s5 + $0x78] sm:$0xff]
  %v4088 = vld [vmem:[%s5 + $0x80] sm:$0xff]
  %v4089 = vld [vmem:[%s5 + $0x88] sm:$0xff]
  %v4090 = vld [vmem:[%s5 + $0x90] sm:$0xff]
  %v4091 = vld [vmem:[%s5 + $0x98] sm:$0xff]
  %v4092 = vld [vmem:[%s5 + $0xa0] sm:$0xff]
  %v4093 = vld [vmem:[%s5 + $0xa8] sm:$0xff]
  %v4094 = vld [vmem:[%s5 + $0xb0] sm:$0xff]
  %v4095 = vld [vmem:[%s5 + $0xb8] sm:$0xff]
  %v4096 = vld [vmem:[%s5 + $0xc0] sm:$0xff]
  %v4097 = vld [vmem:[%s5 + $0xc8] sm:$0xff]
  %v4098 = vld [vmem:[%s5 + $0xd0] sm:$0xff]
  %v4099 = vld [vmem:[%s5 + $0xd8] sm:$0xff]
  %v4100 = vld [vmem:[%s5 + $0xe0] sm:$0xff]
  %v4101 = vld [vmem:[%s5 + $0xe8] sm:$0xff]
  %v4102 = vld [vmem:[%s5 + $0xf0] sm:$0xff]
  %v4103 = vld [vmem:[%s5 + $0xf8] sm:$0xff]
  %v4104 = vld [vmem:[%s5 + $0x100] sm:$0xff]
  %v4105 = vld [vmem:[%s5 + $0x108] sm:$0xff]
  %v4106 = vld [vmem:[%s5 + $0x110] sm:$0xff]
  %v4107 = vld [vmem:[%s5 + $0x118] sm:$0xff]
  %v4108 = vld [vmem:[%s5 + $0x120] sm:$0xff]
  %v4109 = vld [vmem:[%s5 + $0x128] sm:$0xff]
  %v4110 = vld [vmem:[%s5 + $0x130] sm:$0xff]
  %v4111 = vld [vmem:[%s5 + $0x138] sm:$0xff]
  %v4112 = vld [vmem:[%s5 + $0x140] sm:$0xff]
  %v4113 = vld [vmem:[%s5 + $0x148] sm:$0xff]
  %v4114 = vld [vmem:[%s5 + $0x150] sm:$0xff]
  %v4115 = vld [vmem:[%s5 + $0x158] sm:$0xff]
  %v4116 = vld [vmem:[%s5 + $0x160] sm:$0xff]
  %v4117 = vld [vmem:[%s5 + $0x168] sm:$0xff]
  %v4118 = vld [vmem:[%s5 + $0x170] sm:$0xff]
  %v4119 = vld [vmem:[%s5 + $0x178] sm:$0xff]
  %v4120 = vld [vmem:[%s5 + $0x180] sm:$0xff]
  %v4121 = vld [vmem:[%s5 + $0x188] sm:$0xff]
  %v4122 = vld [vmem:[%s5 + $0x190] sm:$0xff]
  %v4123 = vld [vmem:[%s5 + $0x198] sm:$0xff]
  %v4124 = vld [vmem:[%s5 + $0x1a0] sm:$0xff]
  %v4125 = vld [vmem:[%s5 + $0x1a8] sm:$0xff]
  %v4126 = vld [vmem:[%s5 + $0x1b0] sm:$0xff]
  %v4127 = vld [vmem:[%s5 + $0x1b8] sm:$0xff]
  %v4128 = vld [vmem:[%s5 + $0x1c0] sm:$0xff]
  %v4129 = vld [vmem:[%s5 + $0x1c8] sm:$0xff]
  %v4130 = vld [vmem:[%s5 + $0x1d0] sm:$0xff]
  %v4131 = vld [vmem:[%s5 + $0x1d8] sm:$0xff]
  %v4132 = vld [vmem:[%s5 + $0x1e0] sm:$0xff]
  %v4133 = vld [vmem:[%s5 + $0x1e8] sm:$0xff]
  %v4134 = vld [vmem:[%s5 + $0x1f0] sm:$0xff]
  %v4135 = vld [vmem:[%s5 + $0x1f8] sm:$0xff]
  %v4136 = vld [vmem:[%s4] sm:$0xff]
  %v4137 = vld [vmem:[%s4 + $0x8] sm:$0xff]
  %v4138 = vld [vmem:[%s4 + $0x10] sm:$0xff]
  %v4139 = vld [vmem:[%s4 + $0x18] sm:$0xff]
  %v4140 = vld [vmem:[%s4 + $0x20] sm:$0xff]
  %v4141 = vld [vmem:[%s4 + $0x28] sm:$0xff]
  %v4142 = vld [vmem:[%s4 + $0x30] sm:$0xff]
  %v4143 = vld [vmem:[%s4 + $0x38] sm:$0xff]
  %v4144 = vld [vmem:[%s4 + $0x40] sm:$0xff]
  %v4145 = vld [vmem:[%s4 + $0x48] sm:$0xff]
  %v4146 = vld [vmem:[%s4 + $0x50] sm:$0xff]
  %v4147 = vld [vmem:[%s4 + $0x58] sm:$0xff]
  %v4148 = vld [vmem:[%s4 + $0x60] sm:$0xff]
  %v4149 = vld [vmem:[%s4 + $0x68] sm:$0xff]
  %v4150 = vld [vmem:[%s4 + $0x70] sm:$0xff]
  %v4151 = vld [vmem:[%s4 + $0x78] sm:$0xff]
  %v4152 = vld [vmem:[%s4 + $0x80] sm:$0xff]
  %v4153 = vld [vmem:[%s4 + $0x88] sm:$0xff]
  %v4154 = vld [vmem:[%s4 + $0x90] sm:$0xff]
  %v4155 = vld [vmem:[%s4 + $0x98] sm:$0xff]
  %v4156 = vld [vmem:[%s4 + $0xa0] sm:$0xff]
  %v4157 = vld [vmem:[%s4 + $0xa8] sm:$0xff]
  %v4158 = vld [vmem:[%s4 + $0xb0] sm:$0xff]
  %v4159 = vld [vmem:[%s4 + $0xb8] sm:$0xff]
  %v4160 = vld [vmem:[%s4 + $0xc0] sm:$0xff]
  %v4161 = vld [vmem:[%s4 + $0xc8] sm:$0xff]
  %v4162 = vld [vmem:[%s4 + $0xd0] sm:$0xff]
  %v4163 = vld [vmem:[%s4 + $0xd8] sm:$0xff]
  %v4164 = vld [vmem:[%s4 + $0xe0] sm:$0xff]
  %v4165 = vld [vmem:[%s4 + $0xe8] sm:$0xff]
  %v4166 = vld [vmem:[%s4 + $0xf0] sm:$0xff]
  %v4167 = vld [vmem:[%s4 + $0xf8] sm:$0xff]
  %v4168 = vld [vmem:[%s4 + $0x100] sm:$0xff]
  %v4169 = vld [vmem:[%s4 + $0x108] sm:$0xff]
  %v4170 = vld [vmem:[%s4 + $0x110] sm:$0xff]
  %v4171 = vld [vmem:[%s4 + $0x118] sm:$0xff]
  %v4172 = vld [vmem:[%s4 + $0x120] sm:$0xff]
  %v4173 = vld [vmem:[%s4 + $0x128] sm:$0xff]
  %v4174 = vld [vmem:[%s4 + $0x130] sm:$0xff]
  %v4175 = vld [vmem:[%s4 + $0x138] sm:$0xff]
  %v4176 = vld [vmem:[%s4 + $0x140] sm:$0xff]
  %v4177 = vld [vmem:[%s4 + $0x148] sm:$0xff]
  %v4178 = vld [vmem:[%s4 + $0x150] sm:$0xff]
  %v4179 = vld [vmem:[%s4 + $0x158] sm:$0xff]
  %v4180 = vld [vmem:[%s4 + $0x160] sm:$0xff]
  %v4181 = vld [vmem:[%s4 + $0x168] sm:$0xff]
  %v4182 = vld [vmem:[%s4 + $0x170] sm:$0xff]
  %v4183 = vld [vmem:[%s4 + $0x178] sm:$0xff]
  %v4184 = vld [vmem:[%s4 + $0x180] sm:$0xff]
  %v4185 = vld [vmem:[%s4 + $0x188] sm:$0xff]
  %v4186 = vld [vmem:[%s4 + $0x190] sm:$0xff]
  %v4187 = vld [vmem:[%s4 + $0x198] sm:$0xff]
  %v4188 = vld [vmem:[%s4 + $0x1a0] sm:$0xff]
  %v4189 = vld [vmem:[%s4 + $0x1a8] sm:$0xff]
  %v4190 = vld [vmem:[%s4 + $0x1b0] sm:$0xff]
  %v4191 = vld [vmem:[%s4 + $0x1b8] sm:$0xff]
  %v4192 = vld [vmem:[%s4 + $0x1c0] sm:$0xff]
  %v4193 = vld [vmem:[%s4 + $0x1c8] sm:$0xff]
  %v4194 = vld [vmem:[%s4 + $0x1d0] sm:$0xff]
  %v4195 = vld [vmem:[%s4 + $0x1d8] sm:$0xff]
  %v4196 = vld [vmem:[%s4 + $0x1e0] sm:$0xff]
  %v4197 = vld [vmem:[%s4 + $0x1e8] sm:$0xff]
  %v4198 = vld [vmem:[%s4 + $0x1f0] sm:$0xff]
  %v4199 = vld [vmem:[%s4 + $0x1f8] sm:$0xff]
  %4200 = vmatprep.subr.mxu0 %v4073
  %4201 = vmatpush1.msra.mxu0 %v4072
  %4202 = vmatprep.subr.mxu0 %v4077
  %4203 = vmatpush1.msra.mxu0 %v4076
  %4204 = vmatprep.subr.mxu0 %v4081
  %4205 = vmatpush1.msra.mxu0 %v4080
  %4206 = vmatprep.subr.mxu0 %v4085
  %4207 = vmatpush1.msra.mxu0 %v4084
  %4208 = vmatprep.subr.mxu0 %v4089
  %4209 = vmatpush1.msra.mxu0 %v4088
  %4210 = vmatprep.subr.mxu0 %v4093
  %4211 = vmatpush1.msra.mxu0 %v4092
  %4212 = vmatprep.subr.mxu0 %v4097
  %4213 = vmatpush1.msra.mxu0 %v4096
  %4214 = vmatprep.subr.mxu0 %v4101
  %4215 = vmatpush1.msra.mxu0 %v4100
  %4216 = vmatprep.subr.mxu0 %v4105
  %4217 = vmatpush1.msra.mxu0 %v4104
  %4218 = vmatprep.subr.mxu0 %v4109
  %4219 = vmatpush1.msra.mxu0 %v4108
  %4220 = vmatprep.subr.mxu0 %v4113
  %4221 = vmatpush1.msra.mxu0 %v4112
  %4222 = vmatprep.subr.mxu0 %v4117
  %4223 = vmatpush1.msra.mxu0 %v4116
  %4224 = vmatprep.subr.mxu0 %v4121
  %4225 = vmatpush1.msra.mxu0 %v4120
  %4226 = vmatprep.subr.mxu0 %v4125
  %4227 = vmatpush1.msra.mxu0 %v4124
  %4228 = vmatprep.subr.mxu0 %v4129
  %4229 = vmatpush1.msra.mxu0 %v4128
  %4230 = vmatprep.subr.mxu0 %v4133
  %4231 = vmatpush1.msra.mxu0 %v4132
  %4232 = vmatprep.subr.mxu0 0.0
  %4233 = vmatpush1.msra.mxu0 0.0
  %4234 = vmatprep.subr.mxu0 0.0
  %4235 = vmatpush1.msra.mxu0 0.0
  %4236 = vmatprep.subr.mxu0 0.0
  %4237 = vmatpush1.msra.mxu0 0.0
  %4238 = vmatprep.subr.mxu0 0.0
  %4239 = vmatpush1.msra.mxu0 0.0
  %4240 = vmatprep.subr.mxu0 0.0
  %4241 = vmatpush1.msra.mxu0 0.0
  %4242 = vmatprep.subr.mxu0 0.0
  %4243 = vmatpush1.msra.mxu0 0.0
  %4244 = vmatprep.subr.mxu0 0.0
  %4245 = vmatpush1.msra.mxu0 0.0
  %4246 = vmatprep.subr.mxu0 0.0
  %4247 = vmatpush1.msra.mxu0 0.0
  %4248 = vmatprep.subr.mxu0 0.0
  %4249 = vmatpush1.msra.mxu0 0.0
  %4250 = vmatprep.subr.mxu0 0.0
  %4251 = vmatpush1.msra.mxu0 0.0
  %4252 = vmatprep.subr.mxu0 0.0
  %4253 = vmatpush1.msra.mxu0 0.0
  %4254 = vmatprep.subr.mxu0 0.0
  %4255 = vmatpush1.msra.mxu0 0.0
  %4256 = vmatprep.subr.mxu0 0.0
  %4257 = vmatpush1.msra.mxu0 0.0
  %4258 = vmatprep.subr.mxu0 0.0
  %4259 = vmatpush1.msra.mxu0 0.0
  %4260 = vmatprep.subr.mxu0 0.0
  %4261 = vmatpush1.msra.mxu0 0.0
  %4262 = vmatprep.subr.mxu0 0.0
  %4263 = vmatpush1.msra.mxu0 0.0
  %4264 = vmatprep.mubr.f32.mxu0 0.0
  %4265 = vmatmul.mubr.f32.gmra.mrb[0].mxu0 %v3821
  %v4266 = vpop.f32.mrb[0].mxu0
  %v4267 = vadd.f32 0.0, %v4266
  %v4268 = vpop.f32.mrb[0].mxu0
  %v4269 = vadd.f32 0.0, %v4268
  %4270 = vdwg.mxu0
  %4271 = vmatprep.subr.mxu0 %v4075
  %4272 = vmatpush1.msra.mxu0 %v4074
  %4273 = vmatprep.subr.mxu0 %v4079
  %4274 = vmatpush1.msra.mxu0 %v4078
  %4275 = vmatprep.subr.mxu0 %v4083
  %4276 = vmatpush1.msra.mxu0 %v4082
  %4277 = vmatprep.subr.mxu0 %v4087
  %4278 = vmatpush1.msra.mxu0 %v4086
  %4279 = vmatprep.subr.mxu0 %v4091
  %4280 = vmatpush1.msra.mxu0 %v4090
  %4281 = vmatprep.subr.mxu0 %v4095
  %4282 = vmatpush1.msra.mxu0 %v4094
  %4283 = vmatprep.subr.mxu0 %v4099
  %4284 = vmatpush1.msra.mxu0 %v4098
  %4285 = vmatprep.subr.mxu0 %v4103
  %4286 = vmatpush1.msra.mxu0 %v4102
  %4287 = vmatprep.subr.mxu0 %v4107
  %4288 = vmatpush1.msra.mxu0 %v4106
  %4289 = vmatprep.subr.mxu0 %v4111
  %4290 = vmatpush1.msra.mxu0 %v4110
  %4291 = vmatprep.subr.mxu0 %v4115
  %4292 = vmatpush1.msra.mxu0 %v4114
  %4293 = vmatprep.subr.mxu0 %v4119
  %4294 = vmatpush1.msra.mxu0 %v4118
  %4295 = vmatprep.subr.mxu0 %v4123
  %4296 = vmatpush1.msra.mxu0 %v4122
  %4297 = vmatprep.subr.mxu0 %v4127
  %4298 = vmatpush1.msra.mxu0 %v4126
  %4299 = vmatprep.subr.mxu0 %v4131
  %4300 = vmatpush1.msra.mxu0 %v4130
  %4301 = vmatprep.subr.mxu0 %v4135
  %4302 = vmatpush1.msra.mxu0 %v4134
  %4303 = vmatprep.subr.mxu0 0.0
  %4304 = vmatpush1.msra.mxu0 0.0
  %4305 = vmatprep.subr.mxu0 0.0
  %4306 = vmatpush1.msra.mxu0 0.0
  %4307 = vmatprep.subr.mxu0 0.0
  %4308 = vmatpush1.msra.mxu0 0.0
  %4309 = vmatprep.subr.mxu0 0.0
  %4310 = vmatpush1.msra.mxu0 0.0
  %4311 = vmatprep.subr.mxu0 0.0
  %4312 = vmatpush1.msra.mxu0 0.0
  %4313 = vmatprep.subr.mxu0 0.0
  %4314 = vmatpush1.msra.mxu0 0.0
  %4315 = vmatprep.subr.mxu0 0.0
  %4316 = vmatpush1.msra.mxu0 0.0
  %4317 = vmatprep.subr.mxu0 0.0
  %4318 = vmatpush1.msra.mxu0 0.0
  %4319 = vmatprep.subr.mxu0 0.0
  %4320 = vmatpush1.msra.mxu0 0.0
  %4321 = vmatprep.subr.mxu0 0.0
  %4322 = vmatpush1.msra.mxu0 0.0
  %4323 = vmatprep.subr.mxu0 0.0
  %4324 = vmatpush1.msra.mxu0 0.0
  %4325 = vmatprep.subr.mxu0 0.0
  %4326 = vmatpush1.msra.mxu0 0.0
  %4327 = vmatprep.subr.mxu0 0.0
  %4328 = vmatpush1.msra.mxu0 0.0
  %4329 = vmatprep.subr.mxu0 0.0
  %4330 = vmatpush1.msra.mxu0 0.0
  %4331 = vmatprep.subr.mxu0 0.0
  %4332 = vmatpush1.msra.mxu0 0.0
  %4333 = vmatprep.subr.mxu0 0.0
  %4334 = vmatpush1.msra.mxu0 0.0
  %4335 = vmatprep.mubr.f32.mxu0 0.0
  %4336 = vmatmul.mubr.f32.gmra.mrb[0].mxu0 %v3821
  %v4337 = vpop.f32.mrb[0].mxu0
  %v4338 = vadd.f32 0.0, %v4337
  %v4339 = vpop.f32.mrb[0].mxu0
  %v4340 = vadd.f32 0.0, %v4339
  %4341 = vdwg.mxu0
  %v4343 = vrot.slane %v4071, 2
  %4345 = vmatprep.subr.mxu0 %v4137
  %4346 = vmatpush1.msra.mxu0 %v4136
  %4347 = vmatprep.subr.mxu0 %v4141
  %4348 = vmatpush1.msra.mxu0 %v4140
  %4349 = vmatprep.subr.mxu0 %v4145
  %4350 = vmatpush1.msra.mxu0 %v4144
  %4351 = vmatprep.subr.mxu0 %v4149
  %4352 = vmatpush1.msra.mxu0 %v4148
  %4353 = vmatprep.subr.mxu0 %v4153
  %4354 = vmatpush1.msra.mxu0 %v4152
  %4355 = vmatprep.subr.mxu0 %v4157
  %4356 = vmatpush1.msra.mxu0 %v4156
  %4357 = vmatprep.subr.mxu0 %v4161
  %4358 = vmatpush1.msra.mxu0 %v4160
  %4359 = vmatprep.subr.mxu0 %v4165
  %4360 = vmatpush1.msra.mxu0 %v4164
  %4361 = vmatprep.subr.mxu0 %v4169
  %4362 = vmatpush1.msra.mxu0 %v4168
  %4363 = vmatprep.subr.mxu0 %v4173
  %4364 = vmatpush1.msra.mxu0 %v4172
  %4365 = vmatprep.subr.mxu0 %v4177
  %4366 = vmatpush1.msra.mxu0 %v4176
  %4367 = vmatprep.subr.mxu0 %v4181
  %4368 = vmatpush1.msra.mxu0 %v4180
  %4369 = vmatprep.subr.mxu0 %v4185
  %4370 = vmatpush1.msra.mxu0 %v4184
  %4371 = vmatprep.subr.mxu0 %v4189
  %4372 = vmatpush1.msra.mxu0 %v4188
  %4373 = vmatprep.subr.mxu0 %v4193
  %4374 = vmatpush1.msra.mxu0 %v4192
  %4375 = vmatprep.subr.mxu0 %v4197
  %4376 = vmatpush1.msra.mxu0 %v4196
  %4377 = vmatprep.subr.mxu0 0.0
  %4378 = vmatpush1.msra.mxu0 0.0
  %4379 = vmatprep.subr.mxu0 0.0
  %4380 = vmatpush1.msra.mxu0 0.0
  %4381 = vmatprep.subr.mxu0 0.0
  %4382 = vmatpush1.msra.mxu0 0.0
  %4383 = vmatprep.subr.mxu0 0.0
  %4384 = vmatpush1.msra.mxu0 0.0
  %4385 = vmatprep.subr.mxu0 0.0
  %4386 = vmatpush1.msra.mxu0 0.0
  %4387 = vmatprep.subr.mxu0 0.0
  %4388 = vmatpush1.msra.mxu0 0.0
  %4389 = vmatprep.subr.mxu0 0.0
  %4390 = vmatpush1.msra.mxu0 0.0
  %4391 = vmatprep.subr.mxu0 0.0
  %4392 = vmatpush1.msra.mxu0 0.0
  %4393 = vmatprep.subr.mxu0 0.0
  %4394 = vmatpush1.msra.mxu0 0.0
  %4395 = vmatprep.subr.mxu0 0.0
  %4396 = vmatpush1.msra.mxu0 0.0
  %4397 = vmatprep.subr.mxu0 0.0
  %4398 = vmatpush1.msra.mxu0 0.0
  %4399 = vmatprep.subr.mxu0 0.0
  %4400 = vmatpush1.msra.mxu0 0.0
  %4401 = vmatprep.subr.mxu0 0.0
  %4402 = vmatpush1.msra.mxu0 0.0
  %4403 = vmatprep.subr.mxu0 0.0
  %4404 = vmatpush1.msra.mxu0 0.0
  %4405 = vmatprep.subr.mxu0 0.0
  %4406 = vmatpush1.msra.mxu0 0.0
  %4407 = vmatprep.subr.mxu0 0.0
  %4408 = vmatpush1.msra.mxu0 0.0
  %4409 = vmatprep.mubr.f32.mxu0 0.0
  %4410 = vmatmul.mubr.f32.gmra.mrb[0].mxu0 %v4343
  %v4411 = vpop.f32.mrb[0].mxu0
  %v4412 = vadd.f32 %v4267, %v4411
  %v4413 = vpop.f32.mrb[0].mxu0
  %v4414 = vadd.f32 %v4269, %v4413
  %4415 = vdwg.mxu0
  %4416 = vmatprep.subr.mxu0 %v4139
  %4417 = vmatpush1.msra.mxu0 %v4138
  %4418 = vmatprep.subr.mxu0 %v4143
  %4419 = vmatpush1.msra.mxu0 %v4142
  %4420 = vmatprep.subr.mxu0 %v4147
  %4421 = vmatpush1.msra.mxu0 %v4146
  %4422 = vmatprep.subr.mxu0 %v4151
  %4423 = vmatpush1.msra.mxu0 %v4150
  %4424 = vmatprep.subr.mxu0 %v4155
  %4425 = vmatpush1.msra.mxu0 %v4154
  %4426 = vmatprep.subr.mxu0 %v4159
  %4427 = vmatpush1.msra.mxu0 %v4158
  %4428 = vmatprep.subr.mxu0 %v4163
  %4429 = vmatpush1.msra.mxu0 %v4162
  %4430 = vmatprep.subr.mxu0 %v4167
  %4431 = vmatpush1.msra.mxu0 %v4166
  %4432 = vmatprep.subr.mxu0 %v4171
  %4433 = vmatpush1.msra.mxu0 %v4170
  %4434 = vmatprep.subr.mxu0 %v4175
  %4435 = vmatpush1.msra.mxu0 %v4174
  %4436 = vmatprep.subr.mxu0 %v4179
  %4437 = vmatpush1.msra.mxu0 %v4178
  %4438 = vmatprep.subr.mxu0 %v4183
  %4439 = vmatpush1.msra.mxu0 %v4182
  %4440 = vmatprep.subr.mxu0 %v4187
  %4441 = vmatpush1.msra.mxu0 %v4186
  %4442 = vmatprep.subr.mxu0 %v4191
  %4443 = vmatpush1.msra.mxu0 %v4190
  %4444 = vmatprep.subr.mxu0 %v4195
  %4445 = vmatpush1.msra.mxu0 %v4194
  %4446 = vmatprep.subr.mxu0 %v4199
  %4447 = vmatpush1.msra.mxu0 %v4198
  %4448 = vmatprep.subr.mxu0 0.0
  %4449 = vmatpush1.msra.mxu0 0.0
  %4450 = vmatprep.subr.mxu0 0.0
  %4451 = vmatpush1.msra.mxu0 0.0
  %4452 = vmatprep.subr.mxu0 0.0
  %4453 = vmatpush1.msra.mxu0 0.0
  %4454 = vmatprep.subr.mxu0 0.0
  %4455 = vmatpush1.msra.mxu0 0.0
  %4456 = vmatprep.subr.mxu0 0.0
  %4457 = vmatpush1.msra.mxu0 0.0
  %4458 = vmatprep.subr.mxu0 0.0
  %4459 = vmatpush1.msra.mxu0 0.0
  %4460 = vmatprep.subr.mxu0 0.0
  %4461 = vmatpush1.msra.mxu0 0.0
  %4462 = vmatprep.subr.mxu0 0.0
  %4463 = vmatpush1.msra.mxu0 0.0
  %4464 = vmatprep.subr.mxu0 0.0
  %4465 = vmatpush1.msra.mxu0 0.0
  %4466 = vmatprep.subr.mxu0 0.0
  %4467 = vmatpush1.msra.mxu0 0.0
  %4468 = vmatprep.subr.mxu0 0.0
  %4469 = vmatpush1.msra.mxu0 0.0
  %4470 = vmatprep.subr.mxu0 0.0
  %4471 = vmatpush1.msra.mxu0 0.0
  %4472 = vmatprep.subr.mxu0 0.0
  %4473 = vmatpush1.msra.mxu0 0.0
  %4474 = vmatprep.subr.mxu0 0.0
  %4475 = vmatpush1.msra.mxu0 0.0
  %4476 = vmatprep.subr.mxu0 0.0
  %4477 = vmatpush1.msra.mxu0 0.0
  %4478 = vmatprep.subr.mxu0 0.0
  %4479 = vmatpush1.msra.mxu0 0.0
  %4480 = vmatprep.mubr.f32.mxu0 0.0
  %4481 = vmatmul.mubr.f32.gmra.mrb[0].mxu0 %v4343
  %v4482 = vpop.f32.mrb[0].mxu0
  %v4483 = vadd.f32 %v4338, %v4482
  %v4484 = vpop.f32.mrb[0].mxu0
  %v4485 = vadd.f32 %v4340, %v4484
  %4486 = vdwg.mxu0
  %v4487 = vld [vmem:[%s6] sm:$0xf]
  %v4489 = vlaneseq
  %v4490 = vshrl.u32 %v4489, 7
  %v4491 = vsub.s32 0, %v4490
  %v4492 = vrot.slane %v4487, %v4491
  %v4493 = vlaneseq
  %v4494 = vshrl.u32 %v4493, 7
  %v4495 = vsub.s32 1, %v4494
  %v4496 = vrot.slane %v4487, %v4495
  %v4497 = vlaneseq
  %v4498 = vshrl.u32 %v4497, 7
  %v4499 = vsub.s32 2, %v4498
  %v4500 = vrot.slane %v4487, %v4499
  %v4501 = vlaneseq
  %v4502 = vshrl.u32 %v4501, 7
  %v4503 = vsub.s32 3, %v4502
  %v4504 = vrot.slane %v4487, %v4503
  %v4509 = vadd.f32 %v4412, %v4492
  %v4510 = vadd.f32 %v4414, %v4496
  %v4511 = vadd.f32 %v4483, %v4500
  %v4512 = vadd.f32 %v4485, %v4504
  %v4513 = vxor.u32 %v4509, 2147483648
  %v4514 = vmul.f32 %v4513, 1.442695
  %v4515 = vpow.pop %v4514
  %v4516 = vadd.f32 %v4515, 1.0
  %v4517 = vrcp.pop %v4516
  %v4518 = vmul.f32 1.0, %v4517
  %v4519 = vxor.u32 %v4510, 2147483648
  %v4520 = vmul.f32 %v4519, 1.442695
  %v4521 = vpow.pop %v4520
  %v4522 = vadd.f32 %v4521, 1.0
  %v4523 = vrcp.pop %v4522
  %v4524 = vmul.f32 1.0, %v4523
  %v4525 = vtanh.pop %v4511
  %v4526 = vxor.u32 %v4512, 2147483648
  %v4527 = vmul.f32 %v4526, 1.442695
  %v4528 = vpow.pop %v4527
  %v4529 = vadd.f32 %v4528, 1.0
  %v4530 = vrcp.pop %v4529
  %v4531 = vmul.f32 1.0, %v4530
  %v4532 = vmul.f32 %v4524, %v3819
  %v4533 = vmul.f32 %v4518, %v4525
  %v4534 = vadd.f32 %v4532, %v4533
  %v4535 = vtanh.pop %v4534
  %v4536 = vmul.f32 %v4531, %v4535
  %4537 = vst [vmem:[%s7 + $0xa] sm:$0x3] %v4536
  %v4538 = vld [vmem:[%s2] sm:$0xff]
  %v4539 = vld [vmem:[%s2 + $0x8] sm:$0xff]
  %v4540 = vld [vmem:[%s2 + $0x10] sm:$0xff]
  %v4541 = vld [vmem:[%s2 + $0x18] sm:$0xff]
  %v4542 = vld [vmem:[%s2 + $0x20] sm:$0xff]
  %v4543 = vld [vmem:[%s2 + $0x28] sm:$0xff]
  %v4544 = vld [vmem:[%s2 + $0x30] sm:$0xff]
  %v4545 = vld [vmem:[%s2 + $0x38] sm:$0xff]
  %v4546 = vld [vmem:[%s2 + $0x40] sm:$0xff]
  %v4547 = vld [vmem:[%s2 + $0x48] sm:$0xff]
  %v4548 = vld [vmem:[%s2 + $0x50] sm:$0xff]
  %v4549 = vld [vmem:[%s2 + $0x58] sm:$0xff]
  %v4550 = vld [vmem:[%s2 + $0x60] sm:$0xff]
  %v4551 = vld [vmem:[%s2 + $0x68] sm:$0xff]
  %v4552 = vld [vmem:[%s2 + $0x70] sm:$0xff]
  %v4553 = vld [vmem:[%s2 + $0x78] sm:$0xff]
  %v4554 = vld [vmem:[%s2 + $0x80] sm:$0xff]
  %v4555 = vld [vmem:[%s2 + $0x88] sm:$0xff]
  %v4556 = vld [vmem:[%s2 + $0x90] sm:$0xff]
  %v4557 = vld [vmem:[%s2 + $0x98] sm:$0xff]
  %v4558 = vld [vmem:[%s2 + $0xa0] sm:$0xff]
  %v4559 = vld [vmem:[%s2 + $0xa8] sm:$0xff]
  %v4560 = vld [vmem:[%s2 + $0xb0] sm:$0xff]
  %v4561 = vld [vmem:[%s2 + $0xb8] sm:$0xff]
  %v4562 = vld [vmem:[%s2 + $0xc0] sm:$0xff]
  %v4563 = vld [vmem:[%s2 + $0xc8] sm:$0xff]
  %v4564 = vld [vmem:[%s2 + $0xd0] sm:$0xff]
  %v4565 = vld [vmem:[%s2 + $0xd8] sm:$0xff]
  %v4566 = vld [vmem:[%s2 + $0xe0] sm:$0xff]
  %v4567 = vld [vmem:[%s2 + $0xe8] sm:$0xff]
  %v4568 = vld [vmem:[%s2 + $0xf0] sm:$0xff]
  %v4569 = vld [vmem:[%s2 + $0xf8] sm:$0xff]
  %v4570 = vld [vmem:[%s2 + $0x100] sm:$0xff]
  %v4571 = vld [vmem:[%s2 + $0x108] sm:$0xff]
  %v4572 = vld [vmem:[%s2 + $0x110] sm:$0xff]
  %v4573 = vld [vmem:[%s2 + $0x118] sm:$0xff]
  %v4574 = vld [vmem:[%s2 + $0x120] sm:$0xff]
  %v4575 = vld [vmem:[%s2 + $0x128] sm:$0xff]
  %v4576 = vld [vmem:[%s2 + $0x130] sm:$0xff]
  %v4577 = vld [vmem:[%s2 + $0x138] sm:$0xff]
  %v4578 = vld [vmem:[%s2 + $0x140] sm:$0xff]
  %v4579 = vld [vmem:[%s2 + $0x148] sm:$0xff]
  %v4580 = vld [vmem:[%s2 + $0x150] sm:$0xff]
  %v4581 = vld [vmem:[%s2 + $0x158] sm:$0xff]
  %v4582 = vld [vmem:[%s2 + $0x160] sm:$0xff]
  %v4583 = vld [vmem:[%s2 + $0x168] sm:$0xff]
  %v4584 = vld [vmem:[%s2 + $0x170] sm:$0xff]
  %v4585 = vld [vmem:[%s2 + $0x178] sm:$0xff]
  %v4586 = vld [vmem:[%s2 + $0x180] sm:$0xff]
  %v4587 = vld [vmem:[%s2 + $0x188] sm:$0xff]
  %v4588 = vld [vmem:[%s2 + $0x190] sm:$0xff]
  %v4589 = vld [vmem:[%s2 + $0x198] sm:$0xff]
  %v4590 = vld [vmem:[%s2 + $0x1a0] sm:$0xff]
  %v4591 = vld [vmem:[%s2 + $0x1a8] sm:$0xff]
  %v4592 = vld [vmem:[%s2 + $0x1b0] sm:$0xff]
  %v4593 = vld [vmem:[%s2 + $0x1b8] sm:$0xff]
  %v4594 = vld [vmem:[%s2 + $0x1c0] sm:$0xff]
  %v4595 = vld [vmem:[%s2 + $0x1c8] sm:$0xff]
  %v4596 = vld [vmem:[%s2 + $0x1d0] sm:$0xff]
  %v4597 = vld [vmem:[%s2 + $0x1d8] sm:$0xff]
  %v4598 = vld [vmem:[%s2 + $0x1e0] sm:$0xff]
  %v4599 = vld [vmem:[%s2 + $0x1e8] sm:$0xff]
  %v4600 = vld [vmem:[%s2 + $0x1f0] sm:$0xff]
  %v4601 = vld [vmem:[%s2 + $0x1f8] sm:$0xff]
  %4602 = vmatprep.subr.mxu0 %v4539
  %4603 = vmatpush1.msra.mxu0 %v4538
  %4604 = vmatprep.subr.mxu0 %v4543
  %4605 = vmatpush1.msra.mxu0 %v4542
  %4606 = vmatprep.subr.mxu0 %v4547
  %4607 = vmatpush1.msra.mxu0 %v4546
  %4608 = vmatprep.subr.mxu0 %v4551
  %4609 = vmatpush1.msra.mxu0 %v4550
  %4610 = vmatprep.subr.mxu0 %v4555
  %4611 = vmatpush1.msra.mxu0 %v4554
  %4612 = vmatprep.subr.mxu0 %v4559
  %4613 = vmatpush1.msra.mxu0 %v4558
  %4614 = vmatprep.subr.mxu0 %v4563
  %4615 = vmatpush1.msra.mxu0 %v4562
  %4616 = vmatprep.subr.mxu0 %v4567
  %4617 = vmatpush1.msra.mxu0 %v4566
  %4618 = vmatprep.subr.mxu0 %v4571
  %4619 = vmatpush1.msra.mxu0 %v4570
  %4620 = vmatprep.subr.mxu0 %v4575
  %4621 = vmatpush1.msra.mxu0 %v4574
  %4622 = vmatprep.subr.mxu0 %v4579
  %4623 = vmatpush1.msra.mxu0 %v4578
  %4624 = vmatprep.subr.mxu0 %v4583
  %4625 = vmatpush1.msra.mxu0 %v4582
  %4626 = vmatprep.subr.mxu0 %v4587
  %4627 = vmatpush1.msra.mxu0 %v4586
  %4628 = vmatprep.subr.mxu0 %v4591
  %4629 = vmatpush1.msra.mxu0 %v4590
  %4630 = vmatprep.subr.mxu0 %v4595
  %4631 = vmatpush1.msra.mxu0 %v4594
  %4632 = vmatprep.subr.mxu0 %v4599
  %4633 = vmatpush1.msra.mxu0 %v4598
  %4634 = vmatprep.subr.mxu0 0.0
  %4635 = vmatpush1.msra.mxu0 0.0
  %4636 = vmatprep.subr.mxu0 0.0
  %4637 = vmatpush1.msra.mxu0 0.0
  %4638 = vmatprep.subr.mxu0 0.0
  %4639 = vmatpush1.msra.mxu0 0.0
  %4640 = vmatprep.subr.mxu0 0.0
  %4641 = vmatpush1.msra.mxu0 0.0
  %4642 = vmatprep.subr.mxu0 0.0
  %4643 = vmatpush1.msra.mxu0 0.0
  %4644 = vmatprep.subr.mxu0 0.0
  %4645 = vmatpush1.msra.mxu0 0.0
  %4646 = vmatprep.subr.mxu0 0.0
  %4647 = vmatpush1.msra.mxu0 0.0
  %4648 = vmatprep.subr.mxu0 0.0
  %4649 = vmatpush1.msra.mxu0 0.0
  %4650 = vmatprep.subr.mxu0 0.0
  %4651 = vmatpush1.msra.mxu0 0.0
  %4652 = vmatprep.subr.mxu0 0.0
  %4653 = vmatpush1.msra.mxu0 0.0
  %4654 = vmatprep.subr.mxu0 0.0
  %4655 = vmatpush1.msra.mxu0 0.0
  %4656 = vmatprep.subr.mxu0 0.0
  %4657 = vmatpush1.msra.mxu0 0.0
  %4658 = vmatprep.subr.mxu0 0.0
  %4659 = vmatpush1.msra.mxu0 0.0
  %4660 = vmatprep.subr.mxu0 0.0
  %4661 = vmatpush1.msra.mxu0 0.0
  %4662 = vmatprep.subr.mxu0 0.0
  %4663 = vmatpush1.msra.mxu0 0.0
  %4664 = vmatprep.subr.mxu0 0.0
  %4665 = vmatpush1.msra.mxu0 0.0
  %4666 = vmatprep.mubr.f32.mxu0 0.0
  %4667 = vmatmul.mubr.f32.gmra.mrb[0].mxu0 %v4343
  %v4668 = vpop.f32.mrb[0].mxu0
  %v4669 = vadd.f32 0.0, %v4668
  %v4670 = vpop.f32.mrb[0].mxu0
  %v4671 = vadd.f32 0.0, %v4670
  %4672 = vdwg.mxu0
  %4673 = vmatprep.subr.mxu0 %v4541
  %4674 = vmatpush1.msra.mxu0 %v4540
  %4675 = vmatprep.subr.mxu0 %v4545
  %4676 = vmatpush1.msra.mxu0 %v4544
  %4677 = vmatprep.subr.mxu0 %v4549
  %4678 = vmatpush1.msra.mxu0 %v4548
  %4679 = vmatprep.subr.mxu0 %v4553
  %4680 = vmatpush1.msra.mxu0 %v4552
  %4681 = vmatprep.subr.mxu0 %v4557
  %4682 = vmatpush1.msra.mxu0 %v4556
  %4683 = vmatprep.subr.mxu0 %v4561
  %4684 = vmatpush1.msra.mxu0 %v4560
  %4685 = vmatprep.subr.mxu0 %v4565
  %4686 = vmatpush1.msra.mxu0 %v4564
  %4687 = vmatprep.subr.mxu0 %v4569
  %4688 = vmatpush1.msra.mxu0 %v4568
  %4689 = vmatprep.subr.mxu0 %v4573
  %4690 = vmatpush1.msra.mxu0 %v4572
  %4691 = vmatprep.subr.mxu0 %v4577
  %4692 = vmatpush1.msra.mxu0 %v4576
  %4693 = vmatprep.subr.mxu0 %v4581
  %4694 = vmatpush1.msra.mxu0 %v4580
  %4695 = vmatprep.subr.mxu0 %v4585
  %4696 = vmatpush1.msra.mxu0 %v4584
  %4697 = vmatprep.subr.mxu0 %v4589
  %4698 = vmatpush1.msra.mxu0 %v4588
  %4699 = vmatprep.subr.mxu0 %v4593
  %4700 = vmatpush1.msra.mxu0 %v4592
  %4701 = vmatprep.subr.mxu0 %v4597
  %4702 = vmatpush1.msra.mxu0 %v4596
  %4703 = vmatprep.subr.mxu0 %v4601
  %4704 = vmatpush1.msra.mxu0 %v4600
  %4705 = vmatprep.subr.mxu0 0.0
  %4706 = vmatpush1.msra.mxu0 0.0
  %4707 = vmatprep.subr.mxu0 0.0
  %4708 = vmatpush1.msra.mxu0 0.0
  %4709 = vmatprep.subr.mxu0 0.0
  %4710 = vmatpush1.msra.mxu0 0.0
  %4711 = vmatprep.subr.mxu0 0.0
  %4712 = vmatpush1.msra.mxu0 0.0
  %4713 = vmatprep.subr.mxu0 0.0
  %4714 = vmatpush1.msra.mxu0 0.0
  %4715 = vmatprep.subr.mxu0 0.0
  %4716 = vmatpush1.msra.mxu0 0.0
  %4717 = vmatprep.subr.mxu0 0.0
  %4718 = vmatpush1.msra.mxu0 0.0
  %4719 = vmatprep.subr.mxu0 0.0
  %4720 = vmatpush1.msra.mxu0 0.0
  %4721 = vmatprep.subr.mxu0 0.0
  %4722 = vmatpush1.msra.mxu0 0.0
  %4723 = vmatprep.subr.mxu0 0.0
  %4724 = vmatpush1.msra.mxu0 0.0
  %4725 = vmatprep.subr.mxu0 0.0
  %4726 = vmatpush1.msra.mxu0 0.0
  %4727 = vmatprep.subr.mxu0 0.0
  %4728 = vmatpush1.msra.mxu0 0.0
  %4729 = vmatprep.subr.mxu0 0.0
  %4730 = vmatpush1.msra.mxu0 0.0
  %4731 = vmatprep.subr.mxu0 0.0
  %4732 = vmatpush1.msra.mxu0 0.0
  %4733 = vmatprep.subr.mxu0 0.0
  %4734 = vmatpush1.msra.mxu0 0.0
  %4735 = vmatprep.subr.mxu0 0.0
  %4736 = vmatpush1.msra.mxu0 0.0
  %4737 = vmatprep.mubr.f32.mxu0 0.0
  %4738 = vmatmul.mubr.f32.gmra.mrb[0].mxu0 %v4343
  %v4739 = vpop.f32.mrb[0].mxu0
  %v4740 = vadd.f32 0.0, %v4739
  %v4741 = vpop.f32.mrb[0].mxu0
  %v4742 = vadd.f32 0.0, %v4741
  %4743 = vdwg.mxu0
  %v4748 = vrot.slane %v4669, 4
  %v4749 = vrot.slane %v4671, 4
  %v4750 = vrot.slane %v4740, 4
  %v4751 = vrot.slane %v4742, 4
  %v4756 = vadd.f32 %v188, %v4748
  %v4757 = vadd.f32 %v190, %v4749
  %v4758 = vadd.f32 %v271, %v4750
  %v4759 = vadd.f32 %v273, %v4751
  %v4760 = vxor.u32 %v4756, 2147483648
  %v4761 = vmul.f32 %v4760, 1.442695
  %v4762 = vpow.pop %v4761
  %v4763 = vadd.f32 %v4762, 1.0
  %v4764 = vrcp.pop %v4763
  %v4765 = vmul.f32 1.0, %v4764
  %v4766 = vxor.u32 %v4757, 2147483648
  %v4767 = vmul.f32 %v4766, 1.442695
  %v4768 = vpow.pop %v4767
  %v4769 = vadd.f32 %v4768, 1.0
  %v4770 = vrcp.pop %v4769
  %v4771 = vmul.f32 1.0, %v4770
  %v4772 = vtanh.pop %v4758
  %v4773 = vxor.u32 %v4759, 2147483648
  %v4774 = vmul.f32 %v4773, 1.442695
  %v4775 = vpow.pop %v4774
  %v4776 = vadd.f32 %v4775, 1.0
  %v4777 = vrcp.pop %v4776
  %v4778 = vmul.f32 1.0, %v4777
  %v4780 = vrot.slane %v4069, 6
  %v4782 = vmul.f32 %v4771, %v4780
  %v4783 = vmul.f32 %v4765, %v4772
  %v4784 = vadd.f32 %v4782, %v4783
  %v4785 = vtanh.pop %v4784
  %v4786 = vmul.f32 %v4778, %v4785
  %v4787 = vld [vmem:[%s5] sm:$0xff]
  %v4788 = vld [vmem:[%s5 + $0x8] sm:$0xff]
  %v4789 = vld [vmem:[%s5 + $0x10] sm:$0xff]
  %v4790 = vld [vmem:[%s5 + $0x18] sm:$0xff]
  %v4791 = vld [vmem:[%s5 + $0x20] sm:$0xff]
  %v4792 = vld [vmem:[%s5 + $0x28] sm:$0xff]
  %v4793 = vld [vmem:[%s5 + $0x30] sm:$0xff]
  %v4794 = vld [vmem:[%s5 + $0x38] sm:$0xff]
  %v4795 = vld [vmem:[%s5 + $0x40] sm:$0xff]
  %v4796 = vld [vmem:[%s5 + $0x48] sm:$0xff]
  %v4797 = vld [vmem:[%s5 + $0x50] sm:$0xff]
  %v4798 = vld [vmem:[%s5 + $0x58] sm:$0xff]
  %v4799 = vld [vmem:[%s5 + $0x60] sm:$0xff]
  %v4800 = vld [vmem:[%s5 + $0x68] sm:$0xff]
  %v4801 = vld [vmem:[%s5 + $0x70] sm:$0xff]
  %v4802 = vld [vmem:[%s5 + $0x78] sm:$0xff]
  %v4803 = vld [vmem:[%s5 + $0x80] sm:$0xff]
  %v4804 = vld [vmem:[%s5 + $0x88] sm:$0xff]
  %v4805 = vld [vmem:[%s5 + $0x90] sm:$0xff]
  %v4806 = vld [vmem:[%s5 + $0x98] sm:$0xff]
  %v4807 = vld [vmem:[%s5 + $0xa0] sm:$0xff]
  %v4808 = vld [vmem:[%s5 + $0xa8] sm:$0xff]
  %v4809 = vld [vmem:[%s5 + $0xb0] sm:$0xff]
  %v4810 = vld [vmem:[%s5 + $0xb8] sm:$0xff]
  %v4811 = vld [vmem:[%s5 + $0xc0] sm:$0xff]
  %v4812 = vld [vmem:[%s5 + $0xc8] sm:$0xff]
  %v4813 = vld [vmem:[%s5 + $0xd0] sm:$0xff]
  %v4814 = vld [vmem:[%s5 + $0xd8] sm:$0xff]
  %v4815 = vld [vmem:[%s5 + $0xe0] sm:$0xff]
  %v4816 = vld [vmem:[%s5 + $0xe8] sm:$0xff]
  %v4817 = vld [vmem:[%s5 + $0xf0] sm:$0xff]
  %v4818 = vld [vmem:[%s5 + $0xf8] sm:$0xff]
  %v4819 = vld [vmem:[%s5 + $0x100] sm:$0xff]
  %v4820 = vld [vmem:[%s5 + $0x108] sm:$0xff]
  %v4821 = vld [vmem:[%s5 + $0x110] sm:$0xff]
  %v4822 = vld [vmem:[%s5 + $0x118] sm:$0xff]
  %v4823 = vld [vmem:[%s5 + $0x120] sm:$0xff]
  %v4824 = vld [vmem:[%s5 + $0x128] sm:$0xff]
  %v4825 = vld [vmem:[%s5 + $0x130] sm:$0xff]
  %v4826 = vld [vmem:[%s5 + $0x138] sm:$0xff]
  %v4827 = vld [vmem:[%s5 + $0x140] sm:$0xff]
  %v4828 = vld [vmem:[%s5 + $0x148] sm:$0xff]
  %v4829 = vld [vmem:[%s5 + $0x150] sm:$0xff]
  %v4830 = vld [vmem:[%s5 + $0x158] sm:$0xff]
  %v4831 = vld [vmem:[%s5 + $0x160] sm:$0xff]
  %v4832 = vld [vmem:[%s5 + $0x168] sm:$0xff]
  %v4833 = vld [vmem:[%s5 + $0x170] sm:$0xff]
  %v4834 = vld [vmem:[%s5 + $0x178] sm:$0xff]
  %v4835 = vld [vmem:[%s5 + $0x180] sm:$0xff]
  %v4836 = vld [vmem:[%s5 + $0x188] sm:$0xff]
  %v4837 = vld [vmem:[%s5 + $0x190] sm:$0xff]
  %v4838 = vld [vmem:[%s5 + $0x198] sm:$0xff]
  %v4839 = vld [vmem:[%s5 + $0x1a0] sm:$0xff]
  %v4840 = vld [vmem:[%s5 + $0x1a8] sm:$0xff]
  %v4841 = vld [vmem:[%s5 + $0x1b0] sm:$0xff]
  %v4842 = vld [vmem:[%s5 + $0x1b8] sm:$0xff]
  %v4843 = vld [vmem:[%s5 + $0x1c0] sm:$0xff]
  %v4844 = vld [vmem:[%s5 + $0x1c8] sm:$0xff]
  %v4845 = vld [vmem:[%s5 + $0x1d0] sm:$0xff]
  %v4846 = vld [vmem:[%s5 + $0x1d8] sm:$0xff]
  %v4847 = vld [vmem:[%s5 + $0x1e0] sm:$0xff]
  %v4848 = vld [vmem:[%s5 + $0x1e8] sm:$0xff]
  %v4849 = vld [vmem:[%s5 + $0x1f0] sm:$0xff]
  %v4850 = vld [vmem:[%s5 + $0x1f8] sm:$0xff]
  %v4851 = vld [vmem:[%s4] sm:$0xff]
  %v4852 = vld [vmem:[%s4 + $0x8] sm:$0xff]
  %v4853 = vld [vmem:[%s4 + $0x10] sm:$0xff]
  %v4854 = vld [vmem:[%s4 + $0x18] sm:$0xff]
  %v4855 = vld [vmem:[%s4 + $0x20] sm:$0xff]
  %v4856 = vld [vmem:[%s4 + $0x28] sm:$0xff]
  %v4857 = vld [vmem:[%s4 + $0x30] sm:$0xff]
  %v4858 = vld [vmem:[%s4 + $0x38] sm:$0xff]
  %v4859 = vld [vmem:[%s4 + $0x40] sm:$0xff]
  %v4860 = vld [vmem:[%s4 + $0x48] sm:$0xff]
  %v4861 = vld [vmem:[%s4 + $0x50] sm:$0xff]
  %v4862 = vld [vmem:[%s4 + $0x58] sm:$0xff]
  %v4863 = vld [vmem:[%s4 + $0x60] sm:$0xff]
  %v4864 = vld [vmem:[%s4 + $0x68] sm:$0xff]
  %v4865 = vld [vmem:[%s4 + $0x70] sm:$0xff]
  %v4866 = vld [vmem:[%s4 + $0x78] sm:$0xff]
  %v4867 = vld [vmem:[%s4 + $0x80] sm:$0xff]
  %v4868 = vld [vmem:[%s4 + $0x88] sm:$0xff]
  %v4869 = vld [vmem:[%s4 + $0x90] sm:$0xff]
  %v4870 = vld [vmem:[%s4 + $0x98] sm:$0xff]
  %v4871 = vld [vmem:[%s4 + $0xa0] sm:$0xff]
  %v4872 = vld [vmem:[%s4 + $0xa8] sm:$0xff]
  %v4873 = vld [vmem:[%s4 + $0xb0] sm:$0xff]
  %v4874 = vld [vmem:[%s4 + $0xb8] sm:$0xff]
  %v4875 = vld [vmem:[%s4 + $0xc0] sm:$0xff]
  %v4876 = vld [vmem:[%s4 + $0xc8] sm:$0xff]
  %v4877 = vld [vmem:[%s4 + $0xd0] sm:$0xff]
  %v4878 = vld [vmem:[%s4 + $0xd8] sm:$0xff]
  %v4879 = vld [vmem:[%s4 + $0xe0] sm:$0xff]
  %v4880 = vld [vmem:[%s4 + $0xe8] sm:$0xff]
  %v4881 = vld [vmem:[%s4 + $0xf0] sm:$0xff]
  %v4882 = vld [vmem:[%s4 + $0xf8] sm:$0xff]
  %v4883 = vld [vmem:[%s4 + $0x100] sm:$0xff]
  %v4884 = vld [vmem:[%s4 + $0x108] sm:$0xff]
  %v4885 = vld [vmem:[%s4 + $0x110] sm:$0xff]
  %v4886 = vld [vmem:[%s4 + $0x118] sm:$0xff]
  %v4887 = vld [vmem:[%s4 + $0x120] sm:$0xff]
  %v4888 = vld [vmem:[%s4 + $0x128] sm:$0xff]
  %v4889 = vld [vmem:[%s4 + $0x130] sm:$0xff]
  %v4890 = vld [vmem:[%s4 + $0x138] sm:$0xff]
  %v4891 = vld [vmem:[%s4 + $0x140] sm:$0xff]
  %v4892 = vld [vmem:[%s4 + $0x148] sm:$0xff]
  %v4893 = vld [vmem:[%s4 + $0x150] sm:$0xff]
  %v4894 = vld [vmem:[%s4 + $0x158] sm:$0xff]
  %v4895 = vld [vmem:[%s4 + $0x160] sm:$0xff]
  %v4896 = vld [vmem:[%s4 + $0x168] sm:$0xff]
  %v4897 = vld [vmem:[%s4 + $0x170] sm:$0xff]
  %v4898 = vld [vmem:[%s4 + $0x178] sm:$0xff]
  %v4899 = vld [vmem:[%s4 + $0x180] sm:$0xff]
  %v4900 = vld [vmem:[%s4 + $0x188] sm:$0xff]
  %v4901 = vld [vmem:[%s4 + $0x190] sm:$0xff]
  %v4902 = vld [vmem:[%s4 + $0x198] sm:$0xff]
  %v4903 = vld [vmem:[%s4 + $0x1a0] sm:$0xff]
  %v4904 = vld [vmem:[%s4 + $0x1a8] sm:$0xff]
  %v4905 = vld [vmem:[%s4 + $0x1b0] sm:$0xff]
  %v4906 = vld [vmem:[%s4 + $0x1b8] sm:$0xff]
  %v4907 = vld [vmem:[%s4 + $0x1c0] sm:$0xff]
  %v4908 = vld [vmem:[%s4 + $0x1c8] sm:$0xff]
  %v4909 = vld [vmem:[%s4 + $0x1d0] sm:$0xff]
  %v4910 = vld [vmem:[%s4 + $0x1d8] sm:$0xff]
  %v4911 = vld [vmem:[%s4 + $0x1e0] sm:$0xff]
  %v4912 = vld [vmem:[%s4 + $0x1e8] sm:$0xff]
  %v4913 = vld [vmem:[%s4 + $0x1f0] sm:$0xff]
  %v4914 = vld [vmem:[%s4 + $0x1f8] sm:$0xff]
  %4915 = vmatprep.subr.mxu0 %v4788
  %4916 = vmatpush1.msra.mxu0 %v4787
  %4917 = vmatprep.subr.mxu0 %v4792
  %4918 = vmatpush1.msra.mxu0 %v4791
  %4919 = vmatprep.subr.mxu0 %v4796
  %4920 = vmatpush1.msra.mxu0 %v4795
  %4921 = vmatprep.subr.mxu0 %v4800
  %4922 = vmatpush1.msra.mxu0 %v4799
  %4923 = vmatprep.subr.mxu0 %v4804
  %4924 = vmatpush1.msra.mxu0 %v4803
  %4925 = vmatprep.subr.mxu0 %v4808
  %4926 = vmatpush1.msra.mxu0 %v4807
  %4927 = vmatprep.subr.mxu0 %v4812
  %4928 = vmatpush1.msra.mxu0 %v4811
  %4929 = vmatprep.subr.mxu0 %v4816
  %4930 = vmatpush1.msra.mxu0 %v4815
  %4931 = vmatprep.subr.mxu0 %v4820
  %4932 = vmatpush1.msra.mxu0 %v4819
  %4933 = vmatprep.subr.mxu0 %v4824
  %4934 = vmatpush1.msra.mxu0 %v4823
  %4935 = vmatprep.subr.mxu0 %v4828
  %4936 = vmatpush1.msra.mxu0 %v4827
  %4937 = vmatprep.subr.mxu0 %v4832
  %4938 = vmatpush1.msra.mxu0 %v4831
  %4939 = vmatprep.subr.mxu0 %v4836
  %4940 = vmatpush1.msra.mxu0 %v4835
  %4941 = vmatprep.subr.mxu0 %v4840
  %4942 = vmatpush1.msra.mxu0 %v4839
  %4943 = vmatprep.subr.mxu0 %v4844
  %4944 = vmatpush1.msra.mxu0 %v4843
  %4945 = vmatprep.subr.mxu0 %v4848
  %4946 = vmatpush1.msra.mxu0 %v4847
  %4947 = vmatprep.subr.mxu0 0.0
  %4948 = vmatpush1.msra.mxu0 0.0
  %4949 = vmatprep.subr.mxu0 0.0
  %4950 = vmatpush1.msra.mxu0 0.0
  %4951 = vmatprep.subr.mxu0 0.0
  %4952 = vmatpush1.msra.mxu0 0.0
  %4953 = vmatprep.subr.mxu0 0.0
  %4954 = vmatpush1.msra.mxu0 0.0
  %4955 = vmatprep.subr.mxu0 0.0
  %4956 = vmatpush1.msra.mxu0 0.0
  %4957 = vmatprep.subr.mxu0 0.0
  %4958 = vmatpush1.msra.mxu0 0.0
  %4959 = vmatprep.subr.mxu0 0.0
  %4960 = vmatpush1.msra.mxu0 0.0
  %4961 = vmatprep.subr.mxu0 0.0
  %4962 = vmatpush1.msra.mxu0 0.0
  %4963 = vmatprep.subr.mxu0 0.0
  %4964 = vmatpush1.msra.mxu0 0.0
  %4965 = vmatprep.subr.mxu0 0.0
  %4966 = vmatpush1.msra.mxu0 0.0
  %4967 = vmatprep.subr.mxu0 0.0
  %4968 = vmatpush1.msra.mxu0 0.0
  %4969 = vmatprep.subr.mxu0 0.0
  %4970 = vmatpush1.msra.mxu0 0.0
  %4971 = vmatprep.subr.mxu0 0.0
  %4972 = vmatpush1.msra.mxu0 0.0
  %4973 = vmatprep.subr.mxu0 0.0
  %4974 = vmatpush1.msra.mxu0 0.0
  %4975 = vmatprep.subr.mxu0 0.0
  %4976 = vmatpush1.msra.mxu0 0.0
  %4977 = vmatprep.subr.mxu0 0.0
  %4978 = vmatpush1.msra.mxu0 0.0
  %4979 = vmatprep.mubr.f32.mxu0 0.0
  %4980 = vmatmul.mubr.f32.gmra.mrb[0].mxu0 %v4536
  %v4981 = vpop.f32.mrb[0].mxu0
  %v4982 = vadd.f32 0.0, %v4981
  %v4983 = vpop.f32.mrb[0].mxu0
  %v4984 = vadd.f32 0.0, %v4983
  %4985 = vdwg.mxu0
  %4986 = vmatprep.subr.mxu0 %v4790
  %4987 = vmatpush1.msra.mxu0 %v4789
  %4988 = vmatprep.subr.mxu0 %v4794
  %4989 = vmatpush1.msra.mxu0 %v4793
  %4990 = vmatprep.subr.mxu0 %v4798
  %4991 = vmatpush1.msra.mxu0 %v4797
  %4992 = vmatprep.subr.mxu0 %v4802
  %4993 = vmatpush1.msra.mxu0 %v4801
  %4994 = vmatprep.subr.mxu0 %v4806
  %4995 = vmatpush1.msra.mxu0 %v4805
  %4996 = vmatprep.subr.mxu0 %v4810
  %4997 = vmatpush1.msra.mxu0 %v4809
  %4998 = vmatprep.subr.mxu0 %v4814
  %4999 = vmatpush1.msra.mxu0 %v4813
  %5000 = vmatprep.subr.mxu0 %v4818
  %5001 = vmatpush1.msra.mxu0 %v4817
  %5002 = vmatprep.subr.mxu0 %v4822
  %5003 = vmatpush1.msra.mxu0 %v4821
  %5004 = vmatprep.subr.mxu0 %v4826
  %5005 = vmatpush1.msra.mxu0 %v4825
  %5006 = vmatprep.subr.mxu0 %v4830
  %5007 = vmatpush1.msra.mxu0 %v4829
  %5008 = vmatprep.subr.mxu0 %v4834
  %5009 = vmatpush1.msra.mxu0 %v4833
  %5010 = vmatprep.subr.mxu0 %v4838
  %5011 = vmatpush1.msra.mxu0 %v4837
  %5012 = vmatprep.subr.mxu0 %v4842
  %5013 = vmatpush1.msra.mxu0 %v4841
  %5014 = vmatprep.subr.mxu0 %v4846
  %5015 = vmatpush1.msra.mxu0 %v4845
  %5016 = vmatprep.subr.mxu0 %v4850
  %5017 = vmatpush1.msra.mxu0 %v4849
  %5018 = vmatprep.subr.mxu0 0.0
  %5019 = vmatpush1.msra.mxu0 0.0
  %5020 = vmatprep.subr.mxu0 0.0
  %5021 = vmatpush1.msra.mxu0 0.0
  %5022 = vmatprep.subr.mxu0 0.0
  %5023 = vmatpush1.msra.mxu0 0.0
  %5024 = vmatprep.subr.mxu0 0.0
  %5025 = vmatpush1.msra.mxu0 0.0
  %5026 = vmatprep.subr.mxu0 0.0
  %5027 = vmatpush1.msra.mxu0 0.0
  %5028 = vmatprep.subr.mxu0 0.0
  %5029 = vmatpush1.msra.mxu0 0.0
  %5030 = vmatprep.subr.mxu0 0.0
  %5031 = vmatpush1.msra.mxu0 0.0
  %5032 = vmatprep.subr.mxu0 0.0
  %5033 = vmatpush1.msra.mxu0 0.0
  %5034 = vmatprep.subr.mxu0 0.0
  %5035 = vmatpush1.msra.mxu0 0.0
  %5036 = vmatprep.subr.mxu0 0.0
  %5037 = vmatpush1.msra.mxu0 0.0
  %5038 = vmatprep.subr.mxu0 0.0
  %5039 = vmatpush1.msra.mxu0 0.0
  %5040 = vmatprep.subr.mxu0 0.0
  %5041 = vmatpush1.msra.mxu0 0.0
  %5042 = vmatprep.subr.mxu0 0.0
  %5043 = vmatpush1.msra.mxu0 0.0
  %5044 = vmatprep.subr.mxu0 0.0
  %5045 = vmatpush1.msra.mxu0 0.0
  %5046 = vmatprep.subr.mxu0 0.0
  %5047 = vmatpush1.msra.mxu0 0.0
  %5048 = vmatprep.subr.mxu0 0.0
  %5049 = vmatpush1.msra.mxu0 0.0
  %5050 = vmatprep.mubr.f32.mxu0 0.0
  %5051 = vmatmul.mubr.f32.gmra.mrb[0].mxu0 %v4536
  %v5052 = vpop.f32.mrb[0].mxu0
  %v5053 = vadd.f32 0.0, %v5052
  %v5054 = vpop.f32.mrb[0].mxu0
  %v5055 = vadd.f32 0.0, %v5054
  %5056 = vdwg.mxu0
  %v5058 = vrot.slane %v4786, 4
  %5060 = vmatprep.subr.mxu0 %v4852
  %5061 = vmatpush1.msra.mxu0 %v4851
  %5062 = vmatprep.subr.mxu0 %v4856
  %5063 = vmatpush1.msra.mxu0 %v4855
  %5064 = vmatprep.subr.mxu0 %v4860
  %5065 = vmatpush1.msra.mxu0 %v4859
  %5066 = vmatprep.subr.mxu0 %v4864
  %5067 = vmatpush1.msra.mxu0 %v4863
  %5068 = vmatprep.subr.mxu0 %v4868
  %5069 = vmatpush1.msra.mxu0 %v4867
  %5070 = vmatprep.subr.mxu0 %v4872
  %5071 = vmatpush1.msra.mxu0 %v4871
  %5072 = vmatprep.subr.mxu0 %v4876
  %5073 = vmatpush1.msra.mxu0 %v4875
  %5074 = vmatprep.subr.mxu0 %v4880
  %5075 = vmatpush1.msra.mxu0 %v4879
  %5076 = vmatprep.subr.mxu0 %v4884
  %5077 = vmatpush1.msra.mxu0 %v4883
  %5078 = vmatprep.subr.mxu0 %v4888
  %5079 = vmatpush1.msra.mxu0 %v4887
  %5080 = vmatprep.subr.mxu0 %v4892
  %5081 = vmatpush1.msra.mxu0 %v4891
  %5082 = vmatprep.subr.mxu0 %v4896
  %5083 = vmatpush1.msra.mxu0 %v4895
  %5084 = vmatprep.subr.mxu0 %v4900
  %5085 = vmatpush1.msra.mxu0 %v4899
  %5086 = vmatprep.subr.mxu0 %v4904
  %5087 = vmatpush1.msra.mxu0 %v4903
  %5088 = vmatprep.subr.mxu0 %v4908
  %5089 = vmatpush1.msra.mxu0 %v4907
  %5090 = vmatprep.subr.mxu0 %v4912
  %5091 = vmatpush1.msra.mxu0 %v4911
  %5092 = vmatprep.subr.mxu0 0.0
  %5093 = vmatpush1.msra.mxu0 0.0
  %5094 = vmatprep.subr.mxu0 0.0
  %5095 = vmatpush1.msra.mxu0 0.0
  %5096 = vmatprep.subr.mxu0 0.0
  %5097 = vmatpush1.msra.mxu0 0.0
  %5098 = vmatprep.subr.mxu0 0.0
  %5099 = vmatpush1.msra.mxu0 0.0
  %5100 = vmatprep.subr.mxu0 0.0
  %5101 = vmatpush1.msra.mxu0 0.0
  %5102 = vmatprep.subr.mxu0 0.0
  %5103 = vmatpush1.msra.mxu0 0.0
  %5104 = vmatprep.subr.mxu0 0.0
  %5105 = vmatpush1.msra.mxu0 0.0
  %5106 = vmatprep.subr.mxu0 0.0
  %5107 = vmatpush1.msra.mxu0 0.0
  %5108 = vmatprep.subr.mxu0 0.0
  %5109 = vmatpush1.msra.mxu0 0.0
  %5110 = vmatprep.subr.mxu0 0.0
  %5111 = vmatpush1.msra.mxu0 0.0
  %5112 = vmatprep.subr.mxu0 0.0
  %5113 = vmatpush1.msra.mxu0 0.0
  %5114 = vmatprep.subr.mxu0 0.0
  %5115 = vmatpush1.msra.mxu0 0.0
  %5116 = vmatprep.subr.mxu0 0.0
  %5117 = vmatpush1.msra.mxu0 0.0
  %5118 = vmatprep.subr.mxu0 0.0
  %5119 = vmatpush1.msra.mxu0 0.0
  %5120 = vmatprep.subr.mxu0 0.0
  %5121 = vmatpush1.msra.mxu0 0.0
  %5122 = vmatprep.subr.mxu0 0.0
  %5123 = vmatpush1.msra.mxu0 0.0
  %5124 = vmatprep.mubr.f32.mxu0 0.0
  %5125 = vmatmul.mubr.f32.gmra.mrb[0].mxu0 %v5058
  %v5126 = vpop.f32.mrb[0].mxu0
  %v5127 = vadd.f32 %v4982, %v5126
  %v5128 = vpop.f32.mrb[0].mxu0
  %v5129 = vadd.f32 %v4984, %v5128
  %5130 = vdwg.mxu0
  %5131 = vmatprep.subr.mxu0 %v4854
  %5132 = vmatpush1.msra.mxu0 %v4853
  %5133 = vmatprep.subr.mxu0 %v4858
  %5134 = vmatpush1.msra.mxu0 %v4857
  %5135 = vmatprep.subr.mxu0 %v4862
  %5136 = vmatpush1.msra.mxu0 %v4861
  %5137 = vmatprep.subr.mxu0 %v4866
  %5138 = vmatpush1.msra.mxu0 %v4865
  %5139 = vmatprep.subr.mxu0 %v4870
  %5140 = vmatpush1.msra.mxu0 %v4869
  %5141 = vmatprep.subr.mxu0 %v4874
  %5142 = vmatpush1.msra.mxu0 %v4873
  %5143 = vmatprep.subr.mxu0 %v4878
  %5144 = vmatpush1.msra.mxu0 %v4877
  %5145 = vmatprep.subr.mxu0 %v4882
  %5146 = vmatpush1.msra.mxu0 %v4881
  %5147 = vmatprep.subr.mxu0 %v4886
  %5148 = vmatpush1.msra.mxu0 %v4885
  %5149 = vmatprep.subr.mxu0 %v4890
  %5150 = vmatpush1.msra.mxu0 %v4889
  %5151 = vmatprep.subr.mxu0 %v4894
  %5152 = vmatpush1.msra.mxu0 %v4893
  %5153 = vmatprep.subr.mxu0 %v4898
  %5154 = vmatpush1.msra.mxu0 %v4897
  %5155 = vmatprep.subr.mxu0 %v4902
  %5156 = vmatpush1.msra.mxu0 %v4901
  %5157 = vmatprep.subr.mxu0 %v4906
  %5158 = vmatpush1.msra.mxu0 %v4905
  %5159 = vmatprep.subr.mxu0 %v4910
  %5160 = vmatpush1.msra.mxu0 %v4909
  %5161 = vmatprep.subr.mxu0 %v4914
  %5162 = vmatpush1.msra.mxu0 %v4913
  %5163 = vmatprep.subr.mxu0 0.0
  %5164 = vmatpush1.msra.mxu0 0.0
  %5165 = vmatprep.subr.mxu0 0.0
  %5166 = vmatpush1.msra.mxu0 0.0
  %5167 = vmatprep.subr.mxu0 0.0
  %5168 = vmatpush1.msra.mxu0 0.0
  %5169 = vmatprep.subr.mxu0 0.0
  %5170 = vmatpush1.msra.mxu0 0.0
  %5171 = vmatprep.subr.mxu0 0.0
  %5172 = vmatpush1.msra.mxu0 0.0
  %5173 = vmatprep.subr.mxu0 0.0
  %5174 = vmatpush1.msra.mxu0 0.0
  %5175 = vmatprep.subr.mxu0 0.0
  %5176 = vmatpush1.msra.mxu0 0.0
  %5177 = vmatprep.subr.mxu0 0.0
  %5178 = vmatpush1.msra.mxu0 0.0
  %5179 = vmatprep.subr.mxu0 0.0
  %5180 = vmatpush1.msra.mxu0 0.0
  %5181 = vmatprep.subr.mxu0 0.0
  %5182 = vmatpush1.msra.mxu0 0.0
  %5183 = vmatprep.subr.mxu0 0.0
  %5184 = vmatpush1.msra.mxu0 0.0
  %5185 = vmatprep.subr.mxu0 0.0
  %5186 = vmatpush1.msra.mxu0 0.0
  %5187 = vmatprep.subr.mxu0 0.0
  %5188 = vmatpush1.msra.mxu0 0.0
  %5189 = vmatprep.subr.mxu0 0.0
  %5190 = vmatpush1.msra.mxu0 0.0
  %5191 = vmatprep.subr.mxu0 0.0
  %5192 = vmatpush1.msra.mxu0 0.0
  %5193 = vmatprep.subr.mxu0 0.0
  %5194 = vmatpush1.msra.mxu0 0.0
  %5195 = vmatprep.mubr.f32.mxu0 0.0
  %5196 = vmatmul.mubr.f32.gmra.mrb[0].mxu0 %v5058
  %v5197 = vpop.f32.mrb[0].mxu0
  %v5198 = vadd.f32 %v5053, %v5197
  %v5199 = vpop.f32.mrb[0].mxu0
  %v5200 = vadd.f32 %v5055, %v5199
  %5201 = vdwg.mxu0
  %v5202 = vld [vmem:[%s6] sm:$0xf]
  %v5204 = vlaneseq
  %v5205 = vshrl.u32 %v5204, 7
  %v5206 = vsub.s32 0, %v5205
  %v5207 = vrot.slane %v5202, %v5206
  %v5208 = vlaneseq
  %v5209 = vshrl.u32 %v5208, 7
  %v5210 = vsub.s32 1, %v5209
  %v5211 = vrot.slane %v5202, %v5210
  %v5212 = vlaneseq
  %v5213 = vshrl.u32 %v5212, 7
  %v5214 = vsub.s32 2, %v5213
  %v5215 = vrot.slane %v5202, %v5214
  %v5216 = vlaneseq
  %v5217 = vshrl.u32 %v5216, 7
  %v5218 = vsub.s32 3, %v5217
  %v5219 = vrot.slane %v5202, %v5218
  %v5224 = vadd.f32 %v5127, %v5207
  %v5225 = vadd.f32 %v5129, %v5211
  %v5226 = vadd.f32 %v5198, %v5215
  %v5227 = vadd.f32 %v5200, %v5219
  %v5228 = vxor.u32 %v5224, 2147483648
  %v5229 = vmul.f32 %v5228, 1.442695
  %v5230 = vpow.pop %v5229
  %v5231 = vadd.f32 %v5230, 1.0
  %v5232 = vrcp.pop %v5231
  %v5233 = vmul.f32 1.0, %v5232
  %v5234 = vxor.u32 %v5225, 2147483648
  %v5235 = vmul.f32 %v5234, 1.442695
  %v5236 = vpow.pop %v5235
  %v5237 = vadd.f32 %v5236, 1.0
  %v5238 = vrcp.pop %v5237
  %v5239 = vmul.f32 1.0, %v5238
  %v5240 = vtanh.pop %v5226
  %v5241 = vxor.u32 %v5227, 2147483648
  %v5242 = vmul.f32 %v5241, 1.442695
  %v5243 = vpow.pop %v5242
  %v5244 = vadd.f32 %v5243, 1.0
  %v5245 = vrcp.pop %v5244
  %v5246 = vmul.f32 1.0, %v5245
  %v5247 = vmul.f32 %v5239, %v4534
  %v5248 = vmul.f32 %v5233, %v5240
  %v5249 = vadd.f32 %v5247, %v5248
  %v5250 = vtanh.pop %v5249
  %v5251 = vmul.f32 %v5246, %v5250
  %5252 = vst [vmem:[%s7 + $0xc] sm:$0x3] %v5251
  %v5253 = vld [vmem:[%s2] sm:$0xff]
  %v5254 = vld [vmem:[%s2 + $0x8] sm:$0xff]
  %v5255 = vld [vmem:[%s2 + $0x10] sm:$0xff]
  %v5256 = vld [vmem:[%s2 + $0x18] sm:$0xff]
  %v5257 = vld [vmem:[%s2 + $0x20] sm:$0xff]
  %v5258 = vld [vmem:[%s2 + $0x28] sm:$0xff]
  %v5259 = vld [vmem:[%s2 + $0x30] sm:$0xff]
  %v5260 = vld [vmem:[%s2 + $0x38] sm:$0xff]
  %v5261 = vld [vmem:[%s2 + $0x40] sm:$0xff]
  %v5262 = vld [vmem:[%s2 + $0x48] sm:$0xff]
  %v5263 = vld [vmem:[%s2 + $0x50] sm:$0xff]
  %v5264 = vld [vmem:[%s2 + $0x58] sm:$0xff]
  %v5265 = vld [vmem:[%s2 + $0x60] sm:$0xff]
  %v5266 = vld [vmem:[%s2 + $0x68] sm:$0xff]
  %v5267 = vld [vmem:[%s2 + $0x70] sm:$0xff]
  %v5268 = vld [vmem:[%s2 + $0x78] sm:$0xff]
  %v5269 = vld [vmem:[%s2 + $0x80] sm:$0xff]
  %v5270 = vld [vmem:[%s2 + $0x88] sm:$0xff]
  %v5271 = vld [vmem:[%s2 + $0x90] sm:$0xff]
  %v5272 = vld [vmem:[%s2 + $0x98] sm:$0xff]
  %v5273 = vld [vmem:[%s2 + $0xa0] sm:$0xff]
  %v5274 = vld [vmem:[%s2 + $0xa8] sm:$0xff]
  %v5275 = vld [vmem:[%s2 + $0xb0] sm:$0xff]
  %v5276 = vld [vmem:[%s2 + $0xb8] sm:$0xff]
  %v5277 = vld [vmem:[%s2 + $0xc0] sm:$0xff]
  %v5278 = vld [vmem:[%s2 + $0xc8] sm:$0xff]
  %v5279 = vld [vmem:[%s2 + $0xd0] sm:$0xff]
  %v5280 = vld [vmem:[%s2 + $0xd8] sm:$0xff]
  %v5281 = vld [vmem:[%s2 + $0xe0] sm:$0xff]
  %v5282 = vld [vmem:[%s2 + $0xe8] sm:$0xff]
  %v5283 = vld [vmem:[%s2 + $0xf0] sm:$0xff]
  %v5284 = vld [vmem:[%s2 + $0xf8] sm:$0xff]
  %v5285 = vld [vmem:[%s2 + $0x100] sm:$0xff]
  %v5286 = vld [vmem:[%s2 + $0x108] sm:$0xff]
  %v5287 = vld [vmem:[%s2 + $0x110] sm:$0xff]
  %v5288 = vld [vmem:[%s2 + $0x118] sm:$0xff]
  %v5289 = vld [vmem:[%s2 + $0x120] sm:$0xff]
  %v5290 = vld [vmem:[%s2 + $0x128] sm:$0xff]
  %v5291 = vld [vmem:[%s2 + $0x130] sm:$0xff]
  %v5292 = vld [vmem:[%s2 + $0x138] sm:$0xff]
  %v5293 = vld [vmem:[%s2 + $0x140] sm:$0xff]
  %v5294 = vld [vmem:[%s2 + $0x148] sm:$0xff]
  %v5295 = vld [vmem:[%s2 + $0x150] sm:$0xff]
  %v5296 = vld [vmem:[%s2 + $0x158] sm:$0xff]
  %v5297 = vld [vmem:[%s2 + $0x160] sm:$0xff]
  %v5298 = vld [vmem:[%s2 + $0x168] sm:$0xff]
  %v5299 = vld [vmem:[%s2 + $0x170] sm:$0xff]
  %v5300 = vld [vmem:[%s2 + $0x178] sm:$0xff]
  %v5301 = vld [vmem:[%s2 + $0x180] sm:$0xff]
  %v5302 = vld [vmem:[%s2 + $0x188] sm:$0xff]
  %v5303 = vld [vmem:[%s2 + $0x190] sm:$0xff]
  %v5304 = vld [vmem:[%s2 + $0x198] sm:$0xff]
  %v5305 = vld [vmem:[%s2 + $0x1a0] sm:$0xff]
  %v5306 = vld [vmem:[%s2 + $0x1a8] sm:$0xff]
  %v5307 = vld [vmem:[%s2 + $0x1b0] sm:$0xff]
  %v5308 = vld [vmem:[%s2 + $0x1b8] sm:$0xff]
  %v5309 = vld [vmem:[%s2 + $0x1c0] sm:$0xff]
  %v5310 = vld [vmem:[%s2 + $0x1c8] sm:$0xff]
  %v5311 = vld [vmem:[%s2 + $0x1d0] sm:$0xff]
  %v5312 = vld [vmem:[%s2 + $0x1d8] sm:$0xff]
  %v5313 = vld [vmem:[%s2 + $0x1e0] sm:$0xff]
  %v5314 = vld [vmem:[%s2 + $0x1e8] sm:$0xff]
  %v5315 = vld [vmem:[%s2 + $0x1f0] sm:$0xff]
  %v5316 = vld [vmem:[%s2 + $0x1f8] sm:$0xff]
  %5317 = vmatprep.subr.mxu0 %v5254
  %5318 = vmatpush1.msra.mxu0 %v5253
  %5319 = vmatprep.subr.mxu0 %v5258
  %5320 = vmatpush1.msra.mxu0 %v5257
  %5321 = vmatprep.subr.mxu0 %v5262
  %5322 = vmatpush1.msra.mxu0 %v5261
  %5323 = vmatprep.subr.mxu0 %v5266
  %5324 = vmatpush1.msra.mxu0 %v5265
  %5325 = vmatprep.subr.mxu0 %v5270
  %5326 = vmatpush1.msra.mxu0 %v5269
  %5327 = vmatprep.subr.mxu0 %v5274
  %5328 = vmatpush1.msra.mxu0 %v5273
  %5329 = vmatprep.subr.mxu0 %v5278
  %5330 = vmatpush1.msra.mxu0 %v5277
  %5331 = vmatprep.subr.mxu0 %v5282
  %5332 = vmatpush1.msra.mxu0 %v5281
  %5333 = vmatprep.subr.mxu0 %v5286
  %5334 = vmatpush1.msra.mxu0 %v5285
  %5335 = vmatprep.subr.mxu0 %v5290
  %5336 = vmatpush1.msra.mxu0 %v5289
  %5337 = vmatprep.subr.mxu0 %v5294
  %5338 = vmatpush1.msra.mxu0 %v5293
  %5339 = vmatprep.subr.mxu0 %v5298
  %5340 = vmatpush1.msra.mxu0 %v5297
  %5341 = vmatprep.subr.mxu0 %v5302
  %5342 = vmatpush1.msra.mxu0 %v5301
  %5343 = vmatprep.subr.mxu0 %v5306
  %5344 = vmatpush1.msra.mxu0 %v5305
  %5345 = vmatprep.subr.mxu0 %v5310
  %5346 = vmatpush1.msra.mxu0 %v5309
  %5347 = vmatprep.subr.mxu0 %v5314
  %5348 = vmatpush1.msra.mxu0 %v5313
  %5349 = vmatprep.subr.mxu0 0.0
  %5350 = vmatpush1.msra.mxu0 0.0
  %5351 = vmatprep.subr.mxu0 0.0
  %5352 = vmatpush1.msra.mxu0 0.0
  %5353 = vmatprep.subr.mxu0 0.0
  %5354 = vmatpush1.msra.mxu0 0.0
  %5355 = vmatprep.subr.mxu0 0.0
  %5356 = vmatpush1.msra.mxu0 0.0
  %5357 = vmatprep.subr.mxu0 0.0
  %5358 = vmatpush1.msra.mxu0 0.0
  %5359 = vmatprep.subr.mxu0 0.0
  %5360 = vmatpush1.msra.mxu0 0.0
  %5361 = vmatprep.subr.mxu0 0.0
  %5362 = vmatpush1.msra.mxu0 0.0
  %5363 = vmatprep.subr.mxu0 0.0
  %5364 = vmatpush1.msra.mxu0 0.0
  %5365 = vmatprep.subr.mxu0 0.0
  %5366 = vmatpush1.msra.mxu0 0.0
  %5367 = vmatprep.subr.mxu0 0.0
  %5368 = vmatpush1.msra.mxu0 0.0
  %5369 = vmatprep.subr.mxu0 0.0
  %5370 = vmatpush1.msra.mxu0 0.0
  %5371 = vmatprep.subr.mxu0 0.0
  %5372 = vmatpush1.msra.mxu0 0.0
  %5373 = vmatprep.subr.mxu0 0.0
  %5374 = vmatpush1.msra.mxu0 0.0
  %5375 = vmatprep.subr.mxu0 0.0
  %5376 = vmatpush1.msra.mxu0 0.0
  %5377 = vmatprep.subr.mxu0 0.0
  %5378 = vmatpush1.msra.mxu0 0.0
  %5379 = vmatprep.subr.mxu0 0.0
  %5380 = vmatpush1.msra.mxu0 0.0
  %5381 = vmatprep.mubr.f32.mxu0 0.0
  %5382 = vmatmul.mubr.f32.gmra.mrb[0].mxu0 %v5058
  %v5383 = vpop.f32.mrb[0].mxu0
  %v5384 = vadd.f32 0.0, %v5383
  %v5385 = vpop.f32.mrb[0].mxu0
  %v5386 = vadd.f32 0.0, %v5385
  %5387 = vdwg.mxu0
  %5388 = vmatprep.subr.mxu0 %v5256
  %5389 = vmatpush1.msra.mxu0 %v5255
  %5390 = vmatprep.subr.mxu0 %v5260
  %5391 = vmatpush1.msra.mxu0 %v5259
  %5392 = vmatprep.subr.mxu0 %v5264
  %5393 = vmatpush1.msra.mxu0 %v5263
  %5394 = vmatprep.subr.mxu0 %v5268
  %5395 = vmatpush1.msra.mxu0 %v5267
  %5396 = vmatprep.subr.mxu0 %v5272
  %5397 = vmatpush1.msra.mxu0 %v5271
  %5398 = vmatprep.subr.mxu0 %v5276
  %5399 = vmatpush1.msra.mxu0 %v5275
  %5400 = vmatprep.subr.mxu0 %v5280
  %5401 = vmatpush1.msra.mxu0 %v5279
  %5402 = vmatprep.subr.mxu0 %v5284
  %5403 = vmatpush1.msra.mxu0 %v5283
  %5404 = vmatprep.subr.mxu0 %v5288
  %5405 = vmatpush1.msra.mxu0 %v5287
  %5406 = vmatprep.subr.mxu0 %v5292
  %5407 = vmatpush1.msra.mxu0 %v5291
  %5408 = vmatprep.subr.mxu0 %v5296
  %5409 = vmatpush1.msra.mxu0 %v5295
  %5410 = vmatprep.subr.mxu0 %v5300
  %5411 = vmatpush1.msra.mxu0 %v5299
  %5412 = vmatprep.subr.mxu0 %v5304
  %5413 = vmatpush1.msra.mxu0 %v5303
  %5414 = vmatprep.subr.mxu0 %v5308
  %5415 = vmatpush1.msra.mxu0 %v5307
  %5416 = vmatprep.subr.mxu0 %v5312
  %5417 = vmatpush1.msra.mxu0 %v5311
  %5418 = vmatprep.subr.mxu0 %v5316
  %5419 = vmatpush1.msra.mxu0 %v5315
  %5420 = vmatprep.subr.mxu0 0.0
  %5421 = vmatpush1.msra.mxu0 0.0
  %5422 = vmatprep.subr.mxu0 0.0
  %5423 = vmatpush1.msra.mxu0 0.0
  %5424 = vmatprep.subr.mxu0 0.0
  %5425 = vmatpush1.msra.mxu0 0.0
  %5426 = vmatprep.subr.mxu0 0.0
  %5427 = vmatpush1.msra.mxu0 0.0
  %5428 = vmatprep.subr.mxu0 0.0
  %5429 = vmatpush1.msra.mxu0 0.0
  %5430 = vmatprep.subr.mxu0 0.0
  %5431 = vmatpush1.msra.mxu0 0.0
  %5432 = vmatprep.subr.mxu0 0.0
  %5433 = vmatpush1.msra.mxu0 0.0
  %5434 = vmatprep.subr.mxu0 0.0
  %5435 = vmatpush1.msra.mxu0 0.0
  %5436 = vmatprep.subr.mxu0 0.0
  %5437 = vmatpush1.msra.mxu0 0.0
  %5438 = vmatprep.subr.mxu0 0.0
  %5439 = vmatpush1.msra.mxu0 0.0
  %5440 = vmatprep.subr.mxu0 0.0
  %5441 = vmatpush1.msra.mxu0 0.0
  %5442 = vmatprep.subr.mxu0 0.0
  %5443 = vmatpush1.msra.mxu0 0.0
  %5444 = vmatprep.subr.mxu0 0.0
  %5445 = vmatpush1.msra.mxu0 0.0
  %5446 = vmatprep.subr.mxu0 0.0
  %5447 = vmatpush1.msra.mxu0 0.0
  %5448 = vmatprep.subr.mxu0 0.0
  %5449 = vmatpush1.msra.mxu0 0.0
  %5450 = vmatprep.subr.mxu0 0.0
  %5451 = vmatpush1.msra.mxu0 0.0
  %5452 = vmatprep.mubr.f32.mxu0 0.0
  %5453 = vmatmul.mubr.f32.gmra.mrb[0].mxu0 %v5058
  %v5454 = vpop.f32.mrb[0].mxu0
  %v5455 = vadd.f32 0.0, %v5454
  %v5456 = vpop.f32.mrb[0].mxu0
  %v5457 = vadd.f32 0.0, %v5456
  %5458 = vdwg.mxu0
  %v5463 = vrot.slane %v5384, 2
  %v5464 = vrot.slane %v5386, 2
  %v5465 = vrot.slane %v5455, 2
  %v5466 = vrot.slane %v5457, 2
  %v5471 = vadd.f32 %v188, %v5463
  %v5472 = vadd.f32 %v190, %v5464
  %v5473 = vadd.f32 %v271, %v5465
  %v5474 = vadd.f32 %v273, %v5466
  %v5475 = vxor.u32 %v5471, 2147483648
  %v5476 = vmul.f32 %v5475, 1.442695
  %v5477 = vpow.pop %v5476
  %v5478 = vadd.f32 %v5477, 1.0
  %v5479 = vrcp.pop %v5478
  %v5480 = vmul.f32 1.0, %v5479
  %v5481 = vxor.u32 %v5472, 2147483648
  %v5482 = vmul.f32 %v5481, 1.442695
  %v5483 = vpow.pop %v5482
  %v5484 = vadd.f32 %v5483, 1.0
  %v5485 = vrcp.pop %v5484
  %v5486 = vmul.f32 1.0, %v5485
  %v5487 = vtanh.pop %v5473
  %v5488 = vxor.u32 %v5474, 2147483648
  %v5489 = vmul.f32 %v5488, 1.442695
  %v5490 = vpow.pop %v5489
  %v5491 = vadd.f32 %v5490, 1.0
  %v5492 = vrcp.pop %v5491
  %v5493 = vmul.f32 1.0, %v5492
  %v5495 = vrot.slane %v4784, 6
  %v5497 = vmul.f32 %v5486, %v5495
  %v5498 = vmul.f32 %v5480, %v5487
  %v5499 = vadd.f32 %v5497, %v5498
  %v5500 = vtanh.pop %v5499
  %v5501 = vmul.f32 %v5493, %v5500
  %v5502 = vld [vmem:[%s5] sm:$0xff]
  %v5503 = vld [vmem:[%s5 + $0x8] sm:$0xff]
  %v5504 = vld [vmem:[%s5 + $0x10] sm:$0xff]
  %v5505 = vld [vmem:[%s5 + $0x18] sm:$0xff]
  %v5506 = vld [vmem:[%s5 + $0x20] sm:$0xff]
  %v5507 = vld [vmem:[%s5 + $0x28] sm:$0xff]
  %v5508 = vld [vmem:[%s5 + $0x30] sm:$0xff]
  %v5509 = vld [vmem:[%s5 + $0x38] sm:$0xff]
  %v5510 = vld [vmem:[%s5 + $0x40] sm:$0xff]
  %v5511 = vld [vmem:[%s5 + $0x48] sm:$0xff]
  %v5512 = vld [vmem:[%s5 + $0x50] sm:$0xff]
  %v5513 = vld [vmem:[%s5 + $0x58] sm:$0xff]
  %v5514 = vld [vmem:[%s5 + $0x60] sm:$0xff]
  %v5515 = vld [vmem:[%s5 + $0x68] sm:$0xff]
  %v5516 = vld [vmem:[%s5 + $0x70] sm:$0xff]
  %v5517 = vld [vmem:[%s5 + $0x78] sm:$0xff]
  %v5518 = vld [vmem:[%s5 + $0x80] sm:$0xff]
  %v5519 = vld [vmem:[%s5 + $0x88] sm:$0xff]
  %v5520 = vld [vmem:[%s5 + $0x90] sm:$0xff]
  %v5521 = vld [vmem:[%s5 + $0x98] sm:$0xff]
  %v5522 = vld [vmem:[%s5 + $0xa0] sm:$0xff]
  %v5523 = vld [vmem:[%s5 + $0xa8] sm:$0xff]
  %v5524 = vld [vmem:[%s5 + $0xb0] sm:$0xff]
  %v5525 = vld [vmem:[%s5 + $0xb8] sm:$0xff]
  %v5526 = vld [vmem:[%s5 + $0xc0] sm:$0xff]
  %v5527 = vld [vmem:[%s5 + $0xc8] sm:$0xff]
  %v5528 = vld [vmem:[%s5 + $0xd0] sm:$0xff]
  %v5529 = vld [vmem:[%s5 + $0xd8] sm:$0xff]
  %v5530 = vld [vmem:[%s5 + $0xe0] sm:$0xff]
  %v5531 = vld [vmem:[%s5 + $0xe8] sm:$0xff]
  %v5532 = vld [vmem:[%s5 + $0xf0] sm:$0xff]
  %v5533 = vld [vmem:[%s5 + $0xf8] sm:$0xff]
  %v5534 = vld [vmem:[%s5 + $0x100] sm:$0xff]
  %v5535 = vld [vmem:[%s5 + $0x108] sm:$0xff]
  %v5536 = vld [vmem:[%s5 + $0x110] sm:$0xff]
  %v5537 = vld [vmem:[%s5 + $0x118] sm:$0xff]
  %v5538 = vld [vmem:[%s5 + $0x120] sm:$0xff]
  %v5539 = vld [vmem:[%s5 + $0x128] sm:$0xff]
  %v5540 = vld [vmem:[%s5 + $0x130] sm:$0xff]
  %v5541 = vld [vmem:[%s5 + $0x138] sm:$0xff]
  %v5542 = vld [vmem:[%s5 + $0x140] sm:$0xff]
  %v5543 = vld [vmem:[%s5 + $0x148] sm:$0xff]
  %v5544 = vld [vmem:[%s5 + $0x150] sm:$0xff]
  %v5545 = vld [vmem:[%s5 + $0x158] sm:$0xff]
  %v5546 = vld [vmem:[%s5 + $0x160] sm:$0xff]
  %v5547 = vld [vmem:[%s5 + $0x168] sm:$0xff]
  %v5548 = vld [vmem:[%s5 + $0x170] sm:$0xff]
  %v5549 = vld [vmem:[%s5 + $0x178] sm:$0xff]
  %v5550 = vld [vmem:[%s5 + $0x180] sm:$0xff]
  %v5551 = vld [vmem:[%s5 + $0x188] sm:$0xff]
  %v5552 = vld [vmem:[%s5 + $0x190] sm:$0xff]
  %v5553 = vld [vmem:[%s5 + $0x198] sm:$0xff]
  %v5554 = vld [vmem:[%s5 + $0x1a0] sm:$0xff]
  %v5555 = vld [vmem:[%s5 + $0x1a8] sm:$0xff]
  %v5556 = vld [vmem:[%s5 + $0x1b0] sm:$0xff]
  %v5557 = vld [vmem:[%s5 + $0x1b8] sm:$0xff]
  %v5558 = vld [vmem:[%s5 + $0x1c0] sm:$0xff]
  %v5559 = vld [vmem:[%s5 + $0x1c8] sm:$0xff]
  %v5560 = vld [vmem:[%s5 + $0x1d0] sm:$0xff]
  %v5561 = vld [vmem:[%s5 + $0x1d8] sm:$0xff]
  %v5562 = vld [vmem:[%s5 + $0x1e0] sm:$0xff]
  %v5563 = vld [vmem:[%s5 + $0x1e8] sm:$0xff]
  %v5564 = vld [vmem:[%s5 + $0x1f0] sm:$0xff]
  %v5565 = vld [vmem:[%s5 + $0x1f8] sm:$0xff]
  %v5566 = vld [vmem:[%s4] sm:$0xff]
  %v5567 = vld [vmem:[%s4 + $0x8] sm:$0xff]
  %v5568 = vld [vmem:[%s4 + $0x10] sm:$0xff]
  %v5569 = vld [vmem:[%s4 + $0x18] sm:$0xff]
  %v5570 = vld [vmem:[%s4 + $0x20] sm:$0xff]
  %v5571 = vld [vmem:[%s4 + $0x28] sm:$0xff]
  %v5572 = vld [vmem:[%s4 + $0x30] sm:$0xff]
  %v5573 = vld [vmem:[%s4 + $0x38] sm:$0xff]
  %v5574 = vld [vmem:[%s4 + $0x40] sm:$0xff]
  %v5575 = vld [vmem:[%s4 + $0x48] sm:$0xff]
  %v5576 = vld [vmem:[%s4 + $0x50] sm:$0xff]
  %v5577 = vld [vmem:[%s4 + $0x58] sm:$0xff]
  %v5578 = vld [vmem:[%s4 + $0x60] sm:$0xff]
  %v5579 = vld [vmem:[%s4 + $0x68] sm:$0xff]
  %v5580 = vld [vmem:[%s4 + $0x70] sm:$0xff]
  %v5581 = vld [vmem:[%s4 + $0x78] sm:$0xff]
  %v5582 = vld [vmem:[%s4 + $0x80] sm:$0xff]
  %v5583 = vld [vmem:[%s4 + $0x88] sm:$0xff]
  %v5584 = vld [vmem:[%s4 + $0x90] sm:$0xff]
  %v5585 = vld [vmem:[%s4 + $0x98] sm:$0xff]
  %v5586 = vld [vmem:[%s4 + $0xa0] sm:$0xff]
  %v5587 = vld [vmem:[%s4 + $0xa8] sm:$0xff]
  %v5588 = vld [vmem:[%s4 + $0xb0] sm:$0xff]
  %v5589 = vld [vmem:[%s4 + $0xb8] sm:$0xff]
  %v5590 = vld [vmem:[%s4 + $0xc0] sm:$0xff]
  %v5591 = vld [vmem:[%s4 + $0xc8] sm:$0xff]
  %v5592 = vld [vmem:[%s4 + $0xd0] sm:$0xff]
  %v5593 = vld [vmem:[%s4 + $0xd8] sm:$0xff]
  %v5594 = vld [vmem:[%s4 + $0xe0] sm:$0xff]
  %v5595 = vld [vmem:[%s4 + $0xe8] sm:$0xff]
  %v5596 = vld [vmem:[%s4 + $0xf0] sm:$0xff]
  %v5597 = vld [vmem:[%s4 + $0xf8] sm:$0xff]
  %v5598 = vld [vmem:[%s4 + $0x100] sm:$0xff]
  %v5599 = vld [vmem:[%s4 + $0x108] sm:$0xff]
  %v5600 = vld [vmem:[%s4 + $0x110] sm:$0xff]
  %v5601 = vld [vmem:[%s4 + $0x118] sm:$0xff]
  %v5602 = vld [vmem:[%s4 + $0x120] sm:$0xff]
  %v5603 = vld [vmem:[%s4 + $0x128] sm:$0xff]
  %v5604 = vld [vmem:[%s4 + $0x130] sm:$0xff]
  %v5605 = vld [vmem:[%s4 + $0x138] sm:$0xff]
  %v5606 = vld [vmem:[%s4 + $0x140] sm:$0xff]
  %v5607 = vld [vmem:[%s4 + $0x148] sm:$0xff]
  %v5608 = vld [vmem:[%s4 + $0x150] sm:$0xff]
  %v5609 = vld [vmem:[%s4 + $0x158] sm:$0xff]
  %v5610 = vld [vmem:[%s4 + $0x160] sm:$0xff]
  %v5611 = vld [vmem:[%s4 + $0x168] sm:$0xff]
  %v5612 = vld [vmem:[%s4 + $0x170] sm:$0xff]
  %v5613 = vld [vmem:[%s4 + $0x178] sm:$0xff]
  %v5614 = vld [vmem:[%s4 + $0x180] sm:$0xff]
  %v5615 = vld [vmem:[%s4 + $0x188] sm:$0xff]
  %v5616 = vld [vmem:[%s4 + $0x190] sm:$0xff]
  %v5617 = vld [vmem:[%s4 + $0x198] sm:$0xff]
  %v5618 = vld [vmem:[%s4 + $0x1a0] sm:$0xff]
  %v5619 = vld [vmem:[%s4 + $0x1a8] sm:$0xff]
  %v5620 = vld [vmem:[%s4 + $0x1b0] sm:$0xff]
  %v5621 = vld [vmem:[%s4 + $0x1b8] sm:$0xff]
  %v5622 = vld [vmem:[%s4 + $0x1c0] sm:$0xff]
  %v5623 = vld [vmem:[%s4 + $0x1c8] sm:$0xff]
  %v5624 = vld [vmem:[%s4 + $0x1d0] sm:$0xff]
  %v5625 = vld [vmem:[%s4 + $0x1d8] sm:$0xff]
  %v5626 = vld [vmem:[%s4 + $0x1e0] sm:$0xff]
  %v5627 = vld [vmem:[%s4 + $0x1e8] sm:$0xff]
  %v5628 = vld [vmem:[%s4 + $0x1f0] sm:$0xff]
  %v5629 = vld [vmem:[%s4 + $0x1f8] sm:$0xff]
  %5630 = vmatprep.subr.mxu0 %v5503
  %5631 = vmatpush1.msra.mxu0 %v5502
  %5632 = vmatprep.subr.mxu0 %v5507
  %5633 = vmatpush1.msra.mxu0 %v5506
  %5634 = vmatprep.subr.mxu0 %v5511
  %5635 = vmatpush1.msra.mxu0 %v5510
  %5636 = vmatprep.subr.mxu0 %v5515
  %5637 = vmatpush1.msra.mxu0 %v5514
  %5638 = vmatprep.subr.mxu0 %v5519
  %5639 = vmatpush1.msra.mxu0 %v5518
  %5640 = vmatprep.subr.mxu0 %v5523
  %5641 = vmatpush1.msra.mxu0 %v5522
  %5642 = vmatprep.subr.mxu0 %v5527
  %5643 = vmatpush1.msra.mxu0 %v5526
  %5644 = vmatprep.subr.mxu0 %v5531
  %5645 = vmatpush1.msra.mxu0 %v5530
  %5646 = vmatprep.subr.mxu0 %v5535
  %5647 = vmatpush1.msra.mxu0 %v5534
  %5648 = vmatprep.subr.mxu0 %v5539
  %5649 = vmatpush1.msra.mxu0 %v5538
  %5650 = vmatprep.subr.mxu0 %v5543
  %5651 = vmatpush1.msra.mxu0 %v5542
  %5652 = vmatprep.subr.mxu0 %v5547
  %5653 = vmatpush1.msra.mxu0 %v5546
  %5654 = vmatprep.subr.mxu0 %v5551
  %5655 = vmatpush1.msra.mxu0 %v5550
  %5656 = vmatprep.subr.mxu0 %v5555
  %5657 = vmatpush1.msra.mxu0 %v5554
  %5658 = vmatprep.subr.mxu0 %v5559
  %5659 = vmatpush1.msra.mxu0 %v5558
  %5660 = vmatprep.subr.mxu0 %v5563
  %5661 = vmatpush1.msra.mxu0 %v5562
  %5662 = vmatprep.subr.mxu0 0.0
  %5663 = vmatpush1.msra.mxu0 0.0
  %5664 = vmatprep.subr.mxu0 0.0
  %5665 = vmatpush1.msra.mxu0 0.0
  %5666 = vmatprep.subr.mxu0 0.0
  %5667 = vmatpush1.msra.mxu0 0.0
  %5668 = vmatprep.subr.mxu0 0.0
  %5669 = vmatpush1.msra.mxu0 0.0
  %5670 = vmatprep.subr.mxu0 0.0
  %5671 = vmatpush1.msra.mxu0 0.0
  %5672 = vmatprep.subr.mxu0 0.0
  %5673 = vmatpush1.msra.mxu0 0.0
  %5674 = vmatprep.subr.mxu0 0.0
  %5675 = vmatpush1.msra.mxu0 0.0
  %5676 = vmatprep.subr.mxu0 0.0
  %5677 = vmatpush1.msra.mxu0 0.0
  %5678 = vmatprep.subr.mxu0 0.0
  %5679 = vmatpush1.msra.mxu0 0.0
  %5680 = vmatprep.subr.mxu0 0.0
  %5681 = vmatpush1.msra.mxu0 0.0
  %5682 = vmatprep.subr.mxu0 0.0
  %5683 = vmatpush1.msra.mxu0 0.0
  %5684 = vmatprep.subr.mxu0 0.0
  %5685 = vmatpush1.msra.mxu0 0.0
  %5686 = vmatprep.subr.mxu0 0.0
  %5687 = vmatpush1.msra.mxu0 0.0
  %5688 = vmatprep.subr.mxu0 0.0
  %5689 = vmatpush1.msra.mxu0 0.0
  %5690 = vmatprep.subr.mxu0 0.0
  %5691 = vmatpush1.msra.mxu0 0.0
  %5692 = vmatprep.subr.mxu0 0.0
  %5693 = vmatpush1.msra.mxu0 0.0
  %5694 = vmatprep.mubr.f32.mxu0 0.0
  %5695 = vmatmul.mubr.f32.gmra.mrb[0].mxu0 %v5251
  %v5696 = vpop.f32.mrb[0].mxu0
  %v5697 = vadd.f32 0.0, %v5696
  %v5698 = vpop.f32.mrb[0].mxu0
  %v5699 = vadd.f32 0.0, %v5698
  %5700 = vdwg.mxu0
  %5701 = vmatprep.subr.mxu0 %v5505
  %5702 = vmatpush1.msra.mxu0 %v5504
  %5703 = vmatprep.subr.mxu0 %v5509
  %5704 = vmatpush1.msra.mxu0 %v5508
  %5705 = vmatprep.subr.mxu0 %v5513
  %5706 = vmatpush1.msra.mxu0 %v5512
  %5707 = vmatprep.subr.mxu0 %v5517
  %5708 = vmatpush1.msra.mxu0 %v5516
  %5709 = vmatprep.subr.mxu0 %v5521
  %5710 = vmatpush1.msra.mxu0 %v5520
  %5711 = vmatprep.subr.mxu0 %v5525
  %5712 = vmatpush1.msra.mxu0 %v5524
  %5713 = vmatprep.subr.mxu0 %v5529
  %5714 = vmatpush1.msra.mxu0 %v5528
  %5715 = vmatprep.subr.mxu0 %v5533
  %5716 = vmatpush1.msra.mxu0 %v5532
  %5717 = vmatprep.subr.mxu0 %v5537
  %5718 = vmatpush1.msra.mxu0 %v5536
  %5719 = vmatprep.subr.mxu0 %v5541
  %5720 = vmatpush1.msra.mxu0 %v5540
  %5721 = vmatprep.subr.mxu0 %v5545
  %5722 = vmatpush1.msra.mxu0 %v5544
  %5723 = vmatprep.subr.mxu0 %v5549
  %5724 = vmatpush1.msra.mxu0 %v5548
  %5725 = vmatprep.subr.mxu0 %v5553
  %5726 = vmatpush1.msra.mxu0 %v5552
  %5727 = vmatprep.subr.mxu0 %v5557
  %5728 = vmatpush1.msra.mxu0 %v5556
  %5729 = vmatprep.subr.mxu0 %v5561
  %5730 = vmatpush1.msra.mxu0 %v5560
  %5731 = vmatprep.subr.mxu0 %v5565
  %5732 = vmatpush1.msra.mxu0 %v5564
  %5733 = vmatprep.subr.mxu0 0.0
  %5734 = vmatpush1.msra.mxu0 0.0
  %5735 = vmatprep.subr.mxu0 0.0
  %5736 = vmatpush1.msra.mxu0 0.0
  %5737 = vmatprep.subr.mxu0 0.0
  %5738 = vmatpush1.msra.mxu0 0.0
  %5739 = vmatprep.subr.mxu0 0.0
  %5740 = vmatpush1.msra.mxu0 0.0
  %5741 = vmatprep.subr.mxu0 0.0
  %5742 = vmatpush1.msra.mxu0 0.0
  %5743 = vmatprep.subr.mxu0 0.0
  %5744 = vmatpush1.msra.mxu0 0.0
  %5745 = vmatprep.subr.mxu0 0.0
  %5746 = vmatpush1.msra.mxu0 0.0
  %5747 = vmatprep.subr.mxu0 0.0
  %5748 = vmatpush1.msra.mxu0 0.0
  %5749 = vmatprep.subr.mxu0 0.0
  %5750 = vmatpush1.msra.mxu0 0.0
  %5751 = vmatprep.subr.mxu0 0.0
  %5752 = vmatpush1.msra.mxu0 0.0
  %5753 = vmatprep.subr.mxu0 0.0
  %5754 = vmatpush1.msra.mxu0 0.0
  %5755 = vmatprep.subr.mxu0 0.0
  %5756 = vmatpush1.msra.mxu0 0.0
  %5757 = vmatprep.subr.mxu0 0.0
  %5758 = vmatpush1.msra.mxu0 0.0
  %5759 = vmatprep.subr.mxu0 0.0
  %5760 = vmatpush1.msra.mxu0 0.0
  %5761 = vmatprep.subr.mxu0 0.0
  %5762 = vmatpush1.msra.mxu0 0.0
  %5763 = vmatprep.subr.mxu0 0.0
  %5764 = vmatpush1.msra.mxu0 0.0
  %5765 = vmatprep.mubr.f32.mxu0 0.0
  %5766 = vmatmul.mubr.f32.gmra.mrb[0].mxu0 %v5251
  %v5767 = vpop.f32.mrb[0].mxu0
  %v5768 = vadd.f32 0.0, %v5767
  %v5769 = vpop.f32.mrb[0].mxu0
  %v5770 = vadd.f32 0.0, %v5769
  %5771 = vdwg.mxu0
  %v5773 = vrot.slane %v5501, 6
  %5775 = vmatprep.subr.mxu0 %v5567
  %5776 = vmatpush1.msra.mxu0 %v5566
  %5777 = vmatprep.subr.mxu0 %v5571
  %5778 = vmatpush1.msra.mxu0 %v5570
  %5779 = vmatprep.subr.mxu0 %v5575
  %5780 = vmatpush1.msra.mxu0 %v5574
  %5781 = vmatprep.subr.mxu0 %v5579
  %5782 = vmatpush1.msra.mxu0 %v5578
  %5783 = vmatprep.subr.mxu0 %v5583
  %5784 = vmatpush1.msra.mxu0 %v5582
  %5785 = vmatprep.subr.mxu0 %v5587
  %5786 = vmatpush1.msra.mxu0 %v5586
  %5787 = vmatprep.subr.mxu0 %v5591
  %5788 = vmatpush1.msra.mxu0 %v5590
  %5789 = vmatprep.subr.mxu0 %v5595
  %5790 = vmatpush1.msra.mxu0 %v5594
  %5791 = vmatprep.subr.mxu0 %v5599
  %5792 = vmatpush1.msra.mxu0 %v5598
  %5793 = vmatprep.subr.mxu0 %v5603
  %5794 = vmatpush1.msra.mxu0 %v5602
  %5795 = vmatprep.subr.mxu0 %v5607
  %5796 = vmatpush1.msra.mxu0 %v5606
  %5797 = vmatprep.subr.mxu0 %v5611
  %5798 = vmatpush1.msra.mxu0 %v5610
  %5799 = vmatprep.subr.mxu0 %v5615
  %5800 = vmatpush1.msra.mxu0 %v5614
  %5801 = vmatprep.subr.mxu0 %v5619
  %5802 = vmatpush1.msra.mxu0 %v5618
  %5803 = vmatprep.subr.mxu0 %v5623
  %5804 = vmatpush1.msra.mxu0 %v5622
  %5805 = vmatprep.subr.mxu0 %v5627
  %5806 = vmatpush1.msra.mxu0 %v5626
  %5807 = vmatprep.subr.mxu0 0.0
  %5808 = vmatpush1.msra.mxu0 0.0
  %5809 = vmatprep.subr.mxu0 0.0
  %5810 = vmatpush1.msra.mxu0 0.0
  %5811 = vmatprep.subr.mxu0 0.0
  %5812 = vmatpush1.msra.mxu0 0.0
  %5813 = vmatprep.subr.mxu0 0.0
  %5814 = vmatpush1.msra.mxu0 0.0
  %5815 = vmatprep.subr.mxu0 0.0
  %5816 = vmatpush1.msra.mxu0 0.0
  %5817 = vmatprep.subr.mxu0 0.0
  %5818 = vmatpush1.msra.mxu0 0.0
  %5819 = vmatprep.subr.mxu0 0.0
  %5820 = vmatpush1.msra.mxu0 0.0
  %5821 = vmatprep.subr.mxu0 0.0
  %5822 = vmatpush1.msra.mxu0 0.0
  %5823 = vmatprep.subr.mxu0 0.0
  %5824 = vmatpush1.msra.mxu0 0.0
  %5825 = vmatprep.subr.mxu0 0.0
  %5826 = vmatpush1.msra.mxu0 0.0
  %5827 = vmatprep.subr.mxu0 0.0
  %5828 = vmatpush1.msra.mxu0 0.0
  %5829 = vmatprep.subr.mxu0 0.0
  %5830 = vmatpush1.msra.mxu0 0.0
  %5831 = vmatprep.subr.mxu0 0.0
  %5832 = vmatpush1.msra.mxu0 0.0
  %5833 = vmatprep.subr.mxu0 0.0
  %5834 = vmatpush1.msra.mxu0 0.0
  %5835 = vmatprep.subr.mxu0 0.0
  %5836 = vmatpush1.msra.mxu0 0.0
  %5837 = vmatprep.subr.mxu0 0.0
  %5838 = vmatpush1.msra.mxu0 0.0
  %5839 = vmatprep.mubr.f32.mxu0 0.0
  %5840 = vmatmul.mubr.f32.gmra.mrb[0].mxu0 %v5773
  %v5841 = vpop.f32.mrb[0].mxu0
  %v5842 = vadd.f32 %v5697, %v5841
  %v5843 = vpop.f32.mrb[0].mxu0
  %v5844 = vadd.f32 %v5699, %v5843
  %5845 = vdwg.mxu0
  %5846 = vmatprep.subr.mxu0 %v5569
  %5847 = vmatpush1.msra.mxu0 %v5568
  %5848 = vmatprep.subr.mxu0 %v5573
  %5849 = vmatpush1.msra.mxu0 %v5572
  %5850 = vmatprep.subr.mxu0 %v5577
  %5851 = vmatpush1.msra.mxu0 %v5576
  %5852 = vmatprep.subr.mxu0 %v5581
  %5853 = vmatpush1.msra.mxu0 %v5580
  %5854 = vmatprep.subr.mxu0 %v5585
  %5855 = vmatpush1.msra.mxu0 %v5584
  %5856 = vmatprep.subr.mxu0 %v5589
  %5857 = vmatpush1.msra.mxu0 %v5588
  %5858 = vmatprep.subr.mxu0 %v5593
  %5859 = vmatpush1.msra.mxu0 %v5592
  %5860 = vmatprep.subr.mxu0 %v5597
  %5861 = vmatpush1.msra.mxu0 %v5596
  %5862 = vmatprep.subr.mxu0 %v5601
  %5863 = vmatpush1.msra.mxu0 %v5600
  %5864 = vmatprep.subr.mxu0 %v5605
  %5865 = vmatpush1.msra.mxu0 %v5604
  %5866 = vmatprep.subr.mxu0 %v5609
  %5867 = vmatpush1.msra.mxu0 %v5608
  %5868 = vmatprep.subr.mxu0 %v5613
  %5869 = vmatpush1.msra.mxu0 %v5612
  %5870 = vmatprep.subr.mxu0 %v5617
  %5871 = vmatpush1.msra.mxu0 %v5616
  %5872 = vmatprep.subr.mxu0 %v5621
  %5873 = vmatpush1.msra.mxu0 %v5620
  %5874 = vmatprep.subr.mxu0 %v5625
  %5875 = vmatpush1.msra.mxu0 %v5624
  %5876 = vmatprep.subr.mxu0 %v5629
  %5877 = vmatpush1.msra.mxu0 %v5628
  %5878 = vmatprep.subr.mxu0 0.0
  %5879 = vmatpush1.msra.mxu0 0.0
  %5880 = vmatprep.subr.mxu0 0.0
  %5881 = vmatpush1.msra.mxu0 0.0
  %5882 = vmatprep.subr.mxu0 0.0
  %5883 = vmatpush1.msra.mxu0 0.0
  %5884 = vmatprep.subr.mxu0 0.0
  %5885 = vmatpush1.msra.mxu0 0.0
  %5886 = vmatprep.subr.mxu0 0.0
  %5887 = vmatpush1.msra.mxu0 0.0
  %5888 = vmatprep.subr.mxu0 0.0
  %5889 = vmatpush1.msra.mxu0 0.0
  %5890 = vmatprep.subr.mxu0 0.0
  %5891 = vmatpush1.msra.mxu0 0.0
  %5892 = vmatprep.subr.mxu0 0.0
  %5893 = vmatpush1.msra.mxu0 0.0
  %5894 = vmatprep.subr.mxu0 0.0
  %5895 = vmatpush1.msra.mxu0 0.0
  %5896 = vmatprep.subr.mxu0 0.0
  %5897 = vmatpush1.msra.mxu0 0.0
  %5898 = vmatprep.subr.mxu0 0.0
  %5899 = vmatpush1.msra.mxu0 0.0
  %5900 = vmatprep.subr.mxu0 0.0
  %5901 = vmatpush1.msra.mxu0 0.0
  %5902 = vmatprep.subr.mxu0 0.0
  %5903 = vmatpush1.msra.mxu0 0.0
  %5904 = vmatprep.subr.mxu0 0.0
  %5905 = vmatpush1.msra.mxu0 0.0
  %5906 = vmatprep.subr.mxu0 0.0
  %5907 = vmatpush1.msra.mxu0 0.0
  %5908 = vmatprep.subr.mxu0 0.0
  %5909 = vmatpush1.msra.mxu0 0.0
  %5910 = vmatprep.mubr.f32.mxu0 0.0
  %5911 = vmatmul.mubr.f32.gmra.mrb[0].mxu0 %v5773
  %v5912 = vpop.f32.mrb[0].mxu0
  %v5913 = vadd.f32 %v5768, %v5912
  %v5914 = vpop.f32.mrb[0].mxu0
  %v5915 = vadd.f32 %v5770, %v5914
  %5916 = vdwg.mxu0
  %v5917 = vld [vmem:[%s6] sm:$0xf]
  %v5919 = vlaneseq
  %v5920 = vshrl.u32 %v5919, 7
  %v5921 = vsub.s32 0, %v5920
  %v5922 = vrot.slane %v5917, %v5921
  %v5923 = vlaneseq
  %v5924 = vshrl.u32 %v5923, 7
  %v5925 = vsub.s32 1, %v5924
  %v5926 = vrot.slane %v5917, %v5925
  %v5927 = vlaneseq
  %v5928 = vshrl.u32 %v5927, 7
  %v5929 = vsub.s32 2, %v5928
  %v5930 = vrot.slane %v5917, %v5929
  %v5931 = vlaneseq
  %v5932 = vshrl.u32 %v5931, 7
  %v5933 = vsub.s32 3, %v5932
  %v5934 = vrot.slane %v5917, %v5933
  %v5939 = vadd.f32 %v5842, %v5922
  %v5940 = vadd.f32 %v5844, %v5926
  %v5941 = vadd.f32 %v5913, %v5930
  %v5942 = vadd.f32 %v5915, %v5934
  %v5943 = vxor.u32 %v5939, 2147483648
  %v5944 = vmul.f32 %v5943, 1.442695
  %v5945 = vpow.pop %v5944
  %v5946 = vadd.f32 %v5945, 1.0
  %v5947 = vrcp.pop %v5946
  %v5948 = vmul.f32 1.0, %v5947
  %v5949 = vxor.u32 %v5940, 2147483648
  %v5950 = vmul.f32 %v5949, 1.442695
  %v5951 = vpow.pop %v5950
  %v5952 = vadd.f32 %v5951, 1.0
  %v5953 = vrcp.pop %v5952
  %v5954 = vmul.f32 1.0, %v5953
  %v5955 = vtanh.pop %v5941
  %v5956 = vxor.u32 %v5942, 2147483648
  %v5957 = vmul.f32 %v5956, 1.442695
  %v5958 = vpow.pop %v5957
  %v5959 = vadd.f32 %v5958, 1.0
  %v5960 = vrcp.pop %v5959
  %v5961 = vmul.f32 1.0, %v5960
  %v5962 = vmul.f32 %v5954, %v5249
  %v5963 = vmul.f32 %v5948, %v5955
  %v5964 = vadd.f32 %v5962, %v5963
  %v5965 = vtanh.pop %v5964
  %v5966 = vmul.f32 %v5961, %v5965
  %5967 = vst [vmem:[%s7 + $0xe] sm:$0x3] %v5966
  %v5968 = vld [vmem:[%s2] sm:$0xff]
  %v5969 = vld [vmem:[%s2 + $0x8] sm:$0xff]
  %v5970 = vld [vmem:[%s2 + $0x10] sm:$0xff]
  %v5971 = vld [vmem:[%s2 + $0x18] sm:$0xff]
  %v5972 = vld [vmem:[%s2 + $0x20] sm:$0xff]
  %v5973 = vld [vmem:[%s2 + $0x28] sm:$0xff]
  %v5974 = vld [vmem:[%s2 + $0x30] sm:$0xff]
  %v5975 = vld [vmem:[%s2 + $0x38] sm:$0xff]
  %v5976 = vld [vmem:[%s2 + $0x40] sm:$0xff]
  %v5977 = vld [vmem:[%s2 + $0x48] sm:$0xff]
  %v5978 = vld [vmem:[%s2 + $0x50] sm:$0xff]
  %v5979 = vld [vmem:[%s2 + $0x58] sm:$0xff]
  %v5980 = vld [vmem:[%s2 + $0x60] sm:$0xff]
  %v5981 = vld [vmem:[%s2 + $0x68] sm:$0xff]
  %v5982 = vld [vmem:[%s2 + $0x70] sm:$0xff]
  %v5983 = vld [vmem:[%s2 + $0x78] sm:$0xff]
  %v5984 = vld [vmem:[%s2 + $0x80] sm:$0xff]
  %v5985 = vld [vmem:[%s2 + $0x88] sm:$0xff]
  %v5986 = vld [vmem:[%s2 + $0x90] sm:$0xff]
  %v5987 = vld [vmem:[%s2 + $0x98] sm:$0xff]
  %v5988 = vld [vmem:[%s2 + $0xa0] sm:$0xff]
  %v5989 = vld [vmem:[%s2 + $0xa8] sm:$0xff]
  %v5990 = vld [vmem:[%s2 + $0xb0] sm:$0xff]
  %v5991 = vld [vmem:[%s2 + $0xb8] sm:$0xff]
  %v5992 = vld [vmem:[%s2 + $0xc0] sm:$0xff]
  %v5993 = vld [vmem:[%s2 + $0xc8] sm:$0xff]
  %v5994 = vld [vmem:[%s2 + $0xd0] sm:$0xff]
  %v5995 = vld [vmem:[%s2 + $0xd8] sm:$0xff]
  %v5996 = vld [vmem:[%s2 + $0xe0] sm:$0xff]
  %v5997 = vld [vmem:[%s2 + $0xe8] sm:$0xff]
  %v5998 = vld [vmem:[%s2 + $0xf0] sm:$0xff]
  %v5999 = vld [vmem:[%s2 + $0xf8] sm:$0xff]
  %v6000 = vld [vmem:[%s2 + $0x100] sm:$0xff]
  %v6001 = vld [vmem:[%s2 + $0x108] sm:$0xff]
  %v6002 = vld [vmem:[%s2 + $0x110] sm:$0xff]
  %v6003 = vld [vmem:[%s2 + $0x118] sm:$0xff]
  %v6004 = vld [vmem:[%s2 + $0x120] sm:$0xff]
  %v6005 = vld [vmem:[%s2 + $0x128] sm:$0xff]
  %v6006 = vld [vmem:[%s2 + $0x130] sm:$0xff]
  %v6007 = vld [vmem:[%s2 + $0x138] sm:$0xff]
  %v6008 = vld [vmem:[%s2 + $0x140] sm:$0xff]
  %v6009 = vld [vmem:[%s2 + $0x148] sm:$0xff]
  %v6010 = vld [vmem:[%s2 + $0x150] sm:$0xff]
  %v6011 = vld [vmem:[%s2 + $0x158] sm:$0xff]
  %v6012 = vld [vmem:[%s2 + $0x160] sm:$0xff]
  %v6013 = vld [vmem:[%s2 + $0x168] sm:$0xff]
  %v6014 = vld [vmem:[%s2 + $0x170] sm:$0xff]
  %v6015 = vld [vmem:[%s2 + $0x178] sm:$0xff]
  %v6016 = vld [vmem:[%s2 + $0x180] sm:$0xff]
  %v6017 = vld [vmem:[%s2 + $0x188] sm:$0xff]
  %v6018 = vld [vmem:[%s2 + $0x190] sm:$0xff]
  %v6019 = vld [vmem:[%s2 + $0x198] sm:$0xff]
  %v6020 = vld [vmem:[%s2 + $0x1a0] sm:$0xff]
  %v6021 = vld [vmem:[%s2 + $0x1a8] sm:$0xff]
  %v6022 = vld [vmem:[%s2 + $0x1b0] sm:$0xff]
  %v6023 = vld [vmem:[%s2 + $0x1b8] sm:$0xff]
  %v6024 = vld [vmem:[%s2 + $0x1c0] sm:$0xff]
  %v6025 = vld [vmem:[%s2 + $0x1c8] sm:$0xff]
  %v6026 = vld [vmem:[%s2 + $0x1d0] sm:$0xff]
  %v6027 = vld [vmem:[%s2 + $0x1d8] sm:$0xff]
  %v6028 = vld [vmem:[%s2 + $0x1e0] sm:$0xff]
  %v6029 = vld [vmem:[%s2 + $0x1e8] sm:$0xff]
  %v6030 = vld [vmem:[%s2 + $0x1f0] sm:$0xff]
  %v6031 = vld [vmem:[%s2 + $0x1f8] sm:$0xff]
  %6032 = vmatprep.subr.mxu0 %v5969
  %6033 = vmatpush1.msra.mxu0 %v5968
  %6034 = vmatprep.subr.mxu0 %v5973
  %6035 = vmatpush1.msra.mxu0 %v5972
  %6036 = vmatprep.subr.mxu0 %v5977
  %6037 = vmatpush1.msra.mxu0 %v5976
  %6038 = vmatprep.subr.mxu0 %v5981
  %6039 = vmatpush1.msra.mxu0 %v5980
  %6040 = vmatprep.subr.mxu0 %v5985
  %6041 = vmatpush1.msra.mxu0 %v5984
  %6042 = vmatprep.subr.mxu0 %v5989
  %6043 = vmatpush1.msra.mxu0 %v5988
  %6044 = vmatprep.subr.mxu0 %v5993
  %6045 = vmatpush1.msra.mxu0 %v5992
  %6046 = vmatprep.subr.mxu0 %v5997
  %6047 = vmatpush1.msra.mxu0 %v5996
  %6048 = vmatprep.subr.mxu0 %v6001
  %6049 = vmatpush1.msra.mxu0 %v6000
  %6050 = vmatprep.subr.mxu0 %v6005
  %6051 = vmatpush1.msra.mxu0 %v6004
  %6052 = vmatprep.subr.mxu0 %v6009
  %6053 = vmatpush1.msra.mxu0 %v6008
  %6054 = vmatprep.subr.mxu0 %v6013
  %6055 = vmatpush1.msra.mxu0 %v6012
  %6056 = vmatprep.subr.mxu0 %v6017
  %6057 = vmatpush1.msra.mxu0 %v6016
  %6058 = vmatprep.subr.mxu0 %v6021
  %6059 = vmatpush1.msra.mxu0 %v6020
  %6060 = vmatprep.subr.mxu0 %v6025
  %6061 = vmatpush1.msra.mxu0 %v6024
  %6062 = vmatprep.subr.mxu0 %v6029
  %6063 = vmatpush1.msra.mxu0 %v6028
  %6064 = vmatprep.subr.mxu0 0.0
  %6065 = vmatpush1.msra.mxu0 0.0
  %6066 = vmatprep.subr.mxu0 0.0
  %6067 = vmatpush1.msra.mxu0 0.0
  %6068 = vmatprep.subr.mxu0 0.0
  %6069 = vmatpush1.msra.mxu0 0.0
  %6070 = vmatprep.subr.mxu0 0.0
  %6071 = vmatpush1.msra.mxu0 0.0
  %6072 = vmatprep.subr.mxu0 0.0
  %6073 = vmatpush1.msra.mxu0 0.0
  %6074 = vmatprep.subr.mxu0 0.0
  %6075 = vmatpush1.msra.mxu0 0.0
  %6076 = vmatprep.subr.mxu0 0.0
  %6077 = vmatpush1.msra.mxu0 0.0
  %6078 = vmatprep.subr.mxu0 0.0
  %6079 = vmatpush1.msra.mxu0 0.0
  %6080 = vmatprep.subr.mxu0 0.0
  %6081 = vmatpush1.msra.mxu0 0.0
  %6082 = vmatprep.subr.mxu0 0.0
  %6083 = vmatpush1.msra.mxu0 0.0
  %6084 = vmatprep.subr.mxu0 0.0
  %6085 = vmatpush1.msra.mxu0 0.0
  %6086 = vmatprep.subr.mxu0 0.0
  %6087 = vmatpush1.msra.mxu0 0.0
  %6088 = vmatprep.subr.mxu0 0.0
  %6089 = vmatpush1.msra.mxu0 0.0
  %6090 = vmatprep.subr.mxu0 0.0
  %6091 = vmatpush1.msra.mxu0 0.0
  %6092 = vmatprep.subr.mxu0 0.0
  %6093 = vmatpush1.msra.mxu0 0.0
  %6094 = vmatprep.subr.mxu0 0.0
  %6095 = vmatpush1.msra.mxu0 0.0
  %6096 = vmatprep.mubr.f32.mxu0 0.0
  %6097 = vmatmul.mubr.f32.gmra.mrb[0].mxu0 %v5773
  %v6098 = vpop.f32.mrb[0].mxu0
  %v6099 = vadd.f32 0.0, %v6098
  %v6100 = vpop.f32.mrb[0].mxu0
  %v6101 = vadd.f32 0.0, %v6100
  %6102 = vdwg.mxu0
  %6103 = vmatprep.subr.mxu0 %v5971
  %6104 = vmatpush1.msra.mxu0 %v5970
  %6105 = vmatprep.subr.mxu0 %v5975
  %6106 = vmatpush1.msra.mxu0 %v5974
  %6107 = vmatprep.subr.mxu0 %v5979
  %6108 = vmatpush1.msra.mxu0 %v5978
  %6109 = vmatprep.subr.mxu0 %v5983
  %6110 = vmatpush1.msra.mxu0 %v5982
  %6111 = vmatprep.subr.mxu0 %v5987
  %6112 = vmatpush1.msra.mxu0 %v5986
  %6113 = vmatprep.subr.mxu0 %v5991
  %6114 = vmatpush1.msra.mxu0 %v5990
  %6115 = vmatprep.subr.mxu0 %v5995
  %6116 = vmatpush1.msra.mxu0 %v5994
  %6117 = vmatprep.subr.mxu0 %v5999
  %6118 = vmatpush1.msra.mxu0 %v5998
  %6119 = vmatprep.subr.mxu0 %v6003
  %6120 = vmatpush1.msra.mxu0 %v6002
  %6121 = vmatprep.subr.mxu0 %v6007
  %6122 = vmatpush1.msra.mxu0 %v6006
  %6123 = vmatprep.subr.mxu0 %v6011
  %6124 = vmatpush1.msra.mxu0 %v6010
  %6125 = vmatprep.subr.mxu0 %v6015
  %6126 = vmatpush1.msra.mxu0 %v6014
  %6127 = vmatprep.subr.mxu0 %v6019
  %6128 = vmatpush1.msra.mxu0 %v6018
  %6129 = vmatprep.subr.mxu0 %v6023
  %6130 = vmatpush1.msra.mxu0 %v6022
  %6131 = vmatprep.subr.mxu0 %v6027
  %6132 = vmatpush1.msra.mxu0 %v6026
  %6133 = vmatprep.subr.mxu0 %v6031
  %6134 = vmatpush1.msra.mxu0 %v6030
  %6135 = vmatprep.subr.mxu0 0.0
  %6136 = vmatpush1.msra.mxu0 0.0
  %6137 = vmatprep.subr.mxu0 0.0
  %6138 = vmatpush1.msra.mxu0 0.0
  %6139 = vmatprep.subr.mxu0 0.0
  %6140 = vmatpush1.msra.mxu0 0.0
  %6141 = vmatprep.subr.mxu0 0.0
  %6142 = vmatpush1.msra.mxu0 0.0
  %6143 = vmatprep.subr.mxu0 0.0
  %6144 = vmatpush1.msra.mxu0 0.0
  %6145 = vmatprep.subr.mxu0 0.0
  %6146 = vmatpush1.msra.mxu0 0.0
  %6147 = vmatprep.subr.mxu0 0.0
  %6148 = vmatpush1.msra.mxu0 0.0
  %6149 = vmatprep.subr.mxu0 0.0
  %6150 = vmatpush1.msra.mxu0 0.0
  %6151 = vmatprep.subr.mxu0 0.0
  %6152 = vmatpush1.msra.mxu0 0.0
  %6153 = vmatprep.subr.mxu0 0.0
  %6154 = vmatpush1.msra.mxu0 0.0
  %6155 = vmatprep.subr.mxu0 0.0
  %6156 = vmatpush1.msra.mxu0 0.0
  %6157 = vmatprep.subr.mxu0 0.0
  %6158 = vmatpush1.msra.mxu0 0.0
  %6159 = vmatprep.subr.mxu0 0.0
  %6160 = vmatpush1.msra.mxu0 0.0
  %6161 = vmatprep.subr.mxu0 0.0
  %6162 = vmatpush1.msra.mxu0 0.0
  %6163 = vmatprep.subr.mxu0 0.0
  %6164 = vmatpush1.msra.mxu0 0.0
  %6165 = vmatprep.subr.mxu0 0.0
  %6166 = vmatpush1.msra.mxu0 0.0
  %6167 = vmatprep.mubr.f32.mxu0 0.0
  %6168 = vmatmul.mubr.f32.gmra.mrb[0].mxu0 %v5773
  %v6169 = vpop.f32.mrb[0].mxu0
  %v6170 = vadd.f32 0.0, %v6169
  %v6171 = vpop.f32.mrb[0].mxu0
  %v6172 = vadd.f32 0.0, %v6171
  %6173 = vdwg.mxu0
  %v6174 = vadd.f32 %v194, %v6099
  %v6175 = vadd.f32 %v196, %v6101
  %v6176 = vadd.f32 %v277, %v6170
  %v6177 = vadd.f32 %v279, %v6172
  %v6178 = vxor.u32 %v6174, 2147483648
  %v6179 = vmul.f32 %v6178, 1.442695
  %v6180 = vpow.pop %v6179
  %v6181 = vadd.f32 %v6180, 1.0
  %v6182 = vrcp.pop %v6181
  %v6183 = vmul.f32 1.0, %v6182
  %v6184 = vxor.u32 %v6175, 2147483648
  %v6185 = vmul.f32 %v6184, 1.442695
  %v6186 = vpow.pop %v6185
  %v6187 = vadd.f32 %v6186, 1.0
  %v6188 = vrcp.pop %v6187
  %v6189 = vmul.f32 1.0, %v6188
  %v6190 = vtanh.pop %v6176
  %v6191 = vxor.u32 %v6177, 2147483648
  %v6192 = vmul.f32 %v6191, 1.442695
  %v6193 = vpow.pop %v6192
  %v6194 = vadd.f32 %v6193, 1.0
  %v6195 = vrcp.pop %v6194
  %v6196 = vmul.f32 1.0, %v6195
  %v6198 = vrot.slane %v5499, 6
  %v6200 = vmul.f32 %v6189, %v6198
  %v6201 = vmul.f32 %v6183, %v6190
  %v6202 = vadd.f32 %v6200, %v6201
  %v6203 = vtanh.pop %v6202
  %v6204 = vmul.f32 %v6196, %v6203
  %v6205 = vld [vmem:[%s5] sm:$0xff]
  %v6206 = vld [vmem:[%s5 + $0x8] sm:$0xff]
  %v6207 = vld [vmem:[%s5 + $0x10] sm:$0xff]
  %v6208 = vld [vmem:[%s5 + $0x18] sm:$0xff]
  %v6209 = vld [vmem:[%s5 + $0x20] sm:$0xff]
  %v6210 = vld [vmem:[%s5 + $0x28] sm:$0xff]
  %v6211 = vld [vmem:[%s5 + $0x30] sm:$0xff]
  %v6212 = vld [vmem:[%s5 + $0x38] sm:$0xff]
  %v6213 = vld [vmem:[%s5 + $0x40] sm:$0xff]
  %v6214 = vld [vmem:[%s5 + $0x48] sm:$0xff]
  %v6215 = vld [vmem:[%s5 + $0x50] sm:$0xff]
  %v6216 = vld [vmem:[%s5 + $0x58] sm:$0xff]
  %v6217 = vld [vmem:[%s5 + $0x60] sm:$0xff]
  %v6218 = vld [vmem:[%s5 + $0x68] sm:$0xff]
  %v6219 = vld [vmem:[%s5 + $0x70] sm:$0xff]
  %v6220 = vld [vmem:[%s5 + $0x78] sm:$0xff]
  %v6221 = vld [vmem:[%s5 + $0x80] sm:$0xff]
  %v6222 = vld [vmem:[%s5 + $0x88] sm:$0xff]
  %v6223 = vld [vmem:[%s5 + $0x90] sm:$0xff]
  %v6224 = vld [vmem:[%s5 + $0x98] sm:$0xff]
  %v6225 = vld [vmem:[%s5 + $0xa0] sm:$0xff]
  %v6226 = vld [vmem:[%s5 + $0xa8] sm:$0xff]
  %v6227 = vld [vmem:[%s5 + $0xb0] sm:$0xff]
  %v6228 = vld [vmem:[%s5 + $0xb8] sm:$0xff]
  %v6229 = vld [vmem:[%s5 + $0xc0] sm:$0xff]
  %v6230 = vld [vmem:[%s5 + $0xc8] sm:$0xff]
  %v6231 = vld [vmem:[%s5 + $0xd0] sm:$0xff]
  %v6232 = vld [vmem:[%s5 + $0xd8] sm:$0xff]
  %v6233 = vld [vmem:[%s5 + $0xe0] sm:$0xff]
  %v6234 = vld [vmem:[%s5 + $0xe8] sm:$0xff]
  %v6235 = vld [vmem:[%s5 + $0xf0] sm:$0xff]
  %v6236 = vld [vmem:[%s5 + $0xf8] sm:$0xff]
  %v6237 = vld [vmem:[%s5 + $0x100] sm:$0xff]
  %v6238 = vld [vmem:[%s5 + $0x108] sm:$0xff]
  %v6239 = vld [vmem:[%s5 + $0x110] sm:$0xff]
  %v6240 = vld [vmem:[%s5 + $0x118] sm:$0xff]
  %v6241 = vld [vmem:[%s5 + $0x120] sm:$0xff]
  %v6242 = vld [vmem:[%s5 + $0x128] sm:$0xff]
  %v6243 = vld [vmem:[%s5 + $0x130] sm:$0xff]
  %v6244 = vld [vmem:[%s5 + $0x138] sm:$0xff]
  %v6245 = vld [vmem:[%s5 + $0x140] sm:$0xff]
  %v6246 = vld [vmem:[%s5 + $0x148] sm:$0xff]
  %v6247 = vld [vmem:[%s5 + $0x150] sm:$0xff]
  %v6248 = vld [vmem:[%s5 + $0x158] sm:$0xff]
  %v6249 = vld [vmem:[%s5 + $0x160] sm:$0xff]
  %v6250 = vld [vmem:[%s5 + $0x168] sm:$0xff]
  %v6251 = vld [vmem:[%s5 + $0x170] sm:$0xff]
  %v6252 = vld [vmem:[%s5 + $0x178] sm:$0xff]
  %v6253 = vld [vmem:[%s5 + $0x180] sm:$0xff]
  %v6254 = vld [vmem:[%s5 + $0x188] sm:$0xff]
  %v6255 = vld [vmem:[%s5 + $0x190] sm:$0xff]
  %v6256 = vld [vmem:[%s5 + $0x198] sm:$0xff]
  %v6257 = vld [vmem:[%s5 + $0x1a0] sm:$0xff]
  %v6258 = vld [vmem:[%s5 + $0x1a8] sm:$0xff]
  %v6259 = vld [vmem:[%s5 + $0x1b0] sm:$0xff]
  %v6260 = vld [vmem:[%s5 + $0x1b8] sm:$0xff]
  %v6261 = vld [vmem:[%s5 + $0x1c0] sm:$0xff]
  %v6262 = vld [vmem:[%s5 + $0x1c8] sm:$0xff]
  %v6263 = vld [vmem:[%s5 + $0x1d0] sm:$0xff]
  %v6264 = vld [vmem:[%s5 + $0x1d8] sm:$0xff]
  %v6265 = vld [vmem:[%s5 + $0x1e0] sm:$0xff]
  %v6266 = vld [vmem:[%s5 + $0x1e8] sm:$0xff]
  %v6267 = vld [vmem:[%s5 + $0x1f0] sm:$0xff]
  %v6268 = vld [vmem:[%s5 + $0x1f8] sm:$0xff]
  %v6269 = vld [vmem:[%s4] sm:$0xff]
  %v6270 = vld [vmem:[%s4 + $0x8] sm:$0xff]
  %v6271 = vld [vmem:[%s4 + $0x10] sm:$0xff]
  %v6272 = vld [vmem:[%s4 + $0x18] sm:$0xff]
  %v6273 = vld [vmem:[%s4 + $0x20] sm:$0xff]
  %v6274 = vld [vmem:[%s4 + $0x28] sm:$0xff]
  %v6275 = vld [vmem:[%s4 + $0x30] sm:$0xff]
  %v6276 = vld [vmem:[%s4 + $0x38] sm:$0xff]
  %v6277 = vld [vmem:[%s4 + $0x40] sm:$0xff]
  %v6278 = vld [vmem:[%s4 + $0x48] sm:$0xff]
  %v6279 = vld [vmem:[%s4 + $0x50] sm:$0xff]
  %v6280 = vld [vmem:[%s4 + $0x58] sm:$0xff]
  %v6281 = vld [vmem:[%s4 + $0x60] sm:$0xff]
  %v6282 = vld [vmem:[%s4 + $0x68] sm:$0xff]
  %v6283 = vld [vmem:[%s4 + $0x70] sm:$0xff]
  %v6284 = vld [vmem:[%s4 + $0x78] sm:$0xff]
  %v6285 = vld [vmem:[%s4 + $0x80] sm:$0xff]
  %v6286 = vld [vmem:[%s4 + $0x88] sm:$0xff]
  %v6287 = vld [vmem:[%s4 + $0x90] sm:$0xff]
  %v6288 = vld [vmem:[%s4 + $0x98] sm:$0xff]
  %v6289 = vld [vmem:[%s4 + $0xa0] sm:$0xff]
  %v6290 = vld [vmem:[%s4 + $0xa8] sm:$0xff]
  %v6291 = vld [vmem:[%s4 + $0xb0] sm:$0xff]
  %v6292 = vld [vmem:[%s4 + $0xb8] sm:$0xff]
  %v6293 = vld [vmem:[%s4 + $0xc0] sm:$0xff]
  %v6294 = vld [vmem:[%s4 + $0xc8] sm:$0xff]
  %v6295 = vld [vmem:[%s4 + $0xd0] sm:$0xff]
  %v6296 = vld [vmem:[%s4 + $0xd8] sm:$0xff]
  %v6297 = vld [vmem:[%s4 + $0xe0] sm:$0xff]
  %v6298 = vld [vmem:[%s4 + $0xe8] sm:$0xff]
  %v6299 = vld [vmem:[%s4 + $0xf0] sm:$0xff]
  %v6300 = vld [vmem:[%s4 + $0xf8] sm:$0xff]
  %v6301 = vld [vmem:[%s4 + $0x100] sm:$0xff]
  %v6302 = vld [vmem:[%s4 + $0x108] sm:$0xff]
  %v6303 = vld [vmem:[%s4 + $0x110] sm:$0xff]
  %v6304 = vld [vmem:[%s4 + $0x118] sm:$0xff]
  %v6305 = vld [vmem:[%s4 + $0x120] sm:$0xff]
  %v6306 = vld [vmem:[%s4 + $0x128] sm:$0xff]
  %v6307 = vld [vmem:[%s4 + $0x130] sm:$0xff]
  %v6308 = vld [vmem:[%s4 + $0x138] sm:$0xff]
  %v6309 = vld [vmem:[%s4 + $0x140] sm:$0xff]
  %v6310 = vld [vmem:[%s4 + $0x148] sm:$0xff]
  %v6311 = vld [vmem:[%s4 + $0x150] sm:$0xff]
  %v6312 = vld [vmem:[%s4 + $0x158] sm:$0xff]
  %v6313 = vld [vmem:[%s4 + $0x160] sm:$0xff]
  %v6314 = vld [vmem:[%s4 + $0x168] sm:$0xff]
  %v6315 = vld [vmem:[%s4 + $0x170] sm:$0xff]
  %v6316 = vld [vmem:[%s4 + $0x178] sm:$0xff]
  %v6317 = vld [vmem:[%s4 + $0x180] sm:$0xff]
  %v6318 = vld [vmem:[%s4 + $0x188] sm:$0xff]
  %v6319 = vld [vmem:[%s4 + $0x190] sm:$0xff]
  %v6320 = vld [vmem:[%s4 + $0x198] sm:$0xff]
  %v6321 = vld [vmem:[%s4 + $0x1a0] sm:$0xff]
  %v6322 = vld [vmem:[%s4 + $0x1a8] sm:$0xff]
  %v6323 = vld [vmem:[%s4 + $0x1b0] sm:$0xff]
  %v6324 = vld [vmem:[%s4 + $0x1b8] sm:$0xff]
  %v6325 = vld [vmem:[%s4 + $0x1c0] sm:$0xff]
  %v6326 = vld [vmem:[%s4 + $0x1c8] sm:$0xff]
  %v6327 = vld [vmem:[%s4 + $0x1d0] sm:$0xff]
  %v6328 = vld [vmem:[%s4 + $0x1d8] sm:$0xff]
  %v6329 = vld [vmem:[%s4 + $0x1e0] sm:$0xff]
  %v6330 = vld [vmem:[%s4 + $0x1e8] sm:$0xff]
  %v6331 = vld [vmem:[%s4 + $0x1f0] sm:$0xff]
  %v6332 = vld [vmem:[%s4 + $0x1f8] sm:$0xff]
  %6333 = vmatprep.subr.mxu0 %v6206
  %6334 = vmatpush1.msra.mxu0 %v6205
  %6335 = vmatprep.subr.mxu0 %v6210
  %6336 = vmatpush1.msra.mxu0 %v6209
  %6337 = vmatprep.subr.mxu0 %v6214
  %6338 = vmatpush1.msra.mxu0 %v6213
  %6339 = vmatprep.subr.mxu0 %v6218
  %6340 = vmatpush1.msra.mxu0 %v6217
  %6341 = vmatprep.subr.mxu0 %v6222
  %6342 = vmatpush1.msra.mxu0 %v6221
  %6343 = vmatprep.subr.mxu0 %v6226
  %6344 = vmatpush1.msra.mxu0 %v6225
  %6345 = vmatprep.subr.mxu0 %v6230
  %6346 = vmatpush1.msra.mxu0 %v6229
  %6347 = vmatprep.subr.mxu0 %v6234
  %6348 = vmatpush1.msra.mxu0 %v6233
  %6349 = vmatprep.subr.mxu0 %v6238
  %6350 = vmatpush1.msra.mxu0 %v6237
  %6351 = vmatprep.subr.mxu0 %v6242
  %6352 = vmatpush1.msra.mxu0 %v6241
  %6353 = vmatprep.subr.mxu0 %v6246
  %6354 = vmatpush1.msra.mxu0 %v6245
  %6355 = vmatprep.subr.mxu0 %v6250
  %6356 = vmatpush1.msra.mxu0 %v6249
  %6357 = vmatprep.subr.mxu0 %v6254
  %6358 = vmatpush1.msra.mxu0 %v6253
  %6359 = vmatprep.subr.mxu0 %v6258
  %6360 = vmatpush1.msra.mxu0 %v6257
  %6361 = vmatprep.subr.mxu0 %v6262
  %6362 = vmatpush1.msra.mxu0 %v6261
  %6363 = vmatprep.subr.mxu0 %v6266
  %6364 = vmatpush1.msra.mxu0 %v6265
  %6365 = vmatprep.subr.mxu0 0.0
  %6366 = vmatpush1.msra.mxu0 0.0
  %6367 = vmatprep.subr.mxu0 0.0
  %6368 = vmatpush1.msra.mxu0 0.0
  %6369 = vmatprep.subr.mxu0 0.0
  %6370 = vmatpush1.msra.mxu0 0.0
  %6371 = vmatprep.subr.mxu0 0.0
  %6372 = vmatpush1.msra.mxu0 0.0
  %6373 = vmatprep.subr.mxu0 0.0
  %6374 = vmatpush1.msra.mxu0 0.0
  %6375 = vmatprep.subr.mxu0 0.0
  %6376 = vmatpush1.msra.mxu0 0.0
  %6377 = vmatprep.subr.mxu0 0.0
  %6378 = vmatpush1.msra.mxu0 0.0
  %6379 = vmatprep.subr.mxu0 0.0
  %6380 = vmatpush1.msra.mxu0 0.0
  %6381 = vmatprep.subr.mxu0 0.0
  %6382 = vmatpush1.msra.mxu0 0.0
  %6383 = vmatprep.subr.mxu0 0.0
  %6384 = vmatpush1.msra.mxu0 0.0
  %6385 = vmatprep.subr.mxu0 0.0
  %6386 = vmatpush1.msra.mxu0 0.0
  %6387 = vmatprep.subr.mxu0 0.0
  %6388 = vmatpush1.msra.mxu0 0.0
  %6389 = vmatprep.subr.mxu0 0.0
  %6390 = vmatpush1.msra.mxu0 0.0
  %6391 = vmatprep.subr.mxu0 0.0
  %6392 = vmatpush1.msra.mxu0 0.0
  %6393 = vmatprep.subr.mxu0 0.0
  %6394 = vmatpush1.msra.mxu0 0.0
  %6395 = vmatprep.subr.mxu0 0.0
  %6396 = vmatpush1.msra.mxu0 0.0
  %6397 = vmatprep.mubr.f32.mxu0 0.0
  %6398 = vmatmul.mubr.f32.gmra.mrb[0].mxu0 %v5966
  %v6399 = vpop.f32.mrb[0].mxu0
  %v6400 = vadd.f32 0.0, %v6399
  %v6401 = vpop.f32.mrb[0].mxu0
  %v6402 = vadd.f32 0.0, %v6401
  %6403 = vdwg.mxu0
  %6404 = vmatprep.subr.mxu0 %v6208
  %6405 = vmatpush1.msra.mxu0 %v6207
  %6406 = vmatprep.subr.mxu0 %v6212
  %6407 = vmatpush1.msra.mxu0 %v6211
  %6408 = vmatprep.subr.mxu0 %v6216
  %6409 = vmatpush1.msra.mxu0 %v6215
  %6410 = vmatprep.subr.mxu0 %v6220
  %6411 = vmatpush1.msra.mxu0 %v6219
  %6412 = vmatprep.subr.mxu0 %v6224
  %6413 = vmatpush1.msra.mxu0 %v6223
  %6414 = vmatprep.subr.mxu0 %v6228
  %6415 = vmatpush1.msra.mxu0 %v6227
  %6416 = vmatprep.subr.mxu0 %v6232
  %6417 = vmatpush1.msra.mxu0 %v6231
  %6418 = vmatprep.subr.mxu0 %v6236
  %6419 = vmatpush1.msra.mxu0 %v6235
  %6420 = vmatprep.subr.mxu0 %v6240
  %6421 = vmatpush1.msra.mxu0 %v6239
  %6422 = vmatprep.subr.mxu0 %v6244
  %6423 = vmatpush1.msra.mxu0 %v6243
  %6424 = vmatprep.subr.mxu0 %v6248
  %6425 = vmatpush1.msra.mxu0 %v6247
  %6426 = vmatprep.subr.mxu0 %v6252
  %6427 = vmatpush1.msra.mxu0 %v6251
  %6428 = vmatprep.subr.mxu0 %v6256
  %6429 = vmatpush1.msra.mxu0 %v6255
  %6430 = vmatprep.subr.mxu0 %v6260
  %6431 = vmatpush1.msra.mxu0 %v6259
  %6432 = vmatprep.subr.mxu0 %v6264
  %6433 = vmatpush1.msra.mxu0 %v6263
  %6434 = vmatprep.subr.mxu0 %v6268
  %6435 = vmatpush1.msra.mxu0 %v6267
  %6436 = vmatprep.subr.mxu0 0.0
  %6437 = vmatpush1.msra.mxu0 0.0
  %6438 = vmatprep.subr.mxu0 0.0
  %6439 = vmatpush1.msra.mxu0 0.0
  %6440 = vmatprep.subr.mxu0 0.0
  %6441 = vmatpush1.msra.mxu0 0.0
  %6442 = vmatprep.subr.mxu0 0.0
  %6443 = vmatpush1.msra.mxu0 0.0
  %6444 = vmatprep.subr.mxu0 0.0
  %6445 = vmatpush1.msra.mxu0 0.0
  %6446 = vmatprep.subr.mxu0 0.0
  %6447 = vmatpush1.msra.mxu0 0.0
  %6448 = vmatprep.subr.mxu0 0.0
  %6449 = vmatpush1.msra.mxu0 0.0
  %6450 = vmatprep.subr.mxu0 0.0
  %6451 = vmatpush1.msra.mxu0 0.0
  %6452 = vmatprep.subr.mxu0 0.0
  %6453 = vmatpush1.msra.mxu0 0.0
  %6454 = vmatprep.subr.mxu0 0.0
  %6455 = vmatpush1.msra.mxu0 0.0
  %6456 = vmatprep.subr.mxu0 0.0
  %6457 = vmatpush1.msra.mxu0 0.0
  %6458 = vmatprep.subr.mxu0 0.0
  %6459 = vmatpush1.msra.mxu0 0.0
  %6460 = vmatprep.subr.mxu0 0.0
  %6461 = vmatpush1.msra.mxu0 0.0
  %6462 = vmatprep.subr.mxu0 0.0
  %6463 = vmatpush1.msra.mxu0 0.0
  %6464 = vmatprep.subr.mxu0 0.0
  %6465 = vmatpush1.msra.mxu0 0.0
  %6466 = vmatprep.subr.mxu0 0.0
  %6467 = vmatpush1.msra.mxu0 0.0
  %6468 = vmatprep.mubr.f32.mxu0 0.0
  %6469 = vmatmul.mubr.f32.gmra.mrb[0].mxu0 %v5966
  %v6470 = vpop.f32.mrb[0].mxu0
  %v6471 = vadd.f32 0.0, %v6470
  %v6472 = vpop.f32.mrb[0].mxu0
  %v6473 = vadd.f32 0.0, %v6472
  %6474 = vdwg.mxu0
  %6475 = vmatprep.subr.mxu0 %v6270
  %6476 = vmatpush1.msra.mxu0 %v6269
  %6477 = vmatprep.subr.mxu0 %v6274
  %6478 = vmatpush1.msra.mxu0 %v6273
  %6479 = vmatprep.subr.mxu0 %v6278
  %6480 = vmatpush1.msra.mxu0 %v6277
  %6481 = vmatprep.subr.mxu0 %v6282
  %6482 = vmatpush1.msra.mxu0 %v6281
  %6483 = vmatprep.subr.mxu0 %v6286
  %6484 = vmatpush1.msra.mxu0 %v6285
  %6485 = vmatprep.subr.mxu0 %v6290
  %6486 = vmatpush1.msra.mxu0 %v6289
  %6487 = vmatprep.subr.mxu0 %v6294
  %6488 = vmatpush1.msra.mxu0 %v6293
  %6489 = vmatprep.subr.mxu0 %v6298
  %6490 = vmatpush1.msra.mxu0 %v6297
  %6491 = vmatprep.subr.mxu0 %v6302
  %6492 = vmatpush1.msra.mxu0 %v6301
  %6493 = vmatprep.subr.mxu0 %v6306
  %6494 = vmatpush1.msra.mxu0 %v6305
  %6495 = vmatprep.subr.mxu0 %v6310
  %6496 = vmatpush1.msra.mxu0 %v6309
  %6497 = vmatprep.subr.mxu0 %v6314
  %6498 = vmatpush1.msra.mxu0 %v6313
  %6499 = vmatprep.subr.mxu0 %v6318
  %6500 = vmatpush1.msra.mxu0 %v6317
  %6501 = vmatprep.subr.mxu0 %v6322
  %6502 = vmatpush1.msra.mxu0 %v6321
  %6503 = vmatprep.subr.mxu0 %v6326
  %6504 = vmatpush1.msra.mxu0 %v6325
  %6505 = vmatprep.subr.mxu0 %v6330
  %6506 = vmatpush1.msra.mxu0 %v6329
  %6507 = vmatprep.subr.mxu0 0.0
  %6508 = vmatpush1.msra.mxu0 0.0
  %6509 = vmatprep.subr.mxu0 0.0
  %6510 = vmatpush1.msra.mxu0 0.0
  %6511 = vmatprep.subr.mxu0 0.0
  %6512 = vmatpush1.msra.mxu0 0.0
  %6513 = vmatprep.subr.mxu0 0.0
  %6514 = vmatpush1.msra.mxu0 0.0
  %6515 = vmatprep.subr.mxu0 0.0
  %6516 = vmatpush1.msra.mxu0 0.0
  %6517 = vmatprep.subr.mxu0 0.0
  %6518 = vmatpush1.msra.mxu0 0.0
  %6519 = vmatprep.subr.mxu0 0.0
  %6520 = vmatpush1.msra.mxu0 0.0
  %6521 = vmatprep.subr.mxu0 0.0
  %6522 = vmatpush1.msra.mxu0 0.0
  %6523 = vmatprep.subr.mxu0 0.0
  %6524 = vmatpush1.msra.mxu0 0.0
  %6525 = vmatprep.subr.mxu0 0.0
  %6526 = vmatpush1.msra.mxu0 0.0
  %6527 = vmatprep.subr.mxu0 0.0
  %6528 = vmatpush1.msra.mxu0 0.0
  %6529 = vmatprep.subr.mxu0 0.0
  %6530 = vmatpush1.msra.mxu0 0.0
  %6531 = vmatprep.subr.mxu0 0.0
  %6532 = vmatpush1.msra.mxu0 0.0
  %6533 = vmatprep.subr.mxu0 0.0
  %6534 = vmatpush1.msra.mxu0 0.0
  %6535 = vmatprep.subr.mxu0 0.0
  %6536 = vmatpush1.msra.mxu0 0.0
  %6537 = vmatprep.subr.mxu0 0.0
  %6538 = vmatpush1.msra.mxu0 0.0
  %6539 = vmatprep.mubr.f32.mxu0 0.0
  %6540 = vmatmul.mubr.f32.gmra.mrb[0].mxu0 %v6204
  %v6541 = vpop.f32.mrb[0].mxu0
  %v6542 = vadd.f32 %v6400, %v6541
  %v6543 = vpop.f32.mrb[0].mxu0
  %v6544 = vadd.f32 %v6402, %v6543
  %6545 = vdwg.mxu0
  %6546 = vmatprep.subr.mxu0 %v6272
  %6547 = vmatpush1.msra.mxu0 %v6271
  %6548 = vmatprep.subr.mxu0 %v6276
  %6549 = vmatpush1.msra.mxu0 %v6275
  %6550 = vmatprep.subr.mxu0 %v6280
  %6551 = vmatpush1.msra.mxu0 %v6279
  %6552 = vmatprep.subr.mxu0 %v6284
  %6553 = vmatpush1.msra.mxu0 %v6283
  %6554 = vmatprep.subr.mxu0 %v6288
  %6555 = vmatpush1.msra.mxu0 %v6287
  %6556 = vmatprep.subr.mxu0 %v6292
  %6557 = vmatpush1.msra.mxu0 %v6291
  %6558 = vmatprep.subr.mxu0 %v6296
  %6559 = vmatpush1.msra.mxu0 %v6295
  %6560 = vmatprep.subr.mxu0 %v6300
  %6561 = vmatpush1.msra.mxu0 %v6299
  %6562 = vmatprep.subr.mxu0 %v6304
  %6563 = vmatpush1.msra.mxu0 %v6303
  %6564 = vmatprep.subr.mxu0 %v6308
  %6565 = vmatpush1.msra.mxu0 %v6307
  %6566 = vmatprep.subr.mxu0 %v6312
  %6567 = vmatpush1.msra.mxu0 %v6311
  %6568 = vmatprep.subr.mxu0 %v6316
  %6569 = vmatpush1.msra.mxu0 %v6315
  %6570 = vmatprep.subr.mxu0 %v6320
  %6571 = vmatpush1.msra.mxu0 %v6319
  %6572 = vmatprep.subr.mxu0 %v6324
  %6573 = vmatpush1.msra.mxu0 %v6323
  %6574 = vmatprep.subr.mxu0 %v6328
  %6575 = vmatpush1.msra.mxu0 %v6327
  %6576 = vmatprep.subr.mxu0 %v6332
  %6577 = vmatpush1.msra.mxu0 %v6331
  %6578 = vmatprep.subr.mxu0 0.0
  %6579 = vmatpush1.msra.mxu0 0.0
  %6580 = vmatprep.subr.mxu0 0.0
  %6581 = vmatpush1.msra.mxu0 0.0
  %6582 = vmatprep.subr.mxu0 0.0
  %6583 = vmatpush1.msra.mxu0 0.0
  %6584 = vmatprep.subr.mxu0 0.0
  %6585 = vmatpush1.msra.mxu0 0.0
  %6586 = vmatprep.subr.mxu0 0.0
  %6587 = vmatpush1.msra.mxu0 0.0
  %6588 = vmatprep.subr.mxu0 0.0
  %6589 = vmatpush1.msra.mxu0 0.0
  %6590 = vmatprep.subr.mxu0 0.0
  %6591 = vmatpush1.msra.mxu0 0.0
  %6592 = vmatprep.subr.mxu0 0.0
  %6593 = vmatpush1.msra.mxu0 0.0
  %6594 = vmatprep.subr.mxu0 0.0
  %6595 = vmatpush1.msra.mxu0 0.0
  %6596 = vmatprep.subr.mxu0 0.0
  %6597 = vmatpush1.msra.mxu0 0.0
  %6598 = vmatprep.subr.mxu0 0.0
  %6599 = vmatpush1.msra.mxu0 0.0
  %6600 = vmatprep.subr.mxu0 0.0
  %6601 = vmatpush1.msra.mxu0 0.0
  %6602 = vmatprep.subr.mxu0 0.0
  %6603 = vmatpush1.msra.mxu0 0.0
  %6604 = vmatprep.subr.mxu0 0.0
  %6605 = vmatpush1.msra.mxu0 0.0
  %6606 = vmatprep.subr.mxu0 0.0
  %6607 = vmatpush1.msra.mxu0 0.0
  %6608 = vmatprep.subr.mxu0 0.0
  %6609 = vmatpush1.msra.mxu0 0.0
  %6610 = vmatprep.mubr.f32.mxu0 0.0
  %6611 = vmatmul.mubr.f32.gmra.mrb[0].mxu0 %v6204
  %v6612 = vpop.f32.mrb[0].mxu0
  %v6613 = vadd.f32 %v6471, %v6612
  %v6614 = vpop.f32.mrb[0].mxu0
  %v6615 = vadd.f32 %v6473, %v6614
  %6616 = vdwg.mxu0
  %v6617 = vld [vmem:[%s6] sm:$0xf]
  %v6619 = vlaneseq
  %v6620 = vshrl.u32 %v6619, 7
  %v6621 = vsub.s32 0, %v6620
  %v6622 = vrot.slane %v6617, %v6621
  %v6623 = vlaneseq
  %v6624 = vshrl.u32 %v6623, 7
  %v6625 = vsub.s32 1, %v6624
  %v6626 = vrot.slane %v6617, %v6625
  %v6627 = vlaneseq
  %v6628 = vshrl.u32 %v6627, 7
  %v6629 = vsub.s32 2, %v6628
  %v6630 = vrot.slane %v6617, %v6629
  %v6631 = vlaneseq
  %v6632 = vshrl.u32 %v6631, 7
  %v6633 = vsub.s32 3, %v6632
  %v6634 = vrot.slane %v6617, %v6633
  %v6639 = vadd.f32 %v6542, %v6622
  %v6640 = vadd.f32 %v6544, %v6626
  %v6641 = vadd.f32 %v6613, %v6630
  %v6642 = vadd.f32 %v6615, %v6634
  %v6643 = vxor.u32 %v6639, 2147483648
  %v6644 = vmul.f32 %v6643, 1.442695
  %v6645 = vpow.pop %v6644
  %v6646 = vadd.f32 %v6645, 1.0
  %v6647 = vrcp.pop %v6646
  %v6648 = vmul.f32 1.0, %v6647
  %v6649 = vxor.u32 %v6640, 2147483648
  %v6650 = vmul.f32 %v6649, 1.442695
  %v6651 = vpow.pop %v6650
  %v6652 = vadd.f32 %v6651, 1.0
  %v6653 = vrcp.pop %v6652
  %v6654 = vmul.f32 1.0, %v6653
  %v6655 = vtanh.pop %v6641
  %v6656 = vxor.u32 %v6642, 2147483648
  %v6657 = vmul.f32 %v6656, 1.442695
  %v6658 = vpow.pop %v6657
  %v6659 = vadd.f32 %v6658, 1.0
  %v6660 = vrcp.pop %v6659
  %v6661 = vmul.f32 1.0, %v6660
  %v6662 = vmul.f32 %v6654, %v5964
  %v6663 = vmul.f32 %v6648, %v6655
  %v6664 = vadd.f32 %v6662, %v6663
  %v6665 = vtanh.pop %v6664
  %v6666 = vmul.f32 %v6661, %v6665
  %6667 = vst [vmem:[%s7 + $0x10] sm:$0x3] %v6666
  // Predicated region
  $region30: #{cnn_to_rnn_forward.4} parent=0 // pred_check
    _
  $region31: #{cnn_to_rnn_forward.4} parent=0 // pred_check_branch
    %6669 = sbr.rel (0) target = $region33
  $region32: #{cnn_to_rnn_forward.4} parent=0 // pred_region
    _
  $region33: #{cnn_to_rnn_forward.4} parent=0 // pred_fallthru
    _
  // Predicated region
  $region34: #{cnn_to_rnn_forward.4} parent=0 // pred_check
    _
  $region35: #{cnn_to_rnn_forward.4} parent=0 // pred_check_branch
    %6671 = sbr.rel (0) target = $region37
  $region36: #{cnn_to_rnn_forward.4} parent=0 // pred_region
    _
  $region37: #{cnn_to_rnn_forward.4} parent=0 // pred_fallthru
    _

</llo_original>
